<compile_context>
chip_gen: v7x
topology: tpu7x:2x2x1
jax: 0.10.0
libtpu: 0.0.40
codegen_flags: <defaults>
</compile_context>

<pallas_src>
import functools

import jax
import jax.numpy as jnp
import numpy as np
from jax.experimental import pallas as pl
from jax.experimental.pallas import tpu as pltpu

EPS = 1e-5           # nn.BatchNorm2d default
_PAD = 8             # sublane-aligned left pad inside the conv scratch buffers (>= 2)
_ROW_TILE = 512      # max rows (N*H) per grid step (keeps (8, rt) chunks register-resident)
_WCHUNK = 8          # W chunk = one sublane tile
_VMEM_BUDGET = 40 * 1024 * 1024   # row-tile planning budget (safe under v7x's 64 MiB)


# ----------------------------- Pallas kernels ------------------------------ #
def _k1_kernel(x_ref, skip_ref, upw_ref, upb_ref, c1w_ref,
               z1_ref, st1_ref, pad_ref, *,
               cin, chalf, cskip, k, wi, ws, w1o,
               up_off, skip_off, w_off, rows, masked):
    """Fused upconv (ConvTranspose2d) + concat + Conv2d#1 + BN1 partial stats."""
    rt = x_ref.shape[-1]
    ccat = chalf + cskip
    cout = z1_ref.shape[0]
    wup = k * wi

    def zcol(c, w):
        return jnp.zeros((c, w, rt), jnp.float32)

    # Zero only the columns the conv reads as padding (2-left / 2-right halo) plus the
    # spatial-pad gap of concat_features on the upconv channels; every other column is
    # fully overwritten below (scratch persists across grid steps, so this must run
    # every step -- do NOT gate it on program_id==0).
    pad_ref[:, _PAD - 2:_PAD, :] = zcol(ccat, 2)
    pad_ref[:, _PAD + ws:_PAD + ws + 2, :] = zcol(ccat, 2)
    if w_off > 0:
        pad_ref[up_off:up_off + chalf, _PAD:_PAD + w_off, :] = zcol(chalf, w_off)
    rgap = ws - (w_off + wup)
    if rgap > 0:
        pad_ref[up_off:up_off + chalf, _PAD + w_off + wup:_PAD + ws, :] = zcol(chalf, rgap)

    # Skip-connection channels -> concat scratch (bulk packed store).
    pad_ref[skip_off:skip_off + cskip, _PAD:_PAD + ws, :] = skip_ref[...]

    # ConvTranspose2d with kernel == stride == k: taps never overlap, so input column w
    # scatters to output columns k*w + kk.  Vectorized over 8-column W chunks so the
    # cin-term sums run at full vreg width; the interleaved scatter uses static offsets.
    for w0 in range(0, wi, _WCHUNK):
        wc = min(_WCHUNK, wi - w0)
        xch = [x_ref[ci, w0:w0 + wc, :] for ci in range(cin)]   # reused chalf*k times
        for co in range(chalf):
            for kk in range(k):
                acc = jnp.full((wc, rt), upb_ref[co], jnp.float32)
                for ci in range(cin):
                    acc = acc + upw_ref[(ci * chalf + co) * k + kk] * xch[ci]
                base = _PAD + w_off + k * w0 + kk
                for j in range(wc):
                    pad_ref[up_off + co, base + k * j, :] = acc[j]

    # Conv2d #1 (1xk, pad 2): chunked over output W so all cout accumulators stay
    # register resident; each tap is loaded once per (ci, kk) and shared across co.
    for v0 in range(0, w1o, _WCHUNK):
        vc = min(_WCHUNK, w1o - v0)
        accs = [jnp.zeros((vc, rt), jnp.float32) for _ in range(cout)]
        for ci in range(ccat):
            for kk in range(k):
                tap = pad_ref[ci, _PAD - 2 + kk + v0:_PAD - 2 + kk + v0 + vc, :]
                for co in range(cout):
                    accs[co] = accs[co] + c1w_ref[(co * ccat + ci) * k + kk] * tap
        for co in range(cout):
            z1_ref[co, v0:v0 + vc, :] = accs[co]

    # Per-tile BN1 partial sums (one bulk lane-dense store); padded rows masked out.
    if masked:
        lane = jax.lax.broadcasted_iota(jnp.int32, (1, rt), 1)
        valid = (lane + pl.program_id(0) * rt < rows).astype(jnp.float32)
    sums, sqs = [], []
    for co in range(cout):
        zc = z1_ref[co] * valid if masked else z1_ref[co]
        sums.append(jnp.sum(zc, axis=0, keepdims=True))
        sqs.append(jnp.sum(zc * zc, axis=0, keepdims=True))
    st1_ref[...] = jnp.concatenate(sums + sqs, axis=0)


def _k2_kernel(z1_ref, sc1_ref, sh1_ref, c2w_ref,
               z2_ref, st2_ref, pad_ref, *, k, w1o, w2o, rows, masked):
    """Fused BN1 normalize + ReLU + Conv2d#2 + BN2 partial stats."""
    rt = z1_ref.shape[-1]
    cmid = z1_ref.shape[0]
    cout = z2_ref.shape[0]

    def zcol(c, w):
        return jnp.zeros((c, w, rt), jnp.float32)

    pad_ref[:, _PAD - 2:_PAD, :] = zcol(cmid, 2)
    pad_ref[:, _PAD + w1o:_PAD + w1o + 2, :] = zcol(cmid, 2)

    # BN1 normalize + ReLU into the conv scratch.
    for c in range(cmid):
        pad_ref[c, _PAD:_PAD + w1o, :] = jnp.maximum(
            z1_ref[c] * sc1_ref[c] + sh1_ref[c], 0.0)

    for v0 in range(0, w2o, _WCHUNK):
        vc = min(_WCHUNK, w2o - v0)
        accs = [jnp.zeros((vc, rt), jnp.float32) for _ in range(cout)]
        for ci in range(cmid):
            for kk in range(k):
                tap = pad_ref[ci, _PAD - 2 + kk + v0:_PAD - 2 + kk + v0 + vc, :]
                for co in range(cout):
                    accs[co] = accs[co] + c2w_ref[(co * cmid + ci) * k + kk] * tap
        for co in range(cout):
            z2_ref[co, v0:v0 + vc, :] = accs[co]

    if masked:
        lane = jax.lax.broadcasted_iota(jnp.int32, (1, rt), 1)
        valid = (lane + pl.program_id(0) * rt < rows).astype(jnp.float32)
    sums, sqs = [], []
    for co in range(cout):
        zc = z2_ref[co] * valid if masked else z2_ref[co]
        sums.append(jnp.sum(zc, axis=0, keepdims=True))
        sqs.append(jnp.sum(zc * zc, axis=0, keepdims=True))
    st2_ref[...] = jnp.concatenate(sums + sqs, axis=0)


# ------------------------------ stage wrappers ------------------------------ #
def _smem_spec():
    return pl.BlockSpec(memory_space=pltpu.MemorySpace.SMEM)


def _vmem_limit(block_bytes, scratch_bytes):
    """Scoped-VMEM limit from the real working set (2x margin, capped under v7x's 64 MiB)."""
    need = scratch_bytes + 2 * block_bytes          # double-buffered in/out blocks
    return int(min(56 << 20, max(32 << 20, 2 * need)))


def _round_up(a, b):
    return -(-a // b) * b


def _row_plan(rows, per_row_bytes):
    """Pick a 128-multiple row tile and padded row count (VMEM- and megacore-aware)."""
    cap = (_VMEM_BUDGET // max(per_row_bytes, 1)) // 128 * 128
    cap = max(128, min(_ROW_TILE, cap))
    rp = _round_up(rows, 128)
    if rp <= cap:
        if rp >= 256:                 # >= 2 grid steps so both v7x TensorCores get work
            rt = _round_up(-(-rows // 2), 128)
            return rt, 2 * rt
        return rp, rp
    return cap, _round_up(rows, cap)


def _stage1(x_c, skip_c, upw, upb, c1w, *, chalf, cout, k,
            up_off, skip_off, w_off, rows, rt):
    cin, wi, rows_p = x_c.shape
    cskip, ws, _ = skip_c.shape
    ccat = chalf + cskip
    w1o = ws + 4 - (k - 1)
    grid = (rows_p // rt,)
    kern = functools.partial(
        _k1_kernel, cin=cin, chalf=chalf, cskip=cskip, k=k, wi=wi, ws=ws, w1o=w1o,
        up_off=up_off, skip_off=skip_off, w_off=w_off, rows=rows,
        masked=(rows_p != rows))
    blk_bytes = 4 * rt * (cin * wi + cskip * ws + cout * w1o + 2 * cout)
    scr_bytes = 4 * rt * ccat * (ws + _PAD + 2)
    return pl.pallas_call(
        kern,
        grid=grid,
        in_specs=[
            pl.BlockSpec((cin, wi, rt), lambda i: (0, 0, i)),
            pl.BlockSpec((cskip, ws, rt), lambda i: (0, 0, i)),
            _smem_spec(),   # upconv weights (flattened)
            _smem_spec(),   # upconv bias
            _smem_spec(),   # conv1 weights (flattened)
        ],
        out_specs=[
            pl.BlockSpec((cout, w1o, rt), lambda i: (0, 0, i)),
            pl.BlockSpec((2 * cout, rt), lambda i: (0, i)),
        ],
        out_shape=[
            jax.ShapeDtypeStruct((cout, w1o, rows_p), jnp.float32),
            jax.ShapeDtypeStruct((2 * cout, rows_p), jnp.float32),
        ],
        scratch_shapes=[pltpu.VMEM((ccat, ws + _PAD + 2, rt), jnp.float32)],
        compiler_params=pltpu.CompilerParams(
            dimension_semantics=("parallel",),
            vmem_limit_bytes=_vmem_limit(blk_bytes, scr_bytes)),
    )(x_c, skip_c, upw, upb, c1w)


def _stage2(z1, sc1, sh1, c2w, *, k, rows, rt):
    cmid, w1o, rows_p = z1.shape
    cout = sc1.shape[0]
    w2o = w1o + 4 - (k - 1)
    grid = (rows_p // rt,)
    kern = functools.partial(_k2_kernel, k=k, w1o=w1o, w2o=w2o, rows=rows,
                             masked=(rows_p != rows))
    blk_bytes = 4 * rt * (cmid * w1o + cout * w2o + 2 * cout)
    scr_bytes = 4 * rt * cmid * (w1o + _PAD + 2)
    return pl.pallas_call(
        kern,
        grid=grid,
        in_specs=[
            pl.BlockSpec((cmid, w1o, rt), lambda i: (0, 0, i)),
            _smem_spec(),   # BN1 scale
            _smem_spec(),   # BN1 shift
            _smem_spec(),   # conv2 weights (flattened)
        ],
        out_specs=[
            pl.BlockSpec((cout, w2o, rt), lambda i: (0, 0, i)),
            pl.BlockSpec((2 * cout, rt), lambda i: (0, i)),
        ],
        out_shape=[
            jax.ShapeDtypeStruct((cout, w2o, rows_p), jnp.float32),
            jax.ShapeDtypeStruct((2 * cout, rows_p), jnp.float32),
        ],
        scratch_shapes=[pltpu.VMEM((cmid, w1o + _PAD + 2, rt), jnp.float32)],
        compiler_params=pltpu.CompilerParams(
            dimension_semantics=("parallel",),
            vmem_limit_bytes=_vmem_limit(blk_bytes, scr_bytes)),
    )(z1, sc1, sh1, c2w)


def _bn_scale_shift(stats, gamma, beta, count):
    """Finalize training-mode BatchNorm from per-tile partial sums (biased variance)."""
    # TODO(synk): Welford-style (count, mean, M2) combine for very large N*H*W; the f32
    # E[x^2] - E[x]^2 form can cancel when mean^2 >> var.
    cout = gamma.shape[0]
    s = jnp.sum(stats[:cout], axis=1)
    ss = jnp.sum(stats[cout:], axis=1)
    mean = s / count
    var = jnp.maximum(ss / count - mean * mean, 0.0)
    scale = gamma * jax.lax.rsqrt(var + EPS)
    shift = beta - mean * scale
    return scale, shift


# ------------------------------ public forward ------------------------------ #
@jax.jit
def decoder_block_forward(params, x_nchw, skip_nchw):
    x_nchw = x_nchw.astype(jnp.float32)
    skip_nchw = skip_nchw.astype(jnp.float32)
    n, cin, h, wi = x_nchw.shape
    ns, cskip, hs, ws = skip_nchw.shape
    upw4 = params["up_w"]                      # (cin, cin//2, 1, k)
    chalf, k = upw4.shape[1], upw4.shape[3]
    wup = k * wi                               # upconv output width
    cout = params["c1_w"].shape[0]

    # concat_features: equal shapes -> cat(up, skip); else pad up to skip's W, cat(skip, up).
    if (n, chalf, h, wup) == (ns, cskip, hs, ws):
        up_off, skip_off, w_off = 0, chalf, 0
    elif n == ns and h == hs and ws >= wup:
        up_off, skip_off, w_off = cskip, 0, (ws - wup) // 2
    else:
        # TODO(synk): H re-padding of the upsampled features (mismatched N/H) is not fused.
        raise NotImplementedError("concat_features with mismatched N/H is not supported")

    rows = n * h
    ccat = chalf + cskip
    w1o = ws + 4 - (k - 1)
    w2o = w1o + 4 - (k - 1)

    # Shared row-tile plan (bytes per lane-row of the bigger stage).
    s1_words = (2 * (cin * wi + cskip * ws) + 2 * (cout * w1o + 2 * cout)
                + ccat * (ws + _PAD + 2))
    s2_words = (2 * cout * w1o + 2 * (cout * w2o + 2 * cout)
                + cout * (w1o + _PAD + 2))
    rt, rows_p = _row_plan(rows, 4 * max(s1_words, s2_words))

    # channel-major (C, W, N*H): flattened batch*height on lanes, W on sublanes.
    # TODO(synk): at production sizes with W >= 128, keep W on lanes and drop these transposes.
    x_c = jnp.transpose(x_nchw, (1, 3, 0, 2)).reshape(cin, wi, rows)
    skip_c = jnp.transpose(skip_nchw, (1, 3, 0, 2)).reshape(cskip, ws, rows)
    if rows_p != rows:
        x_c = jnp.pad(x_c, ((0, 0), (0, 0), (0, rows_p - rows)))
        skip_c = jnp.pad(skip_c, ((0, 0), (0, 0), (0, rows_p - rows)))

    upw = params["up_w"][:, :, 0, :].reshape(-1)      # (cin*chalf*k,)
    c1w = params["c1_w"][:, :, 0, :].reshape(-1)      # (cout*ccat*k,)
    c2w = params["c2_w"][:, :, 0, :].reshape(-1)      # (cout*cout*k,)

    z1, st1 = _stage1(x_c, skip_c, upw, params["up_b"], c1w,
                      chalf=chalf, cout=cout, k=k,
                      up_off=up_off, skip_off=skip_off, w_off=w_off,
                      rows=rows, rt=rt)
    sc1, sh1 = _bn_scale_shift(st1, params["bn1_g"], params["bn1_b"], rows * w1o)
    z2, st2 = _stage2(z1, sc1, sh1, c2w, k=k, rows=rows, rt=rt)
    sc2, sh2 = _bn_scale_shift(st2, params["bn2_g"], params["bn2_b"], rows * w2o)

    # BN2 normalize + ReLU left to XLA so it fuses with the slice/transpose epilogue.
    out = jnp.maximum(z2 * sc2[:, None, None] + sh2[:, None, None], 0.0)
    out = out[:, :, :rows].reshape(cout, w2o, n, h)
    return jnp.transpose(out, (2, 0, 3, 1))           # NCHW


# ------------------------- deterministic parameters ------------------------- #
def init_params(key, in_channels, out_channels, k=3):
    ch = in_channels // 2
    ks = jax.random.split(key, 8)
    return {
        # ConvTranspose2d: weight (Cin, Cin//2, 1, K), bias (Cin//2,)
        "up_w": 0.1 * jax.random.normal(ks[0], (in_channels, ch, 1, k), jnp.float32),
        "up_b": 0.1 * jax.random.normal(ks[1], (ch,), jnp.float32),
        # conv_block conv1: (Cout, Cin, 1, K), no bias; BN affine params
        "c1_w": 0.1 * jax.random.normal(ks[2], (out_channels, in_channels, 1, k), jnp.float32),
        "bn1_g": 1.0 + 0.1 * jax.random.normal(ks[3], (out_channels,), jnp.float32),
        "bn1_b": 0.1 * jax.random.normal(ks[4], (out_channels,), jnp.float32),
        # conv_block conv2: (Cout, Cout, 1, K), no bias; BN affine params
        "c2_w": 0.1 * jax.random.normal(ks[5], (out_channels, out_channels, 1, k), jnp.float32),
        "bn2_g": 1.0 + 0.1 * jax.random.normal(ks[6], (out_channels,), jnp.float32),
        "bn2_b": 0.1 * jax.random.normal(ks[7], (out_channels,), jnp.float32),
    }


# ------------------------------ pure-JAX reference --------------------------- #
def concat_features(f1, f2):
    """Same semantics as DecoderBlock.concat_features, but NHWC (channel = axis 3)."""
    if f1.shape == f2.shape:
        return jnp.concatenate([f1, f2], axis=3)
    diffY = f2.shape[1] - f1.shape[1]
    diffX = f2.shape[2] - f1.shape[2]
    f1p = jnp.pad(
        f1,
        ((0, 0),
         (diffY // 2, diffY - diffY // 2),
         (diffX // 2, diffX - diffX // 2),
         (0, 0)),
    )
    return jnp.concatenate([f2, f1p], axis=3)


def ref_forward(params, x_nchw, skip_nchw):
    x = jnp.transpose(x_nchw, (0, 2, 3, 1)).astype(jnp.float32)
    skip = jnp.transpose(skip_nchw, (0, 2, 3, 1)).astype(jnp.float32)
    N, H, Wi, _ = x.shape
    w = params["up_w"]
    K, Chalf = w.shape[3], w.shape[1]
    y = jnp.einsum("nhwc,cok->nhwko", x, w[:, :, 0, :])
    y = y.reshape(N, H, Wi * K, Chalf) + params["up_b"]
    y = concat_features(y, skip)

    def cbr(t, wc, g, b):
        wk = jnp.transpose(wc, (2, 3, 1, 0))  # HWIO
        z = jax.lax.conv_general_dilated(
            t, wk, window_strides=(1, 1), padding=((0, 0), (2, 2)),
            dimension_numbers=("NHWC", "HWIO", "NHWC"))
        m = jnp.mean(z, axis=(0, 1, 2), keepdims=True)
        v = jnp.mean((z - m) ** 2, axis=(0, 1, 2), keepdims=True)
        z = (z - m) * jax.lax.rsqrt(v + EPS) * g + b
        return jnp.maximum(z, 0.0)

    y = cbr(y, params["c1_w"], params["bn1_g"], params["bn1_b"])
    y = cbr(y, params["c2_w"], params["bn2_g"], params["bn2_b"])
    return jnp.transpose(y, (0, 3, 1, 2))


# ------------------------------------ main ----------------------------------- #
if __name__ == "__main__":
    key = jax.random.PRNGKey(0)
    kp, kx, ks1, ks2 = jax.random.split(key, 4)

    in_channels, out_channels = 8, 4
    n, h, wx = 2, 4, 5                        # x: (2, 8, 4, 5) -> upconv width 15
    params = init_params(kp, in_channels, out_channels)
    x = jax.random.normal(kx, (n, in_channels, h, wx), jnp.float32)

    # Case 1: skip matches the upconv output shape exactly -> cat(up, skip).
    skip_eq = jax.random.normal(ks1, (n, in_channels // 2, h, 3 * wx), jnp.float32)
    out = jax.block_until_ready(decoder_block_forward(params, x, skip_eq))
    assert out.shape == (n, out_channels, h, 3 * wx + 4), out.shape
    np.testing.assert_allclose(np.asarray(out),
                               np.asarray(ref_forward(params, x, skip_eq)),
                               rtol=1e-4, atol=1e-4)

    # Case 2: wider skip -> spatial zero-pad of the upsampled features + cat(skip, up).
    skip_wide = jax.random.normal(ks2, (n, in_channels // 2, h, 3 * wx + 4), jnp.float32)
    out2 = jax.block_until_ready(decoder_block_forward(params, x, skip_wide))
    assert out2.shape == (n, out_channels, h, 3 * wx + 8), out2.shape
    np.testing.assert_allclose(np.asarray(out2),
                               np.asarray(ref_forward(params, x, skip_wide)),
                               rtol=1e-4, atol=1e-4)

    print("KERNEL_OK")
</pallas_src>

<mosaic_0001>
module attributes {stable_mosaic.version = 11 : i64} {
  func.func @_k2_kernel(%arg0: i32, %arg1: memref<4x17x128xf32, #tpu.memory_space<vmem>>, %arg2: memref<4xf32, #tpu.memory_space<smem>>, %arg3: memref<4xf32, #tpu.memory_space<smem>>, %arg4: memref<48xf32, #tpu.memory_space<smem>>, %arg5: memref<4x19x128xf32, #tpu.memory_space<vmem>>, %arg6: memref<8x128xf32, #tpu.memory_space<vmem>>, %arg7: memref<4x27x128xf32, #tpu.memory_space<vmem>>) attributes {dimension_semantics = [#tpu.dimension_semantics<parallel>], iteration_bounds = array<i64: 1>, scalar_prefetch = 0 : i64, scratch_operands = 1 : i64, tpu.core_type = #tpu.core_type<tc>, window_params = [{transform_indices = @transform_0, window_bounds = array<i64: 4, 17, 128>}, {transform_indices = @transform_1, window_bounds = array<i64: 4>}, {transform_indices = @transform_2, window_bounds = array<i64: 4>}, {transform_indices = @transform_3, window_bounds = array<i64: 48>}, {transform_indices = @transform_4, window_bounds = array<i64: 4, 19, 128>}, {transform_indices = @transform_5, window_bounds = array<i64: 8, 128>}]} {
    %cst = arith.constant 0.000000e+00 : f32
    %0 = vector.broadcast %cst : f32 to vector<4x2x128xf32>
    %c0 = arith.constant 0 : index
    %c6 = arith.constant 6 : index
    %c0_0 = arith.constant 0 : index
    %1 = vector.load %arg7[%c0, %c6, %c0_0] : memref<4x27x128xf32, #tpu.memory_space<vmem>>, vector<4x2x128xf32>
    tpu.vector_store %arg7[%c0, %c6, %c0_0], %0 {strides = array<i32>} : memref<4x27x128xf32, #tpu.memory_space<vmem>>, vector<4x2x128xf32>,
    %cst_1 = arith.constant 0.000000e+00 : f32
    %2 = vector.broadcast %cst_1 : f32 to vector<4x2x128xf32>
    %c0_2 = arith.constant 0 : index
    %c25 = arith.constant 25 : index
    %c0_3 = arith.constant 0 : index
    %3 = vector.load %arg7[%c0_2, %c25, %c0_3] : memref<4x27x128xf32, #tpu.memory_space<vmem>>, vector<4x2x128xf32>
    tpu.vector_store %arg7[%c0_2, %c25, %c0_3], %2 {strides = array<i32>} : memref<4x27x128xf32, #tpu.memory_space<vmem>>, vector<4x2x128xf32>,
    %c0_4 = arith.constant 0 : index
    %c0_5 = arith.constant 0 : index
    %c0_6 = arith.constant 0 : index
    %4 = vector.load %arg1[%c0_4, %c0_5, %c0_6] : memref<4x17x128xf32, #tpu.memory_space<vmem>>, vector<1x17x128xf32>
    %5 = vector.shape_cast %4 : vector<1x17x128xf32> to vector<17x128xf32>
    %c0_7 = arith.constant 0 : index
    %6 = memref.load %arg2[%c0_7] : memref<4xf32, #tpu.memory_space<smem>>
    %7 = vector.broadcast %6 : f32 to vector<17x128xf32>
    %8 = arith.mulf %5, %7 : vector<17x128xf32>
    %c0_8 = arith.constant 0 : index
    %9 = memref.load %arg3[%c0_8] : memref<4xf32, #tpu.memory_space<smem>>
    %10 = vector.broadcast %9 : f32 to vector<17x128xf32>
    %11 = arith.addf %8, %10 : vector<17x128xf32>
    %cst_9 = arith.constant 0.000000e+00 : f32
    %12 = vector.broadcast %cst_9 : f32 to vector<17x128xf32>
    %13 = arith.maximumf %11, %12 : vector<17x128xf32>
    %c0_10 = arith.constant 0 : index
    %c8 = arith.constant 8 : index
    %c0_11 = arith.constant 0 : index
    %14 = vector.load %arg7[%c0_10, %c8, %c0_11] : memref<4x27x128xf32, #tpu.memory_space<vmem>>, vector<1x17x128xf32>
    %15 = vector.shape_cast %14 : vector<1x17x128xf32> to vector<17x128xf32>
    %16 = vector.shape_cast %13 : vector<17x128xf32> to vector<1x17x128xf32>
    tpu.vector_store %arg7[%c0_10, %c8, %c0_11], %16 {strides = array<i32>} : memref<4x27x128xf32, #tpu.memory_space<vmem>>, vector<1x17x128xf32>,
    %c1 = arith.constant 1 : index
    %c0_12 = arith.constant 0 : index
    %c0_13 = arith.constant 0 : index
    %17 = vector.load %arg1[%c1, %c0_12, %c0_13] : memref<4x17x128xf32, #tpu.memory_space<vmem>>, vector<1x17x128xf32>
    %18 = vector.shape_cast %17 : vector<1x17x128xf32> to vector<17x128xf32>
    %c1_14 = arith.constant 1 : index
    %19 = memref.load %arg2[%c1_14] : memref<4xf32, #tpu.memory_space<smem>>
    %20 = vector.broadcast %19 : f32 to vector<17x128xf32>
    %21 = arith.mulf %18, %20 : vector<17x128xf32>
    %c1_15 = arith.constant 1 : index
    %22 = memref.load %arg3[%c1_15] : memref<4xf32, #tpu.memory_space<smem>>
    %23 = vector.broadcast %22 : f32 to vector<17x128xf32>
    %24 = arith.addf %21, %23 : vector<17x128xf32>
    %cst_16 = arith.constant 0.000000e+00 : f32
    %25 = vector.broadcast %cst_16 : f32 to vector<17x128xf32>
    %26 = arith.maximumf %24, %25 : vector<17x128xf32>
    %c1_17 = arith.constant 1 : index
    %c8_18 = arith.constant 8 : index
    %c0_19 = arith.constant 0 : index
    %27 = vector.load %arg7[%c1_17, %c8_18, %c0_19] : memref<4x27x128xf32, #tpu.memory_space<vmem>>, vector<1x17x128xf32>
    %28 = vector.shape_cast %27 : vector<1x17x128xf32> to vector<17x128xf32>
    %29 = vector.shape_cast %26 : vector<17x128xf32> to vector<1x17x128xf32>
    tpu.vector_store %arg7[%c1_17, %c8_18, %c0_19], %29 {strides = array<i32>} : memref<4x27x128xf32, #tpu.memory_space<vmem>>, vector<1x17x128xf32>,
    %c2 = arith.constant 2 : index
    %c0_20 = arith.constant 0 : index
    %c0_21 = arith.constant 0 : index
    %30 = vector.load %arg1[%c2, %c0_20, %c0_21] : memref<4x17x128xf32, #tpu.memory_space<vmem>>, vector<1x17x128xf32>
    %31 = vector.shape_cast %30 : vector<1x17x128xf32> to vector<17x128xf32>
    %c2_22 = arith.constant 2 : index
    %32 = memref.load %arg2[%c2_22] : memref<4xf32, #tpu.memory_space<smem>>
    %33 = vector.broadcast %32 : f32 to vector<17x128xf32>
    %34 = arith.mulf %31, %33 : vector<17x128xf32>
    %c2_23 = arith.constant 2 : index
    %35 = memref.load %arg3[%c2_23] : memref<4xf32, #tpu.memory_space<smem>>
    %36 = vector.broadcast %35 : f32 to vector<17x128xf32>
    %37 = arith.addf %34, %36 : vector<17x128xf32>
    %cst_24 = arith.constant 0.000000e+00 : f32
    %38 = vector.broadcast %cst_24 : f32 to vector<17x128xf32>
    %39 = arith.maximumf %37, %38 : vector<17x128xf32>
    %c2_25 = arith.constant 2 : index
    %c8_26 = arith.constant 8 : index
    %c0_27 = arith.constant 0 : index
    %40 = vector.load %arg7[%c2_25, %c8_26, %c0_27] : memref<4x27x128xf32, #tpu.memory_space<vmem>>, vector<1x17x128xf32>
    %41 = vector.shape_cast %40 : vector<1x17x128xf32> to vector<17x128xf32>
    %42 = vector.shape_cast %39 : vector<17x128xf32> to vector<1x17x128xf32>
    tpu.vector_store %arg7[%c2_25, %c8_26, %c0_27], %42 {strides = array<i32>} : memref<4x27x128xf32, #tpu.memory_space<vmem>>, vector<1x17x128xf32>,
    %c3 = arith.constant 3 : index
    %c0_28 = arith.constant 0 : index
    %c0_29 = arith.constant 0 : index
    %43 = vector.load %arg1[%c3, %c0_28, %c0_29] : memref<4x17x128xf32, #tpu.memory_space<vmem>>, vector<1x17x128xf32>
    %44 = vector.shape_cast %43 : vector<1x17x128xf32> to vector<17x128xf32>
    %c3_30 = arith.constant 3 : index
    %45 = memref.load %arg2[%c3_30] : memref<4xf32, #tpu.memory_space<smem>>
    %46 = vector.broadcast %45 : f32 to vector<17x128xf32>
    %47 = arith.mulf %44, %46 : vector<17x128xf32>
    %c3_31 = arith.constant 3 : index
    %48 = memref.load %arg3[%c3_31] : memref<4xf32, #tpu.memory_space<smem>>
    %49 = vector.broadcast %48 : f32 to vector<17x128xf32>
    %50 = arith.addf %47, %49 : vector<17x128xf32>
    %cst_32 = arith.constant 0.000000e+00 : f32
    %51 = vector.broadcast %cst_32 : f32 to vector<17x128xf32>
    %52 = arith.maximumf %50, %51 : vector<17x128xf32>
    %c3_33 = arith.constant 3 : index
    %c8_34 = arith.constant 8 : index
    %c0_35 = arith.constant 0 : index
    %53 = vector.load %arg7[%c3_33, %c8_34, %c0_35] : memref<4x27x128xf32, #tpu.memory_space<vmem>>, vector<1x17x128xf32>
    %54 = vector.shape_cast %53 : vector<1x17x128xf32> to vector<17x128xf32>
    %55 = vector.shape_cast %52 : vector<17x128xf32> to vector<1x17x128xf32>
    tpu.vector_store %arg7[%c3_33, %c8_34, %c0_35], %55 {strides = array<i32>} : memref<4x27x128xf32, #tpu.memory_space<vmem>>, vector<1x17x128xf32>,
    %cst_36 = arith.constant 0.000000e+00 : f32
    %56 = vector.broadcast %cst_36 : f32 to vector<8x128xf32>
    %cst_37 = arith.constant 0.000000e+00 : f32
    %57 = vector.broadcast %cst_37 : f32 to vector<8x128xf32>
    %cst_38 = arith.constant 0.000000e+00 : f32
    %58 = vector.broadcast %cst_38 : f32 to vector<8x128xf32>
    %cst_39 = arith.constant 0.000000e+00 : f32
    %59 = vector.broadcast %cst_39 : f32 to vector<8x128xf32>
    %c0_40 = arith.constant 0 : index
    %c6_41 = arith.constant 6 : index
    %c0_42 = arith.constant 0 : index
    %60 = vector.load %arg7[%c0_40, %c6_41, %c0_42] : memref<4x27x128xf32, #tpu.memory_space<vmem>>, vector<1x8x128xf32>
    %61 = vector.shape_cast %60 : vector<1x8x128xf32> to vector<8x128xf32>
    %c0_43 = arith.constant 0 : index
    %62 = memref.load %arg4[%c0_43] : memref<48xf32, #tpu.memory_space<smem>>
    %63 = vector.broadcast %62 : f32 to vector<8x128xf32>
    %64 = arith.mulf %63, %61 : vector<8x128xf32>
    %65 = arith.addf %56, %64 : vector<8x128xf32>
    %c12 = arith.constant 12 : index
    %66 = memref.load %arg4[%c12] : memref<48xf32, #tpu.memory_space<smem>>
    %67 = vector.broadcast %66 : f32 to vector<8x128xf32>
    %68 = arith.mulf %67, %61 : vector<8x128xf32>
    %69 = arith.addf %57, %68 : vector<8x128xf32>
    %c24 = arith.constant 24 : index
    %70 = memref.load %arg4[%c24] : memref<48xf32, #tpu.memory_space<smem>>
    %71 = vector.broadcast %70 : f32 to vector<8x128xf32>
    %72 = arith.mulf %71, %61 : vector<8x128xf32>
    %73 = arith.addf %58, %72 : vector<8x128xf32>
    %c36 = arith.constant 36 : index
    %74 = memref.load %arg4[%c36] : memref<48xf32, #tpu.memory_space<smem>>
    %75 = vector.broadcast %74 : f32 to vector<8x128xf32>
    %76 = arith.mulf %75, %61 : vector<8x128xf32>
    %77 = arith.addf %59, %76 : vector<8x128xf32>
    %c0_44 = arith.constant 0 : index
    %c7 = arith.constant 7 : index
    %c0_45 = arith.constant 0 : index
    %78 = vector.load %arg7[%c0_44, %c7, %c0_45] : memref<4x27x128xf32, #tpu.memory_space<vmem>>, vector<1x8x128xf32>
    %79 = vector.shape_cast %78 : vector<1x8x128xf32> to vector<8x128xf32>
    %c1_46 = arith.constant 1 : index
    %80 = memref.load %arg4[%c1_46] : memref<48xf32, #tpu.memory_space<smem>>
    %81 = vector.broadcast %80 : f32 to vector<8x128xf32>
    %82 = arith.mulf %81, %79 : vector<8x128xf32>
    %83 = arith.addf %65, %82 : vector<8x128xf32>
    %c13 = arith.constant 13 : index
    %84 = memref.load %arg4[%c13] : memref<48xf32, #tpu.memory_space<smem>>
    %85 = vector.broadcast %84 : f32 to vector<8x128xf32>
    %86 = arith.mulf %85, %79 : vector<8x128xf32>
    %87 = arith.addf %69, %86 : vector<8x128xf32>
    %c25_47 = arith.constant 25 : index
    %88 = memref.load %arg4[%c25_47] : memref<48xf32, #tpu.memory_space<smem>>
    %89 = vector.broadcast %88 : f32 to vector<8x128xf32>
    %90 = arith.mulf %89, %79 : vector<8x128xf32>
    %91 = arith.addf %73, %90 : vector<8x128xf32>
    %c37 = arith.constant 37 : index
    %92 = memref.load %arg4[%c37] : memref<48xf32, #tpu.memory_space<smem>>
    %93 = vector.broadcast %92 : f32 to vector<8x128xf32>
    %94 = arith.mulf %93, %79 : vector<8x128xf32>
    %95 = arith.addf %77, %94 : vector<8x128xf32>
    %c0_48 = arith.constant 0 : index
    %c8_49 = arith.constant 8 : index
    %c0_50 = arith.constant 0 : index
    %96 = vector.load %arg7[%c0_48, %c8_49, %c0_50] : memref<4x27x128xf32, #tpu.memory_space<vmem>>, vector<1x8x128xf32>
    %97 = vector.shape_cast %96 : vector<1x8x128xf32> to vector<8x128xf32>
    %c2_51 = arith.constant 2 : index
    %98 = memref.load %arg4[%c2_51] : memref<48xf32, #tpu.memory_space<smem>>
    %99 = vector.broadcast %98 : f32 to vector<8x128xf32>
    %100 = arith.mulf %99, %97 : vector<8x128xf32>
    %101 = arith.addf %83, %100 : vector<8x128xf32>
    %c14 = arith.constant 14 : index
    %102 = memref.load %arg4[%c14] : memref<48xf32, #tpu.memory_space<smem>>
    %103 = vector.broadcast %102 : f32 to vector<8x128xf32>
    %104 = arith.mulf %103, %97 : vector<8x128xf32>
    %105 = arith.addf %87, %104 : vector<8x128xf32>
    %c26 = arith.constant 26 : index
    %106 = memref.load %arg4[%c26] : memref<48xf32, #tpu.memory_space<smem>>
    %107 = vector.broadcast %106 : f32 to vector<8x128xf32>
    %108 = arith.mulf %107, %97 : vector<8x128xf32>
    %109 = arith.addf %91, %108 : vector<8x128xf32>
    %c38 = arith.constant 38 : index
    %110 = memref.load %arg4[%c38] : memref<48xf32, #tpu.memory_space<smem>>
    %111 = vector.broadcast %110 : f32 to vector<8x128xf32>
    %112 = arith.mulf %111, %97 : vector<8x128xf32>
    %113 = arith.addf %95, %112 : vector<8x128xf32>
    %c1_52 = arith.constant 1 : index
    %c6_53 = arith.constant 6 : index
    %c0_54 = arith.constant 0 : index
    %114 = vector.load %arg7[%c1_52, %c6_53, %c0_54] : memref<4x27x128xf32, #tpu.memory_space<vmem>>, vector<1x8x128xf32>
    %115 = vector.shape_cast %114 : vector<1x8x128xf32> to vector<8x128xf32>
    %c3_55 = arith.constant 3 : index
    %116 = memref.load %arg4[%c3_55] : memref<48xf32, #tpu.memory_space<smem>>
    %117 = vector.broadcast %116 : f32 to vector<8x128xf32>
    %118 = arith.mulf %117, %115 : vector<8x128xf32>
    %119 = arith.addf %101, %118 : vector<8x128xf32>
    %c15 = arith.constant 15 : index
    %120 = memref.load %arg4[%c15] : memref<48xf32, #tpu.memory_space<smem>>
    %121 = vector.broadcast %120 : f32 to vector<8x128xf32>
    %122 = arith.mulf %121, %115 : vector<8x128xf32>
    %123 = arith.addf %105, %122 : vector<8x128xf32>
    %c27 = arith.constant 27 : index
    %124 = memref.load %arg4[%c27] : memref<48xf32, #tpu.memory_space<smem>>
    %125 = vector.broadcast %124 : f32 to vector<8x128xf32>
    %126 = arith.mulf %125, %115 : vector<8x128xf32>
    %127 = arith.addf %109, %126 : vector<8x128xf32>
    %c39 = arith.constant 39 : index
    %128 = memref.load %arg4[%c39] : memref<48xf32, #tpu.memory_space<smem>>
    %129 = vector.broadcast %128 : f32 to vector<8x128xf32>
    %130 = arith.mulf %129, %115 : vector<8x128xf32>
    %131 = arith.addf %113, %130 : vector<8x128xf32>
    %c1_56 = arith.constant 1 : index
    %c7_57 = arith.constant 7 : index
    %c0_58 = arith.constant 0 : index
    %132 = vector.load %arg7[%c1_56, %c7_57, %c0_58] : memref<4x27x128xf32, #tpu.memory_space<vmem>>, vector<1x8x128xf32>
    %133 = vector.shape_cast %132 : vector<1x8x128xf32> to vector<8x128xf32>
    %c4 = arith.constant 4 : index
    %134 = memref.load %arg4[%c4] : memref<48xf32, #tpu.memory_space<smem>>
    %135 = vector.broadcast %134 : f32 to vector<8x128xf32>
    %136 = arith.mulf %135, %133 : vector<8x128xf32>
    %137 = arith.addf %119, %136 : vector<8x128xf32>
    %c16 = arith.constant 16 : index
    %138 = memref.load %arg4[%c16] : memref<48xf32, #tpu.memory_space<smem>>
    %139 = vector.broadcast %138 : f32 to vector<8x128xf32>
    %140 = arith.mulf %139, %133 : vector<8x128xf32>
    %141 = arith.addf %123, %140 : vector<8x128xf32>
    %c28 = arith.constant 28 : index
    %142 = memref.load %arg4[%c28] : memref<48xf32, #tpu.memory_space<smem>>
    %143 = vector.broadcast %142 : f32 to vector<8x128xf32>
    %144 = arith.mulf %143, %133 : vector<8x128xf32>
    %145 = arith.addf %127, %144 : vector<8x128xf32>
    %c40 = arith.constant 40 : index
    %146 = memref.load %arg4[%c40] : memref<48xf32, #tpu.memory_space<smem>>
    %147 = vector.broadcast %146 : f32 to vector<8x128xf32>
    %148 = arith.mulf %147, %133 : vector<8x128xf32>
    %149 = arith.addf %131, %148 : vector<8x128xf32>
    %c1_59 = arith.constant 1 : index
    %c8_60 = arith.constant 8 : index
    %c0_61 = arith.constant 0 : index
    %150 = vector.load %arg7[%c1_59, %c8_60, %c0_61] : memref<4x27x128xf32, #tpu.memory_space<vmem>>, vector<1x8x128xf32>
    %151 = vector.shape_cast %150 : vector<1x8x128xf32> to vector<8x128xf32>
    %c5 = arith.constant 5 : index
    %152 = memref.load %arg4[%c5] : memref<48xf32, #tpu.memory_space<smem>>
    %153 = vector.broadcast %152 : f32 to vector<8x128xf32>
    %154 = arith.mulf %153, %151 : vector<8x128xf32>
    %155 = arith.addf %137, %154 : vector<8x128xf32>
    %c17 = arith.constant 17 : index
    %156 = memref.load %arg4[%c17] : memref<48xf32, #tpu.memory_space<smem>>
    %157 = vector.broadcast %156 : f32 to vector<8x128xf32>
    %158 = arith.mulf %157, %151 : vector<8x128xf32>
    %159 = arith.addf %141, %158 : vector<8x128xf32>
    %c29 = arith.constant 29 : index
    %160 = memref.load %arg4[%c29] : memref<48xf32, #tpu.memory_space<smem>>
    %161 = vector.broadcast %160 : f32 to vector<8x128xf32>
    %162 = arith.mulf %161, %151 : vector<8x128xf32>
    %163 = arith.addf %145, %162 : vector<8x128xf32>
    %c41 = arith.constant 41 : index
    %164 = memref.load %arg4[%c41] : memref<48xf32, #tpu.memory_space<smem>>
    %165 = vector.broadcast %164 : f32 to vector<8x128xf32>
    %166 = arith.mulf %165, %151 : vector<8x128xf32>
    %167 = arith.addf %149, %166 : vector<8x128xf32>
    %c2_62 = arith.constant 2 : index
    %c6_63 = arith.constant 6 : index
    %c0_64 = arith.constant 0 : index
    %168 = vector.load %arg7[%c2_62, %c6_63, %c0_64] : memref<4x27x128xf32, #tpu.memory_space<vmem>>, vector<1x8x128xf32>
    %169 = vector.shape_cast %168 : vector<1x8x128xf32> to vector<8x128xf32>
    %c6_65 = arith.constant 6 : index
    %170 = memref.load %arg4[%c6_65] : memref<48xf32, #tpu.memory_space<smem>>
    %171 = vector.broadcast %170 : f32 to vector<8x128xf32>
    %172 = arith.mulf %171, %169 : vector<8x128xf32>
    %173 = arith.addf %155, %172 : vector<8x128xf32>
    %c18 = arith.constant 18 : index
    %174 = memref.load %arg4[%c18] : memref<48xf32, #tpu.memory_space<smem>>
    %175 = vector.broadcast %174 : f32 to vector<8x128xf32>
    %176 = arith.mulf %175, %169 : vector<8x128xf32>
    %177 = arith.addf %159, %176 : vector<8x128xf32>
    %c30 = arith.constant 30 : index
    %178 = memref.load %arg4[%c30] : memref<48xf32, #tpu.memory_space<smem>>
    %179 = vector.broadcast %178 : f32 to vector<8x128xf32>
    %180 = arith.mulf %179, %169 : vector<8x128xf32>
    %181 = arith.addf %163, %180 : vector<8x128xf32>
    %c42 = arith.constant 42 : index
    %182 = memref.load %arg4[%c42] : memref<48xf32, #tpu.memory_space<smem>>
    %183 = vector.broadcast %182 : f32 to vector<8x128xf32>
    %184 = arith.mulf %183, %169 : vector<8x128xf32>
    %185 = arith.addf %167, %184 : vector<8x128xf32>
    %c2_66 = arith.constant 2 : index
    %c7_67 = arith.constant 7 : index
    %c0_68 = arith.constant 0 : index
    %186 = vector.load %arg7[%c2_66, %c7_67, %c0_68] : memref<4x27x128xf32, #tpu.memory_space<vmem>>, vector<1x8x128xf32>
    %187 = vector.shape_cast %186 : vector<1x8x128xf32> to vector<8x128xf32>
    %c7_69 = arith.constant 7 : index
    %188 = memref.load %arg4[%c7_69] : memref<48xf32, #tpu.memory_space<smem>>
    %189 = vector.broadcast %188 : f32 to vector<8x128xf32>
    %190 = arith.mulf %189, %187 : vector<8x128xf32>
    %191 = arith.addf %173, %190 : vector<8x128xf32>
    %c19 = arith.constant 19 : index
    %192 = memref.load %arg4[%c19] : memref<48xf32, #tpu.memory_space<smem>>
    %193 = vector.broadcast %192 : f32 to vector<8x128xf32>
    %194 = arith.mulf %193, %187 : vector<8x128xf32>
    %195 = arith.addf %177, %194 : vector<8x128xf32>
    %c31 = arith.constant 31 : index
    %196 = memref.load %arg4[%c31] : memref<48xf32, #tpu.memory_space<smem>>
    %197 = vector.broadcast %196 : f32 to vector<8x128xf32>
    %198 = arith.mulf %197, %187 : vector<8x128xf32>
    %199 = arith.addf %181, %198 : vector<8x128xf32>
    %c43 = arith.constant 43 : index
    %200 = memref.load %arg4[%c43] : memref<48xf32, #tpu.memory_space<smem>>
    %201 = vector.broadcast %200 : f32 to vector<8x128xf32>
    %202 = arith.mulf %201, %187 : vector<8x128xf32>
    %203 = arith.addf %185, %202 : vector<8x128xf32>
    %c2_70 = arith.constant 2 : index
    %c8_71 = arith.constant 8 : index
    %c0_72 = arith.constant 0 : index
    %204 = vector.load %arg7[%c2_70, %c8_71, %c0_72] : memref<4x27x128xf32, #tpu.memory_space<vmem>>, vector<1x8x128xf32>
    %205 = vector.shape_cast %204 : vector<1x8x128xf32> to vector<8x128xf32>
    %c8_73 = arith.constant 8 : index
    %206 = memref.load %arg4[%c8_73] : memref<48xf32, #tpu.memory_space<smem>>
    %207 = vector.broadcast %206 : f32 to vector<8x128xf32>
    %208 = arith.mulf %207, %205 : vector<8x128xf32>
    %209 = arith.addf %191, %208 : vector<8x128xf32>
    %c20 = arith.constant 20 : index
    %210 = memref.load %arg4[%c20] : memref<48xf32, #tpu.memory_space<smem>>
    %211 = vector.broadcast %210 : f32 to vector<8x128xf32>
    %212 = arith.mulf %211, %205 : vector<8x128xf32>
    %213 = arith.addf %195, %212 : vector<8x128xf32>
    %c32 = arith.constant 32 : index
    %214 = memref.load %arg4[%c32] : memref<48xf32, #tpu.memory_space<smem>>
    %215 = vector.broadcast %214 : f32 to vector<8x128xf32>
    %216 = arith.mulf %215, %205 : vector<8x128xf32>
    %217 = arith.addf %199, %216 : vector<8x128xf32>
    %c44 = arith.constant 44 : index
    %218 = memref.load %arg4[%c44] : memref<48xf32, #tpu.memory_space<smem>>
    %219 = vector.broadcast %218 : f32 to vector<8x128xf32>
    %220 = arith.mulf %219, %205 : vector<8x128xf32>
    %221 = arith.addf %203, %220 : vector<8x128xf32>
    %c3_74 = arith.constant 3 : index
    %c6_75 = arith.constant 6 : index
    %c0_76 = arith.constant 0 : index
    %222 = vector.load %arg7[%c3_74, %c6_75, %c0_76] : memref<4x27x128xf32, #tpu.memory_space<vmem>>, vector<1x8x128xf32>
    %223 = vector.shape_cast %222 : vector<1x8x128xf32> to vector<8x128xf32>
    %c9 = arith.constant 9 : index
    %224 = memref.load %arg4[%c9] : memref<48xf32, #tpu.memory_space<smem>>
    %225 = vector.broadcast %224 : f32 to vector<8x128xf32>
    %226 = arith.mulf %225, %223 : vector<8x128xf32>
    %227 = arith.addf %209, %226 : vector<8x128xf32>
    %c21 = arith.constant 21 : index
    %228 = memref.load %arg4[%c21] : memref<48xf32, #tpu.memory_space<smem>>
    %229 = vector.broadcast %228 : f32 to vector<8x128xf32>
    %230 = arith.mulf %229, %223 : vector<8x128xf32>
    %231 = arith.addf %213, %230 : vector<8x128xf32>
    %c33 = arith.constant 33 : index
    %232 = memref.load %arg4[%c33] : memref<48xf32, #tpu.memory_space<smem>>
    %233 = vector.broadcast %232 : f32 to vector<8x128xf32>
    %234 = arith.mulf %233, %223 : vector<8x128xf32>
    %235 = arith.addf %217, %234 : vector<8x128xf32>
    %c45 = arith.constant 45 : index
    %236 = memref.load %arg4[%c45] : memref<48xf32, #tpu.memory_space<smem>>
    %237 = vector.broadcast %236 : f32 to vector<8x128xf32>
    %238 = arith.mulf %237, %223 : vector<8x128xf32>
    %239 = arith.addf %221, %238 : vector<8x128xf32>
    %c3_77 = arith.constant 3 : index
    %c7_78 = arith.constant 7 : index
    %c0_79 = arith.constant 0 : index
    %240 = vector.load %arg7[%c3_77, %c7_78, %c0_79] : memref<4x27x128xf32, #tpu.memory_space<vmem>>, vector<1x8x128xf32>
    %241 = vector.shape_cast %240 : vector<1x8x128xf32> to vector<8x128xf32>
    %c10 = arith.constant 10 : index
    %242 = memref.load %arg4[%c10] : memref<48xf32, #tpu.memory_space<smem>>
    %243 = vector.broadcast %242 : f32 to vector<8x128xf32>
    %244 = arith.mulf %243, %241 : vector<8x128xf32>
    %245 = arith.addf %227, %244 : vector<8x128xf32>
    %c22 = arith.constant 22 : index
    %246 = memref.load %arg4[%c22] : memref<48xf32, #tpu.memory_space<smem>>
    %247 = vector.broadcast %246 : f32 to vector<8x128xf32>
    %248 = arith.mulf %247, %241 : vector<8x128xf32>
    %249 = arith.addf %231, %248 : vector<8x128xf32>
    %c34 = arith.constant 34 : index
    %250 = memref.load %arg4[%c34] : memref<48xf32, #tpu.memory_space<smem>>
    %251 = vector.broadcast %250 : f32 to vector<8x128xf32>
    %252 = arith.mulf %251, %241 : vector<8x128xf32>
    %253 = arith.addf %235, %252 : vector<8x128xf32>
    %c46 = arith.constant 46 : index
    %254 = memref.load %arg4[%c46] : memref<48xf32, #tpu.memory_space<smem>>
    %255 = vector.broadcast %254 : f32 to vector<8x128xf32>
    %256 = arith.mulf %255, %241 : vector<8x128xf32>
    %257 = arith.addf %239, %256 : vector<8x128xf32>
    %c3_80 = arith.constant 3 : index
    %c8_81 = arith.constant 8 : index
    %c0_82 = arith.constant 0 : index
    %258 = vector.load %arg7[%c3_80, %c8_81, %c0_82] : memref<4x27x128xf32, #tpu.memory_space<vmem>>, vector<1x8x128xf32>
    %259 = vector.shape_cast %258 : vector<1x8x128xf32> to vector<8x128xf32>
    %c11 = arith.constant 11 : index
    %260 = memref.load %arg4[%c11] : memref<48xf32, #tpu.memory_space<smem>>
    %261 = vector.broadcast %260 : f32 to vector<8x128xf32>
    %262 = arith.mulf %261, %259 : vector<8x128xf32>
    %263 = arith.addf %245, %262 : vector<8x128xf32>
    %c23 = arith.constant 23 : index
    %264 = memref.load %arg4[%c23] : memref<48xf32, #tpu.memory_space<smem>>
    %265 = vector.broadcast %264 : f32 to vector<8x128xf32>
    %266 = arith.mulf %265, %259 : vector<8x128xf32>
    %267 = arith.addf %249, %266 : vector<8x128xf32>
    %c35 = arith.constant 35 : index
    %268 = memref.load %arg4[%c35] : memref<48xf32, #tpu.memory_space<smem>>
    %269 = vector.broadcast %268 : f32 to vector<8x128xf32>
    %270 = arith.mulf %269, %259 : vector<8x128xf32>
    %271 = arith.addf %253, %270 : vector<8x128xf32>
    %c47 = arith.constant 47 : index
    %272 = memref.load %arg4[%c47] : memref<48xf32, #tpu.memory_space<smem>>
    %273 = vector.broadcast %272 : f32 to vector<8x128xf32>
    %274 = arith.mulf %273, %259 : vector<8x128xf32>
    %275 = arith.addf %257, %274 : vector<8x128xf32>
    %c0_83 = arith.constant 0 : index
    %c0_84 = arith.constant 0 : index
    %c0_85 = arith.constant 0 : index
    %276 = vector.load %arg5[%c0_83, %c0_84, %c0_85] : memref<4x19x128xf32, #tpu.memory_space<vmem>>, vector<1x8x128xf32>
    %277 = vector.shape_cast %276 : vector<1x8x128xf32> to vector<8x128xf32>
    %278 = vector.shape_cast %263 : vector<8x128xf32> to vector<1x8x128xf32>
    tpu.vector_store %arg5[%c0_83, %c0_84, %c0_85], %278 {strides = array<i32>} : memref<4x19x128xf32, #tpu.memory_space<vmem>>, vector<1x8x128xf32>,
    %c1_86 = arith.constant 1 : index
    %c0_87 = arith.constant 0 : index
    %c0_88 = arith.constant 0 : index
    %279 = vector.load %arg5[%c1_86, %c0_87, %c0_88] : memref<4x19x128xf32, #tpu.memory_space<vmem>>, vector<1x8x128xf32>
    %280 = vector.shape_cast %279 : vector<1x8x128xf32> to vector<8x128xf32>
    %281 = vector.shape_cast %267 : vector<8x128xf32> to vector<1x8x128xf32>
    tpu.vector_store %arg5[%c1_86, %c0_87, %c0_88], %281 {strides = array<i32>} : memref<4x19x128xf32, #tpu.memory_space<vmem>>, vector<1x8x128xf32>,
    %c2_89 = arith.constant 2 : index
    %c0_90 = arith.constant 0 : index
    %c0_91 = arith.constant 0 : index
    %282 = vector.load %arg5[%c2_89, %c0_90, %c0_91] : memref<4x19x128xf32, #tpu.memory_space<vmem>>, vector<1x8x128xf32>
    %283 = vector.shape_cast %282 : vector<1x8x128xf32> to vector<8x128xf32>
    %284 = vector.shape_cast %271 : vector<8x128xf32> to vector<1x8x128xf32>
    tpu.vector_store %arg5[%c2_89, %c0_90, %c0_91], %284 {strides = array<i32>} : memref<4x19x128xf32, #tpu.memory_space<vmem>>, vector<1x8x128xf32>,
    %c3_92 = arith.constant 3 : index
    %c0_93 = arith.constant 0 : index
    %c0_94 = arith.constant 0 : index
    %285 = vector.load %arg5[%c3_92, %c0_93, %c0_94] : memref<4x19x128xf32, #tpu.memory_space<vmem>>, vector<1x8x128xf32>
    %286 = vector.shape_cast %285 : vector<1x8x128xf32> to vector<8x128xf32>
    %287 = vector.shape_cast %275 : vector<8x128xf32> to vector<1x8x128xf32>
    tpu.vector_store %arg5[%c3_92, %c0_93, %c0_94], %287 {strides = array<i32>} : memref<4x19x128xf32, #tpu.memory_space<vmem>>, vector<1x8x128xf32>,
    %cst_95 = arith.constant 0.000000e+00 : f32
    %288 = vector.broadcast %cst_95 : f32 to vector<8x128xf32>
    %cst_96 = arith.constant 0.000000e+00 : f32
    %289 = vector.broadcast %cst_96 : f32 to vector<8x128xf32>
    %cst_97 = arith.constant 0.000000e+00 : f32
    %290 = vector.broadcast %cst_97 : f32 to vector<8x128xf32>
    %cst_98 = arith.constant 0.000000e+00 : f32
    %291 = vector.broadcast %cst_98 : f32 to vector<8x128xf32>
    %c0_99 = arith.constant 0 : index
    %c14_100 = arith.constant 14 : index
    %c0_101 = arith.constant 0 : index
    %292 = vector.load %arg7[%c0_99, %c14_100, %c0_101] : memref<4x27x128xf32, #tpu.memory_space<vmem>>, vector<1x8x128xf32>
    %293 = vector.shape_cast %292 : vector<1x8x128xf32> to vector<8x128xf32>
    %c0_102 = arith.constant 0 : index
    %294 = memref.load %arg4[%c0_102] : memref<48xf32, #tpu.memory_space<smem>>
    %295 = vector.broadcast %294 : f32 to vector<8x128xf32>
    %296 = arith.mulf %295, %293 : vector<8x128xf32>
    %297 = arith.addf %288, %296 : vector<8x128xf32>
    %c12_103 = arith.constant 12 : index
    %298 = memref.load %arg4[%c12_103] : memref<48xf32, #tpu.memory_space<smem>>
    %299 = vector.broadcast %298 : f32 to vector<8x128xf32>
    %300 = arith.mulf %299, %293 : vector<8x128xf32>
    %301 = arith.addf %289, %300 : vector<8x128xf32>
    %c24_104 = arith.constant 24 : index
    %302 = memref.load %arg4[%c24_104] : memref<48xf32, #tpu.memory_space<smem>>
    %303 = vector.broadcast %302 : f32 to vector<8x128xf32>
    %304 = arith.mulf %303, %293 : vector<8x128xf32>
    %305 = arith.addf %290, %304 : vector<8x128xf32>
    %c36_105 = arith.constant 36 : index
    %306 = memref.load %arg4[%c36_105] : memref<48xf32, #tpu.memory_space<smem>>
    %307 = vector.broadcast %306 : f32 to vector<8x128xf32>
    %308 = arith.mulf %307, %293 : vector<8x128xf32>
    %309 = arith.addf %291, %308 : vector<8x128xf32>
    %c0_106 = arith.constant 0 : index
    %c15_107 = arith.constant 15 : index
    %c0_108 = arith.constant 0 : index
    %310 = vector.load %arg7[%c0_106, %c15_107, %c0_108] : memref<4x27x128xf32, #tpu.memory_space<vmem>>, vector<1x8x128xf32>
    %311 = vector.shape_cast %310 : vector<1x8x128xf32> to vector<8x128xf32>
    %c1_109 = arith.constant 1 : index
    %312 = memref.load %arg4[%c1_109] : memref<48xf32, #tpu.memory_space<smem>>
    %313 = vector.broadcast %312 : f32 to vector<8x128xf32>
    %314 = arith.mulf %313, %311 : vector<8x128xf32>
    %315 = arith.addf %297, %314 : vector<8x128xf32>
    %c13_110 = arith.constant 13 : index
    %316 = memref.load %arg4[%c13_110] : memref<48xf32, #tpu.memory_space<smem>>
    %317 = vector.broadcast %316 : f32 to vector<8x128xf32>
    %318 = arith.mulf %317, %311 : vector<8x128xf32>
    %319 = arith.addf %301, %318 : vector<8x128xf32>
    %c25_111 = arith.constant 25 : index
    %320 = memref.load %arg4[%c25_111] : memref<48xf32, #tpu.memory_space<smem>>
    %321 = vector.broadcast %320 : f32 to vector<8x128xf32>
    %322 = arith.mulf %321, %311 : vector<8x128xf32>
    %323 = arith.addf %305, %322 : vector<8x128xf32>
    %c37_112 = arith.constant 37 : index
    %324 = memref.load %arg4[%c37_112] : memref<48xf32, #tpu.memory_space<smem>>
    %325 = vector.broadcast %324 : f32 to vector<8x128xf32>
    %326 = arith.mulf %325, %311 : vector<8x128xf32>
    %327 = arith.addf %309, %326 : vector<8x128xf32>
    %c0_113 = arith.constant 0 : index
    %c16_114 = arith.constant 16 : index
    %c0_115 = arith.constant 0 : index
    %328 = vector.load %arg7[%c0_113, %c16_114, %c0_115] : memref<4x27x128xf32, #tpu.memory_space<vmem>>, vector<1x8x128xf32>
    %329 = vector.shape_cast %328 : vector<1x8x128xf32> to vector<8x128xf32>
    %c2_116 = arith.constant 2 : index
    %330 = memref.load %arg4[%c2_116] : memref<48xf32, #tpu.memory_space<smem>>
    %331 = vector.broadcast %330 : f32 to vector<8x128xf32>
    %332 = arith.mulf %331, %329 : vector<8x128xf32>
    %333 = arith.addf %315, %332 : vector<8x128xf32>
    %c14_117 = arith.constant 14 : index
    %334 = memref.load %arg4[%c14_117] : memref<48xf32, #tpu.memory_space<smem>>
    %335 = vector.broadcast %334 : f32 to vector<8x128xf32>
    %336 = arith.mulf %335, %329 : vector<8x128xf32>
    %337 = arith.addf %319, %336 : vector<8x128xf32>
    %c26_118 = arith.constant 26 : index
    %338 = memref.load %arg4[%c26_118] : memref<48xf32, #tpu.memory_space<smem>>
    %339 = vector.broadcast %338 : f32 to vector<8x128xf32>
    %340 = arith.mulf %339, %329 : vector<8x128xf32>
    %341 = arith.addf %323, %340 : vector<8x128xf32>
    %c38_119 = arith.constant 38 : index
    %342 = memref.load %arg4[%c38_119] : memref<48xf32, #tpu.memory_space<smem>>
    %343 = vector.broadcast %342 : f32 to vector<8x128xf32>
    %344 = arith.mulf %343, %329 : vector<8x128xf32>
    %345 = arith.addf %327, %344 : vector<8x128xf32>
    %c1_120 = arith.constant 1 : index
    %c14_121 = arith.constant 14 : index
    %c0_122 = arith.constant 0 : index
    %346 = vector.load %arg7[%c1_120, %c14_121, %c0_122] : memref<4x27x128xf32, #tpu.memory_space<vmem>>, vector<1x8x128xf32>
    %347 = vector.shape_cast %346 : vector<1x8x128xf32> to vector<8x128xf32>
    %c3_123 = arith.constant 3 : index
    %348 = memref.load %arg4[%c3_123] : memref<48xf32, #tpu.memory_space<smem>>
    %349 = vector.broadcast %348 : f32 to vector<8x128xf32>
    %350 = arith.mulf %349, %347 : vector<8x128xf32>
    %351 = arith.addf %333, %350 : vector<8x128xf32>
    %c15_124 = arith.constant 15 : index
    %352 = memref.load %arg4[%c15_124] : memref<48xf32, #tpu.memory_space<smem>>
    %353 = vector.broadcast %352 : f32 to vector<8x128xf32>
    %354 = arith.mulf %353, %347 : vector<8x128xf32>
    %355 = arith.addf %337, %354 : vector<8x128xf32>
    %c27_125 = arith.constant 27 : index
    %356 = memref.load %arg4[%c27_125] : memref<48xf32, #tpu.memory_space<smem>>
    %357 = vector.broadcast %356 : f32 to vector<8x128xf32>
    %358 = arith.mulf %357, %347 : vector<8x128xf32>
    %359 = arith.addf %341, %358 : vector<8x128xf32>
    %c39_126 = arith.constant 39 : index
    %360 = memref.load %arg4[%c39_126] : memref<48xf32, #tpu.memory_space<smem>>
    %361 = vector.broadcast %360 : f32 to vector<8x128xf32>
    %362 = arith.mulf %361, %347 : vector<8x128xf32>
    %363 = arith.addf %345, %362 : vector<8x128xf32>
    %c1_127 = arith.constant 1 : index
    %c15_128 = arith.constant 15 : index
    %c0_129 = arith.constant 0 : index
    %364 = vector.load %arg7[%c1_127, %c15_128, %c0_129] : memref<4x27x128xf32, #tpu.memory_space<vmem>>, vector<1x8x128xf32>
    %365 = vector.shape_cast %364 : vector<1x8x128xf32> to vector<8x128xf32>
    %c4_130 = arith.constant 4 : index
    %366 = memref.load %arg4[%c4_130] : memref<48xf32, #tpu.memory_space<smem>>
    %367 = vector.broadcast %366 : f32 to vector<8x128xf32>
    %368 = arith.mulf %367, %365 : vector<8x128xf32>
    %369 = arith.addf %351, %368 : vector<8x128xf32>
    %c16_131 = arith.constant 16 : index
    %370 = memref.load %arg4[%c16_131] : memref<48xf32, #tpu.memory_space<smem>>
    %371 = vector.broadcast %370 : f32 to vector<8x128xf32>
    %372 = arith.mulf %371, %365 : vector<8x128xf32>
    %373 = arith.addf %355, %372 : vector<8x128xf32>
    %c28_132 = arith.constant 28 : index
    %374 = memref.load %arg4[%c28_132] : memref<48xf32, #tpu.memory_space<smem>>
    %375 = vector.broadcast %374 : f32 to vector<8x128xf32>
    %376 = arith.mulf %375, %365 : vector<8x128xf32>
    %377 = arith.addf %359, %376 : vector<8x128xf32>
    %c40_133 = arith.constant 40 : index
    %378 = memref.load %arg4[%c40_133] : memref<48xf32, #tpu.memory_space<smem>>
    %379 = vector.broadcast %378 : f32 to vector<8x128xf32>
    %380 = arith.mulf %379, %365 : vector<8x128xf32>
    %381 = arith.addf %363, %380 : vector<8x128xf32>
    %c1_134 = arith.constant 1 : index
    %c16_135 = arith.constant 16 : index
    %c0_136 = arith.constant 0 : index
    %382 = vector.load %arg7[%c1_134, %c16_135, %c0_136] : memref<4x27x128xf32, #tpu.memory_space<vmem>>, vector<1x8x128xf32>
    %383 = vector.shape_cast %382 : vector<1x8x128xf32> to vector<8x128xf32>
    %c5_137 = arith.constant 5 : index
    %384 = memref.load %arg4[%c5_137] : memref<48xf32, #tpu.memory_space<smem>>
    %385 = vector.broadcast %384 : f32 to vector<8x128xf32>
    %386 = arith.mulf %385, %383 : vector<8x128xf32>
    %387 = arith.addf %369, %386 : vector<8x128xf32>
    %c17_138 = arith.constant 17 : index
    %388 = memref.load %arg4[%c17_138] : memref<48xf32, #tpu.memory_space<smem>>
    %389 = vector.broadcast %388 : f32 to vector<8x128xf32>
    %390 = arith.mulf %389, %383 : vector<8x128xf32>
    %391 = arith.addf %373, %390 : vector<8x128xf32>
    %c29_139 = arith.constant 29 : index
    %392 = memref.load %arg4[%c29_139] : memref<48xf32, #tpu.memory_space<smem>>
    %393 = vector.broadcast %392 : f32 to vector<8x128xf32>
    %394 = arith.mulf %393, %383 : vector<8x128xf32>
    %395 = arith.addf %377, %394 : vector<8x128xf32>
    %c41_140 = arith.constant 41 : index
    %396 = memref.load %arg4[%c41_140] : memref<48xf32, #tpu.memory_space<smem>>
    %397 = vector.broadcast %396 : f32 to vector<8x128xf32>
    %398 = arith.mulf %397, %383 : vector<8x128xf32>
    %399 = arith.addf %381, %398 : vector<8x128xf32>
    %c2_141 = arith.constant 2 : index
    %c14_142 = arith.constant 14 : index
    %c0_143 = arith.constant 0 : index
    %400 = vector.load %arg7[%c2_141, %c14_142, %c0_143] : memref<4x27x128xf32, #tpu.memory_space<vmem>>, vector<1x8x128xf32>
    %401 = vector.shape_cast %400 : vector<1x8x128xf32> to vector<8x128xf32>
    %c6_144 = arith.constant 6 : index
    %402 = memref.load %arg4[%c6_144] : memref<48xf32, #tpu.memory_space<smem>>
    %403 = vector.broadcast %402 : f32 to vector<8x128xf32>
    %404 = arith.mulf %403, %401 : vector<8x128xf32>
    %405 = arith.addf %387, %404 : vector<8x128xf32>
    %c18_145 = arith.constant 18 : index
    %406 = memref.load %arg4[%c18_145] : memref<48xf32, #tpu.memory_space<smem>>
    %407 = vector.broadcast %406 : f32 to vector<8x128xf32>
    %408 = arith.mulf %407, %401 : vector<8x128xf32>
    %409 = arith.addf %391, %408 : vector<8x128xf32>
    %c30_146 = arith.constant 30 : index
    %410 = memref.load %arg4[%c30_146] : memref<48xf32, #tpu.memory_space<smem>>
    %411 = vector.broadcast %410 : f32 to vector<8x128xf32>
    %412 = arith.mulf %411, %401 : vector<8x128xf32>
    %413 = arith.addf %395, %412 : vector<8x128xf32>
    %c42_147 = arith.constant 42 : index
    %414 = memref.load %arg4[%c42_147] : memref<48xf32, #tpu.memory_space<smem>>
    %415 = vector.broadcast %414 : f32 to vector<8x128xf32>
    %416 = arith.mulf %415, %401 : vector<8x128xf32>
    %417 = arith.addf %399, %416 : vector<8x128xf32>
    %c2_148 = arith.constant 2 : index
    %c15_149 = arith.constant 15 : index
    %c0_150 = arith.constant 0 : index
    %418 = vector.load %arg7[%c2_148, %c15_149, %c0_150] : memref<4x27x128xf32, #tpu.memory_space<vmem>>, vector<1x8x128xf32>
    %419 = vector.shape_cast %418 : vector<1x8x128xf32> to vector<8x128xf32>
    %c7_151 = arith.constant 7 : index
    %420 = memref.load %arg4[%c7_151] : memref<48xf32, #tpu.memory_space<smem>>
    %421 = vector.broadcast %420 : f32 to vector<8x128xf32>
    %422 = arith.mulf %421, %419 : vector<8x128xf32>
    %423 = arith.addf %405, %422 : vector<8x128xf32>
    %c19_152 = arith.constant 19 : index
    %424 = memref.load %arg4[%c19_152] : memref<48xf32, #tpu.memory_space<smem>>
    %425 = vector.broadcast %424 : f32 to vector<8x128xf32>
    %426 = arith.mulf %425, %419 : vector<8x128xf32>
    %427 = arith.addf %409, %426 : vector<8x128xf32>
    %c31_153 = arith.constant 31 : index
    %428 = memref.load %arg4[%c31_153] : memref<48xf32, #tpu.memory_space<smem>>
    %429 = vector.broadcast %428 : f32 to vector<8x128xf32>
    %430 = arith.mulf %429, %419 : vector<8x128xf32>
    %431 = arith.addf %413, %430 : vector<8x128xf32>
    %c43_154 = arith.constant 43 : index
    %432 = memref.load %arg4[%c43_154] : memref<48xf32, #tpu.memory_space<smem>>
    %433 = vector.broadcast %432 : f32 to vector<8x128xf32>
    %434 = arith.mulf %433, %419 : vector<8x128xf32>
    %435 = arith.addf %417, %434 : vector<8x128xf32>
    %c2_155 = arith.constant 2 : index
    %c16_156 = arith.constant 16 : index
    %c0_157 = arith.constant 0 : index
    %436 = vector.load %arg7[%c2_155, %c16_156, %c0_157] : memref<4x27x128xf32, #tpu.memory_space<vmem>>, vector<1x8x128xf32>
    %437 = vector.shape_cast %436 : vector<1x8x128xf32> to vector<8x128xf32>
    %c8_158 = arith.constant 8 : index
    %438 = memref.load %arg4[%c8_158] : memref<48xf32, #tpu.memory_space<smem>>
    %439 = vector.broadcast %438 : f32 to vector<8x128xf32>
    %440 = arith.mulf %439, %437 : vector<8x128xf32>
    %441 = arith.addf %423, %440 : vector<8x128xf32>
    %c20_159 = arith.constant 20 : index
    %442 = memref.load %arg4[%c20_159] : memref<48xf32, #tpu.memory_space<smem>>
    %443 = vector.broadcast %442 : f32 to vector<8x128xf32>
    %444 = arith.mulf %443, %437 : vector<8x128xf32>
    %445 = arith.addf %427, %444 : vector<8x128xf32>
    %c32_160 = arith.constant 32 : index
    %446 = memref.load %arg4[%c32_160] : memref<48xf32, #tpu.memory_space<smem>>
    %447 = vector.broadcast %446 : f32 to vector<8x128xf32>
    %448 = arith.mulf %447, %437 : vector<8x128xf32>
    %449 = arith.addf %431, %448 : vector<8x128xf32>
    %c44_161 = arith.constant 44 : index
    %450 = memref.load %arg4[%c44_161] : memref<48xf32, #tpu.memory_space<smem>>
    %451 = vector.broadcast %450 : f32 to vector<8x128xf32>
    %452 = arith.mulf %451, %437 : vector<8x128xf32>
    %453 = arith.addf %435, %452 : vector<8x128xf32>
    %c3_162 = arith.constant 3 : index
    %c14_163 = arith.constant 14 : index
    %c0_164 = arith.constant 0 : index
    %454 = vector.load %arg7[%c3_162, %c14_163, %c0_164] : memref<4x27x128xf32, #tpu.memory_space<vmem>>, vector<1x8x128xf32>
    %455 = vector.shape_cast %454 : vector<1x8x128xf32> to vector<8x128xf32>
    %c9_165 = arith.constant 9 : index
    %456 = memref.load %arg4[%c9_165] : memref<48xf32, #tpu.memory_space<smem>>
    %457 = vector.broadcast %456 : f32 to vector<8x128xf32>
    %458 = arith.mulf %457, %455 : vector<8x128xf32>
    %459 = arith.addf %441, %458 : vector<8x128xf32>
    %c21_166 = arith.constant 21 : index
    %460 = memref.load %arg4[%c21_166] : memref<48xf32, #tpu.memory_space<smem>>
    %461 = vector.broadcast %460 : f32 to vector<8x128xf32>
    %462 = arith.mulf %461, %455 : vector<8x128xf32>
    %463 = arith.addf %445, %462 : vector<8x128xf32>
    %c33_167 = arith.constant 33 : index
    %464 = memref.load %arg4[%c33_167] : memref<48xf32, #tpu.memory_space<smem>>
    %465 = vector.broadcast %464 : f32 to vector<8x128xf32>
    %466 = arith.mulf %465, %455 : vector<8x128xf32>
    %467 = arith.addf %449, %466 : vector<8x128xf32>
    %c45_168 = arith.constant 45 : index
    %468 = memref.load %arg4[%c45_168] : memref<48xf32, #tpu.memory_space<smem>>
    %469 = vector.broadcast %468 : f32 to vector<8x128xf32>
    %470 = arith.mulf %469, %455 : vector<8x128xf32>
    %471 = arith.addf %453, %470 : vector<8x128xf32>
    %c3_169 = arith.constant 3 : index
    %c15_170 = arith.constant 15 : index
    %c0_171 = arith.constant 0 : index
    %472 = vector.load %arg7[%c3_169, %c15_170, %c0_171] : memref<4x27x128xf32, #tpu.memory_space<vmem>>, vector<1x8x128xf32>
    %473 = vector.shape_cast %472 : vector<1x8x128xf32> to vector<8x128xf32>
    %c10_172 = arith.constant 10 : index
    %474 = memref.load %arg4[%c10_172] : memref<48xf32, #tpu.memory_space<smem>>
    %475 = vector.broadcast %474 : f32 to vector<8x128xf32>
    %476 = arith.mulf %475, %473 : vector<8x128xf32>
    %477 = arith.addf %459, %476 : vector<8x128xf32>
    %c22_173 = arith.constant 22 : index
    %478 = memref.load %arg4[%c22_173] : memref<48xf32, #tpu.memory_space<smem>>
    %479 = vector.broadcast %478 : f32 to vector<8x128xf32>
    %480 = arith.mulf %479, %473 : vector<8x128xf32>
    %481 = arith.addf %463, %480 : vector<8x128xf32>
    %c34_174 = arith.constant 34 : index
    %482 = memref.load %arg4[%c34_174] : memref<48xf32, #tpu.memory_space<smem>>
    %483 = vector.broadcast %482 : f32 to vector<8x128xf32>
    %484 = arith.mulf %483, %473 : vector<8x128xf32>
    %485 = arith.addf %467, %484 : vector<8x128xf32>
    %c46_175 = arith.constant 46 : index
    %486 = memref.load %arg4[%c46_175] : memref<48xf32, #tpu.memory_space<smem>>
    %487 = vector.broadcast %486 : f32 to vector<8x128xf32>
    %488 = arith.mulf %487, %473 : vector<8x128xf32>
    %489 = arith.addf %471, %488 : vector<8x128xf32>
    %c3_176 = arith.constant 3 : index
    %c16_177 = arith.constant 16 : index
    %c0_178 = arith.constant 0 : index
    %490 = vector.load %arg7[%c3_176, %c16_177, %c0_178] : memref<4x27x128xf32, #tpu.memory_space<vmem>>, vector<1x8x128xf32>
    %491 = vector.shape_cast %490 : vector<1x8x128xf32> to vector<8x128xf32>
    %c11_179 = arith.constant 11 : index
    %492 = memref.load %arg4[%c11_179] : memref<48xf32, #tpu.memory_space<smem>>
    %493 = vector.broadcast %492 : f32 to vector<8x128xf32>
    %494 = arith.mulf %493, %491 : vector<8x128xf32>
    %495 = arith.addf %477, %494 : vector<8x128xf32>
    %c23_180 = arith.constant 23 : index
    %496 = memref.load %arg4[%c23_180] : memref<48xf32, #tpu.memory_space<smem>>
    %497 = vector.broadcast %496 : f32 to vector<8x128xf32>
    %498 = arith.mulf %497, %491 : vector<8x128xf32>
    %499 = arith.addf %481, %498 : vector<8x128xf32>
    %c35_181 = arith.constant 35 : index
    %500 = memref.load %arg4[%c35_181] : memref<48xf32, #tpu.memory_space<smem>>
    %501 = vector.broadcast %500 : f32 to vector<8x128xf32>
    %502 = arith.mulf %501, %491 : vector<8x128xf32>
    %503 = arith.addf %485, %502 : vector<8x128xf32>
    %c47_182 = arith.constant 47 : index
    %504 = memref.load %arg4[%c47_182] : memref<48xf32, #tpu.memory_space<smem>>
    %505 = vector.broadcast %504 : f32 to vector<8x128xf32>
    %506 = arith.mulf %505, %491 : vector<8x128xf32>
    %507 = arith.addf %489, %506 : vector<8x128xf32>
    %c0_183 = arith.constant 0 : index
    %c8_184 = arith.constant 8 : index
    %c0_185 = arith.constant 0 : index
    %508 = vector.load %arg5[%c0_183, %c8_184, %c0_185] : memref<4x19x128xf32, #tpu.memory_space<vmem>>, vector<1x8x128xf32>
    %509 = vector.shape_cast %508 : vector<1x8x128xf32> to vector<8x128xf32>
    %510 = vector.shape_cast %495 : vector<8x128xf32> to vector<1x8x128xf32>
    tpu.vector_store %arg5[%c0_183, %c8_184, %c0_185], %510 {strides = array<i32>} : memref<4x19x128xf32, #tpu.memory_space<vmem>>, vector<1x8x128xf32>,
    %c1_186 = arith.constant 1 : index
    %c8_187 = arith.constant 8 : index
    %c0_188 = arith.constant 0 : index
    %511 = vector.load %arg5[%c1_186, %c8_187, %c0_188] : memref<4x19x128xf32, #tpu.memory_space<vmem>>, vector<1x8x128xf32>
    %512 = vector.shape_cast %511 : vector<1x8x128xf32> to vector<8x128xf32>
    %513 = vector.shape_cast %499 : vector<8x128xf32> to vector<1x8x128xf32>
    tpu.vector_store %arg5[%c1_186, %c8_187, %c0_188], %513 {strides = array<i32>} : memref<4x19x128xf32, #tpu.memory_space<vmem>>, vector<1x8x128xf32>,
    %c2_189 = arith.constant 2 : index
    %c8_190 = arith.constant 8 : index
    %c0_191 = arith.constant 0 : index
    %514 = vector.load %arg5[%c2_189, %c8_190, %c0_191] : memref<4x19x128xf32, #tpu.memory_space<vmem>>, vector<1x8x128xf32>
    %515 = vector.shape_cast %514 : vector<1x8x128xf32> to vector<8x128xf32>
    %516 = vector.shape_cast %503 : vector<8x128xf32> to vector<1x8x128xf32>
    tpu.vector_store %arg5[%c2_189, %c8_190, %c0_191], %516 {strides = array<i32>} : memref<4x19x128xf32, #tpu.memory_space<vmem>>, vector<1x8x128xf32>,
    %c3_192 = arith.constant 3 : index
    %c8_193 = arith.constant 8 : index
    %c0_194 = arith.constant 0 : index
    %517 = vector.load %arg5[%c3_192, %c8_193, %c0_194] : memref<4x19x128xf32, #tpu.memory_space<vmem>>, vector<1x8x128xf32>
    %518 = vector.shape_cast %517 : vector<1x8x128xf32> to vector<8x128xf32>
    %519 = vector.shape_cast %507 : vector<8x128xf32> to vector<1x8x128xf32>
    tpu.vector_store %arg5[%c3_192, %c8_193, %c0_194], %519 {strides = array<i32>} : memref<4x19x128xf32, #tpu.memory_space<vmem>>, vector<1x8x128xf32>,
    %cst_195 = arith.constant 0.000000e+00 : f32
    %520 = vector.broadcast %cst_195 : f32 to vector<3x128xf32>
    %cst_196 = arith.constant 0.000000e+00 : f32
    %521 = vector.broadcast %cst_196 : f32 to vector<3x128xf32>
    %cst_197 = arith.constant 0.000000e+00 : f32
    %522 = vector.broadcast %cst_197 : f32 to vector<3x128xf32>
    %cst_198 = arith.constant 0.000000e+00 : f32
    %523 = vector.broadcast %cst_198 : f32 to vector<3x128xf32>
    %c0_199 = arith.constant 0 : index
    %c22_200 = arith.constant 22 : index
    %c0_201 = arith.constant 0 : index
    %524 = vector.load %arg7[%c0_199, %c22_200, %c0_201] : memref<4x27x128xf32, #tpu.memory_space<vmem>>, vector<1x3x128xf32>
    %525 = vector.shape_cast %524 : vector<1x3x128xf32> to vector<3x128xf32>
    %c0_202 = arith.constant 0 : index
    %526 = memref.load %arg4[%c0_202] : memref<48xf32, #tpu.memory_space<smem>>
    %527 = vector.broadcast %526 : f32 to vector<3x128xf32>
    %528 = arith.mulf %527, %525 : vector<3x128xf32>
    %529 = arith.addf %520, %528 : vector<3x128xf32>
    %c12_203 = arith.constant 12 : index
    %530 = memref.load %arg4[%c12_203] : memref<48xf32, #tpu.memory_space<smem>>
    %531 = vector.broadcast %530 : f32 to vector<3x128xf32>
    %532 = arith.mulf %531, %525 : vector<3x128xf32>
    %533 = arith.addf %521, %532 : vector<3x128xf32>
    %c24_204 = arith.constant 24 : index
    %534 = memref.load %arg4[%c24_204] : memref<48xf32, #tpu.memory_space<smem>>
    %535 = vector.broadcast %534 : f32 to vector<3x128xf32>
    %536 = arith.mulf %535, %525 : vector<3x128xf32>
    %537 = arith.addf %522, %536 : vector<3x128xf32>
    %c36_205 = arith.constant 36 : index
    %538 = memref.load %arg4[%c36_205] : memref<48xf32, #tpu.memory_space<smem>>
    %539 = vector.broadcast %538 : f32 to vector<3x128xf32>
    %540 = arith.mulf %539, %525 : vector<3x128xf32>
    %541 = arith.addf %523, %540 : vector<3x128xf32>
    %c0_206 = arith.constant 0 : index
    %c23_207 = arith.constant 23 : index
    %c0_208 = arith.constant 0 : index
    %542 = vector.load %arg7[%c0_206, %c23_207, %c0_208] : memref<4x27x128xf32, #tpu.memory_space<vmem>>, vector<1x3x128xf32>
    %543 = vector.shape_cast %542 : vector<1x3x128xf32> to vector<3x128xf32>
    %c1_209 = arith.constant 1 : index
    %544 = memref.load %arg4[%c1_209] : memref<48xf32, #tpu.memory_space<smem>>
    %545 = vector.broadcast %544 : f32 to vector<3x128xf32>
    %546 = arith.mulf %545, %543 : vector<3x128xf32>
    %547 = arith.addf %529, %546 : vector<3x128xf32>
    %c13_210 = arith.constant 13 : index
    %548 = memref.load %arg4[%c13_210] : memref<48xf32, #tpu.memory_space<smem>>
    %549 = vector.broadcast %548 : f32 to vector<3x128xf32>
    %550 = arith.mulf %549, %543 : vector<3x128xf32>
    %551 = arith.addf %533, %550 : vector<3x128xf32>
    %c25_211 = arith.constant 25 : index
    %552 = memref.load %arg4[%c25_211] : memref<48xf32, #tpu.memory_space<smem>>
    %553 = vector.broadcast %552 : f32 to vector<3x128xf32>
    %554 = arith.mulf %553, %543 : vector<3x128xf32>
    %555 = arith.addf %537, %554 : vector<3x128xf32>
    %c37_212 = arith.constant 37 : index
    %556 = memref.load %arg4[%c37_212] : memref<48xf32, #tpu.memory_space<smem>>
    %557 = vector.broadcast %556 : f32 to vector<3x128xf32>
    %558 = arith.mulf %557, %543 : vector<3x128xf32>
    %559 = arith.addf %541, %558 : vector<3x128xf32>
    %c0_213 = arith.constant 0 : index
    %c24_214 = arith.constant 24 : index
    %c0_215 = arith.constant 0 : index
    %560 = vector.load %arg7[%c0_213, %c24_214, %c0_215] : memref<4x27x128xf32, #tpu.memory_space<vmem>>, vector<1x3x128xf32>
    %561 = vector.shape_cast %560 : vector<1x3x128xf32> to vector<3x128xf32>
    %c2_216 = arith.constant 2 : index
    %562 = memref.load %arg4[%c2_216] : memref<48xf32, #tpu.memory_space<smem>>
    %563 = vector.broadcast %562 : f32 to vector<3x128xf32>
    %564 = arith.mulf %563, %561 : vector<3x128xf32>
    %565 = arith.addf %547, %564 : vector<3x128xf32>
    %c14_217 = arith.constant 14 : index
    %566 = memref.load %arg4[%c14_217] : memref<48xf32, #tpu.memory_space<smem>>
    %567 = vector.broadcast %566 : f32 to vector<3x128xf32>
    %568 = arith.mulf %567, %561 : vector<3x128xf32>
    %569 = arith.addf %551, %568 : vector<3x128xf32>
    %c26_218 = arith.constant 26 : index
    %570 = memref.load %arg4[%c26_218] : memref<48xf32, #tpu.memory_space<smem>>
    %571 = vector.broadcast %570 : f32 to vector<3x128xf32>
    %572 = arith.mulf %571, %561 : vector<3x128xf32>
    %573 = arith.addf %555, %572 : vector<3x128xf32>
    %c38_219 = arith.constant 38 : index
    %574 = memref.load %arg4[%c38_219] : memref<48xf32, #tpu.memory_space<smem>>
    %575 = vector.broadcast %574 : f32 to vector<3x128xf32>
    %576 = arith.mulf %575, %561 : vector<3x128xf32>
    %577 = arith.addf %559, %576 : vector<3x128xf32>
    %c1_220 = arith.constant 1 : index
    %c22_221 = arith.constant 22 : index
    %c0_222 = arith.constant 0 : index
    %578 = vector.load %arg7[%c1_220, %c22_221, %c0_222] : memref<4x27x128xf32, #tpu.memory_space<vmem>>, vector<1x3x128xf32>
    %579 = vector.shape_cast %578 : vector<1x3x128xf32> to vector<3x128xf32>
    %c3_223 = arith.constant 3 : index
    %580 = memref.load %arg4[%c3_223] : memref<48xf32, #tpu.memory_space<smem>>
    %581 = vector.broadcast %580 : f32 to vector<3x128xf32>
    %582 = arith.mulf %581, %579 : vector<3x128xf32>
    %583 = arith.addf %565, %582 : vector<3x128xf32>
    %c15_224 = arith.constant 15 : index
    %584 = memref.load %arg4[%c15_224] : memref<48xf32, #tpu.memory_space<smem>>
    %585 = vector.broadcast %584 : f32 to vector<3x128xf32>
    %586 = arith.mulf %585, %579 : vector<3x128xf32>
    %587 = arith.addf %569, %586 : vector<3x128xf32>
    %c27_225 = arith.constant 27 : index
    %588 = memref.load %arg4[%c27_225] : memref<48xf32, #tpu.memory_space<smem>>
    %589 = vector.broadcast %588 : f32 to vector<3x128xf32>
    %590 = arith.mulf %589, %579 : vector<3x128xf32>
    %591 = arith.addf %573, %590 : vector<3x128xf32>
    %c39_226 = arith.constant 39 : index
    %592 = memref.load %arg4[%c39_226] : memref<48xf32, #tpu.memory_space<smem>>
    %593 = vector.broadcast %592 : f32 to vector<3x128xf32>
    %594 = arith.mulf %593, %579 : vector<3x128xf32>
    %595 = arith.addf %577, %594 : vector<3x128xf32>
    %c1_227 = arith.constant 1 : index
    %c23_228 = arith.constant 23 : index
    %c0_229 = arith.constant 0 : index
    %596 = vector.load %arg7[%c1_227, %c23_228, %c0_229] : memref<4x27x128xf32, #tpu.memory_space<vmem>>, vector<1x3x128xf32>
    %597 = vector.shape_cast %596 : vector<1x3x128xf32> to vector<3x128xf32>
    %c4_230 = arith.constant 4 : index
    %598 = memref.load %arg4[%c4_230] : memref<48xf32, #tpu.memory_space<smem>>
    %599 = vector.broadcast %598 : f32 to vector<3x128xf32>
    %600 = arith.mulf %599, %597 : vector<3x128xf32>
    %601 = arith.addf %583, %600 : vector<3x128xf32>
    %c16_231 = arith.constant 16 : index
    %602 = memref.load %arg4[%c16_231] : memref<48xf32, #tpu.memory_space<smem>>
    %603 = vector.broadcast %602 : f32 to vector<3x128xf32>
    %604 = arith.mulf %603, %597 : vector<3x128xf32>
    %605 = arith.addf %587, %604 : vector<3x128xf32>
    %c28_232 = arith.constant 28 : index
    %606 = memref.load %arg4[%c28_232] : memref<48xf32, #tpu.memory_space<smem>>
    %607 = vector.broadcast %606 : f32 to vector<3x128xf32>
    %608 = arith.mulf %607, %597 : vector<3x128xf32>
    %609 = arith.addf %591, %608 : vector<3x128xf32>
    %c40_233 = arith.constant 40 : index
    %610 = memref.load %arg4[%c40_233] : memref<48xf32, #tpu.memory_space<smem>>
    %611 = vector.broadcast %610 : f32 to vector<3x128xf32>
    %612 = arith.mulf %611, %597 : vector<3x128xf32>
    %613 = arith.addf %595, %612 : vector<3x128xf32>
    %c1_234 = arith.constant 1 : index
    %c24_235 = arith.constant 24 : index
    %c0_236 = arith.constant 0 : index
    %614 = vector.load %arg7[%c1_234, %c24_235, %c0_236] : memref<4x27x128xf32, #tpu.memory_space<vmem>>, vector<1x3x128xf32>
    %615 = vector.shape_cast %614 : vector<1x3x128xf32> to vector<3x128xf32>
    %c5_237 = arith.constant 5 : index
    %616 = memref.load %arg4[%c5_237] : memref<48xf32, #tpu.memory_space<smem>>
    %617 = vector.broadcast %616 : f32 to vector<3x128xf32>
    %618 = arith.mulf %617, %615 : vector<3x128xf32>
    %619 = arith.addf %601, %618 : vector<3x128xf32>
    %c17_238 = arith.constant 17 : index
    %620 = memref.load %arg4[%c17_238] : memref<48xf32, #tpu.memory_space<smem>>
    %621 = vector.broadcast %620 : f32 to vector<3x128xf32>
    %622 = arith.mulf %621, %615 : vector<3x128xf32>
    %623 = arith.addf %605, %622 : vector<3x128xf32>
    %c29_239 = arith.constant 29 : index
    %624 = memref.load %arg4[%c29_239] : memref<48xf32, #tpu.memory_space<smem>>
    %625 = vector.broadcast %624 : f32 to vector<3x128xf32>
    %626 = arith.mulf %625, %615 : vector<3x128xf32>
    %627 = arith.addf %609, %626 : vector<3x128xf32>
    %c41_240 = arith.constant 41 : index
    %628 = memref.load %arg4[%c41_240] : memref<48xf32, #tpu.memory_space<smem>>
    %629 = vector.broadcast %628 : f32 to vector<3x128xf32>
    %630 = arith.mulf %629, %615 : vector<3x128xf32>
    %631 = arith.addf %613, %630 : vector<3x128xf32>
    %c2_241 = arith.constant 2 : index
    %c22_242 = arith.constant 22 : index
    %c0_243 = arith.constant 0 : index
    %632 = vector.load %arg7[%c2_241, %c22_242, %c0_243] : memref<4x27x128xf32, #tpu.memory_space<vmem>>, vector<1x3x128xf32>
    %633 = vector.shape_cast %632 : vector<1x3x128xf32> to vector<3x128xf32>
    %c6_244 = arith.constant 6 : index
    %634 = memref.load %arg4[%c6_244] : memref<48xf32, #tpu.memory_space<smem>>
    %635 = vector.broadcast %634 : f32 to vector<3x128xf32>
    %636 = arith.mulf %635, %633 : vector<3x128xf32>
    %637 = arith.addf %619, %636 : vector<3x128xf32>
    %c18_245 = arith.constant 18 : index
    %638 = memref.load %arg4[%c18_245] : memref<48xf32, #tpu.memory_space<smem>>
    %639 = vector.broadcast %638 : f32 to vector<3x128xf32>
    %640 = arith.mulf %639, %633 : vector<3x128xf32>
    %641 = arith.addf %623, %640 : vector<3x128xf32>
    %c30_246 = arith.constant 30 : index
    %642 = memref.load %arg4[%c30_246] : memref<48xf32, #tpu.memory_space<smem>>
    %643 = vector.broadcast %642 : f32 to vector<3x128xf32>
    %644 = arith.mulf %643, %633 : vector<3x128xf32>
    %645 = arith.addf %627, %644 : vector<3x128xf32>
    %c42_247 = arith.constant 42 : index
    %646 = memref.load %arg4[%c42_247] : memref<48xf32, #tpu.memory_space<smem>>
    %647 = vector.broadcast %646 : f32 to vector<3x128xf32>
    %648 = arith.mulf %647, %633 : vector<3x128xf32>
    %649 = arith.addf %631, %648 : vector<3x128xf32>
    %c2_248 = arith.constant 2 : index
    %c23_249 = arith.constant 23 : index
    %c0_250 = arith.constant 0 : index
    %650 = vector.load %arg7[%c2_248, %c23_249, %c0_250] : memref<4x27x128xf32, #tpu.memory_space<vmem>>, vector<1x3x128xf32>
    %651 = vector.shape_cast %650 : vector<1x3x128xf32> to vector<3x128xf32>
    %c7_251 = arith.constant 7 : index
    %652 = memref.load %arg4[%c7_251] : memref<48xf32, #tpu.memory_space<smem>>
    %653 = vector.broadcast %652 : f32 to vector<3x128xf32>
    %654 = arith.mulf %653, %651 : vector<3x128xf32>
    %655 = arith.addf %637, %654 : vector<3x128xf32>
    %c19_252 = arith.constant 19 : index
    %656 = memref.load %arg4[%c19_252] : memref<48xf32, #tpu.memory_space<smem>>
    %657 = vector.broadcast %656 : f32 to vector<3x128xf32>
    %658 = arith.mulf %657, %651 : vector<3x128xf32>
    %659 = arith.addf %641, %658 : vector<3x128xf32>
    %c31_253 = arith.constant 31 : index
    %660 = memref.load %arg4[%c31_253] : memref<48xf32, #tpu.memory_space<smem>>
    %661 = vector.broadcast %660 : f32 to vector<3x128xf32>
    %662 = arith.mulf %661, %651 : vector<3x128xf32>
    %663 = arith.addf %645, %662 : vector<3x128xf32>
    %c43_254 = arith.constant 43 : index
    %664 = memref.load %arg4[%c43_254] : memref<48xf32, #tpu.memory_space<smem>>
    %665 = vector.broadcast %664 : f32 to vector<3x128xf32>
    %666 = arith.mulf %665, %651 : vector<3x128xf32>
    %667 = arith.addf %649, %666 : vector<3x128xf32>
    %c2_255 = arith.constant 2 : index
    %c24_256 = arith.constant 24 : index
    %c0_257 = arith.constant 0 : index
    %668 = vector.load %arg7[%c2_255, %c24_256, %c0_257] : memref<4x27x128xf32, #tpu.memory_space<vmem>>, vector<1x3x128xf32>
    %669 = vector.shape_cast %668 : vector<1x3x128xf32> to vector<3x128xf32>
    %c8_258 = arith.constant 8 : index
    %670 = memref.load %arg4[%c8_258] : memref<48xf32, #tpu.memory_space<smem>>
    %671 = vector.broadcast %670 : f32 to vector<3x128xf32>
    %672 = arith.mulf %671, %669 : vector<3x128xf32>
    %673 = arith.addf %655, %672 : vector<3x128xf32>
    %c20_259 = arith.constant 20 : index
    %674 = memref.load %arg4[%c20_259] : memref<48xf32, #tpu.memory_space<smem>>
    %675 = vector.broadcast %674 : f32 to vector<3x128xf32>
    %676 = arith.mulf %675, %669 : vector<3x128xf32>
    %677 = arith.addf %659, %676 : vector<3x128xf32>
    %c32_260 = arith.constant 32 : index
    %678 = memref.load %arg4[%c32_260] : memref<48xf32, #tpu.memory_space<smem>>
    %679 = vector.broadcast %678 : f32 to vector<3x128xf32>
    %680 = arith.mulf %679, %669 : vector<3x128xf32>
    %681 = arith.addf %663, %680 : vector<3x128xf32>
    %c44_261 = arith.constant 44 : index
    %682 = memref.load %arg4[%c44_261] : memref<48xf32, #tpu.memory_space<smem>>
    %683 = vector.broadcast %682 : f32 to vector<3x128xf32>
    %684 = arith.mulf %683, %669 : vector<3x128xf32>
    %685 = arith.addf %667, %684 : vector<3x128xf32>
    %c3_262 = arith.constant 3 : index
    %c22_263 = arith.constant 22 : index
    %c0_264 = arith.constant 0 : index
    %686 = vector.load %arg7[%c3_262, %c22_263, %c0_264] : memref<4x27x128xf32, #tpu.memory_space<vmem>>, vector<1x3x128xf32>
    %687 = vector.shape_cast %686 : vector<1x3x128xf32> to vector<3x128xf32>
    %c9_265 = arith.constant 9 : index
    %688 = memref.load %arg4[%c9_265] : memref<48xf32, #tpu.memory_space<smem>>
    %689 = vector.broadcast %688 : f32 to vector<3x128xf32>
    %690 = arith.mulf %689, %687 : vector<3x128xf32>
    %691 = arith.addf %673, %690 : vector<3x128xf32>
    %c21_266 = arith.constant 21 : index
    %692 = memref.load %arg4[%c21_266] : memref<48xf32, #tpu.memory_space<smem>>
    %693 = vector.broadcast %692 : f32 to vector<3x128xf32>
    %694 = arith.mulf %693, %687 : vector<3x128xf32>
    %695 = arith.addf %677, %694 : vector<3x128xf32>
    %c33_267 = arith.constant 33 : index
    %696 = memref.load %arg4[%c33_267] : memref<48xf32, #tpu.memory_space<smem>>
    %697 = vector.broadcast %696 : f32 to vector<3x128xf32>
    %698 = arith.mulf %697, %687 : vector<3x128xf32>
    %699 = arith.addf %681, %698 : vector<3x128xf32>
    %c45_268 = arith.constant 45 : index
    %700 = memref.load %arg4[%c45_268] : memref<48xf32, #tpu.memory_space<smem>>
    %701 = vector.broadcast %700 : f32 to vector<3x128xf32>
    %702 = arith.mulf %701, %687 : vector<3x128xf32>
    %703 = arith.addf %685, %702 : vector<3x128xf32>
    %c3_269 = arith.constant 3 : index
    %c23_270 = arith.constant 23 : index
    %c0_271 = arith.constant 0 : index
    %704 = vector.load %arg7[%c3_269, %c23_270, %c0_271] : memref<4x27x128xf32, #tpu.memory_space<vmem>>, vector<1x3x128xf32>
    %705 = vector.shape_cast %704 : vector<1x3x128xf32> to vector<3x128xf32>
    %c10_272 = arith.constant 10 : index
    %706 = memref.load %arg4[%c10_272] : memref<48xf32, #tpu.memory_space<smem>>
    %707 = vector.broadcast %706 : f32 to vector<3x128xf32>
    %708 = arith.mulf %707, %705 : vector<3x128xf32>
    %709 = arith.addf %691, %708 : vector<3x128xf32>
    %c22_273 = arith.constant 22 : index
    %710 = memref.load %arg4[%c22_273] : memref<48xf32, #tpu.memory_space<smem>>
    %711 = vector.broadcast %710 : f32 to vector<3x128xf32>
    %712 = arith.mulf %711, %705 : vector<3x128xf32>
    %713 = arith.addf %695, %712 : vector<3x128xf32>
    %c34_274 = arith.constant 34 : index
    %714 = memref.load %arg4[%c34_274] : memref<48xf32, #tpu.memory_space<smem>>
    %715 = vector.broadcast %714 : f32 to vector<3x128xf32>
    %716 = arith.mulf %715, %705 : vector<3x128xf32>
    %717 = arith.addf %699, %716 : vector<3x128xf32>
    %c46_275 = arith.constant 46 : index
    %718 = memref.load %arg4[%c46_275] : memref<48xf32, #tpu.memory_space<smem>>
    %719 = vector.broadcast %718 : f32 to vector<3x128xf32>
    %720 = arith.mulf %719, %705 : vector<3x128xf32>
    %721 = arith.addf %703, %720 : vector<3x128xf32>
    %c3_276 = arith.constant 3 : index
    %c24_277 = arith.constant 24 : index
    %c0_278 = arith.constant 0 : index
    %722 = vector.load %arg7[%c3_276, %c24_277, %c0_278] : memref<4x27x128xf32, #tpu.memory_space<vmem>>, vector<1x3x128xf32>
    %723 = vector.shape_cast %722 : vector<1x3x128xf32> to vector<3x128xf32>
    %c11_279 = arith.constant 11 : index
    %724 = memref.load %arg4[%c11_279] : memref<48xf32, #tpu.memory_space<smem>>
    %725 = vector.broadcast %724 : f32 to vector<3x128xf32>
    %726 = arith.mulf %725, %723 : vector<3x128xf32>
    %727 = arith.addf %709, %726 : vector<3x128xf32>
    %c23_280 = arith.constant 23 : index
    %728 = memref.load %arg4[%c23_280] : memref<48xf32, #tpu.memory_space<smem>>
    %729 = vector.broadcast %728 : f32 to vector<3x128xf32>
    %730 = arith.mulf %729, %723 : vector<3x128xf32>
    %731 = arith.addf %713, %730 : vector<3x128xf32>
    %c35_281 = arith.constant 35 : index
    %732 = memref.load %arg4[%c35_281] : memref<48xf32, #tpu.memory_space<smem>>
    %733 = vector.broadcast %732 : f32 to vector<3x128xf32>
    %734 = arith.mulf %733, %723 : vector<3x128xf32>
    %735 = arith.addf %717, %734 : vector<3x128xf32>
    %c47_282 = arith.constant 47 : index
    %736 = memref.load %arg4[%c47_282] : memref<48xf32, #tpu.memory_space<smem>>
    %737 = vector.broadcast %736 : f32 to vector<3x128xf32>
    %738 = arith.mulf %737, %723 : vector<3x128xf32>
    %739 = arith.addf %721, %738 : vector<3x128xf32>
    %c0_283 = arith.constant 0 : index
    %c16_284 = arith.constant 16 : index
    %c0_285 = arith.constant 0 : index
    %740 = vector.load %arg5[%c0_283, %c16_284, %c0_285] : memref<4x19x128xf32, #tpu.memory_space<vmem>>, vector<1x3x128xf32>
    %741 = vector.shape_cast %740 : vector<1x3x128xf32> to vector<3x128xf32>
    %742 = vector.shape_cast %727 : vector<3x128xf32> to vector<1x3x128xf32>
    tpu.vector_store %arg5[%c0_283, %c16_284, %c0_285], %742 {strides = array<i32>} : memref<4x19x128xf32, #tpu.memory_space<vmem>>, vector<1x3x128xf32>,
    %c1_286 = arith.constant 1 : index
    %c16_287 = arith.constant 16 : index
    %c0_288 = arith.constant 0 : index
    %743 = vector.load %arg5[%c1_286, %c16_287, %c0_288] : memref<4x19x128xf32, #tpu.memory_space<vmem>>, vector<1x3x128xf32>
    %744 = vector.shape_cast %743 : vector<1x3x128xf32> to vector<3x128xf32>
    %745 = vector.shape_cast %731 : vector<3x128xf32> to vector<1x3x128xf32>
    tpu.vector_store %arg5[%c1_286, %c16_287, %c0_288], %745 {strides = array<i32>} : memref<4x19x128xf32, #tpu.memory_space<vmem>>, vector<1x3x128xf32>,
    %c2_289 = arith.constant 2 : index
    %c16_290 = arith.constant 16 : index
    %c0_291 = arith.constant 0 : index
    %746 = vector.load %arg5[%c2_289, %c16_290, %c0_291] : memref<4x19x128xf32, #tpu.memory_space<vmem>>, vector<1x3x128xf32>
    %747 = vector.shape_cast %746 : vector<1x3x128xf32> to vector<3x128xf32>
    %748 = vector.shape_cast %735 : vector<3x128xf32> to vector<1x3x128xf32>
    tpu.vector_store %arg5[%c2_289, %c16_290, %c0_291], %748 {strides = array<i32>} : memref<4x19x128xf32, #tpu.memory_space<vmem>>, vector<1x3x128xf32>,
    %c3_292 = arith.constant 3 : index
    %c16_293 = arith.constant 16 : index
    %c0_294 = arith.constant 0 : index
    %749 = vector.load %arg5[%c3_292, %c16_293, %c0_294] : memref<4x19x128xf32, #tpu.memory_space<vmem>>, vector<1x3x128xf32>
    %750 = vector.shape_cast %749 : vector<1x3x128xf32> to vector<3x128xf32>
    %751 = vector.shape_cast %739 : vector<3x128xf32> to vector<1x3x128xf32>
    tpu.vector_store %arg5[%c3_292, %c16_293, %c0_294], %751 {strides = array<i32>} : memref<4x19x128xf32, #tpu.memory_space<vmem>>, vector<1x3x128xf32>,
    %752 = tpu.iota {dimensions = array<i32: 1>} : vector<1x128xi32>
    %c128_i32 = arith.constant 128 : i32
    %753 = arith.muli %arg0, %c128_i32 : i32
    %754 = vector.broadcast %753 : i32 to vector<1x128xi32>
    %755 = arith.addi %752, %754 : vector<1x128xi32>
    %c8_i32 = arith.constant 8 : i32
    %756 = vector.broadcast %c8_i32 : i32 to vector<1x128xi32>
    %757 = arith.cmpi slt, %755, %756 : vector<1x128xi32>
    %758 = arith.extui %757 : vector<1x128xi1> to vector<1x128xi32>
    %759 = arith.sitofp %758 : vector<1x128xi32> to vector<1x128xf32>
    %c0_295 = arith.constant 0 : index
    %c0_296 = arith.constant 0 : index
    %c0_297 = arith.constant 0 : index
    %760 = vector.load %arg5[%c0_295, %c0_296, %c0_297] : memref<4x19x128xf32, #tpu.memory_space<vmem>>, vector<1x19x128xf32>
    %761 = vector.shape_cast %760 : vector<1x19x128xf32> to vector<19x128xf32>
    %762 = vector.broadcast %759 : vector<1x128xf32> to vector<19x128xf32>
    %763 = arith.mulf %761, %762 : vector<19x128xf32>
    %cst_298 = arith.constant dense<0.000000e+00> : vector<128xf32>
    %764 = vector.multi_reduction <add>, %763, %cst_298 [0] : vector<19x128xf32> to vector<128xf32>
    %765 = vector.shape_cast %764 : vector<128xf32> to vector<1x128xf32>
    %766 = arith.mulf %763, %763 : vector<19x128xf32>
    %cst_299 = arith.constant dense<0.000000e+00> : vector<128xf32>
    %767 = vector.multi_reduction <add>, %766, %cst_299 [0] : vector<19x128xf32> to vector<128xf32>
    %768 = vector.shape_cast %767 : vector<128xf32> to vector<1x128xf32>
    %c1_300 = arith.constant 1 : index
    %c0_301 = arith.constant 0 : index
    %c0_302 = arith.constant 0 : index
    %769 = vector.load %arg5[%c1_300, %c0_301, %c0_302] : memref<4x19x128xf32, #tpu.memory_space<vmem>>, vector<1x19x128xf32>
    %770 = vector.shape_cast %769 : vector<1x19x128xf32> to vector<19x128xf32>
    %771 = vector.broadcast %759 : vector<1x128xf32> to vector<19x128xf32>
    %772 = arith.mulf %770, %771 : vector<19x128xf32>
    %cst_303 = arith.constant dense<0.000000e+00> : vector<128xf32>
    %773 = vector.multi_reduction <add>, %772, %cst_303 [0] : vector<19x128xf32> to vector<128xf32>
    %774 = vector.shape_cast %773 : vector<128xf32> to vector<1x128xf32>
    %775 = arith.mulf %772, %772 : vector<19x128xf32>
    %cst_304 = arith.constant dense<0.000000e+00> : vector<128xf32>
    %776 = vector.multi_reduction <add>, %775, %cst_304 [0] : vector<19x128xf32> to vector<128xf32>
    %777 = vector.shape_cast %776 : vector<128xf32> to vector<1x128xf32>
    %c2_305 = arith.constant 2 : index
    %c0_306 = arith.constant 0 : index
    %c0_307 = arith.constant 0 : index
    %778 = vector.load %arg5[%c2_305, %c0_306, %c0_307] : memref<4x19x128xf32, #tpu.memory_space<vmem>>, vector<1x19x128xf32>
    %779 = vector.shape_cast %778 : vector<1x19x128xf32> to vector<19x128xf32>
    %780 = vector.broadcast %759 : vector<1x128xf32> to vector<19x128xf32>
    %781 = arith.mulf %779, %780 : vector<19x128xf32>
    %cst_308 = arith.constant dense<0.000000e+00> : vector<128xf32>
    %782 = vector.multi_reduction <add>, %781, %cst_308 [0] : vector<19x128xf32> to vector<128xf32>
    %783 = vector.shape_cast %782 : vector<128xf32> to vector<1x128xf32>
    %784 = arith.mulf %781, %781 : vector<19x128xf32>
    %cst_309 = arith.constant dense<0.000000e+00> : vector<128xf32>
    %785 = vector.multi_reduction <add>, %784, %cst_309 [0] : vector<19x128xf32> to vector<128xf32>
    %786 = vector.shape_cast %785 : vector<128xf32> to vector<1x128xf32>
    %c3_310 = arith.constant 3 : index
    %c0_311 = arith.constant 0 : index
    %c0_312 = arith.constant 0 : index
    %787 = vector.load %arg5[%c3_310, %c0_311, %c0_312] : memref<4x19x128xf32, #tpu.memory_space<vmem>>, vector<1x19x128xf32>
    %788 = vector.shape_cast %787 : vector<1x19x128xf32> to vector<19x128xf32>
    %789 = vector.broadcast %759 : vector<1x128xf32> to vector<19x128xf32>
    %790 = arith.mulf %788, %789 : vector<19x128xf32>
    %cst_313 = arith.constant dense<0.000000e+00> : vector<128xf32>
    %791 = vector.multi_reduction <add>, %790, %cst_313 [0] : vector<19x128xf32> to vector<128xf32>
    %792 = vector.shape_cast %791 : vector<128xf32> to vector<1x128xf32>
    %793 = arith.mulf %790, %790 : vector<19x128xf32>
    %cst_314 = arith.constant dense<0.000000e+00> : vector<128xf32>
    %794 = vector.multi_reduction <add>, %793, %cst_314 [0] : vector<19x128xf32> to vector<128xf32>
    %795 = vector.shape_cast %794 : vector<128xf32> to vector<1x128xf32>
    %796 = tpu.concatenate %765, %774, %783, %792, %768, %777, %786, %795 in 0 : vector<1x128xf32>, vector<1x128xf32>, vector<1x128xf32>, vector<1x128xf32>, vector<1x128xf32>, vector<1x128xf32>, vector<1x128xf32>, vector<1x128xf32> -> vector<8x128xf32>
    %c0_315 = arith.constant 0 : index
    %c0_316 = arith.constant 0 : index
    %797 = vector.load %arg6[%c0_315, %c0_316] : memref<8x128xf32, #tpu.memory_space<vmem>>, vector<8x128xf32>
    tpu.vector_store %arg6[%c0_315, %c0_316], %796 {strides = array<i32>} : memref<8x128xf32, #tpu.memory_space<vmem>>, vector<8x128xf32>,
    return
  }
  func.func @transform_0(%arg0: i32) -> (i32, i32, i32) {
    %c0_i32 = arith.constant 0 : i32
    %c0_i32_0 = arith.constant 0 : i32
    %c0_i32_1 = arith.constant 0 : i32
    return %c0_i32, %c0_i32_0, %arg0 : i32, i32, i32
  }
  func.func @transform_1(%arg0: i32) -> i32 {
    %c0_i32 = arith.constant 0 : i32
    %c0_i32_0 = arith.constant 0 : i32
    return %c0_i32 : i32
  }
  func.func @transform_2(%arg0: i32) -> i32 {
    %c0_i32 = arith.constant 0 : i32
    %c0_i32_0 = arith.constant 0 : i32
    return %c0_i32 : i32
  }
  func.func @transform_3(%arg0: i32) -> i32 {
    %c0_i32 = arith.constant 0 : i32
    %c0_i32_0 = arith.constant 0 : i32
    return %c0_i32 : i32
  }
  func.func @transform_4(%arg0: i32) -> (i32, i32, i32) {
    %c0_i32 = arith.constant 0 : i32
    %c0_i32_0 = arith.constant 0 : i32
    %c0_i32_1 = arith.constant 0 : i32
    return %c0_i32, %c0_i32_0, %arg0 : i32, i32, i32
  }
  func.func @transform_5(%arg0: i32) -> (i32, i32) {
    %c0_i32 = arith.constant 0 : i32
    %c0_i32_0 = arith.constant 0 : i32
    return %c0_i32, %arg0 : i32, i32
  }
}

module attributes {stable_mosaic.version = 11 : i64} {
  func.func @_k1_kernel(%arg0: i32, %arg1: memref<8x5x128xf32, #tpu.memory_space<vmem>>, %arg2: memref<4x15x128xf32, #tpu.memory_space<vmem>>, %arg3: memref<96xf32, #tpu.memory_space<smem>>, %arg4: memref<4xf32, #tpu.memory_space<smem>>, %arg5: memref<96xf32, #tpu.memory_space<smem>>, %arg6: memref<4x17x128xf32, #tpu.memory_space<vmem>>, %arg7: memref<8x128xf32, #tpu.memory_space<vmem>>, %arg8: memref<8x25x128xf32, #tpu.memory_space<vmem>>) attributes {dimension_semantics = [#tpu.dimension_semantics<parallel>], iteration_bounds = array<i64: 1>, scalar_prefetch = 0 : i64, scratch_operands = 1 : i64, tpu.core_type = #tpu.core_type<tc>, window_params = [{transform_indices = @transform_0, window_bounds = array<i64: 8, 5, 128>}, {transform_indices = @transform_1, window_bounds = array<i64: 4, 15, 128>}, {transform_indices = @transform_2, window_bounds = array<i64: 96>}, {transform_indices = @transform_3, window_bounds = array<i64: 4>}, {transform_indices = @transform_4, window_bounds = array<i64: 96>}, {transform_indices = @transform_5, window_bounds = array<i64: 4, 17, 128>}, {transform_indices = @transform_6, window_bounds = array<i64: 8, 128>}]} {
    %cst = arith.constant 0.000000e+00 : f32
    %0 = vector.broadcast %cst : f32 to vector<8x2x128xf32>
    %c0 = arith.constant 0 : index
    %c6 = arith.constant 6 : index
    %c0_0 = arith.constant 0 : index
    %1 = vector.load %arg8[%c0, %c6, %c0_0] : memref<8x25x128xf32, #tpu.memory_space<vmem>>, vector<8x2x128xf32>
    tpu.vector_store %arg8[%c0, %c6, %c0_0], %0 {strides = array<i32>} : memref<8x25x128xf32, #tpu.memory_space<vmem>>, vector<8x2x128xf32>,
    %cst_1 = arith.constant 0.000000e+00 : f32
    %2 = vector.broadcast %cst_1 : f32 to vector<8x2x128xf32>
    %c0_2 = arith.constant 0 : index
    %c23 = arith.constant 23 : index
    %c0_3 = arith.constant 0 : index
    %3 = vector.load %arg8[%c0_2, %c23, %c0_3] : memref<8x25x128xf32, #tpu.memory_space<vmem>>, vector<8x2x128xf32>
    tpu.vector_store %arg8[%c0_2, %c23, %c0_3], %2 {strides = array<i32>} : memref<8x25x128xf32, #tpu.memory_space<vmem>>, vector<8x2x128xf32>,
    %c0_4 = arith.constant 0 : index
    %c0_5 = arith.constant 0 : index
    %c0_6 = arith.constant 0 : index
    %4 = vector.load %arg2[%c0_4, %c0_5, %c0_6] : memref<4x15x128xf32, #tpu.memory_space<vmem>>, vector<4x15x128xf32>
    %c4 = arith.constant 4 : index
    %c8 = arith.constant 8 : index
    %c0_7 = arith.constant 0 : index
    %5 = vector.load %arg8[%c4, %c8, %c0_7] : memref<8x25x128xf32, #tpu.memory_space<vmem>>, vector<4x15x128xf32>
    tpu.vector_store %arg8[%c4, %c8, %c0_7], %4 {strides = array<i32>} : memref<8x25x128xf32, #tpu.memory_space<vmem>>, vector<4x15x128xf32>,
    %c0_8 = arith.constant 0 : index
    %c0_9 = arith.constant 0 : index
    %c0_10 = arith.constant 0 : index
    %6 = vector.load %arg1[%c0_8, %c0_9, %c0_10] : memref<8x5x128xf32, #tpu.memory_space<vmem>>, vector<1x5x128xf32>
    %7 = vector.shape_cast %6 : vector<1x5x128xf32> to vector<5x128xf32>
    %c1 = arith.constant 1 : index
    %c0_11 = arith.constant 0 : index
    %c0_12 = arith.constant 0 : index
    %8 = vector.load %arg1[%c1, %c0_11, %c0_12] : memref<8x5x128xf32, #tpu.memory_space<vmem>>, vector<1x5x128xf32>
    %9 = vector.shape_cast %8 : vector<1x5x128xf32> to vector<5x128xf32>
    %c2 = arith.constant 2 : index
    %c0_13 = arith.constant 0 : index
    %c0_14 = arith.constant 0 : index
    %10 = vector.load %arg1[%c2, %c0_13, %c0_14] : memref<8x5x128xf32, #tpu.memory_space<vmem>>, vector<1x5x128xf32>
    %11 = vector.shape_cast %10 : vector<1x5x128xf32> to vector<5x128xf32>
    %c3 = arith.constant 3 : index
    %c0_15 = arith.constant 0 : index
    %c0_16 = arith.constant 0 : index
    %12 = vector.load %arg1[%c3, %c0_15, %c0_16] : memref<8x5x128xf32, #tpu.memory_space<vmem>>, vector<1x5x128xf32>
    %13 = vector.shape_cast %12 : vector<1x5x128xf32> to vector<5x128xf32>
    %c4_17 = arith.constant 4 : index
    %c0_18 = arith.constant 0 : index
    %c0_19 = arith.constant 0 : index
    %14 = vector.load %arg1[%c4_17, %c0_18, %c0_19] : memref<8x5x128xf32, #tpu.memory_space<vmem>>, vector<1x5x128xf32>
    %15 = vector.shape_cast %14 : vector<1x5x128xf32> to vector<5x128xf32>
    %c5 = arith.constant 5 : index
    %c0_20 = arith.constant 0 : index
    %c0_21 = arith.constant 0 : index
    %16 = vector.load %arg1[%c5, %c0_20, %c0_21] : memref<8x5x128xf32, #tpu.memory_space<vmem>>, vector<1x5x128xf32>
    %17 = vector.shape_cast %16 : vector<1x5x128xf32> to vector<5x128xf32>
    %c6_22 = arith.constant 6 : index
    %c0_23 = arith.constant 0 : index
    %c0_24 = arith.constant 0 : index
    %18 = vector.load %arg1[%c6_22, %c0_23, %c0_24] : memref<8x5x128xf32, #tpu.memory_space<vmem>>, vector<1x5x128xf32>
    %19 = vector.shape_cast %18 : vector<1x5x128xf32> to vector<5x128xf32>
    %c7 = arith.constant 7 : index
    %c0_25 = arith.constant 0 : index
    %c0_26 = arith.constant 0 : index
    %20 = vector.load %arg1[%c7, %c0_25, %c0_26] : memref<8x5x128xf32, #tpu.memory_space<vmem>>, vector<1x5x128xf32>
    %21 = vector.shape_cast %20 : vector<1x5x128xf32> to vector<5x128xf32>
    %c0_27 = arith.constant 0 : index
    %22 = memref.load %arg4[%c0_27] : memref<4xf32, #tpu.memory_space<smem>>
    %23 = vector.broadcast %22 : f32 to vector<5x128xf32>
    %c0_28 = arith.constant 0 : index
    %24 = memref.load %arg3[%c0_28] : memref<96xf32, #tpu.memory_space<smem>>
    %25 = vector.broadcast %24 : f32 to vector<5x128xf32>
    %26 = arith.mulf %25, %7 : vector<5x128xf32>
    %27 = arith.addf %23, %26 : vector<5x128xf32>
    %c12 = arith.constant 12 : index
    %28 = memref.load %arg3[%c12] : memref<96xf32, #tpu.memory_space<smem>>
    %29 = vector.broadcast %28 : f32 to vector<5x128xf32>
    %30 = arith.mulf %29, %9 : vector<5x128xf32>
    %31 = arith.addf %27, %30 : vector<5x128xf32>
    %c24 = arith.constant 24 : index
    %32 = memref.load %arg3[%c24] : memref<96xf32, #tpu.memory_space<smem>>
    %33 = vector.broadcast %32 : f32 to vector<5x128xf32>
    %34 = arith.mulf %33, %11 : vector<5x128xf32>
    %35 = arith.addf %31, %34 : vector<5x128xf32>
    %c36 = arith.constant 36 : index
    %36 = memref.load %arg3[%c36] : memref<96xf32, #tpu.memory_space<smem>>
    %37 = vector.broadcast %36 : f32 to vector<5x128xf32>
    %38 = arith.mulf %37, %13 : vector<5x128xf32>
    %39 = arith.addf %35, %38 : vector<5x128xf32>
    %c48 = arith.constant 48 : index
    %40 = memref.load %arg3[%c48] : memref<96xf32, #tpu.memory_space<smem>>
    %41 = vector.broadcast %40 : f32 to vector<5x128xf32>
    %42 = arith.mulf %41, %15 : vector<5x128xf32>
    %43 = arith.addf %39, %42 : vector<5x128xf32>
    %c60 = arith.constant 60 : index
    %44 = memref.load %arg3[%c60] : memref<96xf32, #tpu.memory_space<smem>>
    %45 = vector.broadcast %44 : f32 to vector<5x128xf32>
    %46 = arith.mulf %45, %17 : vector<5x128xf32>
    %47 = arith.addf %43, %46 : vector<5x128xf32>
    %c72 = arith.constant 72 : index
    %48 = memref.load %arg3[%c72] : memref<96xf32, #tpu.memory_space<smem>>
    %49 = vector.broadcast %48 : f32 to vector<5x128xf32>
    %50 = arith.mulf %49, %19 : vector<5x128xf32>
    %51 = arith.addf %47, %50 : vector<5x128xf32>
    %c84 = arith.constant 84 : index
    %52 = memref.load %arg3[%c84] : memref<96xf32, #tpu.memory_space<smem>>
    %53 = vector.broadcast %52 : f32 to vector<5x128xf32>
    %54 = arith.mulf %53, %21 : vector<5x128xf32>
    %55 = arith.addf %51, %54 : vector<5x128xf32>
    %56 = vector.extract_strided_slice %55 {offsets = [0, 0], sizes = [1, 128], strides = [1, 1]} : vector<5x128xf32> to vector<1x128xf32>
    %57 = vector.shape_cast %56 : vector<1x128xf32> to vector<128xf32>
    %c0_29 = arith.constant 0 : index
    %c8_30 = arith.constant 8 : index
    %c0_31 = arith.constant 0 : index
    %58 = vector.load %arg8[%c0_29, %c8_30, %c0_31] : memref<8x25x128xf32, #tpu.memory_space<vmem>>, vector<1x1x128xf32>
    %59 = vector.shape_cast %58 : vector<1x1x128xf32> to vector<128xf32>
    %60 = vector.shape_cast %57 : vector<128xf32> to vector<1x1x128xf32>
    tpu.vector_store %arg8[%c0_29, %c8_30, %c0_31], %60 {strides = array<i32>} : memref<8x25x128xf32, #tpu.memory_space<vmem>>, vector<1x1x128xf32>,
    %61 = vector.extract_strided_slice %55 {offsets = [1, 0], sizes = [1, 128], strides = [1, 1]} : vector<5x128xf32> to vector<1x128xf32>
    %62 = vector.shape_cast %61 : vector<1x128xf32> to vector<128xf32>
    %c0_32 = arith.constant 0 : index
    %c11 = arith.constant 11 : index
    %c0_33 = arith.constant 0 : index
    %63 = vector.load %arg8[%c0_32, %c11, %c0_33] : memref<8x25x128xf32, #tpu.memory_space<vmem>>, vector<1x1x128xf32>
    %64 = vector.shape_cast %63 : vector<1x1x128xf32> to vector<128xf32>
    %65 = vector.shape_cast %62 : vector<128xf32> to vector<1x1x128xf32>
    tpu.vector_store %arg8[%c0_32, %c11, %c0_33], %65 {strides = array<i32>} : memref<8x25x128xf32, #tpu.memory_space<vmem>>, vector<1x1x128xf32>,
    %66 = vector.extract_strided_slice %55 {offsets = [2, 0], sizes = [1, 128], strides = [1, 1]} : vector<5x128xf32> to vector<1x128xf32>
    %67 = vector.shape_cast %66 : vector<1x128xf32> to vector<128xf32>
    %c0_34 = arith.constant 0 : index
    %c14 = arith.constant 14 : index
    %c0_35 = arith.constant 0 : index
    %68 = vector.load %arg8[%c0_34, %c14, %c0_35] : memref<8x25x128xf32, #tpu.memory_space<vmem>>, vector<1x1x128xf32>
    %69 = vector.shape_cast %68 : vector<1x1x128xf32> to vector<128xf32>
    %70 = vector.shape_cast %67 : vector<128xf32> to vector<1x1x128xf32>
    tpu.vector_store %arg8[%c0_34, %c14, %c0_35], %70 {strides = array<i32>} : memref<8x25x128xf32, #tpu.memory_space<vmem>>, vector<1x1x128xf32>,
    %71 = vector.extract_strided_slice %55 {offsets = [3, 0], sizes = [1, 128], strides = [1, 1]} : vector<5x128xf32> to vector<1x128xf32>
    %72 = vector.shape_cast %71 : vector<1x128xf32> to vector<128xf32>
    %c0_36 = arith.constant 0 : index
    %c17 = arith.constant 17 : index
    %c0_37 = arith.constant 0 : index
    %73 = vector.load %arg8[%c0_36, %c17, %c0_37] : memref<8x25x128xf32, #tpu.memory_space<vmem>>, vector<1x1x128xf32>
    %74 = vector.shape_cast %73 : vector<1x1x128xf32> to vector<128xf32>
    %75 = vector.shape_cast %72 : vector<128xf32> to vector<1x1x128xf32>
    tpu.vector_store %arg8[%c0_36, %c17, %c0_37], %75 {strides = array<i32>} : memref<8x25x128xf32, #tpu.memory_space<vmem>>, vector<1x1x128xf32>,
    %76 = vector.extract_strided_slice %55 {offsets = [4, 0], sizes = [1, 128], strides = [1, 1]} : vector<5x128xf32> to vector<1x128xf32>
    %77 = vector.shape_cast %76 : vector<1x128xf32> to vector<128xf32>
    %c0_38 = arith.constant 0 : index
    %c20 = arith.constant 20 : index
    %c0_39 = arith.constant 0 : index
    %78 = vector.load %arg8[%c0_38, %c20, %c0_39] : memref<8x25x128xf32, #tpu.memory_space<vmem>>, vector<1x1x128xf32>
    %79 = vector.shape_cast %78 : vector<1x1x128xf32> to vector<128xf32>
    %80 = vector.shape_cast %77 : vector<128xf32> to vector<1x1x128xf32>
    tpu.vector_store %arg8[%c0_38, %c20, %c0_39], %80 {strides = array<i32>} : memref<8x25x128xf32, #tpu.memory_space<vmem>>, vector<1x1x128xf32>,
    %c0_40 = arith.constant 0 : index
    %81 = memref.load %arg4[%c0_40] : memref<4xf32, #tpu.memory_space<smem>>
    %82 = vector.broadcast %81 : f32 to vector<5x128xf32>
    %c1_41 = arith.constant 1 : index
    %83 = memref.load %arg3[%c1_41] : memref<96xf32, #tpu.memory_space<smem>>
    %84 = vector.broadcast %83 : f32 to vector<5x128xf32>
    %85 = arith.mulf %84, %7 : vector<5x128xf32>
    %86 = arith.addf %82, %85 : vector<5x128xf32>
    %c13 = arith.constant 13 : index
    %87 = memref.load %arg3[%c13] : memref<96xf32, #tpu.memory_space<smem>>
    %88 = vector.broadcast %87 : f32 to vector<5x128xf32>
    %89 = arith.mulf %88, %9 : vector<5x128xf32>
    %90 = arith.addf %86, %89 : vector<5x128xf32>
    %c25 = arith.constant 25 : index
    %91 = memref.load %arg3[%c25] : memref<96xf32, #tpu.memory_space<smem>>
    %92 = vector.broadcast %91 : f32 to vector<5x128xf32>
    %93 = arith.mulf %92, %11 : vector<5x128xf32>
    %94 = arith.addf %90, %93 : vector<5x128xf32>
    %c37 = arith.constant 37 : index
    %95 = memref.load %arg3[%c37] : memref<96xf32, #tpu.memory_space<smem>>
    %96 = vector.broadcast %95 : f32 to vector<5x128xf32>
    %97 = arith.mulf %96, %13 : vector<5x128xf32>
    %98 = arith.addf %94, %97 : vector<5x128xf32>
    %c49 = arith.constant 49 : index
    %99 = memref.load %arg3[%c49] : memref<96xf32, #tpu.memory_space<smem>>
    %100 = vector.broadcast %99 : f32 to vector<5x128xf32>
    %101 = arith.mulf %100, %15 : vector<5x128xf32>
    %102 = arith.addf %98, %101 : vector<5x128xf32>
    %c61 = arith.constant 61 : index
    %103 = memref.load %arg3[%c61] : memref<96xf32, #tpu.memory_space<smem>>
    %104 = vector.broadcast %103 : f32 to vector<5x128xf32>
    %105 = arith.mulf %104, %17 : vector<5x128xf32>
    %106 = arith.addf %102, %105 : vector<5x128xf32>
    %c73 = arith.constant 73 : index
    %107 = memref.load %arg3[%c73] : memref<96xf32, #tpu.memory_space<smem>>
    %108 = vector.broadcast %107 : f32 to vector<5x128xf32>
    %109 = arith.mulf %108, %19 : vector<5x128xf32>
    %110 = arith.addf %106, %109 : vector<5x128xf32>
    %c85 = arith.constant 85 : index
    %111 = memref.load %arg3[%c85] : memref<96xf32, #tpu.memory_space<smem>>
    %112 = vector.broadcast %111 : f32 to vector<5x128xf32>
    %113 = arith.mulf %112, %21 : vector<5x128xf32>
    %114 = arith.addf %110, %113 : vector<5x128xf32>
    %115 = vector.extract_strided_slice %114 {offsets = [0, 0], sizes = [1, 128], strides = [1, 1]} : vector<5x128xf32> to vector<1x128xf32>
    %116 = vector.shape_cast %115 : vector<1x128xf32> to vector<128xf32>
    %c0_42 = arith.constant 0 : index
    %c9 = arith.constant 9 : index
    %c0_43 = arith.constant 0 : index
    %117 = vector.load %arg8[%c0_42, %c9, %c0_43] : memref<8x25x128xf32, #tpu.memory_space<vmem>>, vector<1x1x128xf32>
    %118 = vector.shape_cast %117 : vector<1x1x128xf32> to vector<128xf32>
    %119 = vector.shape_cast %116 : vector<128xf32> to vector<1x1x128xf32>
    tpu.vector_store %arg8[%c0_42, %c9, %c0_43], %119 {strides = array<i32>} : memref<8x25x128xf32, #tpu.memory_space<vmem>>, vector<1x1x128xf32>,
    %120 = vector.extract_strided_slice %114 {offsets = [1, 0], sizes = [1, 128], strides = [1, 1]} : vector<5x128xf32> to vector<1x128xf32>
    %121 = vector.shape_cast %120 : vector<1x128xf32> to vector<128xf32>
    %c0_44 = arith.constant 0 : index
    %c12_45 = arith.constant 12 : index
    %c0_46 = arith.constant 0 : index
    %122 = vector.load %arg8[%c0_44, %c12_45, %c0_46] : memref<8x25x128xf32, #tpu.memory_space<vmem>>, vector<1x1x128xf32>
    %123 = vector.shape_cast %122 : vector<1x1x128xf32> to vector<128xf32>
    %124 = vector.shape_cast %121 : vector<128xf32> to vector<1x1x128xf32>
    tpu.vector_store %arg8[%c0_44, %c12_45, %c0_46], %124 {strides = array<i32>} : memref<8x25x128xf32, #tpu.memory_space<vmem>>, vector<1x1x128xf32>,
    %125 = vector.extract_strided_slice %114 {offsets = [2, 0], sizes = [1, 128], strides = [1, 1]} : vector<5x128xf32> to vector<1x128xf32>
    %126 = vector.shape_cast %125 : vector<1x128xf32> to vector<128xf32>
    %c0_47 = arith.constant 0 : index
    %c15 = arith.constant 15 : index
    %c0_48 = arith.constant 0 : index
    %127 = vector.load %arg8[%c0_47, %c15, %c0_48] : memref<8x25x128xf32, #tpu.memory_space<vmem>>, vector<1x1x128xf32>
    %128 = vector.shape_cast %127 : vector<1x1x128xf32> to vector<128xf32>
    %129 = vector.shape_cast %126 : vector<128xf32> to vector<1x1x128xf32>
    tpu.vector_store %arg8[%c0_47, %c15, %c0_48], %129 {strides = array<i32>} : memref<8x25x128xf32, #tpu.memory_space<vmem>>, vector<1x1x128xf32>,
    %130 = vector.extract_strided_slice %114 {offsets = [3, 0], sizes = [1, 128], strides = [1, 1]} : vector<5x128xf32> to vector<1x128xf32>
    %131 = vector.shape_cast %130 : vector<1x128xf32> to vector<128xf32>
    %c0_49 = arith.constant 0 : index
    %c18 = arith.constant 18 : index
    %c0_50 = arith.constant 0 : index
    %132 = vector.load %arg8[%c0_49, %c18, %c0_50] : memref<8x25x128xf32, #tpu.memory_space<vmem>>, vector<1x1x128xf32>
    %133 = vector.shape_cast %132 : vector<1x1x128xf32> to vector<128xf32>
    %134 = vector.shape_cast %131 : vector<128xf32> to vector<1x1x128xf32>
    tpu.vector_store %arg8[%c0_49, %c18, %c0_50], %134 {strides = array<i32>} : memref<8x25x128xf32, #tpu.memory_space<vmem>>, vector<1x1x128xf32>,
    %135 = vector.extract_strided_slice %114 {offsets = [4, 0], sizes = [1, 128], strides = [1, 1]} : vector<5x128xf32> to vector<1x128xf32>
    %136 = vector.shape_cast %135 : vector<1x128xf32> to vector<128xf32>
    %c0_51 = arith.constant 0 : index
    %c21 = arith.constant 21 : index
    %c0_52 = arith.constant 0 : index
    %137 = vector.load %arg8[%c0_51, %c21, %c0_52] : memref<8x25x128xf32, #tpu.memory_space<vmem>>, vector<1x1x128xf32>
    %138 = vector.shape_cast %137 : vector<1x1x128xf32> to vector<128xf32>
    %139 = vector.shape_cast %136 : vector<128xf32> to vector<1x1x128xf32>
    tpu.vector_store %arg8[%c0_51, %c21, %c0_52], %139 {strides = array<i32>} : memref<8x25x128xf32, #tpu.memory_space<vmem>>, vector<1x1x128xf32>,
    %c0_53 = arith.constant 0 : index
    %140 = memref.load %arg4[%c0_53] : memref<4xf32, #tpu.memory_space<smem>>
    %141 = vector.broadcast %140 : f32 to vector<5x128xf32>
    %c2_54 = arith.constant 2 : index
    %142 = memref.load %arg3[%c2_54] : memref<96xf32, #tpu.memory_space<smem>>
    %143 = vector.broadcast %142 : f32 to vector<5x128xf32>
    %144 = arith.mulf %143, %7 : vector<5x128xf32>
    %145 = arith.addf %141, %144 : vector<5x128xf32>
    %c14_55 = arith.constant 14 : index
    %146 = memref.load %arg3[%c14_55] : memref<96xf32, #tpu.memory_space<smem>>
    %147 = vector.broadcast %146 : f32 to vector<5x128xf32>
    %148 = arith.mulf %147, %9 : vector<5x128xf32>
    %149 = arith.addf %145, %148 : vector<5x128xf32>
    %c26 = arith.constant 26 : index
    %150 = memref.load %arg3[%c26] : memref<96xf32, #tpu.memory_space<smem>>
    %151 = vector.broadcast %150 : f32 to vector<5x128xf32>
    %152 = arith.mulf %151, %11 : vector<5x128xf32>
    %153 = arith.addf %149, %152 : vector<5x128xf32>
    %c38 = arith.constant 38 : index
    %154 = memref.load %arg3[%c38] : memref<96xf32, #tpu.memory_space<smem>>
    %155 = vector.broadcast %154 : f32 to vector<5x128xf32>
    %156 = arith.mulf %155, %13 : vector<5x128xf32>
    %157 = arith.addf %153, %156 : vector<5x128xf32>
    %c50 = arith.constant 50 : index
    %158 = memref.load %arg3[%c50] : memref<96xf32, #tpu.memory_space<smem>>
    %159 = vector.broadcast %158 : f32 to vector<5x128xf32>
    %160 = arith.mulf %159, %15 : vector<5x128xf32>
    %161 = arith.addf %157, %160 : vector<5x128xf32>
    %c62 = arith.constant 62 : index
    %162 = memref.load %arg3[%c62] : memref<96xf32, #tpu.memory_space<smem>>
    %163 = vector.broadcast %162 : f32 to vector<5x128xf32>
    %164 = arith.mulf %163, %17 : vector<5x128xf32>
    %165 = arith.addf %161, %164 : vector<5x128xf32>
    %c74 = arith.constant 74 : index
    %166 = memref.load %arg3[%c74] : memref<96xf32, #tpu.memory_space<smem>>
    %167 = vector.broadcast %166 : f32 to vector<5x128xf32>
    %168 = arith.mulf %167, %19 : vector<5x128xf32>
    %169 = arith.addf %165, %168 : vector<5x128xf32>
    %c86 = arith.constant 86 : index
    %170 = memref.load %arg3[%c86] : memref<96xf32, #tpu.memory_space<smem>>
    %171 = vector.broadcast %170 : f32 to vector<5x128xf32>
    %172 = arith.mulf %171, %21 : vector<5x128xf32>
    %173 = arith.addf %169, %172 : vector<5x128xf32>
    %174 = vector.extract_strided_slice %173 {offsets = [0, 0], sizes = [1, 128], strides = [1, 1]} : vector<5x128xf32> to vector<1x128xf32>
    %175 = vector.shape_cast %174 : vector<1x128xf32> to vector<128xf32>
    %c0_56 = arith.constant 0 : index
    %c10 = arith.constant 10 : index
    %c0_57 = arith.constant 0 : index
    %176 = vector.load %arg8[%c0_56, %c10, %c0_57] : memref<8x25x128xf32, #tpu.memory_space<vmem>>, vector<1x1x128xf32>
    %177 = vector.shape_cast %176 : vector<1x1x128xf32> to vector<128xf32>
    %178 = vector.shape_cast %175 : vector<128xf32> to vector<1x1x128xf32>
    tpu.vector_store %arg8[%c0_56, %c10, %c0_57], %178 {strides = array<i32>} : memref<8x25x128xf32, #tpu.memory_space<vmem>>, vector<1x1x128xf32>,
    %179 = vector.extract_strided_slice %173 {offsets = [1, 0], sizes = [1, 128], strides = [1, 1]} : vector<5x128xf32> to vector<1x128xf32>
    %180 = vector.shape_cast %179 : vector<1x128xf32> to vector<128xf32>
    %c0_58 = arith.constant 0 : index
    %c13_59 = arith.constant 13 : index
    %c0_60 = arith.constant 0 : index
    %181 = vector.load %arg8[%c0_58, %c13_59, %c0_60] : memref<8x25x128xf32, #tpu.memory_space<vmem>>, vector<1x1x128xf32>
    %182 = vector.shape_cast %181 : vector<1x1x128xf32> to vector<128xf32>
    %183 = vector.shape_cast %180 : vector<128xf32> to vector<1x1x128xf32>
    tpu.vector_store %arg8[%c0_58, %c13_59, %c0_60], %183 {strides = array<i32>} : memref<8x25x128xf32, #tpu.memory_space<vmem>>, vector<1x1x128xf32>,
    %184 = vector.extract_strided_slice %173 {offsets = [2, 0], sizes = [1, 128], strides = [1, 1]} : vector<5x128xf32> to vector<1x128xf32>
    %185 = vector.shape_cast %184 : vector<1x128xf32> to vector<128xf32>
    %c0_61 = arith.constant 0 : index
    %c16 = arith.constant 16 : index
    %c0_62 = arith.constant 0 : index
    %186 = vector.load %arg8[%c0_61, %c16, %c0_62] : memref<8x25x128xf32, #tpu.memory_space<vmem>>, vector<1x1x128xf32>
    %187 = vector.shape_cast %186 : vector<1x1x128xf32> to vector<128xf32>
    %188 = vector.shape_cast %185 : vector<128xf32> to vector<1x1x128xf32>
    tpu.vector_store %arg8[%c0_61, %c16, %c0_62], %188 {strides = array<i32>} : memref<8x25x128xf32, #tpu.memory_space<vmem>>, vector<1x1x128xf32>,
    %189 = vector.extract_strided_slice %173 {offsets = [3, 0], sizes = [1, 128], strides = [1, 1]} : vector<5x128xf32> to vector<1x128xf32>
    %190 = vector.shape_cast %189 : vector<1x128xf32> to vector<128xf32>
    %c0_63 = arith.constant 0 : index
    %c19 = arith.constant 19 : index
    %c0_64 = arith.constant 0 : index
    %191 = vector.load %arg8[%c0_63, %c19, %c0_64] : memref<8x25x128xf32, #tpu.memory_space<vmem>>, vector<1x1x128xf32>
    %192 = vector.shape_cast %191 : vector<1x1x128xf32> to vector<128xf32>
    %193 = vector.shape_cast %190 : vector<128xf32> to vector<1x1x128xf32>
    tpu.vector_store %arg8[%c0_63, %c19, %c0_64], %193 {strides = array<i32>} : memref<8x25x128xf32, #tpu.memory_space<vmem>>, vector<1x1x128xf32>,
    %194 = vector.extract_strided_slice %173 {offsets = [4, 0], sizes = [1, 128], strides = [1, 1]} : vector<5x128xf32> to vector<1x128xf32>
    %195 = vector.shape_cast %194 : vector<1x128xf32> to vector<128xf32>
    %c0_65 = arith.constant 0 : index
    %c22 = arith.constant 22 : index
    %c0_66 = arith.constant 0 : index
    %196 = vector.load %arg8[%c0_65, %c22, %c0_66] : memref<8x25x128xf32, #tpu.memory_space<vmem>>, vector<1x1x128xf32>
    %197 = vector.shape_cast %196 : vector<1x1x128xf32> to vector<128xf32>
    %198 = vector.shape_cast %195 : vector<128xf32> to vector<1x1x128xf32>
    tpu.vector_store %arg8[%c0_65, %c22, %c0_66], %198 {strides = array<i32>} : memref<8x25x128xf32, #tpu.memory_space<vmem>>, vector<1x1x128xf32>,
    %c1_67 = arith.constant 1 : index
    %199 = memref.load %arg4[%c1_67] : memref<4xf32, #tpu.memory_space<smem>>
    %200 = vector.broadcast %199 : f32 to vector<5x128xf32>
    %c3_68 = arith.constant 3 : index
    %201 = memref.load %arg3[%c3_68] : memref<96xf32, #tpu.memory_space<smem>>
    %202 = vector.broadcast %201 : f32 to vector<5x128xf32>
    %203 = arith.mulf %202, %7 : vector<5x128xf32>
    %204 = arith.addf %200, %203 : vector<5x128xf32>
    %c15_69 = arith.constant 15 : index
    %205 = memref.load %arg3[%c15_69] : memref<96xf32, #tpu.memory_space<smem>>
    %206 = vector.broadcast %205 : f32 to vector<5x128xf32>
    %207 = arith.mulf %206, %9 : vector<5x128xf32>
    %208 = arith.addf %204, %207 : vector<5x128xf32>
    %c27 = arith.constant 27 : index
    %209 = memref.load %arg3[%c27] : memref<96xf32, #tpu.memory_space<smem>>
    %210 = vector.broadcast %209 : f32 to vector<5x128xf32>
    %211 = arith.mulf %210, %11 : vector<5x128xf32>
    %212 = arith.addf %208, %211 : vector<5x128xf32>
    %c39 = arith.constant 39 : index
    %213 = memref.load %arg3[%c39] : memref<96xf32, #tpu.memory_space<smem>>
    %214 = vector.broadcast %213 : f32 to vector<5x128xf32>
    %215 = arith.mulf %214, %13 : vector<5x128xf32>
    %216 = arith.addf %212, %215 : vector<5x128xf32>
    %c51 = arith.constant 51 : index
    %217 = memref.load %arg3[%c51] : memref<96xf32, #tpu.memory_space<smem>>
    %218 = vector.broadcast %217 : f32 to vector<5x128xf32>
    %219 = arith.mulf %218, %15 : vector<5x128xf32>
    %220 = arith.addf %216, %219 : vector<5x128xf32>
    %c63 = arith.constant 63 : index
    %221 = memref.load %arg3[%c63] : memref<96xf32, #tpu.memory_space<smem>>
    %222 = vector.broadcast %221 : f32 to vector<5x128xf32>
    %223 = arith.mulf %222, %17 : vector<5x128xf32>
    %224 = arith.addf %220, %223 : vector<5x128xf32>
    %c75 = arith.constant 75 : index
    %225 = memref.load %arg3[%c75] : memref<96xf32, #tpu.memory_space<smem>>
    %226 = vector.broadcast %225 : f32 to vector<5x128xf32>
    %227 = arith.mulf %226, %19 : vector<5x128xf32>
    %228 = arith.addf %224, %227 : vector<5x128xf32>
    %c87 = arith.constant 87 : index
    %229 = memref.load %arg3[%c87] : memref<96xf32, #tpu.memory_space<smem>>
    %230 = vector.broadcast %229 : f32 to vector<5x128xf32>
    %231 = arith.mulf %230, %21 : vector<5x128xf32>
    %232 = arith.addf %228, %231 : vector<5x128xf32>
    %233 = vector.extract_strided_slice %232 {offsets = [0, 0], sizes = [1, 128], strides = [1, 1]} : vector<5x128xf32> to vector<1x128xf32>
    %234 = vector.shape_cast %233 : vector<1x128xf32> to vector<128xf32>
    %c1_70 = arith.constant 1 : index
    %c8_71 = arith.constant 8 : index
    %c0_72 = arith.constant 0 : index
    %235 = vector.load %arg8[%c1_70, %c8_71, %c0_72] : memref<8x25x128xf32, #tpu.memory_space<vmem>>, vector<1x1x128xf32>
    %236 = vector.shape_cast %235 : vector<1x1x128xf32> to vector<128xf32>
    %237 = vector.shape_cast %234 : vector<128xf32> to vector<1x1x128xf32>
    tpu.vector_store %arg8[%c1_70, %c8_71, %c0_72], %237 {strides = array<i32>} : memref<8x25x128xf32, #tpu.memory_space<vmem>>, vector<1x1x128xf32>,
    %238 = vector.extract_strided_slice %232 {offsets = [1, 0], sizes = [1, 128], strides = [1, 1]} : vector<5x128xf32> to vector<1x128xf32>
    %239 = vector.shape_cast %238 : vector<1x128xf32> to vector<128xf32>
    %c1_73 = arith.constant 1 : index
    %c11_74 = arith.constant 11 : index
    %c0_75 = arith.constant 0 : index
    %240 = vector.load %arg8[%c1_73, %c11_74, %c0_75] : memref<8x25x128xf32, #tpu.memory_space<vmem>>, vector<1x1x128xf32>
    %241 = vector.shape_cast %240 : vector<1x1x128xf32> to vector<128xf32>
    %242 = vector.shape_cast %239 : vector<128xf32> to vector<1x1x128xf32>
    tpu.vector_store %arg8[%c1_73, %c11_74, %c0_75], %242 {strides = array<i32>} : memref<8x25x128xf32, #tpu.memory_space<vmem>>, vector<1x1x128xf32>,
    %243 = vector.extract_strided_slice %232 {offsets = [2, 0], sizes = [1, 128], strides = [1, 1]} : vector<5x128xf32> to vector<1x128xf32>
    %244 = vector.shape_cast %243 : vector<1x128xf32> to vector<128xf32>
    %c1_76 = arith.constant 1 : index
    %c14_77 = arith.constant 14 : index
    %c0_78 = arith.constant 0 : index
    %245 = vector.load %arg8[%c1_76, %c14_77, %c0_78] : memref<8x25x128xf32, #tpu.memory_space<vmem>>, vector<1x1x128xf32>
    %246 = vector.shape_cast %245 : vector<1x1x128xf32> to vector<128xf32>
    %247 = vector.shape_cast %244 : vector<128xf32> to vector<1x1x128xf32>
    tpu.vector_store %arg8[%c1_76, %c14_77, %c0_78], %247 {strides = array<i32>} : memref<8x25x128xf32, #tpu.memory_space<vmem>>, vector<1x1x128xf32>,
    %248 = vector.extract_strided_slice %232 {offsets = [3, 0], sizes = [1, 128], strides = [1, 1]} : vector<5x128xf32> to vector<1x128xf32>
    %249 = vector.shape_cast %248 : vector<1x128xf32> to vector<128xf32>
    %c1_79 = arith.constant 1 : index
    %c17_80 = arith.constant 17 : index
    %c0_81 = arith.constant 0 : index
    %250 = vector.load %arg8[%c1_79, %c17_80, %c0_81] : memref<8x25x128xf32, #tpu.memory_space<vmem>>, vector<1x1x128xf32>
    %251 = vector.shape_cast %250 : vector<1x1x128xf32> to vector<128xf32>
    %252 = vector.shape_cast %249 : vector<128xf32> to vector<1x1x128xf32>
    tpu.vector_store %arg8[%c1_79, %c17_80, %c0_81], %252 {strides = array<i32>} : memref<8x25x128xf32, #tpu.memory_space<vmem>>, vector<1x1x128xf32>,
    %253 = vector.extract_strided_slice %232 {offsets = [4, 0], sizes = [1, 128], strides = [1, 1]} : vector<5x128xf32> to vector<1x128xf32>
    %254 = vector.shape_cast %253 : vector<1x128xf32> to vector<128xf32>
    %c1_82 = arith.constant 1 : index
    %c20_83 = arith.constant 20 : index
    %c0_84 = arith.constant 0 : index
    %255 = vector.load %arg8[%c1_82, %c20_83, %c0_84] : memref<8x25x128xf32, #tpu.memory_space<vmem>>, vector<1x1x128xf32>
    %256 = vector.shape_cast %255 : vector<1x1x128xf32> to vector<128xf32>
    %257 = vector.shape_cast %254 : vector<128xf32> to vector<1x1x128xf32>
    tpu.vector_store %arg8[%c1_82, %c20_83, %c0_84], %257 {strides = array<i32>} : memref<8x25x128xf32, #tpu.memory_space<vmem>>, vector<1x1x128xf32>,
    %c1_85 = arith.constant 1 : index
    %258 = memref.load %arg4[%c1_85] : memref<4xf32, #tpu.memory_space<smem>>
    %259 = vector.broadcast %258 : f32 to vector<5x128xf32>
    %c4_86 = arith.constant 4 : index
    %260 = memref.load %arg3[%c4_86] : memref<96xf32, #tpu.memory_space<smem>>
    %261 = vector.broadcast %260 : f32 to vector<5x128xf32>
    %262 = arith.mulf %261, %7 : vector<5x128xf32>
    %263 = arith.addf %259, %262 : vector<5x128xf32>
    %c16_87 = arith.constant 16 : index
    %264 = memref.load %arg3[%c16_87] : memref<96xf32, #tpu.memory_space<smem>>
    %265 = vector.broadcast %264 : f32 to vector<5x128xf32>
    %266 = arith.mulf %265, %9 : vector<5x128xf32>
    %267 = arith.addf %263, %266 : vector<5x128xf32>
    %c28 = arith.constant 28 : index
    %268 = memref.load %arg3[%c28] : memref<96xf32, #tpu.memory_space<smem>>
    %269 = vector.broadcast %268 : f32 to vector<5x128xf32>
    %270 = arith.mulf %269, %11 : vector<5x128xf32>
    %271 = arith.addf %267, %270 : vector<5x128xf32>
    %c40 = arith.constant 40 : index
    %272 = memref.load %arg3[%c40] : memref<96xf32, #tpu.memory_space<smem>>
    %273 = vector.broadcast %272 : f32 to vector<5x128xf32>
    %274 = arith.mulf %273, %13 : vector<5x128xf32>
    %275 = arith.addf %271, %274 : vector<5x128xf32>
    %c52 = arith.constant 52 : index
    %276 = memref.load %arg3[%c52] : memref<96xf32, #tpu.memory_space<smem>>
    %277 = vector.broadcast %276 : f32 to vector<5x128xf32>
    %278 = arith.mulf %277, %15 : vector<5x128xf32>
    %279 = arith.addf %275, %278 : vector<5x128xf32>
    %c64 = arith.constant 64 : index
    %280 = memref.load %arg3[%c64] : memref<96xf32, #tpu.memory_space<smem>>
    %281 = vector.broadcast %280 : f32 to vector<5x128xf32>
    %282 = arith.mulf %281, %17 : vector<5x128xf32>
    %283 = arith.addf %279, %282 : vector<5x128xf32>
    %c76 = arith.constant 76 : index
    %284 = memref.load %arg3[%c76] : memref<96xf32, #tpu.memory_space<smem>>
    %285 = vector.broadcast %284 : f32 to vector<5x128xf32>
    %286 = arith.mulf %285, %19 : vector<5x128xf32>
    %287 = arith.addf %283, %286 : vector<5x128xf32>
    %c88 = arith.constant 88 : index
    %288 = memref.load %arg3[%c88] : memref<96xf32, #tpu.memory_space<smem>>
    %289 = vector.broadcast %288 : f32 to vector<5x128xf32>
    %290 = arith.mulf %289, %21 : vector<5x128xf32>
    %291 = arith.addf %287, %290 : vector<5x128xf32>
    %292 = vector.extract_strided_slice %291 {offsets = [0, 0], sizes = [1, 128], strides = [1, 1]} : vector<5x128xf32> to vector<1x128xf32>
    %293 = vector.shape_cast %292 : vector<1x128xf32> to vector<128xf32>
    %c1_88 = arith.constant 1 : index
    %c9_89 = arith.constant 9 : index
    %c0_90 = arith.constant 0 : index
    %294 = vector.load %arg8[%c1_88, %c9_89, %c0_90] : memref<8x25x128xf32, #tpu.memory_space<vmem>>, vector<1x1x128xf32>
    %295 = vector.shape_cast %294 : vector<1x1x128xf32> to vector<128xf32>
    %296 = vector.shape_cast %293 : vector<128xf32> to vector<1x1x128xf32>
    tpu.vector_store %arg8[%c1_88, %c9_89, %c0_90], %296 {strides = array<i32>} : memref<8x25x128xf32, #tpu.memory_space<vmem>>, vector<1x1x128xf32>,
    %297 = vector.extract_strided_slice %291 {offsets = [1, 0], sizes = [1, 128], strides = [1, 1]} : vector<5x128xf32> to vector<1x128xf32>
    %298 = vector.shape_cast %297 : vector<1x128xf32> to vector<128xf32>
    %c1_91 = arith.constant 1 : index
    %c12_92 = arith.constant 12 : index
    %c0_93 = arith.constant 0 : index
    %299 = vector.load %arg8[%c1_91, %c12_92, %c0_93] : memref<8x25x128xf32, #tpu.memory_space<vmem>>, vector<1x1x128xf32>
    %300 = vector.shape_cast %299 : vector<1x1x128xf32> to vector<128xf32>
    %301 = vector.shape_cast %298 : vector<128xf32> to vector<1x1x128xf32>
    tpu.vector_store %arg8[%c1_91, %c12_92, %c0_93], %301 {strides = array<i32>} : memref<8x25x128xf32, #tpu.memory_space<vmem>>, vector<1x1x128xf32>,
    %302 = vector.extract_strided_slice %291 {offsets = [2, 0], sizes = [1, 128], strides = [1, 1]} : vector<5x128xf32> to vector<1x128xf32>
    %303 = vector.shape_cast %302 : vector<1x128xf32> to vector<128xf32>
    %c1_94 = arith.constant 1 : index
    %c15_95 = arith.constant 15 : index
    %c0_96 = arith.constant 0 : index
    %304 = vector.load %arg8[%c1_94, %c15_95, %c0_96] : memref<8x25x128xf32, #tpu.memory_space<vmem>>, vector<1x1x128xf32>
    %305 = vector.shape_cast %304 : vector<1x1x128xf32> to vector<128xf32>
    %306 = vector.shape_cast %303 : vector<128xf32> to vector<1x1x128xf32>
    tpu.vector_store %arg8[%c1_94, %c15_95, %c0_96], %306 {strides = array<i32>} : memref<8x25x128xf32, #tpu.memory_space<vmem>>, vector<1x1x128xf32>,
    %307 = vector.extract_strided_slice %291 {offsets = [3, 0], sizes = [1, 128], strides = [1, 1]} : vector<5x128xf32> to vector<1x128xf32>
    %308 = vector.shape_cast %307 : vector<1x128xf32> to vector<128xf32>
    %c1_97 = arith.constant 1 : index
    %c18_98 = arith.constant 18 : index
    %c0_99 = arith.constant 0 : index
    %309 = vector.load %arg8[%c1_97, %c18_98, %c0_99] : memref<8x25x128xf32, #tpu.memory_space<vmem>>, vector<1x1x128xf32>
    %310 = vector.shape_cast %309 : vector<1x1x128xf32> to vector<128xf32>
    %311 = vector.shape_cast %308 : vector<128xf32> to vector<1x1x128xf32>
    tpu.vector_store %arg8[%c1_97, %c18_98, %c0_99], %311 {strides = array<i32>} : memref<8x25x128xf32, #tpu.memory_space<vmem>>, vector<1x1x128xf32>,
    %312 = vector.extract_strided_slice %291 {offsets = [4, 0], sizes = [1, 128], strides = [1, 1]} : vector<5x128xf32> to vector<1x128xf32>
    %313 = vector.shape_cast %312 : vector<1x128xf32> to vector<128xf32>
    %c1_100 = arith.constant 1 : index
    %c21_101 = arith.constant 21 : index
    %c0_102 = arith.constant 0 : index
    %314 = vector.load %arg8[%c1_100, %c21_101, %c0_102] : memref<8x25x128xf32, #tpu.memory_space<vmem>>, vector<1x1x128xf32>
    %315 = vector.shape_cast %314 : vector<1x1x128xf32> to vector<128xf32>
    %316 = vector.shape_cast %313 : vector<128xf32> to vector<1x1x128xf32>
    tpu.vector_store %arg8[%c1_100, %c21_101, %c0_102], %316 {strides = array<i32>} : memref<8x25x128xf32, #tpu.memory_space<vmem>>, vector<1x1x128xf32>,
    %c1_103 = arith.constant 1 : index
    %317 = memref.load %arg4[%c1_103] : memref<4xf32, #tpu.memory_space<smem>>
    %318 = vector.broadcast %317 : f32 to vector<5x128xf32>
    %c5_104 = arith.constant 5 : index
    %319 = memref.load %arg3[%c5_104] : memref<96xf32, #tpu.memory_space<smem>>
    %320 = vector.broadcast %319 : f32 to vector<5x128xf32>
    %321 = arith.mulf %320, %7 : vector<5x128xf32>
    %322 = arith.addf %318, %321 : vector<5x128xf32>
    %c17_105 = arith.constant 17 : index
    %323 = memref.load %arg3[%c17_105] : memref<96xf32, #tpu.memory_space<smem>>
    %324 = vector.broadcast %323 : f32 to vector<5x128xf32>
    %325 = arith.mulf %324, %9 : vector<5x128xf32>
    %326 = arith.addf %322, %325 : vector<5x128xf32>
    %c29 = arith.constant 29 : index
    %327 = memref.load %arg3[%c29] : memref<96xf32, #tpu.memory_space<smem>>
    %328 = vector.broadcast %327 : f32 to vector<5x128xf32>
    %329 = arith.mulf %328, %11 : vector<5x128xf32>
    %330 = arith.addf %326, %329 : vector<5x128xf32>
    %c41 = arith.constant 41 : index
    %331 = memref.load %arg3[%c41] : memref<96xf32, #tpu.memory_space<smem>>
    %332 = vector.broadcast %331 : f32 to vector<5x128xf32>
    %333 = arith.mulf %332, %13 : vector<5x128xf32>
    %334 = arith.addf %330, %333 : vector<5x128xf32>
    %c53 = arith.constant 53 : index
    %335 = memref.load %arg3[%c53] : memref<96xf32, #tpu.memory_space<smem>>
    %336 = vector.broadcast %335 : f32 to vector<5x128xf32>
    %337 = arith.mulf %336, %15 : vector<5x128xf32>
    %338 = arith.addf %334, %337 : vector<5x128xf32>
    %c65 = arith.constant 65 : index
    %339 = memref.load %arg3[%c65] : memref<96xf32, #tpu.memory_space<smem>>
    %340 = vector.broadcast %339 : f32 to vector<5x128xf32>
    %341 = arith.mulf %340, %17 : vector<5x128xf32>
    %342 = arith.addf %338, %341 : vector<5x128xf32>
    %c77 = arith.constant 77 : index
    %343 = memref.load %arg3[%c77] : memref<96xf32, #tpu.memory_space<smem>>
    %344 = vector.broadcast %343 : f32 to vector<5x128xf32>
    %345 = arith.mulf %344, %19 : vector<5x128xf32>
    %346 = arith.addf %342, %345 : vector<5x128xf32>
    %c89 = arith.constant 89 : index
    %347 = memref.load %arg3[%c89] : memref<96xf32, #tpu.memory_space<smem>>
    %348 = vector.broadcast %347 : f32 to vector<5x128xf32>
    %349 = arith.mulf %348, %21 : vector<5x128xf32>
    %350 = arith.addf %346, %349 : vector<5x128xf32>
    %351 = vector.extract_strided_slice %350 {offsets = [0, 0], sizes = [1, 128], strides = [1, 1]} : vector<5x128xf32> to vector<1x128xf32>
    %352 = vector.shape_cast %351 : vector<1x128xf32> to vector<128xf32>
    %c1_106 = arith.constant 1 : index
    %c10_107 = arith.constant 10 : index
    %c0_108 = arith.constant 0 : index
    %353 = vector.load %arg8[%c1_106, %c10_107, %c0_108] : memref<8x25x128xf32, #tpu.memory_space<vmem>>, vector<1x1x128xf32>
    %354 = vector.shape_cast %353 : vector<1x1x128xf32> to vector<128xf32>
    %355 = vector.shape_cast %352 : vector<128xf32> to vector<1x1x128xf32>
    tpu.vector_store %arg8[%c1_106, %c10_107, %c0_108], %355 {strides = array<i32>} : memref<8x25x128xf32, #tpu.memory_space<vmem>>, vector<1x1x128xf32>,
    %356 = vector.extract_strided_slice %350 {offsets = [1, 0], sizes = [1, 128], strides = [1, 1]} : vector<5x128xf32> to vector<1x128xf32>
    %357 = vector.shape_cast %356 : vector<1x128xf32> to vector<128xf32>
    %c1_109 = arith.constant 1 : index
    %c13_110 = arith.constant 13 : index
    %c0_111 = arith.constant 0 : index
    %358 = vector.load %arg8[%c1_109, %c13_110, %c0_111] : memref<8x25x128xf32, #tpu.memory_space<vmem>>, vector<1x1x128xf32>
    %359 = vector.shape_cast %358 : vector<1x1x128xf32> to vector<128xf32>
    %360 = vector.shape_cast %357 : vector<128xf32> to vector<1x1x128xf32>
    tpu.vector_store %arg8[%c1_109, %c13_110, %c0_111], %360 {strides = array<i32>} : memref<8x25x128xf32, #tpu.memory_space<vmem>>, vector<1x1x128xf32>,
    %361 = vector.extract_strided_slice %350 {offsets = [2, 0], sizes = [1, 128], strides = [1, 1]} : vector<5x128xf32> to vector<1x128xf32>
    %362 = vector.shape_cast %361 : vector<1x128xf32> to vector<128xf32>
    %c1_112 = arith.constant 1 : index
    %c16_113 = arith.constant 16 : index
    %c0_114 = arith.constant 0 : index
    %363 = vector.load %arg8[%c1_112, %c16_113, %c0_114] : memref<8x25x128xf32, #tpu.memory_space<vmem>>, vector<1x1x128xf32>
    %364 = vector.shape_cast %363 : vector<1x1x128xf32> to vector<128xf32>
    %365 = vector.shape_cast %362 : vector<128xf32> to vector<1x1x128xf32>
    tpu.vector_store %arg8[%c1_112, %c16_113, %c0_114], %365 {strides = array<i32>} : memref<8x25x128xf32, #tpu.memory_space<vmem>>, vector<1x1x128xf32>,
    %366 = vector.extract_strided_slice %350 {offsets = [3, 0], sizes = [1, 128], strides = [1, 1]} : vector<5x128xf32> to vector<1x128xf32>
    %367 = vector.shape_cast %366 : vector<1x128xf32> to vector<128xf32>
    %c1_115 = arith.constant 1 : index
    %c19_116 = arith.constant 19 : index
    %c0_117 = arith.constant 0 : index
    %368 = vector.load %arg8[%c1_115, %c19_116, %c0_117] : memref<8x25x128xf32, #tpu.memory_space<vmem>>, vector<1x1x128xf32>
    %369 = vector.shape_cast %368 : vector<1x1x128xf32> to vector<128xf32>
    %370 = vector.shape_cast %367 : vector<128xf32> to vector<1x1x128xf32>
    tpu.vector_store %arg8[%c1_115, %c19_116, %c0_117], %370 {strides = array<i32>} : memref<8x25x128xf32, #tpu.memory_space<vmem>>, vector<1x1x128xf32>,
    %371 = vector.extract_strided_slice %350 {offsets = [4, 0], sizes = [1, 128], strides = [1, 1]} : vector<5x128xf32> to vector<1x128xf32>
    %372 = vector.shape_cast %371 : vector<1x128xf32> to vector<128xf32>
    %c1_118 = arith.constant 1 : index
    %c22_119 = arith.constant 22 : index
    %c0_120 = arith.constant 0 : index
    %373 = vector.load %arg8[%c1_118, %c22_119, %c0_120] : memref<8x25x128xf32, #tpu.memory_space<vmem>>, vector<1x1x128xf32>
    %374 = vector.shape_cast %373 : vector<1x1x128xf32> to vector<128xf32>
    %375 = vector.shape_cast %372 : vector<128xf32> to vector<1x1x128xf32>
    tpu.vector_store %arg8[%c1_118, %c22_119, %c0_120], %375 {strides = array<i32>} : memref<8x25x128xf32, #tpu.memory_space<vmem>>, vector<1x1x128xf32>,
    %c2_121 = arith.constant 2 : index
    %376 = memref.load %arg4[%c2_121] : memref<4xf32, #tpu.memory_space<smem>>
    %377 = vector.broadcast %376 : f32 to vector<5x128xf32>
    %c6_122 = arith.constant 6 : index
    %378 = memref.load %arg3[%c6_122] : memref<96xf32, #tpu.memory_space<smem>>
    %379 = vector.broadcast %378 : f32 to vector<5x128xf32>
    %380 = arith.mulf %379, %7 : vector<5x128xf32>
    %381 = arith.addf %377, %380 : vector<5x128xf32>
    %c18_123 = arith.constant 18 : index
    %382 = memref.load %arg3[%c18_123] : memref<96xf32, #tpu.memory_space<smem>>
    %383 = vector.broadcast %382 : f32 to vector<5x128xf32>
    %384 = arith.mulf %383, %9 : vector<5x128xf32>
    %385 = arith.addf %381, %384 : vector<5x128xf32>
    %c30 = arith.constant 30 : index
    %386 = memref.load %arg3[%c30] : memref<96xf32, #tpu.memory_space<smem>>
    %387 = vector.broadcast %386 : f32 to vector<5x128xf32>
    %388 = arith.mulf %387, %11 : vector<5x128xf32>
    %389 = arith.addf %385, %388 : vector<5x128xf32>
    %c42 = arith.constant 42 : index
    %390 = memref.load %arg3[%c42] : memref<96xf32, #tpu.memory_space<smem>>
    %391 = vector.broadcast %390 : f32 to vector<5x128xf32>
    %392 = arith.mulf %391, %13 : vector<5x128xf32>
    %393 = arith.addf %389, %392 : vector<5x128xf32>
    %c54 = arith.constant 54 : index
    %394 = memref.load %arg3[%c54] : memref<96xf32, #tpu.memory_space<smem>>
    %395 = vector.broadcast %394 : f32 to vector<5x128xf32>
    %396 = arith.mulf %395, %15 : vector<5x128xf32>
    %397 = arith.addf %393, %396 : vector<5x128xf32>
    %c66 = arith.constant 66 : index
    %398 = memref.load %arg3[%c66] : memref<96xf32, #tpu.memory_space<smem>>
    %399 = vector.broadcast %398 : f32 to vector<5x128xf32>
    %400 = arith.mulf %399, %17 : vector<5x128xf32>
    %401 = arith.addf %397, %400 : vector<5x128xf32>
    %c78 = arith.constant 78 : index
    %402 = memref.load %arg3[%c78] : memref<96xf32, #tpu.memory_space<smem>>
    %403 = vector.broadcast %402 : f32 to vector<5x128xf32>
    %404 = arith.mulf %403, %19 : vector<5x128xf32>
    %405 = arith.addf %401, %404 : vector<5x128xf32>
    %c90 = arith.constant 90 : index
    %406 = memref.load %arg3[%c90] : memref<96xf32, #tpu.memory_space<smem>>
    %407 = vector.broadcast %406 : f32 to vector<5x128xf32>
    %408 = arith.mulf %407, %21 : vector<5x128xf32>
    %409 = arith.addf %405, %408 : vector<5x128xf32>
    %410 = vector.extract_strided_slice %409 {offsets = [0, 0], sizes = [1, 128], strides = [1, 1]} : vector<5x128xf32> to vector<1x128xf32>
    %411 = vector.shape_cast %410 : vector<1x128xf32> to vector<128xf32>
    %c2_124 = arith.constant 2 : index
    %c8_125 = arith.constant 8 : index
    %c0_126 = arith.constant 0 : index
    %412 = vector.load %arg8[%c2_124, %c8_125, %c0_126] : memref<8x25x128xf32, #tpu.memory_space<vmem>>, vector<1x1x128xf32>
    %413 = vector.shape_cast %412 : vector<1x1x128xf32> to vector<128xf32>
    %414 = vector.shape_cast %411 : vector<128xf32> to vector<1x1x128xf32>
    tpu.vector_store %arg8[%c2_124, %c8_125, %c0_126], %414 {strides = array<i32>} : memref<8x25x128xf32, #tpu.memory_space<vmem>>, vector<1x1x128xf32>,
    %415 = vector.extract_strided_slice %409 {offsets = [1, 0], sizes = [1, 128], strides = [1, 1]} : vector<5x128xf32> to vector<1x128xf32>
    %416 = vector.shape_cast %415 : vector<1x128xf32> to vector<128xf32>
    %c2_127 = arith.constant 2 : index
    %c11_128 = arith.constant 11 : index
    %c0_129 = arith.constant 0 : index
    %417 = vector.load %arg8[%c2_127, %c11_128, %c0_129] : memref<8x25x128xf32, #tpu.memory_space<vmem>>, vector<1x1x128xf32>
    %418 = vector.shape_cast %417 : vector<1x1x128xf32> to vector<128xf32>
    %419 = vector.shape_cast %416 : vector<128xf32> to vector<1x1x128xf32>
    tpu.vector_store %arg8[%c2_127, %c11_128, %c0_129], %419 {strides = array<i32>} : memref<8x25x128xf32, #tpu.memory_space<vmem>>, vector<1x1x128xf32>,
    %420 = vector.extract_strided_slice %409 {offsets = [2, 0], sizes = [1, 128], strides = [1, 1]} : vector<5x128xf32> to vector<1x128xf32>
    %421 = vector.shape_cast %420 : vector<1x128xf32> to vector<128xf32>
    %c2_130 = arith.constant 2 : index
    %c14_131 = arith.constant 14 : index
    %c0_132 = arith.constant 0 : index
    %422 = vector.load %arg8[%c2_130, %c14_131, %c0_132] : memref<8x25x128xf32, #tpu.memory_space<vmem>>, vector<1x1x128xf32>
    %423 = vector.shape_cast %422 : vector<1x1x128xf32> to vector<128xf32>
    %424 = vector.shape_cast %421 : vector<128xf32> to vector<1x1x128xf32>
    tpu.vector_store %arg8[%c2_130, %c14_131, %c0_132], %424 {strides = array<i32>} : memref<8x25x128xf32, #tpu.memory_space<vmem>>, vector<1x1x128xf32>,
    %425 = vector.extract_strided_slice %409 {offsets = [3, 0], sizes = [1, 128], strides = [1, 1]} : vector<5x128xf32> to vector<1x128xf32>
    %426 = vector.shape_cast %425 : vector<1x128xf32> to vector<128xf32>
    %c2_133 = arith.constant 2 : index
    %c17_134 = arith.constant 17 : index
    %c0_135 = arith.constant 0 : index
    %427 = vector.load %arg8[%c2_133, %c17_134, %c0_135] : memref<8x25x128xf32, #tpu.memory_space<vmem>>, vector<1x1x128xf32>
    %428 = vector.shape_cast %427 : vector<1x1x128xf32> to vector<128xf32>
    %429 = vector.shape_cast %426 : vector<128xf32> to vector<1x1x128xf32>
    tpu.vector_store %arg8[%c2_133, %c17_134, %c0_135], %429 {strides = array<i32>} : memref<8x25x128xf32, #tpu.memory_space<vmem>>, vector<1x1x128xf32>,
    %430 = vector.extract_strided_slice %409 {offsets = [4, 0], sizes = [1, 128], strides = [1, 1]} : vector<5x128xf32> to vector<1x128xf32>
    %431 = vector.shape_cast %430 : vector<1x128xf32> to vector<128xf32>
    %c2_136 = arith.constant 2 : index
    %c20_137 = arith.constant 20 : index
    %c0_138 = arith.constant 0 : index
    %432 = vector.load %arg8[%c2_136, %c20_137, %c0_138] : memref<8x25x128xf32, #tpu.memory_space<vmem>>, vector<1x1x128xf32>
    %433 = vector.shape_cast %432 : vector<1x1x128xf32> to vector<128xf32>
    %434 = vector.shape_cast %431 : vector<128xf32> to vector<1x1x128xf32>
    tpu.vector_store %arg8[%c2_136, %c20_137, %c0_138], %434 {strides = array<i32>} : memref<8x25x128xf32, #tpu.memory_space<vmem>>, vector<1x1x128xf32>,
    %c2_139 = arith.constant 2 : index
    %435 = memref.load %arg4[%c2_139] : memref<4xf32, #tpu.memory_space<smem>>
    %436 = vector.broadcast %435 : f32 to vector<5x128xf32>
    %c7_140 = arith.constant 7 : index
    %437 = memref.load %arg3[%c7_140] : memref<96xf32, #tpu.memory_space<smem>>
    %438 = vector.broadcast %437 : f32 to vector<5x128xf32>
    %439 = arith.mulf %438, %7 : vector<5x128xf32>
    %440 = arith.addf %436, %439 : vector<5x128xf32>
    %c19_141 = arith.constant 19 : index
    %441 = memref.load %arg3[%c19_141] : memref<96xf32, #tpu.memory_space<smem>>
    %442 = vector.broadcast %441 : f32 to vector<5x128xf32>
    %443 = arith.mulf %442, %9 : vector<5x128xf32>
    %444 = arith.addf %440, %443 : vector<5x128xf32>
    %c31 = arith.constant 31 : index
    %445 = memref.load %arg3[%c31] : memref<96xf32, #tpu.memory_space<smem>>
    %446 = vector.broadcast %445 : f32 to vector<5x128xf32>
    %447 = arith.mulf %446, %11 : vector<5x128xf32>
    %448 = arith.addf %444, %447 : vector<5x128xf32>
    %c43 = arith.constant 43 : index
    %449 = memref.load %arg3[%c43] : memref<96xf32, #tpu.memory_space<smem>>
    %450 = vector.broadcast %449 : f32 to vector<5x128xf32>
    %451 = arith.mulf %450, %13 : vector<5x128xf32>
    %452 = arith.addf %448, %451 : vector<5x128xf32>
    %c55 = arith.constant 55 : index
    %453 = memref.load %arg3[%c55] : memref<96xf32, #tpu.memory_space<smem>>
    %454 = vector.broadcast %453 : f32 to vector<5x128xf32>
    %455 = arith.mulf %454, %15 : vector<5x128xf32>
    %456 = arith.addf %452, %455 : vector<5x128xf32>
    %c67 = arith.constant 67 : index
    %457 = memref.load %arg3[%c67] : memref<96xf32, #tpu.memory_space<smem>>
    %458 = vector.broadcast %457 : f32 to vector<5x128xf32>
    %459 = arith.mulf %458, %17 : vector<5x128xf32>
    %460 = arith.addf %456, %459 : vector<5x128xf32>
    %c79 = arith.constant 79 : index
    %461 = memref.load %arg3[%c79] : memref<96xf32, #tpu.memory_space<smem>>
    %462 = vector.broadcast %461 : f32 to vector<5x128xf32>
    %463 = arith.mulf %462, %19 : vector<5x128xf32>
    %464 = arith.addf %460, %463 : vector<5x128xf32>
    %c91 = arith.constant 91 : index
    %465 = memref.load %arg3[%c91] : memref<96xf32, #tpu.memory_space<smem>>
    %466 = vector.broadcast %465 : f32 to vector<5x128xf32>
    %467 = arith.mulf %466, %21 : vector<5x128xf32>
    %468 = arith.addf %464, %467 : vector<5x128xf32>
    %469 = vector.extract_strided_slice %468 {offsets = [0, 0], sizes = [1, 128], strides = [1, 1]} : vector<5x128xf32> to vector<1x128xf32>
    %470 = vector.shape_cast %469 : vector<1x128xf32> to vector<128xf32>
    %c2_142 = arith.constant 2 : index
    %c9_143 = arith.constant 9 : index
    %c0_144 = arith.constant 0 : index
    %471 = vector.load %arg8[%c2_142, %c9_143, %c0_144] : memref<8x25x128xf32, #tpu.memory_space<vmem>>, vector<1x1x128xf32>
    %472 = vector.shape_cast %471 : vector<1x1x128xf32> to vector<128xf32>
    %473 = vector.shape_cast %470 : vector<128xf32> to vector<1x1x128xf32>
    tpu.vector_store %arg8[%c2_142, %c9_143, %c0_144], %473 {strides = array<i32>} : memref<8x25x128xf32, #tpu.memory_space<vmem>>, vector<1x1x128xf32>,
    %474 = vector.extract_strided_slice %468 {offsets = [1, 0], sizes = [1, 128], strides = [1, 1]} : vector<5x128xf32> to vector<1x128xf32>
    %475 = vector.shape_cast %474 : vector<1x128xf32> to vector<128xf32>
    %c2_145 = arith.constant 2 : index
    %c12_146 = arith.constant 12 : index
    %c0_147 = arith.constant 0 : index
    %476 = vector.load %arg8[%c2_145, %c12_146, %c0_147] : memref<8x25x128xf32, #tpu.memory_space<vmem>>, vector<1x1x128xf32>
    %477 = vector.shape_cast %476 : vector<1x1x128xf32> to vector<128xf32>
    %478 = vector.shape_cast %475 : vector<128xf32> to vector<1x1x128xf32>
    tpu.vector_store %arg8[%c2_145, %c12_146, %c0_147], %478 {strides = array<i32>} : memref<8x25x128xf32, #tpu.memory_space<vmem>>, vector<1x1x128xf32>,
    %479 = vector.extract_strided_slice %468 {offsets = [2, 0], sizes = [1, 128], strides = [1, 1]} : vector<5x128xf32> to vector<1x128xf32>
    %480 = vector.shape_cast %479 : vector<1x128xf32> to vector<128xf32>
    %c2_148 = arith.constant 2 : index
    %c15_149 = arith.constant 15 : index
    %c0_150 = arith.constant 0 : index
    %481 = vector.load %arg8[%c2_148, %c15_149, %c0_150] : memref<8x25x128xf32, #tpu.memory_space<vmem>>, vector<1x1x128xf32>
    %482 = vector.shape_cast %481 : vector<1x1x128xf32> to vector<128xf32>
    %483 = vector.shape_cast %480 : vector<128xf32> to vector<1x1x128xf32>
    tpu.vector_store %arg8[%c2_148, %c15_149, %c0_150], %483 {strides = array<i32>} : memref<8x25x128xf32, #tpu.memory_space<vmem>>, vector<1x1x128xf32>,
    %484 = vector.extract_strided_slice %468 {offsets = [3, 0], sizes = [1, 128], strides = [1, 1]} : vector<5x128xf32> to vector<1x128xf32>
    %485 = vector.shape_cast %484 : vector<1x128xf32> to vector<128xf32>
    %c2_151 = arith.constant 2 : index
    %c18_152 = arith.constant 18 : index
    %c0_153 = arith.constant 0 : index
    %486 = vector.load %arg8[%c2_151, %c18_152, %c0_153] : memref<8x25x128xf32, #tpu.memory_space<vmem>>, vector<1x1x128xf32>
    %487 = vector.shape_cast %486 : vector<1x1x128xf32> to vector<128xf32>
    %488 = vector.shape_cast %485 : vector<128xf32> to vector<1x1x128xf32>
    tpu.vector_store %arg8[%c2_151, %c18_152, %c0_153], %488 {strides = array<i32>} : memref<8x25x128xf32, #tpu.memory_space<vmem>>, vector<1x1x128xf32>,
    %489 = vector.extract_strided_slice %468 {offsets = [4, 0], sizes = [1, 128], strides = [1, 1]} : vector<5x128xf32> to vector<1x128xf32>
    %490 = vector.shape_cast %489 : vector<1x128xf32> to vector<128xf32>
    %c2_154 = arith.constant 2 : index
    %c21_155 = arith.constant 21 : index
    %c0_156 = arith.constant 0 : index
    %491 = vector.load %arg8[%c2_154, %c21_155, %c0_156] : memref<8x25x128xf32, #tpu.memory_space<vmem>>, vector<1x1x128xf32>
    %492 = vector.shape_cast %491 : vector<1x1x128xf32> to vector<128xf32>
    %493 = vector.shape_cast %490 : vector<128xf32> to vector<1x1x128xf32>
    tpu.vector_store %arg8[%c2_154, %c21_155, %c0_156], %493 {strides = array<i32>} : memref<8x25x128xf32, #tpu.memory_space<vmem>>, vector<1x1x128xf32>,
    %c2_157 = arith.constant 2 : index
    %494 = memref.load %arg4[%c2_157] : memref<4xf32, #tpu.memory_space<smem>>
    %495 = vector.broadcast %494 : f32 to vector<5x128xf32>
    %c8_158 = arith.constant 8 : index
    %496 = memref.load %arg3[%c8_158] : memref<96xf32, #tpu.memory_space<smem>>
    %497 = vector.broadcast %496 : f32 to vector<5x128xf32>
    %498 = arith.mulf %497, %7 : vector<5x128xf32>
    %499 = arith.addf %495, %498 : vector<5x128xf32>
    %c20_159 = arith.constant 20 : index
    %500 = memref.load %arg3[%c20_159] : memref<96xf32, #tpu.memory_space<smem>>
    %501 = vector.broadcast %500 : f32 to vector<5x128xf32>
    %502 = arith.mulf %501, %9 : vector<5x128xf32>
    %503 = arith.addf %499, %502 : vector<5x128xf32>
    %c32 = arith.constant 32 : index
    %504 = memref.load %arg3[%c32] : memref<96xf32, #tpu.memory_space<smem>>
    %505 = vector.broadcast %504 : f32 to vector<5x128xf32>
    %506 = arith.mulf %505, %11 : vector<5x128xf32>
    %507 = arith.addf %503, %506 : vector<5x128xf32>
    %c44 = arith.constant 44 : index
    %508 = memref.load %arg3[%c44] : memref<96xf32, #tpu.memory_space<smem>>
    %509 = vector.broadcast %508 : f32 to vector<5x128xf32>
    %510 = arith.mulf %509, %13 : vector<5x128xf32>
    %511 = arith.addf %507, %510 : vector<5x128xf32>
    %c56 = arith.constant 56 : index
    %512 = memref.load %arg3[%c56] : memref<96xf32, #tpu.memory_space<smem>>
    %513 = vector.broadcast %512 : f32 to vector<5x128xf32>
    %514 = arith.mulf %513, %15 : vector<5x128xf32>
    %515 = arith.addf %511, %514 : vector<5x128xf32>
    %c68 = arith.constant 68 : index
    %516 = memref.load %arg3[%c68] : memref<96xf32, #tpu.memory_space<smem>>
    %517 = vector.broadcast %516 : f32 to vector<5x128xf32>
    %518 = arith.mulf %517, %17 : vector<5x128xf32>
    %519 = arith.addf %515, %518 : vector<5x128xf32>
    %c80 = arith.constant 80 : index
    %520 = memref.load %arg3[%c80] : memref<96xf32, #tpu.memory_space<smem>>
    %521 = vector.broadcast %520 : f32 to vector<5x128xf32>
    %522 = arith.mulf %521, %19 : vector<5x128xf32>
    %523 = arith.addf %519, %522 : vector<5x128xf32>
    %c92 = arith.constant 92 : index
    %524 = memref.load %arg3[%c92] : memref<96xf32, #tpu.memory_space<smem>>
    %525 = vector.broadcast %524 : f32 to vector<5x128xf32>
    %526 = arith.mulf %525, %21 : vector<5x128xf32>
    %527 = arith.addf %523, %526 : vector<5x128xf32>
    %528 = vector.extract_strided_slice %527 {offsets = [0, 0], sizes = [1, 128], strides = [1, 1]} : vector<5x128xf32> to vector<1x128xf32>
    %529 = vector.shape_cast %528 : vector<1x128xf32> to vector<128xf32>
    %c2_160 = arith.constant 2 : index
    %c10_161 = arith.constant 10 : index
    %c0_162 = arith.constant 0 : index
    %530 = vector.load %arg8[%c2_160, %c10_161, %c0_162] : memref<8x25x128xf32, #tpu.memory_space<vmem>>, vector<1x1x128xf32>
    %531 = vector.shape_cast %530 : vector<1x1x128xf32> to vector<128xf32>
    %532 = vector.shape_cast %529 : vector<128xf32> to vector<1x1x128xf32>
    tpu.vector_store %arg8[%c2_160, %c10_161, %c0_162], %532 {strides = array<i32>} : memref<8x25x128xf32, #tpu.memory_space<vmem>>, vector<1x1x128xf32>,
    %533 = vector.extract_strided_slice %527 {offsets = [1, 0], sizes = [1, 128], strides = [1, 1]} : vector<5x128xf32> to vector<1x128xf32>
    %534 = vector.shape_cast %533 : vector<1x128xf32> to vector<128xf32>
    %c2_163 = arith.constant 2 : index
    %c13_164 = arith.constant 13 : index
    %c0_165 = arith.constant 0 : index
    %535 = vector.load %arg8[%c2_163, %c13_164, %c0_165] : memref<8x25x128xf32, #tpu.memory_space<vmem>>, vector<1x1x128xf32>
    %536 = vector.shape_cast %535 : vector<1x1x128xf32> to vector<128xf32>
    %537 = vector.shape_cast %534 : vector<128xf32> to vector<1x1x128xf32>
    tpu.vector_store %arg8[%c2_163, %c13_164, %c0_165], %537 {strides = array<i32>} : memref<8x25x128xf32, #tpu.memory_space<vmem>>, vector<1x1x128xf32>,
    %538 = vector.extract_strided_slice %527 {offsets = [2, 0], sizes = [1, 128], strides = [1, 1]} : vector<5x128xf32> to vector<1x128xf32>
    %539 = vector.shape_cast %538 : vector<1x128xf32> to vector<128xf32>
    %c2_166 = arith.constant 2 : index
    %c16_167 = arith.constant 16 : index
    %c0_168 = arith.constant 0 : index
    %540 = vector.load %arg8[%c2_166, %c16_167, %c0_168] : memref<8x25x128xf32, #tpu.memory_space<vmem>>, vector<1x1x128xf32>
    %541 = vector.shape_cast %540 : vector<1x1x128xf32> to vector<128xf32>
    %542 = vector.shape_cast %539 : vector<128xf32> to vector<1x1x128xf32>
    tpu.vector_store %arg8[%c2_166, %c16_167, %c0_168], %542 {strides = array<i32>} : memref<8x25x128xf32, #tpu.memory_space<vmem>>, vector<1x1x128xf32>,
    %543 = vector.extract_strided_slice %527 {offsets = [3, 0], sizes = [1, 128], strides = [1, 1]} : vector<5x128xf32> to vector<1x128xf32>
    %544 = vector.shape_cast %543 : vector<1x128xf32> to vector<128xf32>
    %c2_169 = arith.constant 2 : index
    %c19_170 = arith.constant 19 : index
    %c0_171 = arith.constant 0 : index
    %545 = vector.load %arg8[%c2_169, %c19_170, %c0_171] : memref<8x25x128xf32, #tpu.memory_space<vmem>>, vector<1x1x128xf32>
    %546 = vector.shape_cast %545 : vector<1x1x128xf32> to vector<128xf32>
    %547 = vector.shape_cast %544 : vector<128xf32> to vector<1x1x128xf32>
    tpu.vector_store %arg8[%c2_169, %c19_170, %c0_171], %547 {strides = array<i32>} : memref<8x25x128xf32, #tpu.memory_space<vmem>>, vector<1x1x128xf32>,
    %548 = vector.extract_strided_slice %527 {offsets = [4, 0], sizes = [1, 128], strides = [1, 1]} : vector<5x128xf32> to vector<1x128xf32>
    %549 = vector.shape_cast %548 : vector<1x128xf32> to vector<128xf32>
    %c2_172 = arith.constant 2 : index
    %c22_173 = arith.constant 22 : index
    %c0_174 = arith.constant 0 : index
    %550 = vector.load %arg8[%c2_172, %c22_173, %c0_174] : memref<8x25x128xf32, #tpu.memory_space<vmem>>, vector<1x1x128xf32>
    %551 = vector.shape_cast %550 : vector<1x1x128xf32> to vector<128xf32>
    %552 = vector.shape_cast %549 : vector<128xf32> to vector<1x1x128xf32>
    tpu.vector_store %arg8[%c2_172, %c22_173, %c0_174], %552 {strides = array<i32>} : memref<8x25x128xf32, #tpu.memory_space<vmem>>, vector<1x1x128xf32>,
    %c3_175 = arith.constant 3 : index
    %553 = memref.load %arg4[%c3_175] : memref<4xf32, #tpu.memory_space<smem>>
    %554 = vector.broadcast %553 : f32 to vector<5x128xf32>
    %c9_176 = arith.constant 9 : index
    %555 = memref.load %arg3[%c9_176] : memref<96xf32, #tpu.memory_space<smem>>
    %556 = vector.broadcast %555 : f32 to vector<5x128xf32>
    %557 = arith.mulf %556, %7 : vector<5x128xf32>
    %558 = arith.addf %554, %557 : vector<5x128xf32>
    %c21_177 = arith.constant 21 : index
    %559 = memref.load %arg3[%c21_177] : memref<96xf32, #tpu.memory_space<smem>>
    %560 = vector.broadcast %559 : f32 to vector<5x128xf32>
    %561 = arith.mulf %560, %9 : vector<5x128xf32>
    %562 = arith.addf %558, %561 : vector<5x128xf32>
    %c33 = arith.constant 33 : index
    %563 = memref.load %arg3[%c33] : memref<96xf32, #tpu.memory_space<smem>>
    %564 = vector.broadcast %563 : f32 to vector<5x128xf32>
    %565 = arith.mulf %564, %11 : vector<5x128xf32>
    %566 = arith.addf %562, %565 : vector<5x128xf32>
    %c45 = arith.constant 45 : index
    %567 = memref.load %arg3[%c45] : memref<96xf32, #tpu.memory_space<smem>>
    %568 = vector.broadcast %567 : f32 to vector<5x128xf32>
    %569 = arith.mulf %568, %13 : vector<5x128xf32>
    %570 = arith.addf %566, %569 : vector<5x128xf32>
    %c57 = arith.constant 57 : index
    %571 = memref.load %arg3[%c57] : memref<96xf32, #tpu.memory_space<smem>>
    %572 = vector.broadcast %571 : f32 to vector<5x128xf32>
    %573 = arith.mulf %572, %15 : vector<5x128xf32>
    %574 = arith.addf %570, %573 : vector<5x128xf32>
    %c69 = arith.constant 69 : index
    %575 = memref.load %arg3[%c69] : memref<96xf32, #tpu.memory_space<smem>>
    %576 = vector.broadcast %575 : f32 to vector<5x128xf32>
    %577 = arith.mulf %576, %17 : vector<5x128xf32>
    %578 = arith.addf %574, %577 : vector<5x128xf32>
    %c81 = arith.constant 81 : index
    %579 = memref.load %arg3[%c81] : memref<96xf32, #tpu.memory_space<smem>>
    %580 = vector.broadcast %579 : f32 to vector<5x128xf32>
    %581 = arith.mulf %580, %19 : vector<5x128xf32>
    %582 = arith.addf %578, %581 : vector<5x128xf32>
    %c93 = arith.constant 93 : index
    %583 = memref.load %arg3[%c93] : memref<96xf32, #tpu.memory_space<smem>>
    %584 = vector.broadcast %583 : f32 to vector<5x128xf32>
    %585 = arith.mulf %584, %21 : vector<5x128xf32>
    %586 = arith.addf %582, %585 : vector<5x128xf32>
    %587 = vector.extract_strided_slice %586 {offsets = [0, 0], sizes = [1, 128], strides = [1, 1]} : vector<5x128xf32> to vector<1x128xf32>
    %588 = vector.shape_cast %587 : vector<1x128xf32> to vector<128xf32>
    %c3_178 = arith.constant 3 : index
    %c8_179 = arith.constant 8 : index
    %c0_180 = arith.constant 0 : index
    %589 = vector.load %arg8[%c3_178, %c8_179, %c0_180] : memref<8x25x128xf32, #tpu.memory_space<vmem>>, vector<1x1x128xf32>
    %590 = vector.shape_cast %589 : vector<1x1x128xf32> to vector<128xf32>
    %591 = vector.shape_cast %588 : vector<128xf32> to vector<1x1x128xf32>
    tpu.vector_store %arg8[%c3_178, %c8_179, %c0_180], %591 {strides = array<i32>} : memref<8x25x128xf32, #tpu.memory_space<vmem>>, vector<1x1x128xf32>,
    %592 = vector.extract_strided_slice %586 {offsets = [1, 0], sizes = [1, 128], strides = [1, 1]} : vector<5x128xf32> to vector<1x128xf32>
    %593 = vector.shape_cast %592 : vector<1x128xf32> to vector<128xf32>
    %c3_181 = arith.constant 3 : index
    %c11_182 = arith.constant 11 : index
    %c0_183 = arith.constant 0 : index
    %594 = vector.load %arg8[%c3_181, %c11_182, %c0_183] : memref<8x25x128xf32, #tpu.memory_space<vmem>>, vector<1x1x128xf32>
    %595 = vector.shape_cast %594 : vector<1x1x128xf32> to vector<128xf32>
    %596 = vector.shape_cast %593 : vector<128xf32> to vector<1x1x128xf32>
    tpu.vector_store %arg8[%c3_181, %c11_182, %c0_183], %596 {strides = array<i32>} : memref<8x25x128xf32, #tpu.memory_space<vmem>>, vector<1x1x128xf32>,
    %597 = vector.extract_strided_slice %586 {offsets = [2, 0], sizes = [1, 128], strides = [1, 1]} : vector<5x128xf32> to vector<1x128xf32>
    %598 = vector.shape_cast %597 : vector<1x128xf32> to vector<128xf32>
    %c3_184 = arith.constant 3 : index
    %c14_185 = arith.constant 14 : index
    %c0_186 = arith.constant 0 : index
    %599 = vector.load %arg8[%c3_184, %c14_185, %c0_186] : memref<8x25x128xf32, #tpu.memory_space<vmem>>, vector<1x1x128xf32>
    %600 = vector.shape_cast %599 : vector<1x1x128xf32> to vector<128xf32>
    %601 = vector.shape_cast %598 : vector<128xf32> to vector<1x1x128xf32>
    tpu.vector_store %arg8[%c3_184, %c14_185, %c0_186], %601 {strides = array<i32>} : memref<8x25x128xf32, #tpu.memory_space<vmem>>, vector<1x1x128xf32>,
    %602 = vector.extract_strided_slice %586 {offsets = [3, 0], sizes = [1, 128], strides = [1, 1]} : vector<5x128xf32> to vector<1x128xf32>
    %603 = vector.shape_cast %602 : vector<1x128xf32> to vector<128xf32>
    %c3_187 = arith.constant 3 : index
    %c17_188 = arith.constant 17 : index
    %c0_189 = arith.constant 0 : index
    %604 = vector.load %arg8[%c3_187, %c17_188, %c0_189] : memref<8x25x128xf32, #tpu.memory_space<vmem>>, vector<1x1x128xf32>
    %605 = vector.shape_cast %604 : vector<1x1x128xf32> to vector<128xf32>
    %606 = vector.shape_cast %603 : vector<128xf32> to vector<1x1x128xf32>
    tpu.vector_store %arg8[%c3_187, %c17_188, %c0_189], %606 {strides = array<i32>} : memref<8x25x128xf32, #tpu.memory_space<vmem>>, vector<1x1x128xf32>,
    %607 = vector.extract_strided_slice %586 {offsets = [4, 0], sizes = [1, 128], strides = [1, 1]} : vector<5x128xf32> to vector<1x128xf32>
    %608 = vector.shape_cast %607 : vector<1x128xf32> to vector<128xf32>
    %c3_190 = arith.constant 3 : index
    %c20_191 = arith.constant 20 : index
    %c0_192 = arith.constant 0 : index
    %609 = vector.load %arg8[%c3_190, %c20_191, %c0_192] : memref<8x25x128xf32, #tpu.memory_space<vmem>>, vector<1x1x128xf32>
    %610 = vector.shape_cast %609 : vector<1x1x128xf32> to vector<128xf32>
    %611 = vector.shape_cast %608 : vector<128xf32> to vector<1x1x128xf32>
    tpu.vector_store %arg8[%c3_190, %c20_191, %c0_192], %611 {strides = array<i32>} : memref<8x25x128xf32, #tpu.memory_space<vmem>>, vector<1x1x128xf32>,
    %c3_193 = arith.constant 3 : index
    %612 = memref.load %arg4[%c3_193] : memref<4xf32, #tpu.memory_space<smem>>
    %613 = vector.broadcast %612 : f32 to vector<5x128xf32>
    %c10_194 = arith.constant 10 : index
    %614 = memref.load %arg3[%c10_194] : memref<96xf32, #tpu.memory_space<smem>>
    %615 = vector.broadcast %614 : f32 to vector<5x128xf32>
    %616 = arith.mulf %615, %7 : vector<5x128xf32>
    %617 = arith.addf %613, %616 : vector<5x128xf32>
    %c22_195 = arith.constant 22 : index
    %618 = memref.load %arg3[%c22_195] : memref<96xf32, #tpu.memory_space<smem>>
    %619 = vector.broadcast %618 : f32 to vector<5x128xf32>
    %620 = arith.mulf %619, %9 : vector<5x128xf32>
    %621 = arith.addf %617, %620 : vector<5x128xf32>
    %c34 = arith.constant 34 : index
    %622 = memref.load %arg3[%c34] : memref<96xf32, #tpu.memory_space<smem>>
    %623 = vector.broadcast %622 : f32 to vector<5x128xf32>
    %624 = arith.mulf %623, %11 : vector<5x128xf32>
    %625 = arith.addf %621, %624 : vector<5x128xf32>
    %c46 = arith.constant 46 : index
    %626 = memref.load %arg3[%c46] : memref<96xf32, #tpu.memory_space<smem>>
    %627 = vector.broadcast %626 : f32 to vector<5x128xf32>
    %628 = arith.mulf %627, %13 : vector<5x128xf32>
    %629 = arith.addf %625, %628 : vector<5x128xf32>
    %c58 = arith.constant 58 : index
    %630 = memref.load %arg3[%c58] : memref<96xf32, #tpu.memory_space<smem>>
    %631 = vector.broadcast %630 : f32 to vector<5x128xf32>
    %632 = arith.mulf %631, %15 : vector<5x128xf32>
    %633 = arith.addf %629, %632 : vector<5x128xf32>
    %c70 = arith.constant 70 : index
    %634 = memref.load %arg3[%c70] : memref<96xf32, #tpu.memory_space<smem>>
    %635 = vector.broadcast %634 : f32 to vector<5x128xf32>
    %636 = arith.mulf %635, %17 : vector<5x128xf32>
    %637 = arith.addf %633, %636 : vector<5x128xf32>
    %c82 = arith.constant 82 : index
    %638 = memref.load %arg3[%c82] : memref<96xf32, #tpu.memory_space<smem>>
    %639 = vector.broadcast %638 : f32 to vector<5x128xf32>
    %640 = arith.mulf %639, %19 : vector<5x128xf32>
    %641 = arith.addf %637, %640 : vector<5x128xf32>
    %c94 = arith.constant 94 : index
    %642 = memref.load %arg3[%c94] : memref<96xf32, #tpu.memory_space<smem>>
    %643 = vector.broadcast %642 : f32 to vector<5x128xf32>
    %644 = arith.mulf %643, %21 : vector<5x128xf32>
    %645 = arith.addf %641, %644 : vector<5x128xf32>
    %646 = vector.extract_strided_slice %645 {offsets = [0, 0], sizes = [1, 128], strides = [1, 1]} : vector<5x128xf32> to vector<1x128xf32>
    %647 = vector.shape_cast %646 : vector<1x128xf32> to vector<128xf32>
    %c3_196 = arith.constant 3 : index
    %c9_197 = arith.constant 9 : index
    %c0_198 = arith.constant 0 : index
    %648 = vector.load %arg8[%c3_196, %c9_197, %c0_198] : memref<8x25x128xf32, #tpu.memory_space<vmem>>, vector<1x1x128xf32>
    %649 = vector.shape_cast %648 : vector<1x1x128xf32> to vector<128xf32>
    %650 = vector.shape_cast %647 : vector<128xf32> to vector<1x1x128xf32>
    tpu.vector_store %arg8[%c3_196, %c9_197, %c0_198], %650 {strides = array<i32>} : memref<8x25x128xf32, #tpu.memory_space<vmem>>, vector<1x1x128xf32>,
    %651 = vector.extract_strided_slice %645 {offsets = [1, 0], sizes = [1, 128], strides = [1, 1]} : vector<5x128xf32> to vector<1x128xf32>
    %652 = vector.shape_cast %651 : vector<1x128xf32> to vector<128xf32>
    %c3_199 = arith.constant 3 : index
    %c12_200 = arith.constant 12 : index
    %c0_201 = arith.constant 0 : index
    %653 = vector.load %arg8[%c3_199, %c12_200, %c0_201] : memref<8x25x128xf32, #tpu.memory_space<vmem>>, vector<1x1x128xf32>
    %654 = vector.shape_cast %653 : vector<1x1x128xf32> to vector<128xf32>
    %655 = vector.shape_cast %652 : vector<128xf32> to vector<1x1x128xf32>
    tpu.vector_store %arg8[%c3_199, %c12_200, %c0_201], %655 {strides = array<i32>} : memref<8x25x128xf32, #tpu.memory_space<vmem>>, vector<1x1x128xf32>,
    %656 = vector.extract_strided_slice %645 {offsets = [2, 0], sizes = [1, 128], strides = [1, 1]} : vector<5x128xf32> to vector<1x128xf32>
    %657 = vector.shape_cast %656 : vector<1x128xf32> to vector<128xf32>
    %c3_202 = arith.constant 3 : index
    %c15_203 = arith.constant 15 : index
    %c0_204 = arith.constant 0 : index
    %658 = vector.load %arg8[%c3_202, %c15_203, %c0_204] : memref<8x25x128xf32, #tpu.memory_space<vmem>>, vector<1x1x128xf32>
    %659 = vector.shape_cast %658 : vector<1x1x128xf32> to vector<128xf32>
    %660 = vector.shape_cast %657 : vector<128xf32> to vector<1x1x128xf32>
    tpu.vector_store %arg8[%c3_202, %c15_203, %c0_204], %660 {strides = array<i32>} : memref<8x25x128xf32, #tpu.memory_space<vmem>>, vector<1x1x128xf32>,
    %661 = vector.extract_strided_slice %645 {offsets = [3, 0], sizes = [1, 128], strides = [1, 1]} : vector<5x128xf32> to vector<1x128xf32>
    %662 = vector.shape_cast %661 : vector<1x128xf32> to vector<128xf32>
    %c3_205 = arith.constant 3 : index
    %c18_206 = arith.constant 18 : index
    %c0_207 = arith.constant 0 : index
    %663 = vector.load %arg8[%c3_205, %c18_206, %c0_207] : memref<8x25x128xf32, #tpu.memory_space<vmem>>, vector<1x1x128xf32>
    %664 = vector.shape_cast %663 : vector<1x1x128xf32> to vector<128xf32>
    %665 = vector.shape_cast %662 : vector<128xf32> to vector<1x1x128xf32>
    tpu.vector_store %arg8[%c3_205, %c18_206, %c0_207], %665 {strides = array<i32>} : memref<8x25x128xf32, #tpu.memory_space<vmem>>, vector<1x1x128xf32>,
    %666 = vector.extract_strided_slice %645 {offsets = [4, 0], sizes = [1, 128], strides = [1, 1]} : vector<5x128xf32> to vector<1x128xf32>
    %667 = vector.shape_cast %666 : vector<1x128xf32> to vector<128xf32>
    %c3_208 = arith.constant 3 : index
    %c21_209 = arith.constant 21 : index
    %c0_210 = arith.constant 0 : index
    %668 = vector.load %arg8[%c3_208, %c21_209, %c0_210] : memref<8x25x128xf32, #tpu.memory_space<vmem>>, vector<1x1x128xf32>
    %669 = vector.shape_cast %668 : vector<1x1x128xf32> to vector<128xf32>
    %670 = vector.shape_cast %667 : vector<128xf32> to vector<1x1x128xf32>
    tpu.vector_store %arg8[%c3_208, %c21_209, %c0_210], %670 {strides = array<i32>} : memref<8x25x128xf32, #tpu.memory_space<vmem>>, vector<1x1x128xf32>,
    %c3_211 = arith.constant 3 : index
    %671 = memref.load %arg4[%c3_211] : memref<4xf32, #tpu.memory_space<smem>>
    %672 = vector.broadcast %671 : f32 to vector<5x128xf32>
    %c11_212 = arith.constant 11 : index
    %673 = memref.load %arg3[%c11_212] : memref<96xf32, #tpu.memory_space<smem>>
    %674 = vector.broadcast %673 : f32 to vector<5x128xf32>
    %675 = arith.mulf %674, %7 : vector<5x128xf32>
    %676 = arith.addf %672, %675 : vector<5x128xf32>
    %c23_213 = arith.constant 23 : index
    %677 = memref.load %arg3[%c23_213] : memref<96xf32, #tpu.memory_space<smem>>
    %678 = vector.broadcast %677 : f32 to vector<5x128xf32>
    %679 = arith.mulf %678, %9 : vector<5x128xf32>
    %680 = arith.addf %676, %679 : vector<5x128xf32>
    %c35 = arith.constant 35 : index
    %681 = memref.load %arg3[%c35] : memref<96xf32, #tpu.memory_space<smem>>
    %682 = vector.broadcast %681 : f32 to vector<5x128xf32>
    %683 = arith.mulf %682, %11 : vector<5x128xf32>
    %684 = arith.addf %680, %683 : vector<5x128xf32>
    %c47 = arith.constant 47 : index
    %685 = memref.load %arg3[%c47] : memref<96xf32, #tpu.memory_space<smem>>
    %686 = vector.broadcast %685 : f32 to vector<5x128xf32>
    %687 = arith.mulf %686, %13 : vector<5x128xf32>
    %688 = arith.addf %684, %687 : vector<5x128xf32>
    %c59 = arith.constant 59 : index
    %689 = memref.load %arg3[%c59] : memref<96xf32, #tpu.memory_space<smem>>
    %690 = vector.broadcast %689 : f32 to vector<5x128xf32>
    %691 = arith.mulf %690, %15 : vector<5x128xf32>
    %692 = arith.addf %688, %691 : vector<5x128xf32>
    %c71 = arith.constant 71 : index
    %693 = memref.load %arg3[%c71] : memref<96xf32, #tpu.memory_space<smem>>
    %694 = vector.broadcast %693 : f32 to vector<5x128xf32>
    %695 = arith.mulf %694, %17 : vector<5x128xf32>
    %696 = arith.addf %692, %695 : vector<5x128xf32>
    %c83 = arith.constant 83 : index
    %697 = memref.load %arg3[%c83] : memref<96xf32, #tpu.memory_space<smem>>
    %698 = vector.broadcast %697 : f32 to vector<5x128xf32>
    %699 = arith.mulf %698, %19 : vector<5x128xf32>
    %700 = arith.addf %696, %699 : vector<5x128xf32>
    %c95 = arith.constant 95 : index
    %701 = memref.load %arg3[%c95] : memref<96xf32, #tpu.memory_space<smem>>
    %702 = vector.broadcast %701 : f32 to vector<5x128xf32>
    %703 = arith.mulf %702, %21 : vector<5x128xf32>
    %704 = arith.addf %700, %703 : vector<5x128xf32>
    %705 = vector.extract_strided_slice %704 {offsets = [0, 0], sizes = [1, 128], strides = [1, 1]} : vector<5x128xf32> to vector<1x128xf32>
    %706 = vector.shape_cast %705 : vector<1x128xf32> to vector<128xf32>
    %c3_214 = arith.constant 3 : index
    %c10_215 = arith.constant 10 : index
    %c0_216 = arith.constant 0 : index
    %707 = vector.load %arg8[%c3_214, %c10_215, %c0_216] : memref<8x25x128xf32, #tpu.memory_space<vmem>>, vector<1x1x128xf32>
    %708 = vector.shape_cast %707 : vector<1x1x128xf32> to vector<128xf32>
    %709 = vector.shape_cast %706 : vector<128xf32> to vector<1x1x128xf32>
    tpu.vector_store %arg8[%c3_214, %c10_215, %c0_216], %709 {strides = array<i32>} : memref<8x25x128xf32, #tpu.memory_space<vmem>>, vector<1x1x128xf32>,
    %710 = vector.extract_strided_slice %704 {offsets = [1, 0], sizes = [1, 128], strides = [1, 1]} : vector<5x128xf32> to vector<1x128xf32>
    %711 = vector.shape_cast %710 : vector<1x128xf32> to vector<128xf32>
    %c3_217 = arith.constant 3 : index
    %c13_218 = arith.constant 13 : index
    %c0_219 = arith.constant 0 : index
    %712 = vector.load %arg8[%c3_217, %c13_218, %c0_219] : memref<8x25x128xf32, #tpu.memory_space<vmem>>, vector<1x1x128xf32>
    %713 = vector.shape_cast %712 : vector<1x1x128xf32> to vector<128xf32>
    %714 = vector.shape_cast %711 : vector<128xf32> to vector<1x1x128xf32>
    tpu.vector_store %arg8[%c3_217, %c13_218, %c0_219], %714 {strides = array<i32>} : memref<8x25x128xf32, #tpu.memory_space<vmem>>, vector<1x1x128xf32>,
    %715 = vector.extract_strided_slice %704 {offsets = [2, 0], sizes = [1, 128], strides = [1, 1]} : vector<5x128xf32> to vector<1x128xf32>
    %716 = vector.shape_cast %715 : vector<1x128xf32> to vector<128xf32>
    %c3_220 = arith.constant 3 : index
    %c16_221 = arith.constant 16 : index
    %c0_222 = arith.constant 0 : index
    %717 = vector.load %arg8[%c3_220, %c16_221, %c0_222] : memref<8x25x128xf32, #tpu.memory_space<vmem>>, vector<1x1x128xf32>
    %718 = vector.shape_cast %717 : vector<1x1x128xf32> to vector<128xf32>
    %719 = vector.shape_cast %716 : vector<128xf32> to vector<1x1x128xf32>
    tpu.vector_store %arg8[%c3_220, %c16_221, %c0_222], %719 {strides = array<i32>} : memref<8x25x128xf32, #tpu.memory_space<vmem>>, vector<1x1x128xf32>,
    %720 = vector.extract_strided_slice %704 {offsets = [3, 0], sizes = [1, 128], strides = [1, 1]} : vector<5x128xf32> to vector<1x128xf32>
    %721 = vector.shape_cast %720 : vector<1x128xf32> to vector<128xf32>
    %c3_223 = arith.constant 3 : index
    %c19_224 = arith.constant 19 : index
    %c0_225 = arith.constant 0 : index
    %722 = vector.load %arg8[%c3_223, %c19_224, %c0_225] : memref<8x25x128xf32, #tpu.memory_space<vmem>>, vector<1x1x128xf32>
    %723 = vector.shape_cast %722 : vector<1x1x128xf32> to vector<128xf32>
    %724 = vector.shape_cast %721 : vector<128xf32> to vector<1x1x128xf32>
    tpu.vector_store %arg8[%c3_223, %c19_224, %c0_225], %724 {strides = array<i32>} : memref<8x25x128xf32, #tpu.memory_space<vmem>>, vector<1x1x128xf32>,
    %725 = vector.extract_strided_slice %704 {offsets = [4, 0], sizes = [1, 128], strides = [1, 1]} : vector<5x128xf32> to vector<1x128xf32>
    %726 = vector.shape_cast %725 : vector<1x128xf32> to vector<128xf32>
    %c3_226 = arith.constant 3 : index
    %c22_227 = arith.constant 22 : index
    %c0_228 = arith.constant 0 : index
    %727 = vector.load %arg8[%c3_226, %c22_227, %c0_228] : memref<8x25x128xf32, #tpu.memory_space<vmem>>, vector<1x1x128xf32>
    %728 = vector.shape_cast %727 : vector<1x1x128xf32> to vector<128xf32>
    %729 = vector.shape_cast %726 : vector<128xf32> to vector<1x1x128xf32>
    tpu.vector_store %arg8[%c3_226, %c22_227, %c0_228], %729 {strides = array<i32>} : memref<8x25x128xf32, #tpu.memory_space<vmem>>, vector<1x1x128xf32>,
    %cst_229 = arith.constant 0.000000e+00 : f32
    %730 = vector.broadcast %cst_229 : f32 to vector<8x128xf32>
    %cst_230 = arith.constant 0.000000e+00 : f32
    %731 = vector.broadcast %cst_230 : f32 to vector<8x128xf32>
    %cst_231 = arith.constant 0.000000e+00 : f32
    %732 = vector.broadcast %cst_231 : f32 to vector<8x128xf32>
    %cst_232 = arith.constant 0.000000e+00 : f32
    %733 = vector.broadcast %cst_232 : f32 to vector<8x128xf32>
    %c0_233 = arith.constant 0 : index
    %c6_234 = arith.constant 6 : index
    %c0_235 = arith.constant 0 : index
    %734 = vector.load %arg8[%c0_233, %c6_234, %c0_235] : memref<8x25x128xf32, #tpu.memory_space<vmem>>, vector<1x8x128xf32>
    %735 = vector.shape_cast %734 : vector<1x8x128xf32> to vector<8x128xf32>
    %c0_236 = arith.constant 0 : index
    %736 = memref.load %arg5[%c0_236] : memref<96xf32, #tpu.memory_space<smem>>
    %737 = vector.broadcast %736 : f32 to vector<8x128xf32>
    %738 = arith.mulf %737, %735 : vector<8x128xf32>
    %739 = arith.addf %730, %738 : vector<8x128xf32>
    %c24_237 = arith.constant 24 : index
    %740 = memref.load %arg5[%c24_237] : memref<96xf32, #tpu.memory_space<smem>>
    %741 = vector.broadcast %740 : f32 to vector<8x128xf32>
    %742 = arith.mulf %741, %735 : vector<8x128xf32>
    %743 = arith.addf %731, %742 : vector<8x128xf32>
    %c48_238 = arith.constant 48 : index
    %744 = memref.load %arg5[%c48_238] : memref<96xf32, #tpu.memory_space<smem>>
    %745 = vector.broadcast %744 : f32 to vector<8x128xf32>
    %746 = arith.mulf %745, %735 : vector<8x128xf32>
    %747 = arith.addf %732, %746 : vector<8x128xf32>
    %c72_239 = arith.constant 72 : index
    %748 = memref.load %arg5[%c72_239] : memref<96xf32, #tpu.memory_space<smem>>
    %749 = vector.broadcast %748 : f32 to vector<8x128xf32>
    %750 = arith.mulf %749, %735 : vector<8x128xf32>
    %751 = arith.addf %733, %750 : vector<8x128xf32>
    %c0_240 = arith.constant 0 : index
    %c7_241 = arith.constant 7 : index
    %c0_242 = arith.constant 0 : index
    %752 = vector.load %arg8[%c0_240, %c7_241, %c0_242] : memref<8x25x128xf32, #tpu.memory_space<vmem>>, vector<1x8x128xf32>
    %753 = vector.shape_cast %752 : vector<1x8x128xf32> to vector<8x128xf32>
    %c1_243 = arith.constant 1 : index
    %754 = memref.load %arg5[%c1_243] : memref<96xf32, #tpu.memory_space<smem>>
    %755 = vector.broadcast %754 : f32 to vector<8x128xf32>
    %756 = arith.mulf %755, %753 : vector<8x128xf32>
    %757 = arith.addf %739, %756 : vector<8x128xf32>
    %c25_244 = arith.constant 25 : index
    %758 = memref.load %arg5[%c25_244] : memref<96xf32, #tpu.memory_space<smem>>
    %759 = vector.broadcast %758 : f32 to vector<8x128xf32>
    %760 = arith.mulf %759, %753 : vector<8x128xf32>
    %761 = arith.addf %743, %760 : vector<8x128xf32>
    %c49_245 = arith.constant 49 : index
    %762 = memref.load %arg5[%c49_245] : memref<96xf32, #tpu.memory_space<smem>>
    %763 = vector.broadcast %762 : f32 to vector<8x128xf32>
    %764 = arith.mulf %763, %753 : vector<8x128xf32>
    %765 = arith.addf %747, %764 : vector<8x128xf32>
    %c73_246 = arith.constant 73 : index
    %766 = memref.load %arg5[%c73_246] : memref<96xf32, #tpu.memory_space<smem>>
    %767 = vector.broadcast %766 : f32 to vector<8x128xf32>
    %768 = arith.mulf %767, %753 : vector<8x128xf32>
    %769 = arith.addf %751, %768 : vector<8x128xf32>
    %c0_247 = arith.constant 0 : index
    %c8_248 = arith.constant 8 : index
    %c0_249 = arith.constant 0 : index
    %770 = vector.load %arg8[%c0_247, %c8_248, %c0_249] : memref<8x25x128xf32, #tpu.memory_space<vmem>>, vector<1x8x128xf32>
    %771 = vector.shape_cast %770 : vector<1x8x128xf32> to vector<8x128xf32>
    %c2_250 = arith.constant 2 : index
    %772 = memref.load %arg5[%c2_250] : memref<96xf32, #tpu.memory_space<smem>>
    %773 = vector.broadcast %772 : f32 to vector<8x128xf32>
    %774 = arith.mulf %773, %771 : vector<8x128xf32>
    %775 = arith.addf %757, %774 : vector<8x128xf32>
    %c26_251 = arith.constant 26 : index
    %776 = memref.load %arg5[%c26_251] : memref<96xf32, #tpu.memory_space<smem>>
    %777 = vector.broadcast %776 : f32 to vector<8x128xf32>
    %778 = arith.mulf %777, %771 : vector<8x128xf32>
    %779 = arith.addf %761, %778 : vector<8x128xf32>
    %c50_252 = arith.constant 50 : index
    %780 = memref.load %arg5[%c50_252] : memref<96xf32, #tpu.memory_space<smem>>
    %781 = vector.broadcast %780 : f32 to vector<8x128xf32>
    %782 = arith.mulf %781, %771 : vector<8x128xf32>
    %783 = arith.addf %765, %782 : vector<8x128xf32>
    %c74_253 = arith.constant 74 : index
    %784 = memref.load %arg5[%c74_253] : memref<96xf32, #tpu.memory_space<smem>>
    %785 = vector.broadcast %784 : f32 to vector<8x128xf32>
    %786 = arith.mulf %785, %771 : vector<8x128xf32>
    %787 = arith.addf %769, %786 : vector<8x128xf32>
    %c1_254 = arith.constant 1 : index
    %c6_255 = arith.constant 6 : index
    %c0_256 = arith.constant 0 : index
    %788 = vector.load %arg8[%c1_254, %c6_255, %c0_256] : memref<8x25x128xf32, #tpu.memory_space<vmem>>, vector<1x8x128xf32>
    %789 = vector.shape_cast %788 : vector<1x8x128xf32> to vector<8x128xf32>
    %c3_257 = arith.constant 3 : index
    %790 = memref.load %arg5[%c3_257] : memref<96xf32, #tpu.memory_space<smem>>
    %791 = vector.broadcast %790 : f32 to vector<8x128xf32>
    %792 = arith.mulf %791, %789 : vector<8x128xf32>
    %793 = arith.addf %775, %792 : vector<8x128xf32>
    %c27_258 = arith.constant 27 : index
    %794 = memref.load %arg5[%c27_258] : memref<96xf32, #tpu.memory_space<smem>>
    %795 = vector.broadcast %794 : f32 to vector<8x128xf32>
    %796 = arith.mulf %795, %789 : vector<8x128xf32>
    %797 = arith.addf %779, %796 : vector<8x128xf32>
    %c51_259 = arith.constant 51 : index
    %798 = memref.load %arg5[%c51_259] : memref<96xf32, #tpu.memory_space<smem>>
    %799 = vector.broadcast %798 : f32 to vector<8x128xf32>
    %800 = arith.mulf %799, %789 : vector<8x128xf32>
    %801 = arith.addf %783, %800 : vector<8x128xf32>
    %c75_260 = arith.constant 75 : index
    %802 = memref.load %arg5[%c75_260] : memref<96xf32, #tpu.memory_space<smem>>
    %803 = vector.broadcast %802 : f32 to vector<8x128xf32>
    %804 = arith.mulf %803, %789 : vector<8x128xf32>
    %805 = arith.addf %787, %804 : vector<8x128xf32>
    %c1_261 = arith.constant 1 : index
    %c7_262 = arith.constant 7 : index
    %c0_263 = arith.constant 0 : index
    %806 = vector.load %arg8[%c1_261, %c7_262, %c0_263] : memref<8x25x128xf32, #tpu.memory_space<vmem>>, vector<1x8x128xf32>
    %807 = vector.shape_cast %806 : vector<1x8x128xf32> to vector<8x128xf32>
    %c4_264 = arith.constant 4 : index
    %808 = memref.load %arg5[%c4_264] : memref<96xf32, #tpu.memory_space<smem>>
    %809 = vector.broadcast %808 : f32 to vector<8x128xf32>
    %810 = arith.mulf %809, %807 : vector<8x128xf32>
    %811 = arith.addf %793, %810 : vector<8x128xf32>
    %c28_265 = arith.constant 28 : index
    %812 = memref.load %arg5[%c28_265] : memref<96xf32, #tpu.memory_space<smem>>
    %813 = vector.broadcast %812 : f32 to vector<8x128xf32>
    %814 = arith.mulf %813, %807 : vector<8x128xf32>
    %815 = arith.addf %797, %814 : vector<8x128xf32>
    %c52_266 = arith.constant 52 : index
    %816 = memref.load %arg5[%c52_266] : memref<96xf32, #tpu.memory_space<smem>>
    %817 = vector.broadcast %816 : f32 to vector<8x128xf32>
    %818 = arith.mulf %817, %807 : vector<8x128xf32>
    %819 = arith.addf %801, %818 : vector<8x128xf32>
    %c76_267 = arith.constant 76 : index
    %820 = memref.load %arg5[%c76_267] : memref<96xf32, #tpu.memory_space<smem>>
    %821 = vector.broadcast %820 : f32 to vector<8x128xf32>
    %822 = arith.mulf %821, %807 : vector<8x128xf32>
    %823 = arith.addf %805, %822 : vector<8x128xf32>
    %c1_268 = arith.constant 1 : index
    %c8_269 = arith.constant 8 : index
    %c0_270 = arith.constant 0 : index
    %824 = vector.load %arg8[%c1_268, %c8_269, %c0_270] : memref<8x25x128xf32, #tpu.memory_space<vmem>>, vector<1x8x128xf32>
    %825 = vector.shape_cast %824 : vector<1x8x128xf32> to vector<8x128xf32>
    %c5_271 = arith.constant 5 : index
    %826 = memref.load %arg5[%c5_271] : memref<96xf32, #tpu.memory_space<smem>>
    %827 = vector.broadcast %826 : f32 to vector<8x128xf32>
    %828 = arith.mulf %827, %825 : vector<8x128xf32>
    %829 = arith.addf %811, %828 : vector<8x128xf32>
    %c29_272 = arith.constant 29 : index
    %830 = memref.load %arg5[%c29_272] : memref<96xf32, #tpu.memory_space<smem>>
    %831 = vector.broadcast %830 : f32 to vector<8x128xf32>
    %832 = arith.mulf %831, %825 : vector<8x128xf32>
    %833 = arith.addf %815, %832 : vector<8x128xf32>
    %c53_273 = arith.constant 53 : index
    %834 = memref.load %arg5[%c53_273] : memref<96xf32, #tpu.memory_space<smem>>
    %835 = vector.broadcast %834 : f32 to vector<8x128xf32>
    %836 = arith.mulf %835, %825 : vector<8x128xf32>
    %837 = arith.addf %819, %836 : vector<8x128xf32>
    %c77_274 = arith.constant 77 : index
    %838 = memref.load %arg5[%c77_274] : memref<96xf32, #tpu.memory_space<smem>>
    %839 = vector.broadcast %838 : f32 to vector<8x128xf32>
    %840 = arith.mulf %839, %825 : vector<8x128xf32>
    %841 = arith.addf %823, %840 : vector<8x128xf32>
    %c2_275 = arith.constant 2 : index
    %c6_276 = arith.constant 6 : index
    %c0_277 = arith.constant 0 : index
    %842 = vector.load %arg8[%c2_275, %c6_276, %c0_277] : memref<8x25x128xf32, #tpu.memory_space<vmem>>, vector<1x8x128xf32>
    %843 = vector.shape_cast %842 : vector<1x8x128xf32> to vector<8x128xf32>
    %c6_278 = arith.constant 6 : index
    %844 = memref.load %arg5[%c6_278] : memref<96xf32, #tpu.memory_space<smem>>
    %845 = vector.broadcast %844 : f32 to vector<8x128xf32>
    %846 = arith.mulf %845, %843 : vector<8x128xf32>
    %847 = arith.addf %829, %846 : vector<8x128xf32>
    %c30_279 = arith.constant 30 : index
    %848 = memref.load %arg5[%c30_279] : memref<96xf32, #tpu.memory_space<smem>>
    %849 = vector.broadcast %848 : f32 to vector<8x128xf32>
    %850 = arith.mulf %849, %843 : vector<8x128xf32>
    %851 = arith.addf %833, %850 : vector<8x128xf32>
    %c54_280 = arith.constant 54 : index
    %852 = memref.load %arg5[%c54_280] : memref<96xf32, #tpu.memory_space<smem>>
    %853 = vector.broadcast %852 : f32 to vector<8x128xf32>
    %854 = arith.mulf %853, %843 : vector<8x128xf32>
    %855 = arith.addf %837, %854 : vector<8x128xf32>
    %c78_281 = arith.constant 78 : index
    %856 = memref.load %arg5[%c78_281] : memref<96xf32, #tpu.memory_space<smem>>
    %857 = vector.broadcast %856 : f32 to vector<8x128xf32>
    %858 = arith.mulf %857, %843 : vector<8x128xf32>
    %859 = arith.addf %841, %858 : vector<8x128xf32>
    %c2_282 = arith.constant 2 : index
    %c7_283 = arith.constant 7 : index
    %c0_284 = arith.constant 0 : index
    %860 = vector.load %arg8[%c2_282, %c7_283, %c0_284] : memref<8x25x128xf32, #tpu.memory_space<vmem>>, vector<1x8x128xf32>
    %861 = vector.shape_cast %860 : vector<1x8x128xf32> to vector<8x128xf32>
    %c7_285 = arith.constant 7 : index
    %862 = memref.load %arg5[%c7_285] : memref<96xf32, #tpu.memory_space<smem>>
    %863 = vector.broadcast %862 : f32 to vector<8x128xf32>
    %864 = arith.mulf %863, %861 : vector<8x128xf32>
    %865 = arith.addf %847, %864 : vector<8x128xf32>
    %c31_286 = arith.constant 31 : index
    %866 = memref.load %arg5[%c31_286] : memref<96xf32, #tpu.memory_space<smem>>
    %867 = vector.broadcast %866 : f32 to vector<8x128xf32>
    %868 = arith.mulf %867, %861 : vector<8x128xf32>
    %869 = arith.addf %851, %868 : vector<8x128xf32>
    %c55_287 = arith.constant 55 : index
    %870 = memref.load %arg5[%c55_287] : memref<96xf32, #tpu.memory_space<smem>>
    %871 = vector.broadcast %870 : f32 to vector<8x128xf32>
    %872 = arith.mulf %871, %861 : vector<8x128xf32>
    %873 = arith.addf %855, %872 : vector<8x128xf32>
    %c79_288 = arith.constant 79 : index
    %874 = memref.load %arg5[%c79_288] : memref<96xf32, #tpu.memory_space<smem>>
    %875 = vector.broadcast %874 : f32 to vector<8x128xf32>
    %876 = arith.mulf %875, %861 : vector<8x128xf32>
    %877 = arith.addf %859, %876 : vector<8x128xf32>
    %c2_289 = arith.constant 2 : index
    %c8_290 = arith.constant 8 : index
    %c0_291 = arith.constant 0 : index
    %878 = vector.load %arg8[%c2_289, %c8_290, %c0_291] : memref<8x25x128xf32, #tpu.memory_space<vmem>>, vector<1x8x128xf32>
    %879 = vector.shape_cast %878 : vector<1x8x128xf32> to vector<8x128xf32>
    %c8_292 = arith.constant 8 : index
    %880 = memref.load %arg5[%c8_292] : memref<96xf32, #tpu.memory_space<smem>>
    %881 = vector.broadcast %880 : f32 to vector<8x128xf32>
    %882 = arith.mulf %881, %879 : vector<8x128xf32>
    %883 = arith.addf %865, %882 : vector<8x128xf32>
    %c32_293 = arith.constant 32 : index
    %884 = memref.load %arg5[%c32_293] : memref<96xf32, #tpu.memory_space<smem>>
    %885 = vector.broadcast %884 : f32 to vector<8x128xf32>
    %886 = arith.mulf %885, %879 : vector<8x128xf32>
    %887 = arith.addf %869, %886 : vector<8x128xf32>
    %c56_294 = arith.constant 56 : index
    %888 = memref.load %arg5[%c56_294] : memref<96xf32, #tpu.memory_space<smem>>
    %889 = vector.broadcast %888 : f32 to vector<8x128xf32>
    %890 = arith.mulf %889, %879 : vector<8x128xf32>
    %891 = arith.addf %873, %890 : vector<8x128xf32>
    %c80_295 = arith.constant 80 : index
    %892 = memref.load %arg5[%c80_295] : memref<96xf32, #tpu.memory_space<smem>>
    %893 = vector.broadcast %892 : f32 to vector<8x128xf32>
    %894 = arith.mulf %893, %879 : vector<8x128xf32>
    %895 = arith.addf %877, %894 : vector<8x128xf32>
    %c3_296 = arith.constant 3 : index
    %c6_297 = arith.constant 6 : index
    %c0_298 = arith.constant 0 : index
    %896 = vector.load %arg8[%c3_296, %c6_297, %c0_298] : memref<8x25x128xf32, #tpu.memory_space<vmem>>, vector<1x8x128xf32>
    %897 = vector.shape_cast %896 : vector<1x8x128xf32> to vector<8x128xf32>
    %c9_299 = arith.constant 9 : index
    %898 = memref.load %arg5[%c9_299] : memref<96xf32, #tpu.memory_space<smem>>
    %899 = vector.broadcast %898 : f32 to vector<8x128xf32>
    %900 = arith.mulf %899, %897 : vector<8x128xf32>
    %901 = arith.addf %883, %900 : vector<8x128xf32>
    %c33_300 = arith.constant 33 : index
    %902 = memref.load %arg5[%c33_300] : memref<96xf32, #tpu.memory_space<smem>>
    %903 = vector.broadcast %902 : f32 to vector<8x128xf32>
    %904 = arith.mulf %903, %897 : vector<8x128xf32>
    %905 = arith.addf %887, %904 : vector<8x128xf32>
    %c57_301 = arith.constant 57 : index
    %906 = memref.load %arg5[%c57_301] : memref<96xf32, #tpu.memory_space<smem>>
    %907 = vector.broadcast %906 : f32 to vector<8x128xf32>
    %908 = arith.mulf %907, %897 : vector<8x128xf32>
    %909 = arith.addf %891, %908 : vector<8x128xf32>
    %c81_302 = arith.constant 81 : index
    %910 = memref.load %arg5[%c81_302] : memref<96xf32, #tpu.memory_space<smem>>
    %911 = vector.broadcast %910 : f32 to vector<8x128xf32>
    %912 = arith.mulf %911, %897 : vector<8x128xf32>
    %913 = arith.addf %895, %912 : vector<8x128xf32>
    %c3_303 = arith.constant 3 : index
    %c7_304 = arith.constant 7 : index
    %c0_305 = arith.constant 0 : index
    %914 = vector.load %arg8[%c3_303, %c7_304, %c0_305] : memref<8x25x128xf32, #tpu.memory_space<vmem>>, vector<1x8x128xf32>
    %915 = vector.shape_cast %914 : vector<1x8x128xf32> to vector<8x128xf32>
    %c10_306 = arith.constant 10 : index
    %916 = memref.load %arg5[%c10_306] : memref<96xf32, #tpu.memory_space<smem>>
    %917 = vector.broadcast %916 : f32 to vector<8x128xf32>
    %918 = arith.mulf %917, %915 : vector<8x128xf32>
    %919 = arith.addf %901, %918 : vector<8x128xf32>
    %c34_307 = arith.constant 34 : index
    %920 = memref.load %arg5[%c34_307] : memref<96xf32, #tpu.memory_space<smem>>
    %921 = vector.broadcast %920 : f32 to vector<8x128xf32>
    %922 = arith.mulf %921, %915 : vector<8x128xf32>
    %923 = arith.addf %905, %922 : vector<8x128xf32>
    %c58_308 = arith.constant 58 : index
    %924 = memref.load %arg5[%c58_308] : memref<96xf32, #tpu.memory_space<smem>>
    %925 = vector.broadcast %924 : f32 to vector<8x128xf32>
    %926 = arith.mulf %925, %915 : vector<8x128xf32>
    %927 = arith.addf %909, %926 : vector<8x128xf32>
    %c82_309 = arith.constant 82 : index
    %928 = memref.load %arg5[%c82_309] : memref<96xf32, #tpu.memory_space<smem>>
    %929 = vector.broadcast %928 : f32 to vector<8x128xf32>
    %930 = arith.mulf %929, %915 : vector<8x128xf32>
    %931 = arith.addf %913, %930 : vector<8x128xf32>
    %c3_310 = arith.constant 3 : index
    %c8_311 = arith.constant 8 : index
    %c0_312 = arith.constant 0 : index
    %932 = vector.load %arg8[%c3_310, %c8_311, %c0_312] : memref<8x25x128xf32, #tpu.memory_space<vmem>>, vector<1x8x128xf32>
    %933 = vector.shape_cast %932 : vector<1x8x128xf32> to vector<8x128xf32>
    %c11_313 = arith.constant 11 : index
    %934 = memref.load %arg5[%c11_313] : memref<96xf32, #tpu.memory_space<smem>>
    %935 = vector.broadcast %934 : f32 to vector<8x128xf32>
    %936 = arith.mulf %935, %933 : vector<8x128xf32>
    %937 = arith.addf %919, %936 : vector<8x128xf32>
    %c35_314 = arith.constant 35 : index
    %938 = memref.load %arg5[%c35_314] : memref<96xf32, #tpu.memory_space<smem>>
    %939 = vector.broadcast %938 : f32 to vector<8x128xf32>
    %940 = arith.mulf %939, %933 : vector<8x128xf32>
    %941 = arith.addf %923, %940 : vector<8x128xf32>
    %c59_315 = arith.constant 59 : index
    %942 = memref.load %arg5[%c59_315] : memref<96xf32, #tpu.memory_space<smem>>
    %943 = vector.broadcast %942 : f32 to vector<8x128xf32>
    %944 = arith.mulf %943, %933 : vector<8x128xf32>
    %945 = arith.addf %927, %944 : vector<8x128xf32>
    %c83_316 = arith.constant 83 : index
    %946 = memref.load %arg5[%c83_316] : memref<96xf32, #tpu.memory_space<smem>>
    %947 = vector.broadcast %946 : f32 to vector<8x128xf32>
    %948 = arith.mulf %947, %933 : vector<8x128xf32>
    %949 = arith.addf %931, %948 : vector<8x128xf32>
    %c4_317 = arith.constant 4 : index
    %c6_318 = arith.constant 6 : index
    %c0_319 = arith.constant 0 : index
    %950 = vector.load %arg8[%c4_317, %c6_318, %c0_319] : memref<8x25x128xf32, #tpu.memory_space<vmem>>, vector<1x8x128xf32>
    %951 = vector.shape_cast %950 : vector<1x8x128xf32> to vector<8x128xf32>
    %c12_320 = arith.constant 12 : index
    %952 = memref.load %arg5[%c12_320] : memref<96xf32, #tpu.memory_space<smem>>
    %953 = vector.broadcast %952 : f32 to vector<8x128xf32>
    %954 = arith.mulf %953, %951 : vector<8x128xf32>
    %955 = arith.addf %937, %954 : vector<8x128xf32>
    %c36_321 = arith.constant 36 : index
    %956 = memref.load %arg5[%c36_321] : memref<96xf32, #tpu.memory_space<smem>>
    %957 = vector.broadcast %956 : f32 to vector<8x128xf32>
    %958 = arith.mulf %957, %951 : vector<8x128xf32>
    %959 = arith.addf %941, %958 : vector<8x128xf32>
    %c60_322 = arith.constant 60 : index
    %960 = memref.load %arg5[%c60_322] : memref<96xf32, #tpu.memory_space<smem>>
    %961 = vector.broadcast %960 : f32 to vector<8x128xf32>
    %962 = arith.mulf %961, %951 : vector<8x128xf32>
    %963 = arith.addf %945, %962 : vector<8x128xf32>
    %c84_323 = arith.constant 84 : index
    %964 = memref.load %arg5[%c84_323] : memref<96xf32, #tpu.memory_space<smem>>
    %965 = vector.broadcast %964 : f32 to vector<8x128xf32>
    %966 = arith.mulf %965, %951 : vector<8x128xf32>
    %967 = arith.addf %949, %966 : vector<8x128xf32>
    %c4_324 = arith.constant 4 : index
    %c7_325 = arith.constant 7 : index
    %c0_326 = arith.constant 0 : index
    %968 = vector.load %arg8[%c4_324, %c7_325, %c0_326] : memref<8x25x128xf32, #tpu.memory_space<vmem>>, vector<1x8x128xf32>
    %969 = vector.shape_cast %968 : vector<1x8x128xf32> to vector<8x128xf32>
    %c13_327 = arith.constant 13 : index
    %970 = memref.load %arg5[%c13_327] : memref<96xf32, #tpu.memory_space<smem>>
    %971 = vector.broadcast %970 : f32 to vector<8x128xf32>
    %972 = arith.mulf %971, %969 : vector<8x128xf32>
    %973 = arith.addf %955, %972 : vector<8x128xf32>
    %c37_328 = arith.constant 37 : index
    %974 = memref.load %arg5[%c37_328] : memref<96xf32, #tpu.memory_space<smem>>
    %975 = vector.broadcast %974 : f32 to vector<8x128xf32>
    %976 = arith.mulf %975, %969 : vector<8x128xf32>
    %977 = arith.addf %959, %976 : vector<8x128xf32>
    %c61_329 = arith.constant 61 : index
    %978 = memref.load %arg5[%c61_329] : memref<96xf32, #tpu.memory_space<smem>>
    %979 = vector.broadcast %978 : f32 to vector<8x128xf32>
    %980 = arith.mulf %979, %969 : vector<8x128xf32>
    %981 = arith.addf %963, %980 : vector<8x128xf32>
    %c85_330 = arith.constant 85 : index
    %982 = memref.load %arg5[%c85_330] : memref<96xf32, #tpu.memory_space<smem>>
    %983 = vector.broadcast %982 : f32 to vector<8x128xf32>
    %984 = arith.mulf %983, %969 : vector<8x128xf32>
    %985 = arith.addf %967, %984 : vector<8x128xf32>
    %c4_331 = arith.constant 4 : index
    %c8_332 = arith.constant 8 : index
    %c0_333 = arith.constant 0 : index
    %986 = vector.load %arg8[%c4_331, %c8_332, %c0_333] : memref<8x25x128xf32, #tpu.memory_space<vmem>>, vector<1x8x128xf32>
    %987 = vector.shape_cast %986 : vector<1x8x128xf32> to vector<8x128xf32>
    %c14_334 = arith.constant 14 : index
    %988 = memref.load %arg5[%c14_334] : memref<96xf32, #tpu.memory_space<smem>>
    %989 = vector.broadcast %988 : f32 to vector<8x128xf32>
    %990 = arith.mulf %989, %987 : vector<8x128xf32>
    %991 = arith.addf %973, %990 : vector<8x128xf32>
    %c38_335 = arith.constant 38 : index
    %992 = memref.load %arg5[%c38_335] : memref<96xf32, #tpu.memory_space<smem>>
    %993 = vector.broadcast %992 : f32 to vector<8x128xf32>
    %994 = arith.mulf %993, %987 : vector<8x128xf32>
    %995 = arith.addf %977, %994 : vector<8x128xf32>
    %c62_336 = arith.constant 62 : index
    %996 = memref.load %arg5[%c62_336] : memref<96xf32, #tpu.memory_space<smem>>
    %997 = vector.broadcast %996 : f32 to vector<8x128xf32>
    %998 = arith.mulf %997, %987 : vector<8x128xf32>
    %999 = arith.addf %981, %998 : vector<8x128xf32>
    %c86_337 = arith.constant 86 : index
    %1000 = memref.load %arg5[%c86_337] : memref<96xf32, #tpu.memory_space<smem>>
    %1001 = vector.broadcast %1000 : f32 to vector<8x128xf32>
    %1002 = arith.mulf %1001, %987 : vector<8x128xf32>
    %1003 = arith.addf %985, %1002 : vector<8x128xf32>
    %c5_338 = arith.constant 5 : index
    %c6_339 = arith.constant 6 : index
    %c0_340 = arith.constant 0 : index
    %1004 = vector.load %arg8[%c5_338, %c6_339, %c0_340] : memref<8x25x128xf32, #tpu.memory_space<vmem>>, vector<1x8x128xf32>
    %1005 = vector.shape_cast %1004 : vector<1x8x128xf32> to vector<8x128xf32>
    %c15_341 = arith.constant 15 : index
    %1006 = memref.load %arg5[%c15_341] : memref<96xf32, #tpu.memory_space<smem>>
    %1007 = vector.broadcast %1006 : f32 to vector<8x128xf32>
    %1008 = arith.mulf %1007, %1005 : vector<8x128xf32>
    %1009 = arith.addf %991, %1008 : vector<8x128xf32>
    %c39_342 = arith.constant 39 : index
    %1010 = memref.load %arg5[%c39_342] : memref<96xf32, #tpu.memory_space<smem>>
    %1011 = vector.broadcast %1010 : f32 to vector<8x128xf32>
    %1012 = arith.mulf %1011, %1005 : vector<8x128xf32>
    %1013 = arith.addf %995, %1012 : vector<8x128xf32>
    %c63_343 = arith.constant 63 : index
    %1014 = memref.load %arg5[%c63_343] : memref<96xf32, #tpu.memory_space<smem>>
    %1015 = vector.broadcast %1014 : f32 to vector<8x128xf32>
    %1016 = arith.mulf %1015, %1005 : vector<8x128xf32>
    %1017 = arith.addf %999, %1016 : vector<8x128xf32>
    %c87_344 = arith.constant 87 : index
    %1018 = memref.load %arg5[%c87_344] : memref<96xf32, #tpu.memory_space<smem>>
    %1019 = vector.broadcast %1018 : f32 to vector<8x128xf32>
    %1020 = arith.mulf %1019, %1005 : vector<8x128xf32>
    %1021 = arith.addf %1003, %1020 : vector<8x128xf32>
    %c5_345 = arith.constant 5 : index
    %c7_346 = arith.constant 7 : index
    %c0_347 = arith.constant 0 : index
    %1022 = vector.load %arg8[%c5_345, %c7_346, %c0_347] : memref<8x25x128xf32, #tpu.memory_space<vmem>>, vector<1x8x128xf32>
    %1023 = vector.shape_cast %1022 : vector<1x8x128xf32> to vector<8x128xf32>
    %c16_348 = arith.constant 16 : index
    %1024 = memref.load %arg5[%c16_348] : memref<96xf32, #tpu.memory_space<smem>>
    %1025 = vector.broadcast %1024 : f32 to vector<8x128xf32>
    %1026 = arith.mulf %1025, %1023 : vector<8x128xf32>
    %1027 = arith.addf %1009, %1026 : vector<8x128xf32>
    %c40_349 = arith.constant 40 : index
    %1028 = memref.load %arg5[%c40_349] : memref<96xf32, #tpu.memory_space<smem>>
    %1029 = vector.broadcast %1028 : f32 to vector<8x128xf32>
    %1030 = arith.mulf %1029, %1023 : vector<8x128xf32>
    %1031 = arith.addf %1013, %1030 : vector<8x128xf32>
    %c64_350 = arith.constant 64 : index
    %1032 = memref.load %arg5[%c64_350] : memref<96xf32, #tpu.memory_space<smem>>
    %1033 = vector.broadcast %1032 : f32 to vector<8x128xf32>
    %1034 = arith.mulf %1033, %1023 : vector<8x128xf32>
    %1035 = arith.addf %1017, %1034 : vector<8x128xf32>
    %c88_351 = arith.constant 88 : index
    %1036 = memref.load %arg5[%c88_351] : memref<96xf32, #tpu.memory_space<smem>>
    %1037 = vector.broadcast %1036 : f32 to vector<8x128xf32>
    %1038 = arith.mulf %1037, %1023 : vector<8x128xf32>
    %1039 = arith.addf %1021, %1038 : vector<8x128xf32>
    %c5_352 = arith.constant 5 : index
    %c8_353 = arith.constant 8 : index
    %c0_354 = arith.constant 0 : index
    %1040 = vector.load %arg8[%c5_352, %c8_353, %c0_354] : memref<8x25x128xf32, #tpu.memory_space<vmem>>, vector<1x8x128xf32>
    %1041 = vector.shape_cast %1040 : vector<1x8x128xf32> to vector<8x128xf32>
    %c17_355 = arith.constant 17 : index
    %1042 = memref.load %arg5[%c17_355] : memref<96xf32, #tpu.memory_space<smem>>
    %1043 = vector.broadcast %1042 : f32 to vector<8x128xf32>
    %1044 = arith.mulf %1043, %1041 : vector<8x128xf32>
    %1045 = arith.addf %1027, %1044 : vector<8x128xf32>
    %c41_356 = arith.constant 41 : index
    %1046 = memref.load %arg5[%c41_356] : memref<96xf32, #tpu.memory_space<smem>>
    %1047 = vector.broadcast %1046 : f32 to vector<8x128xf32>
    %1048 = arith.mulf %1047, %1041 : vector<8x128xf32>
    %1049 = arith.addf %1031, %1048 : vector<8x128xf32>
    %c65_357 = arith.constant 65 : index
    %1050 = memref.load %arg5[%c65_357] : memref<96xf32, #tpu.memory_space<smem>>
    %1051 = vector.broadcast %1050 : f32 to vector<8x128xf32>
    %1052 = arith.mulf %1051, %1041 : vector<8x128xf32>
    %1053 = arith.addf %1035, %1052 : vector<8x128xf32>
    %c89_358 = arith.constant 89 : index
    %1054 = memref.load %arg5[%c89_358] : memref<96xf32, #tpu.memory_space<smem>>
    %1055 = vector.broadcast %1054 : f32 to vector<8x128xf32>
    %1056 = arith.mulf %1055, %1041 : vector<8x128xf32>
    %1057 = arith.addf %1039, %1056 : vector<8x128xf32>
    %c6_359 = arith.constant 6 : index
    %c6_360 = arith.constant 6 : index
    %c0_361 = arith.constant 0 : index
    %1058 = vector.load %arg8[%c6_359, %c6_360, %c0_361] : memref<8x25x128xf32, #tpu.memory_space<vmem>>, vector<1x8x128xf32>
    %1059 = vector.shape_cast %1058 : vector<1x8x128xf32> to vector<8x128xf32>
    %c18_362 = arith.constant 18 : index
    %1060 = memref.load %arg5[%c18_362] : memref<96xf32, #tpu.memory_space<smem>>
    %1061 = vector.broadcast %1060 : f32 to vector<8x128xf32>
    %1062 = arith.mulf %1061, %1059 : vector<8x128xf32>
    %1063 = arith.addf %1045, %1062 : vector<8x128xf32>
    %c42_363 = arith.constant 42 : index
    %1064 = memref.load %arg5[%c42_363] : memref<96xf32, #tpu.memory_space<smem>>
    %1065 = vector.broadcast %1064 : f32 to vector<8x128xf32>
    %1066 = arith.mulf %1065, %1059 : vector<8x128xf32>
    %1067 = arith.addf %1049, %1066 : vector<8x128xf32>
    %c66_364 = arith.constant 66 : index
    %1068 = memref.load %arg5[%c66_364] : memref<96xf32, #tpu.memory_space<smem>>
    %1069 = vector.broadcast %1068 : f32 to vector<8x128xf32>
    %1070 = arith.mulf %1069, %1059 : vector<8x128xf32>
    %1071 = arith.addf %1053, %1070 : vector<8x128xf32>
    %c90_365 = arith.constant 90 : index
    %1072 = memref.load %arg5[%c90_365] : memref<96xf32, #tpu.memory_space<smem>>
    %1073 = vector.broadcast %1072 : f32 to vector<8x128xf32>
    %1074 = arith.mulf %1073, %1059 : vector<8x128xf32>
    %1075 = arith.addf %1057, %1074 : vector<8x128xf32>
    %c6_366 = arith.constant 6 : index
    %c7_367 = arith.constant 7 : index
    %c0_368 = arith.constant 0 : index
    %1076 = vector.load %arg8[%c6_366, %c7_367, %c0_368] : memref<8x25x128xf32, #tpu.memory_space<vmem>>, vector<1x8x128xf32>
    %1077 = vector.shape_cast %1076 : vector<1x8x128xf32> to vector<8x128xf32>
    %c19_369 = arith.constant 19 : index
    %1078 = memref.load %arg5[%c19_369] : memref<96xf32, #tpu.memory_space<smem>>
    %1079 = vector.broadcast %1078 : f32 to vector<8x128xf32>
    %1080 = arith.mulf %1079, %1077 : vector<8x128xf32>
    %1081 = arith.addf %1063, %1080 : vector<8x128xf32>
    %c43_370 = arith.constant 43 : index
    %1082 = memref.load %arg5[%c43_370] : memref<96xf32, #tpu.memory_space<smem>>
    %1083 = vector.broadcast %1082 : f32 to vector<8x128xf32>
    %1084 = arith.mulf %1083, %1077 : vector<8x128xf32>
    %1085 = arith.addf %1067, %1084 : vector<8x128xf32>
    %c67_371 = arith.constant 67 : index
    %1086 = memref.load %arg5[%c67_371] : memref<96xf32, #tpu.memory_space<smem>>
    %1087 = vector.broadcast %1086 : f32 to vector<8x128xf32>
    %1088 = arith.mulf %1087, %1077 : vector<8x128xf32>
    %1089 = arith.addf %1071, %1088 : vector<8x128xf32>
    %c91_372 = arith.constant 91 : index
    %1090 = memref.load %arg5[%c91_372] : memref<96xf32, #tpu.memory_space<smem>>
    %1091 = vector.broadcast %1090 : f32 to vector<8x128xf32>
    %1092 = arith.mulf %1091, %1077 : vector<8x128xf32>
    %1093 = arith.addf %1075, %1092 : vector<8x128xf32>
    %c6_373 = arith.constant 6 : index
    %c8_374 = arith.constant 8 : index
    %c0_375 = arith.constant 0 : index
    %1094 = vector.load %arg8[%c6_373, %c8_374, %c0_375] : memref<8x25x128xf32, #tpu.memory_space<vmem>>, vector<1x8x128xf32>
    %1095 = vector.shape_cast %1094 : vector<1x8x128xf32> to vector<8x128xf32>
    %c20_376 = arith.constant 20 : index
    %1096 = memref.load %arg5[%c20_376] : memref<96xf32, #tpu.memory_space<smem>>
    %1097 = vector.broadcast %1096 : f32 to vector<8x128xf32>
    %1098 = arith.mulf %1097, %1095 : vector<8x128xf32>
    %1099 = arith.addf %1081, %1098 : vector<8x128xf32>
    %c44_377 = arith.constant 44 : index
    %1100 = memref.load %arg5[%c44_377] : memref<96xf32, #tpu.memory_space<smem>>
    %1101 = vector.broadcast %1100 : f32 to vector<8x128xf32>
    %1102 = arith.mulf %1101, %1095 : vector<8x128xf32>
    %1103 = arith.addf %1085, %1102 : vector<8x128xf32>
    %c68_378 = arith.constant 68 : index
    %1104 = memref.load %arg5[%c68_378] : memref<96xf32, #tpu.memory_space<smem>>
    %1105 = vector.broadcast %1104 : f32 to vector<8x128xf32>
    %1106 = arith.mulf %1105, %1095 : vector<8x128xf32>
    %1107 = arith.addf %1089, %1106 : vector<8x128xf32>
    %c92_379 = arith.constant 92 : index
    %1108 = memref.load %arg5[%c92_379] : memref<96xf32, #tpu.memory_space<smem>>
    %1109 = vector.broadcast %1108 : f32 to vector<8x128xf32>
    %1110 = arith.mulf %1109, %1095 : vector<8x128xf32>
    %1111 = arith.addf %1093, %1110 : vector<8x128xf32>
    %c7_380 = arith.constant 7 : index
    %c6_381 = arith.constant 6 : index
    %c0_382 = arith.constant 0 : index
    %1112 = vector.load %arg8[%c7_380, %c6_381, %c0_382] : memref<8x25x128xf32, #tpu.memory_space<vmem>>, vector<1x8x128xf32>
    %1113 = vector.shape_cast %1112 : vector<1x8x128xf32> to vector<8x128xf32>
    %c21_383 = arith.constant 21 : index
    %1114 = memref.load %arg5[%c21_383] : memref<96xf32, #tpu.memory_space<smem>>
    %1115 = vector.broadcast %1114 : f32 to vector<8x128xf32>
    %1116 = arith.mulf %1115, %1113 : vector<8x128xf32>
    %1117 = arith.addf %1099, %1116 : vector<8x128xf32>
    %c45_384 = arith.constant 45 : index
    %1118 = memref.load %arg5[%c45_384] : memref<96xf32, #tpu.memory_space<smem>>
    %1119 = vector.broadcast %1118 : f32 to vector<8x128xf32>
    %1120 = arith.mulf %1119, %1113 : vector<8x128xf32>
    %1121 = arith.addf %1103, %1120 : vector<8x128xf32>
    %c69_385 = arith.constant 69 : index
    %1122 = memref.load %arg5[%c69_385] : memref<96xf32, #tpu.memory_space<smem>>
    %1123 = vector.broadcast %1122 : f32 to vector<8x128xf32>
    %1124 = arith.mulf %1123, %1113 : vector<8x128xf32>
    %1125 = arith.addf %1107, %1124 : vector<8x128xf32>
    %c93_386 = arith.constant 93 : index
    %1126 = memref.load %arg5[%c93_386] : memref<96xf32, #tpu.memory_space<smem>>
    %1127 = vector.broadcast %1126 : f32 to vector<8x128xf32>
    %1128 = arith.mulf %1127, %1113 : vector<8x128xf32>
    %1129 = arith.addf %1111, %1128 : vector<8x128xf32>
    %c7_387 = arith.constant 7 : index
    %c7_388 = arith.constant 7 : index
    %c0_389 = arith.constant 0 : index
    %1130 = vector.load %arg8[%c7_387, %c7_388, %c0_389] : memref<8x25x128xf32, #tpu.memory_space<vmem>>, vector<1x8x128xf32>
    %1131 = vector.shape_cast %1130 : vector<1x8x128xf32> to vector<8x128xf32>
    %c22_390 = arith.constant 22 : index
    %1132 = memref.load %arg5[%c22_390] : memref<96xf32, #tpu.memory_space<smem>>
    %1133 = vector.broadcast %1132 : f32 to vector<8x128xf32>
    %1134 = arith.mulf %1133, %1131 : vector<8x128xf32>
    %1135 = arith.addf %1117, %1134 : vector<8x128xf32>
    %c46_391 = arith.constant 46 : index
    %1136 = memref.load %arg5[%c46_391] : memref<96xf32, #tpu.memory_space<smem>>
    %1137 = vector.broadcast %1136 : f32 to vector<8x128xf32>
    %1138 = arith.mulf %1137, %1131 : vector<8x128xf32>
    %1139 = arith.addf %1121, %1138 : vector<8x128xf32>
    %c70_392 = arith.constant 70 : index
    %1140 = memref.load %arg5[%c70_392] : memref<96xf32, #tpu.memory_space<smem>>
    %1141 = vector.broadcast %1140 : f32 to vector<8x128xf32>
    %1142 = arith.mulf %1141, %1131 : vector<8x128xf32>
    %1143 = arith.addf %1125, %1142 : vector<8x128xf32>
    %c94_393 = arith.constant 94 : index
    %1144 = memref.load %arg5[%c94_393] : memref<96xf32, #tpu.memory_space<smem>>
    %1145 = vector.broadcast %1144 : f32 to vector<8x128xf32>
    %1146 = arith.mulf %1145, %1131 : vector<8x128xf32>
    %1147 = arith.addf %1129, %1146 : vector<8x128xf32>
    %c7_394 = arith.constant 7 : index
    %c8_395 = arith.constant 8 : index
    %c0_396 = arith.constant 0 : index
    %1148 = vector.load %arg8[%c7_394, %c8_395, %c0_396] : memref<8x25x128xf32, #tpu.memory_space<vmem>>, vector<1x8x128xf32>
    %1149 = vector.shape_cast %1148 : vector<1x8x128xf32> to vector<8x128xf32>
    %c23_397 = arith.constant 23 : index
    %1150 = memref.load %arg5[%c23_397] : memref<96xf32, #tpu.memory_space<smem>>
    %1151 = vector.broadcast %1150 : f32 to vector<8x128xf32>
    %1152 = arith.mulf %1151, %1149 : vector<8x128xf32>
    %1153 = arith.addf %1135, %1152 : vector<8x128xf32>
    %c47_398 = arith.constant 47 : index
    %1154 = memref.load %arg5[%c47_398] : memref<96xf32, #tpu.memory_space<smem>>
    %1155 = vector.broadcast %1154 : f32 to vector<8x128xf32>
    %1156 = arith.mulf %1155, %1149 : vector<8x128xf32>
    %1157 = arith.addf %1139, %1156 : vector<8x128xf32>
    %c71_399 = arith.constant 71 : index
    %1158 = memref.load %arg5[%c71_399] : memref<96xf32, #tpu.memory_space<smem>>
    %1159 = vector.broadcast %1158 : f32 to vector<8x128xf32>
    %1160 = arith.mulf %1159, %1149 : vector<8x128xf32>
    %1161 = arith.addf %1143, %1160 : vector<8x128xf32>
    %c95_400 = arith.constant 95 : index
    %1162 = memref.load %arg5[%c95_400] : memref<96xf32, #tpu.memory_space<smem>>
    %1163 = vector.broadcast %1162 : f32 to vector<8x128xf32>
    %1164 = arith.mulf %1163, %1149 : vector<8x128xf32>
    %1165 = arith.addf %1147, %1164 : vector<8x128xf32>
    %c0_401 = arith.constant 0 : index
    %c0_402 = arith.constant 0 : index
    %c0_403 = arith.constant 0 : index
    %1166 = vector.load %arg6[%c0_401, %c0_402, %c0_403] : memref<4x17x128xf32, #tpu.memory_space<vmem>>, vector<1x8x128xf32>
    %1167 = vector.shape_cast %1166 : vector<1x8x128xf32> to vector<8x128xf32>
    %1168 = vector.shape_cast %1153 : vector<8x128xf32> to vector<1x8x128xf32>
    tpu.vector_store %arg6[%c0_401, %c0_402, %c0_403], %1168 {strides = array<i32>} : memref<4x17x128xf32, #tpu.memory_space<vmem>>, vector<1x8x128xf32>,
    %c1_404 = arith.constant 1 : index
    %c0_405 = arith.constant 0 : index
    %c0_406 = arith.constant 0 : index
    %1169 = vector.load %arg6[%c1_404, %c0_405, %c0_406] : memref<4x17x128xf32, #tpu.memory_space<vmem>>, vector<1x8x128xf32>
    %1170 = vector.shape_cast %1169 : vector<1x8x128xf32> to vector<8x128xf32>
    %1171 = vector.shape_cast %1157 : vector<8x128xf32> to vector<1x8x128xf32>
    tpu.vector_store %arg6[%c1_404, %c0_405, %c0_406], %1171 {strides = array<i32>} : memref<4x17x128xf32, #tpu.memory_space<vmem>>, vector<1x8x128xf32>,
    %c2_407 = arith.constant 2 : index
    %c0_408 = arith.constant 0 : index
    %c0_409 = arith.constant 0 : index
    %1172 = vector.load %arg6[%c2_407, %c0_408, %c0_409] : memref<4x17x128xf32, #tpu.memory_space<vmem>>, vector<1x8x128xf32>
    %1173 = vector.shape_cast %1172 : vector<1x8x128xf32> to vector<8x128xf32>
    %1174 = vector.shape_cast %1161 : vector<8x128xf32> to vector<1x8x128xf32>
    tpu.vector_store %arg6[%c2_407, %c0_408, %c0_409], %1174 {strides = array<i32>} : memref<4x17x128xf32, #tpu.memory_space<vmem>>, vector<1x8x128xf32>,
    %c3_410 = arith.constant 3 : index
    %c0_411 = arith.constant 0 : index
    %c0_412 = arith.constant 0 : index
    %1175 = vector.load %arg6[%c3_410, %c0_411, %c0_412] : memref<4x17x128xf32, #tpu.memory_space<vmem>>, vector<1x8x128xf32>
    %1176 = vector.shape_cast %1175 : vector<1x8x128xf32> to vector<8x128xf32>
    %1177 = vector.shape_cast %1165 : vector<8x128xf32> to vector<1x8x128xf32>
    tpu.vector_store %arg6[%c3_410, %c0_411, %c0_412], %1177 {strides = array<i32>} : memref<4x17x128xf32, #tpu.memory_space<vmem>>, vector<1x8x128xf32>,
    %cst_413 = arith.constant 0.000000e+00 : f32
    %1178 = vector.broadcast %cst_413 : f32 to vector<8x128xf32>
    %cst_414 = arith.constant 0.000000e+00 : f32
    %1179 = vector.broadcast %cst_414 : f32 to vector<8x128xf32>
    %cst_415 = arith.constant 0.000000e+00 : f32
    %1180 = vector.broadcast %cst_415 : f32 to vector<8x128xf32>
    %cst_416 = arith.constant 0.000000e+00 : f32
    %1181 = vector.broadcast %cst_416 : f32 to vector<8x128xf32>
    %c0_417 = arith.constant 0 : index
    %c14_418 = arith.constant 14 : index
    %c0_419 = arith.constant 0 : index
    %1182 = vector.load %arg8[%c0_417, %c14_418, %c0_419] : memref<8x25x128xf32, #tpu.memory_space<vmem>>, vector<1x8x128xf32>
    %1183 = vector.shape_cast %1182 : vector<1x8x128xf32> to vector<8x128xf32>
    %c0_420 = arith.constant 0 : index
    %1184 = memref.load %arg5[%c0_420] : memref<96xf32, #tpu.memory_space<smem>>
    %1185 = vector.broadcast %1184 : f32 to vector<8x128xf32>
    %1186 = arith.mulf %1185, %1183 : vector<8x128xf32>
    %1187 = arith.addf %1178, %1186 : vector<8x128xf32>
    %c24_421 = arith.constant 24 : index
    %1188 = memref.load %arg5[%c24_421] : memref<96xf32, #tpu.memory_space<smem>>
    %1189 = vector.broadcast %1188 : f32 to vector<8x128xf32>
    %1190 = arith.mulf %1189, %1183 : vector<8x128xf32>
    %1191 = arith.addf %1179, %1190 : vector<8x128xf32>
    %c48_422 = arith.constant 48 : index
    %1192 = memref.load %arg5[%c48_422] : memref<96xf32, #tpu.memory_space<smem>>
    %1193 = vector.broadcast %1192 : f32 to vector<8x128xf32>
    %1194 = arith.mulf %1193, %1183 : vector<8x128xf32>
    %1195 = arith.addf %1180, %1194 : vector<8x128xf32>
    %c72_423 = arith.constant 72 : index
    %1196 = memref.load %arg5[%c72_423] : memref<96xf32, #tpu.memory_space<smem>>
    %1197 = vector.broadcast %1196 : f32 to vector<8x128xf32>
    %1198 = arith.mulf %1197, %1183 : vector<8x128xf32>
    %1199 = arith.addf %1181, %1198 : vector<8x128xf32>
    %c0_424 = arith.constant 0 : index
    %c15_425 = arith.constant 15 : index
    %c0_426 = arith.constant 0 : index
    %1200 = vector.load %arg8[%c0_424, %c15_425, %c0_426] : memref<8x25x128xf32, #tpu.memory_space<vmem>>, vector<1x8x128xf32>
    %1201 = vector.shape_cast %1200 : vector<1x8x128xf32> to vector<8x128xf32>
    %c1_427 = arith.constant 1 : index
    %1202 = memref.load %arg5[%c1_427] : memref<96xf32, #tpu.memory_space<smem>>
    %1203 = vector.broadcast %1202 : f32 to vector<8x128xf32>
    %1204 = arith.mulf %1203, %1201 : vector<8x128xf32>
    %1205 = arith.addf %1187, %1204 : vector<8x128xf32>
    %c25_428 = arith.constant 25 : index
    %1206 = memref.load %arg5[%c25_428] : memref<96xf32, #tpu.memory_space<smem>>
    %1207 = vector.broadcast %1206 : f32 to vector<8x128xf32>
    %1208 = arith.mulf %1207, %1201 : vector<8x128xf32>
    %1209 = arith.addf %1191, %1208 : vector<8x128xf32>
    %c49_429 = arith.constant 49 : index
    %1210 = memref.load %arg5[%c49_429] : memref<96xf32, #tpu.memory_space<smem>>
    %1211 = vector.broadcast %1210 : f32 to vector<8x128xf32>
    %1212 = arith.mulf %1211, %1201 : vector<8x128xf32>
    %1213 = arith.addf %1195, %1212 : vector<8x128xf32>
    %c73_430 = arith.constant 73 : index
    %1214 = memref.load %arg5[%c73_430] : memref<96xf32, #tpu.memory_space<smem>>
    %1215 = vector.broadcast %1214 : f32 to vector<8x128xf32>
    %1216 = arith.mulf %1215, %1201 : vector<8x128xf32>
    %1217 = arith.addf %1199, %1216 : vector<8x128xf32>
    %c0_431 = arith.constant 0 : index
    %c16_432 = arith.constant 16 : index
    %c0_433 = arith.constant 0 : index
    %1218 = vector.load %arg8[%c0_431, %c16_432, %c0_433] : memref<8x25x128xf32, #tpu.memory_space<vmem>>, vector<1x8x128xf32>
    %1219 = vector.shape_cast %1218 : vector<1x8x128xf32> to vector<8x128xf32>
    %c2_434 = arith.constant 2 : index
    %1220 = memref.load %arg5[%c2_434] : memref<96xf32, #tpu.memory_space<smem>>
    %1221 = vector.broadcast %1220 : f32 to vector<8x128xf32>
    %1222 = arith.mulf %1221, %1219 : vector<8x128xf32>
    %1223 = arith.addf %1205, %1222 : vector<8x128xf32>
    %c26_435 = arith.constant 26 : index
    %1224 = memref.load %arg5[%c26_435] : memref<96xf32, #tpu.memory_space<smem>>
    %1225 = vector.broadcast %1224 : f32 to vector<8x128xf32>
    %1226 = arith.mulf %1225, %1219 : vector<8x128xf32>
    %1227 = arith.addf %1209, %1226 : vector<8x128xf32>
    %c50_436 = arith.constant 50 : index
    %1228 = memref.load %arg5[%c50_436] : memref<96xf32, #tpu.memory_space<smem>>
    %1229 = vector.broadcast %1228 : f32 to vector<8x128xf32>
    %1230 = arith.mulf %1229, %1219 : vector<8x128xf32>
    %1231 = arith.addf %1213, %1230 : vector<8x128xf32>
    %c74_437 = arith.constant 74 : index
    %1232 = memref.load %arg5[%c74_437] : memref<96xf32, #tpu.memory_space<smem>>
    %1233 = vector.broadcast %1232 : f32 to vector<8x128xf32>
    %1234 = arith.mulf %1233, %1219 : vector<8x128xf32>
    %1235 = arith.addf %1217, %1234 : vector<8x128xf32>
    %c1_438 = arith.constant 1 : index
    %c14_439 = arith.constant 14 : index
    %c0_440 = arith.constant 0 : index
    %1236 = vector.load %arg8[%c1_438, %c14_439, %c0_440] : memref<8x25x128xf32, #tpu.memory_space<vmem>>, vector<1x8x128xf32>
    %1237 = vector.shape_cast %1236 : vector<1x8x128xf32> to vector<8x128xf32>
    %c3_441 = arith.constant 3 : index
    %1238 = memref.load %arg5[%c3_441] : memref<96xf32, #tpu.memory_space<smem>>
    %1239 = vector.broadcast %1238 : f32 to vector<8x128xf32>
    %1240 = arith.mulf %1239, %1237 : vector<8x128xf32>
    %1241 = arith.addf %1223, %1240 : vector<8x128xf32>
    %c27_442 = arith.constant 27 : index
    %1242 = memref.load %arg5[%c27_442] : memref<96xf32, #tpu.memory_space<smem>>
    %1243 = vector.broadcast %1242 : f32 to vector<8x128xf32>
    %1244 = arith.mulf %1243, %1237 : vector<8x128xf32>
    %1245 = arith.addf %1227, %1244 : vector<8x128xf32>
    %c51_443 = arith.constant 51 : index
    %1246 = memref.load %arg5[%c51_443] : memref<96xf32, #tpu.memory_space<smem>>
    %1247 = vector.broadcast %1246 : f32 to vector<8x128xf32>
    %1248 = arith.mulf %1247, %1237 : vector<8x128xf32>
    %1249 = arith.addf %1231, %1248 : vector<8x128xf32>
    %c75_444 = arith.constant 75 : index
    %1250 = memref.load %arg5[%c75_444] : memref<96xf32, #tpu.memory_space<smem>>
    %1251 = vector.broadcast %1250 : f32 to vector<8x128xf32>
    %1252 = arith.mulf %1251, %1237 : vector<8x128xf32>
    %1253 = arith.addf %1235, %1252 : vector<8x128xf32>
    %c1_445 = arith.constant 1 : index
    %c15_446 = arith.constant 15 : index
    %c0_447 = arith.constant 0 : index
    %1254 = vector.load %arg8[%c1_445, %c15_446, %c0_447] : memref<8x25x128xf32, #tpu.memory_space<vmem>>, vector<1x8x128xf32>
    %1255 = vector.shape_cast %1254 : vector<1x8x128xf32> to vector<8x128xf32>
    %c4_448 = arith.constant 4 : index
    %1256 = memref.load %arg5[%c4_448] : memref<96xf32, #tpu.memory_space<smem>>
    %1257 = vector.broadcast %1256 : f32 to vector<8x128xf32>
    %1258 = arith.mulf %1257, %1255 : vector<8x128xf32>
    %1259 = arith.addf %1241, %1258 : vector<8x128xf32>
    %c28_449 = arith.constant 28 : index
    %1260 = memref.load %arg5[%c28_449] : memref<96xf32, #tpu.memory_space<smem>>
    %1261 = vector.broadcast %1260 : f32 to vector<8x128xf32>
    %1262 = arith.mulf %1261, %1255 : vector<8x128xf32>
    %1263 = arith.addf %1245, %1262 : vector<8x128xf32>
    %c52_450 = arith.constant 52 : index
    %1264 = memref.load %arg5[%c52_450] : memref<96xf32, #tpu.memory_space<smem>>
    %1265 = vector.broadcast %1264 : f32 to vector<8x128xf32>
    %1266 = arith.mulf %1265, %1255 : vector<8x128xf32>
    %1267 = arith.addf %1249, %1266 : vector<8x128xf32>
    %c76_451 = arith.constant 76 : index
    %1268 = memref.load %arg5[%c76_451] : memref<96xf32, #tpu.memory_space<smem>>
    %1269 = vector.broadcast %1268 : f32 to vector<8x128xf32>
    %1270 = arith.mulf %1269, %1255 : vector<8x128xf32>
    %1271 = arith.addf %1253, %1270 : vector<8x128xf32>
    %c1_452 = arith.constant 1 : index
    %c16_453 = arith.constant 16 : index
    %c0_454 = arith.constant 0 : index
    %1272 = vector.load %arg8[%c1_452, %c16_453, %c0_454] : memref<8x25x128xf32, #tpu.memory_space<vmem>>, vector<1x8x128xf32>
    %1273 = vector.shape_cast %1272 : vector<1x8x128xf32> to vector<8x128xf32>
    %c5_455 = arith.constant 5 : index
    %1274 = memref.load %arg5[%c5_455] : memref<96xf32, #tpu.memory_space<smem>>
    %1275 = vector.broadcast %1274 : f32 to vector<8x128xf32>
    %1276 = arith.mulf %1275, %1273 : vector<8x128xf32>
    %1277 = arith.addf %1259, %1276 : vector<8x128xf32>
    %c29_456 = arith.constant 29 : index
    %1278 = memref.load %arg5[%c29_456] : memref<96xf32, #tpu.memory_space<smem>>
    %1279 = vector.broadcast %1278 : f32 to vector<8x128xf32>
    %1280 = arith.mulf %1279, %1273 : vector<8x128xf32>
    %1281 = arith.addf %1263, %1280 : vector<8x128xf32>
    %c53_457 = arith.constant 53 : index
    %1282 = memref.load %arg5[%c53_457] : memref<96xf32, #tpu.memory_space<smem>>
    %1283 = vector.broadcast %1282 : f32 to vector<8x128xf32>
    %1284 = arith.mulf %1283, %1273 : vector<8x128xf32>
    %1285 = arith.addf %1267, %1284 : vector<8x128xf32>
    %c77_458 = arith.constant 77 : index
    %1286 = memref.load %arg5[%c77_458] : memref<96xf32, #tpu.memory_space<smem>>
    %1287 = vector.broadcast %1286 : f32 to vector<8x128xf32>
    %1288 = arith.mulf %1287, %1273 : vector<8x128xf32>
    %1289 = arith.addf %1271, %1288 : vector<8x128xf32>
    %c2_459 = arith.constant 2 : index
    %c14_460 = arith.constant 14 : index
    %c0_461 = arith.constant 0 : index
    %1290 = vector.load %arg8[%c2_459, %c14_460, %c0_461] : memref<8x25x128xf32, #tpu.memory_space<vmem>>, vector<1x8x128xf32>
    %1291 = vector.shape_cast %1290 : vector<1x8x128xf32> to vector<8x128xf32>
    %c6_462 = arith.constant 6 : index
    %1292 = memref.load %arg5[%c6_462] : memref<96xf32, #tpu.memory_space<smem>>
    %1293 = vector.broadcast %1292 : f32 to vector<8x128xf32>
    %1294 = arith.mulf %1293, %1291 : vector<8x128xf32>
    %1295 = arith.addf %1277, %1294 : vector<8x128xf32>
    %c30_463 = arith.constant 30 : index
    %1296 = memref.load %arg5[%c30_463] : memref<96xf32, #tpu.memory_space<smem>>
    %1297 = vector.broadcast %1296 : f32 to vector<8x128xf32>
    %1298 = arith.mulf %1297, %1291 : vector<8x128xf32>
    %1299 = arith.addf %1281, %1298 : vector<8x128xf32>
    %c54_464 = arith.constant 54 : index
    %1300 = memref.load %arg5[%c54_464] : memref<96xf32, #tpu.memory_space<smem>>
    %1301 = vector.broadcast %1300 : f32 to vector<8x128xf32>
    %1302 = arith.mulf %1301, %1291 : vector<8x128xf32>
    %1303 = arith.addf %1285, %1302 : vector<8x128xf32>
    %c78_465 = arith.constant 78 : index
    %1304 = memref.load %arg5[%c78_465] : memref<96xf32, #tpu.memory_space<smem>>
    %1305 = vector.broadcast %1304 : f32 to vector<8x128xf32>
    %1306 = arith.mulf %1305, %1291 : vector<8x128xf32>
    %1307 = arith.addf %1289, %1306 : vector<8x128xf32>
    %c2_466 = arith.constant 2 : index
    %c15_467 = arith.constant 15 : index
    %c0_468 = arith.constant 0 : index
    %1308 = vector.load %arg8[%c2_466, %c15_467, %c0_468] : memref<8x25x128xf32, #tpu.memory_space<vmem>>, vector<1x8x128xf32>
    %1309 = vector.shape_cast %1308 : vector<1x8x128xf32> to vector<8x128xf32>
    %c7_469 = arith.constant 7 : index
    %1310 = memref.load %arg5[%c7_469] : memref<96xf32, #tpu.memory_space<smem>>
    %1311 = vector.broadcast %1310 : f32 to vector<8x128xf32>
    %1312 = arith.mulf %1311, %1309 : vector<8x128xf32>
    %1313 = arith.addf %1295, %1312 : vector<8x128xf32>
    %c31_470 = arith.constant 31 : index
    %1314 = memref.load %arg5[%c31_470] : memref<96xf32, #tpu.memory_space<smem>>
    %1315 = vector.broadcast %1314 : f32 to vector<8x128xf32>
    %1316 = arith.mulf %1315, %1309 : vector<8x128xf32>
    %1317 = arith.addf %1299, %1316 : vector<8x128xf32>
    %c55_471 = arith.constant 55 : index
    %1318 = memref.load %arg5[%c55_471] : memref<96xf32, #tpu.memory_space<smem>>
    %1319 = vector.broadcast %1318 : f32 to vector<8x128xf32>
    %1320 = arith.mulf %1319, %1309 : vector<8x128xf32>
    %1321 = arith.addf %1303, %1320 : vector<8x128xf32>
    %c79_472 = arith.constant 79 : index
    %1322 = memref.load %arg5[%c79_472] : memref<96xf32, #tpu.memory_space<smem>>
    %1323 = vector.broadcast %1322 : f32 to vector<8x128xf32>
    %1324 = arith.mulf %1323, %1309 : vector<8x128xf32>
    %1325 = arith.addf %1307, %1324 : vector<8x128xf32>
    %c2_473 = arith.constant 2 : index
    %c16_474 = arith.constant 16 : index
    %c0_475 = arith.constant 0 : index
    %1326 = vector.load %arg8[%c2_473, %c16_474, %c0_475] : memref<8x25x128xf32, #tpu.memory_space<vmem>>, vector<1x8x128xf32>
    %1327 = vector.shape_cast %1326 : vector<1x8x128xf32> to vector<8x128xf32>
    %c8_476 = arith.constant 8 : index
    %1328 = memref.load %arg5[%c8_476] : memref<96xf32, #tpu.memory_space<smem>>
    %1329 = vector.broadcast %1328 : f32 to vector<8x128xf32>
    %1330 = arith.mulf %1329, %1327 : vector<8x128xf32>
    %1331 = arith.addf %1313, %1330 : vector<8x128xf32>
    %c32_477 = arith.constant 32 : index
    %1332 = memref.load %arg5[%c32_477] : memref<96xf32, #tpu.memory_space<smem>>
    %1333 = vector.broadcast %1332 : f32 to vector<8x128xf32>
    %1334 = arith.mulf %1333, %1327 : vector<8x128xf32>
    %1335 = arith.addf %1317, %1334 : vector<8x128xf32>
    %c56_478 = arith.constant 56 : index
    %1336 = memref.load %arg5[%c56_478] : memref<96xf32, #tpu.memory_space<smem>>
    %1337 = vector.broadcast %1336 : f32 to vector<8x128xf32>
    %1338 = arith.mulf %1337, %1327 : vector<8x128xf32>
    %1339 = arith.addf %1321, %1338 : vector<8x128xf32>
    %c80_479 = arith.constant 80 : index
    %1340 = memref.load %arg5[%c80_479] : memref<96xf32, #tpu.memory_space<smem>>
    %1341 = vector.broadcast %1340 : f32 to vector<8x128xf32>
    %1342 = arith.mulf %1341, %1327 : vector<8x128xf32>
    %1343 = arith.addf %1325, %1342 : vector<8x128xf32>
    %c3_480 = arith.constant 3 : index
    %c14_481 = arith.constant 14 : index
    %c0_482 = arith.constant 0 : index
    %1344 = vector.load %arg8[%c3_480, %c14_481, %c0_482] : memref<8x25x128xf32, #tpu.memory_space<vmem>>, vector<1x8x128xf32>
    %1345 = vector.shape_cast %1344 : vector<1x8x128xf32> to vector<8x128xf32>
    %c9_483 = arith.constant 9 : index
    %1346 = memref.load %arg5[%c9_483] : memref<96xf32, #tpu.memory_space<smem>>
    %1347 = vector.broadcast %1346 : f32 to vector<8x128xf32>
    %1348 = arith.mulf %1347, %1345 : vector<8x128xf32>
    %1349 = arith.addf %1331, %1348 : vector<8x128xf32>
    %c33_484 = arith.constant 33 : index
    %1350 = memref.load %arg5[%c33_484] : memref<96xf32, #tpu.memory_space<smem>>
    %1351 = vector.broadcast %1350 : f32 to vector<8x128xf32>
    %1352 = arith.mulf %1351, %1345 : vector<8x128xf32>
    %1353 = arith.addf %1335, %1352 : vector<8x128xf32>
    %c57_485 = arith.constant 57 : index
    %1354 = memref.load %arg5[%c57_485] : memref<96xf32, #tpu.memory_space<smem>>
    %1355 = vector.broadcast %1354 : f32 to vector<8x128xf32>
    %1356 = arith.mulf %1355, %1345 : vector<8x128xf32>
    %1357 = arith.addf %1339, %1356 : vector<8x128xf32>
    %c81_486 = arith.constant 81 : index
    %1358 = memref.load %arg5[%c81_486] : memref<96xf32, #tpu.memory_space<smem>>
    %1359 = vector.broadcast %1358 : f32 to vector<8x128xf32>
    %1360 = arith.mulf %1359, %1345 : vector<8x128xf32>
    %1361 = arith.addf %1343, %1360 : vector<8x128xf32>
    %c3_487 = arith.constant 3 : index
    %c15_488 = arith.constant 15 : index
    %c0_489 = arith.constant 0 : index
    %1362 = vector.load %arg8[%c3_487, %c15_488, %c0_489] : memref<8x25x128xf32, #tpu.memory_space<vmem>>, vector<1x8x128xf32>
    %1363 = vector.shape_cast %1362 : vector<1x8x128xf32> to vector<8x128xf32>
    %c10_490 = arith.constant 10 : index
    %1364 = memref.load %arg5[%c10_490] : memref<96xf32, #tpu.memory_space<smem>>
    %1365 = vector.broadcast %1364 : f32 to vector<8x128xf32>
    %1366 = arith.mulf %1365, %1363 : vector<8x128xf32>
    %1367 = arith.addf %1349, %1366 : vector<8x128xf32>
    %c34_491 = arith.constant 34 : index
    %1368 = memref.load %arg5[%c34_491] : memref<96xf32, #tpu.memory_space<smem>>
    %1369 = vector.broadcast %1368 : f32 to vector<8x128xf32>
    %1370 = arith.mulf %1369, %1363 : vector<8x128xf32>
    %1371 = arith.addf %1353, %1370 : vector<8x128xf32>
    %c58_492 = arith.constant 58 : index
    %1372 = memref.load %arg5[%c58_492] : memref<96xf32, #tpu.memory_space<smem>>
    %1373 = vector.broadcast %1372 : f32 to vector<8x128xf32>
    %1374 = arith.mulf %1373, %1363 : vector<8x128xf32>
    %1375 = arith.addf %1357, %1374 : vector<8x128xf32>
    %c82_493 = arith.constant 82 : index
    %1376 = memref.load %arg5[%c82_493] : memref<96xf32, #tpu.memory_space<smem>>
    %1377 = vector.broadcast %1376 : f32 to vector<8x128xf32>
    %1378 = arith.mulf %1377, %1363 : vector<8x128xf32>
    %1379 = arith.addf %1361, %1378 : vector<8x128xf32>
    %c3_494 = arith.constant 3 : index
    %c16_495 = arith.constant 16 : index
    %c0_496 = arith.constant 0 : index
    %1380 = vector.load %arg8[%c3_494, %c16_495, %c0_496] : memref<8x25x128xf32, #tpu.memory_space<vmem>>, vector<1x8x128xf32>
    %1381 = vector.shape_cast %1380 : vector<1x8x128xf32> to vector<8x128xf32>
    %c11_497 = arith.constant 11 : index
    %1382 = memref.load %arg5[%c11_497] : memref<96xf32, #tpu.memory_space<smem>>
    %1383 = vector.broadcast %1382 : f32 to vector<8x128xf32>
    %1384 = arith.mulf %1383, %1381 : vector<8x128xf32>
    %1385 = arith.addf %1367, %1384 : vector<8x128xf32>
    %c35_498 = arith.constant 35 : index
    %1386 = memref.load %arg5[%c35_498] : memref<96xf32, #tpu.memory_space<smem>>
    %1387 = vector.broadcast %1386 : f32 to vector<8x128xf32>
    %1388 = arith.mulf %1387, %1381 : vector<8x128xf32>
    %1389 = arith.addf %1371, %1388 : vector<8x128xf32>
    %c59_499 = arith.constant 59 : index
    %1390 = memref.load %arg5[%c59_499] : memref<96xf32, #tpu.memory_space<smem>>
    %1391 = vector.broadcast %1390 : f32 to vector<8x128xf32>
    %1392 = arith.mulf %1391, %1381 : vector<8x128xf32>
    %1393 = arith.addf %1375, %1392 : vector<8x128xf32>
    %c83_500 = arith.constant 83 : index
    %1394 = memref.load %arg5[%c83_500] : memref<96xf32, #tpu.memory_space<smem>>
    %1395 = vector.broadcast %1394 : f32 to vector<8x128xf32>
    %1396 = arith.mulf %1395, %1381 : vector<8x128xf32>
    %1397 = arith.addf %1379, %1396 : vector<8x128xf32>
    %c4_501 = arith.constant 4 : index
    %c14_502 = arith.constant 14 : index
    %c0_503 = arith.constant 0 : index
    %1398 = vector.load %arg8[%c4_501, %c14_502, %c0_503] : memref<8x25x128xf32, #tpu.memory_space<vmem>>, vector<1x8x128xf32>
    %1399 = vector.shape_cast %1398 : vector<1x8x128xf32> to vector<8x128xf32>
    %c12_504 = arith.constant 12 : index
    %1400 = memref.load %arg5[%c12_504] : memref<96xf32, #tpu.memory_space<smem>>
    %1401 = vector.broadcast %1400 : f32 to vector<8x128xf32>
    %1402 = arith.mulf %1401, %1399 : vector<8x128xf32>
    %1403 = arith.addf %1385, %1402 : vector<8x128xf32>
    %c36_505 = arith.constant 36 : index
    %1404 = memref.load %arg5[%c36_505] : memref<96xf32, #tpu.memory_space<smem>>
    %1405 = vector.broadcast %1404 : f32 to vector<8x128xf32>
    %1406 = arith.mulf %1405, %1399 : vector<8x128xf32>
    %1407 = arith.addf %1389, %1406 : vector<8x128xf32>
    %c60_506 = arith.constant 60 : index
    %1408 = memref.load %arg5[%c60_506] : memref<96xf32, #tpu.memory_space<smem>>
    %1409 = vector.broadcast %1408 : f32 to vector<8x128xf32>
    %1410 = arith.mulf %1409, %1399 : vector<8x128xf32>
    %1411 = arith.addf %1393, %1410 : vector<8x128xf32>
    %c84_507 = arith.constant 84 : index
    %1412 = memref.load %arg5[%c84_507] : memref<96xf32, #tpu.memory_space<smem>>
    %1413 = vector.broadcast %1412 : f32 to vector<8x128xf32>
    %1414 = arith.mulf %1413, %1399 : vector<8x128xf32>
    %1415 = arith.addf %1397, %1414 : vector<8x128xf32>
    %c4_508 = arith.constant 4 : index
    %c15_509 = arith.constant 15 : index
    %c0_510 = arith.constant 0 : index
    %1416 = vector.load %arg8[%c4_508, %c15_509, %c0_510] : memref<8x25x128xf32, #tpu.memory_space<vmem>>, vector<1x8x128xf32>
    %1417 = vector.shape_cast %1416 : vector<1x8x128xf32> to vector<8x128xf32>
    %c13_511 = arith.constant 13 : index
    %1418 = memref.load %arg5[%c13_511] : memref<96xf32, #tpu.memory_space<smem>>
    %1419 = vector.broadcast %1418 : f32 to vector<8x128xf32>
    %1420 = arith.mulf %1419, %1417 : vector<8x128xf32>
    %1421 = arith.addf %1403, %1420 : vector<8x128xf32>
    %c37_512 = arith.constant 37 : index
    %1422 = memref.load %arg5[%c37_512] : memref<96xf32, #tpu.memory_space<smem>>
    %1423 = vector.broadcast %1422 : f32 to vector<8x128xf32>
    %1424 = arith.mulf %1423, %1417 : vector<8x128xf32>
    %1425 = arith.addf %1407, %1424 : vector<8x128xf32>
    %c61_513 = arith.constant 61 : index
    %1426 = memref.load %arg5[%c61_513] : memref<96xf32, #tpu.memory_space<smem>>
    %1427 = vector.broadcast %1426 : f32 to vector<8x128xf32>
    %1428 = arith.mulf %1427, %1417 : vector<8x128xf32>
    %1429 = arith.addf %1411, %1428 : vector<8x128xf32>
    %c85_514 = arith.constant 85 : index
    %1430 = memref.load %arg5[%c85_514] : memref<96xf32, #tpu.memory_space<smem>>
    %1431 = vector.broadcast %1430 : f32 to vector<8x128xf32>
    %1432 = arith.mulf %1431, %1417 : vector<8x128xf32>
    %1433 = arith.addf %1415, %1432 : vector<8x128xf32>
    %c4_515 = arith.constant 4 : index
    %c16_516 = arith.constant 16 : index
    %c0_517 = arith.constant 0 : index
    %1434 = vector.load %arg8[%c4_515, %c16_516, %c0_517] : memref<8x25x128xf32, #tpu.memory_space<vmem>>, vector<1x8x128xf32>
    %1435 = vector.shape_cast %1434 : vector<1x8x128xf32> to vector<8x128xf32>
    %c14_518 = arith.constant 14 : index
    %1436 = memref.load %arg5[%c14_518] : memref<96xf32, #tpu.memory_space<smem>>
    %1437 = vector.broadcast %1436 : f32 to vector<8x128xf32>
    %1438 = arith.mulf %1437, %1435 : vector<8x128xf32>
    %1439 = arith.addf %1421, %1438 : vector<8x128xf32>
    %c38_519 = arith.constant 38 : index
    %1440 = memref.load %arg5[%c38_519] : memref<96xf32, #tpu.memory_space<smem>>
    %1441 = vector.broadcast %1440 : f32 to vector<8x128xf32>
    %1442 = arith.mulf %1441, %1435 : vector<8x128xf32>
    %1443 = arith.addf %1425, %1442 : vector<8x128xf32>
    %c62_520 = arith.constant 62 : index
    %1444 = memref.load %arg5[%c62_520] : memref<96xf32, #tpu.memory_space<smem>>
    %1445 = vector.broadcast %1444 : f32 to vector<8x128xf32>
    %1446 = arith.mulf %1445, %1435 : vector<8x128xf32>
    %1447 = arith.addf %1429, %1446 : vector<8x128xf32>
    %c86_521 = arith.constant 86 : index
    %1448 = memref.load %arg5[%c86_521] : memref<96xf32, #tpu.memory_space<smem>>
    %1449 = vector.broadcast %1448 : f32 to vector<8x128xf32>
    %1450 = arith.mulf %1449, %1435 : vector<8x128xf32>
    %1451 = arith.addf %1433, %1450 : vector<8x128xf32>
    %c5_522 = arith.constant 5 : index
    %c14_523 = arith.constant 14 : index
    %c0_524 = arith.constant 0 : index
    %1452 = vector.load %arg8[%c5_522, %c14_523, %c0_524] : memref<8x25x128xf32, #tpu.memory_space<vmem>>, vector<1x8x128xf32>
    %1453 = vector.shape_cast %1452 : vector<1x8x128xf32> to vector<8x128xf32>
    %c15_525 = arith.constant 15 : index
    %1454 = memref.load %arg5[%c15_525] : memref<96xf32, #tpu.memory_space<smem>>
    %1455 = vector.broadcast %1454 : f32 to vector<8x128xf32>
    %1456 = arith.mulf %1455, %1453 : vector<8x128xf32>
    %1457 = arith.addf %1439, %1456 : vector<8x128xf32>
    %c39_526 = arith.constant 39 : index
    %1458 = memref.load %arg5[%c39_526] : memref<96xf32, #tpu.memory_space<smem>>
    %1459 = vector.broadcast %1458 : f32 to vector<8x128xf32>
    %1460 = arith.mulf %1459, %1453 : vector<8x128xf32>
    %1461 = arith.addf %1443, %1460 : vector<8x128xf32>
    %c63_527 = arith.constant 63 : index
    %1462 = memref.load %arg5[%c63_527] : memref<96xf32, #tpu.memory_space<smem>>
    %1463 = vector.broadcast %1462 : f32 to vector<8x128xf32>
    %1464 = arith.mulf %1463, %1453 : vector<8x128xf32>
    %1465 = arith.addf %1447, %1464 : vector<8x128xf32>
    %c87_528 = arith.constant 87 : index
    %1466 = memref.load %arg5[%c87_528] : memref<96xf32, #tpu.memory_space<smem>>
    %1467 = vector.broadcast %1466 : f32 to vector<8x128xf32>
    %1468 = arith.mulf %1467, %1453 : vector<8x128xf32>
    %1469 = arith.addf %1451, %1468 : vector<8x128xf32>
    %c5_529 = arith.constant 5 : index
    %c15_530 = arith.constant 15 : index
    %c0_531 = arith.constant 0 : index
    %1470 = vector.load %arg8[%c5_529, %c15_530, %c0_531] : memref<8x25x128xf32, #tpu.memory_space<vmem>>, vector<1x8x128xf32>
    %1471 = vector.shape_cast %1470 : vector<1x8x128xf32> to vector<8x128xf32>
    %c16_532 = arith.constant 16 : index
    %1472 = memref.load %arg5[%c16_532] : memref<96xf32, #tpu.memory_space<smem>>
    %1473 = vector.broadcast %1472 : f32 to vector<8x128xf32>
    %1474 = arith.mulf %1473, %1471 : vector<8x128xf32>
    %1475 = arith.addf %1457, %1474 : vector<8x128xf32>
    %c40_533 = arith.constant 40 : index
    %1476 = memref.load %arg5[%c40_533] : memref<96xf32, #tpu.memory_space<smem>>
    %1477 = vector.broadcast %1476 : f32 to vector<8x128xf32>
    %1478 = arith.mulf %1477, %1471 : vector<8x128xf32>
    %1479 = arith.addf %1461, %1478 : vector<8x128xf32>
    %c64_534 = arith.constant 64 : index
    %1480 = memref.load %arg5[%c64_534] : memref<96xf32, #tpu.memory_space<smem>>
    %1481 = vector.broadcast %1480 : f32 to vector<8x128xf32>
    %1482 = arith.mulf %1481, %1471 : vector<8x128xf32>
    %1483 = arith.addf %1465, %1482 : vector<8x128xf32>
    %c88_535 = arith.constant 88 : index
    %1484 = memref.load %arg5[%c88_535] : memref<96xf32, #tpu.memory_space<smem>>
    %1485 = vector.broadcast %1484 : f32 to vector<8x128xf32>
    %1486 = arith.mulf %1485, %1471 : vector<8x128xf32>
    %1487 = arith.addf %1469, %1486 : vector<8x128xf32>
    %c5_536 = arith.constant 5 : index
    %c16_537 = arith.constant 16 : index
    %c0_538 = arith.constant 0 : index
    %1488 = vector.load %arg8[%c5_536, %c16_537, %c0_538] : memref<8x25x128xf32, #tpu.memory_space<vmem>>, vector<1x8x128xf32>
    %1489 = vector.shape_cast %1488 : vector<1x8x128xf32> to vector<8x128xf32>
    %c17_539 = arith.constant 17 : index
    %1490 = memref.load %arg5[%c17_539] : memref<96xf32, #tpu.memory_space<smem>>
    %1491 = vector.broadcast %1490 : f32 to vector<8x128xf32>
    %1492 = arith.mulf %1491, %1489 : vector<8x128xf32>
    %1493 = arith.addf %1475, %1492 : vector<8x128xf32>
    %c41_540 = arith.constant 41 : index
    %1494 = memref.load %arg5[%c41_540] : memref<96xf32, #tpu.memory_space<smem>>
    %1495 = vector.broadcast %1494 : f32 to vector<8x128xf32>
    %1496 = arith.mulf %1495, %1489 : vector<8x128xf32>
    %1497 = arith.addf %1479, %1496 : vector<8x128xf32>
    %c65_541 = arith.constant 65 : index
    %1498 = memref.load %arg5[%c65_541] : memref<96xf32, #tpu.memory_space<smem>>
    %1499 = vector.broadcast %1498 : f32 to vector<8x128xf32>
    %1500 = arith.mulf %1499, %1489 : vector<8x128xf32>
    %1501 = arith.addf %1483, %1500 : vector<8x128xf32>
    %c89_542 = arith.constant 89 : index
    %1502 = memref.load %arg5[%c89_542] : memref<96xf32, #tpu.memory_space<smem>>
    %1503 = vector.broadcast %1502 : f32 to vector<8x128xf32>
    %1504 = arith.mulf %1503, %1489 : vector<8x128xf32>
    %1505 = arith.addf %1487, %1504 : vector<8x128xf32>
    %c6_543 = arith.constant 6 : index
    %c14_544 = arith.constant 14 : index
    %c0_545 = arith.constant 0 : index
    %1506 = vector.load %arg8[%c6_543, %c14_544, %c0_545] : memref<8x25x128xf32, #tpu.memory_space<vmem>>, vector<1x8x128xf32>
    %1507 = vector.shape_cast %1506 : vector<1x8x128xf32> to vector<8x128xf32>
    %c18_546 = arith.constant 18 : index
    %1508 = memref.load %arg5[%c18_546] : memref<96xf32, #tpu.memory_space<smem>>
    %1509 = vector.broadcast %1508 : f32 to vector<8x128xf32>
    %1510 = arith.mulf %1509, %1507 : vector<8x128xf32>
    %1511 = arith.addf %1493, %1510 : vector<8x128xf32>
    %c42_547 = arith.constant 42 : index
    %1512 = memref.load %arg5[%c42_547] : memref<96xf32, #tpu.memory_space<smem>>
    %1513 = vector.broadcast %1512 : f32 to vector<8x128xf32>
    %1514 = arith.mulf %1513, %1507 : vector<8x128xf32>
    %1515 = arith.addf %1497, %1514 : vector<8x128xf32>
    %c66_548 = arith.constant 66 : index
    %1516 = memref.load %arg5[%c66_548] : memref<96xf32, #tpu.memory_space<smem>>
    %1517 = vector.broadcast %1516 : f32 to vector<8x128xf32>
    %1518 = arith.mulf %1517, %1507 : vector<8x128xf32>
    %1519 = arith.addf %1501, %1518 : vector<8x128xf32>
    %c90_549 = arith.constant 90 : index
    %1520 = memref.load %arg5[%c90_549] : memref<96xf32, #tpu.memory_space<smem>>
    %1521 = vector.broadcast %1520 : f32 to vector<8x128xf32>
    %1522 = arith.mulf %1521, %1507 : vector<8x128xf32>
    %1523 = arith.addf %1505, %1522 : vector<8x128xf32>
    %c6_550 = arith.constant 6 : index
    %c15_551 = arith.constant 15 : index
    %c0_552 = arith.constant 0 : index
    %1524 = vector.load %arg8[%c6_550, %c15_551, %c0_552] : memref<8x25x128xf32, #tpu.memory_space<vmem>>, vector<1x8x128xf32>
    %1525 = vector.shape_cast %1524 : vector<1x8x128xf32> to vector<8x128xf32>
    %c19_553 = arith.constant 19 : index
    %1526 = memref.load %arg5[%c19_553] : memref<96xf32, #tpu.memory_space<smem>>
    %1527 = vector.broadcast %1526 : f32 to vector<8x128xf32>
    %1528 = arith.mulf %1527, %1525 : vector<8x128xf32>
    %1529 = arith.addf %1511, %1528 : vector<8x128xf32>
    %c43_554 = arith.constant 43 : index
    %1530 = memref.load %arg5[%c43_554] : memref<96xf32, #tpu.memory_space<smem>>
    %1531 = vector.broadcast %1530 : f32 to vector<8x128xf32>
    %1532 = arith.mulf %1531, %1525 : vector<8x128xf32>
    %1533 = arith.addf %1515, %1532 : vector<8x128xf32>
    %c67_555 = arith.constant 67 : index
    %1534 = memref.load %arg5[%c67_555] : memref<96xf32, #tpu.memory_space<smem>>
    %1535 = vector.broadcast %1534 : f32 to vector<8x128xf32>
    %1536 = arith.mulf %1535, %1525 : vector<8x128xf32>
    %1537 = arith.addf %1519, %1536 : vector<8x128xf32>
    %c91_556 = arith.constant 91 : index
    %1538 = memref.load %arg5[%c91_556] : memref<96xf32, #tpu.memory_space<smem>>
    %1539 = vector.broadcast %1538 : f32 to vector<8x128xf32>
    %1540 = arith.mulf %1539, %1525 : vector<8x128xf32>
    %1541 = arith.addf %1523, %1540 : vector<8x128xf32>
    %c6_557 = arith.constant 6 : index
    %c16_558 = arith.constant 16 : index
    %c0_559 = arith.constant 0 : index
    %1542 = vector.load %arg8[%c6_557, %c16_558, %c0_559] : memref<8x25x128xf32, #tpu.memory_space<vmem>>, vector<1x8x128xf32>
    %1543 = vector.shape_cast %1542 : vector<1x8x128xf32> to vector<8x128xf32>
    %c20_560 = arith.constant 20 : index
    %1544 = memref.load %arg5[%c20_560] : memref<96xf32, #tpu.memory_space<smem>>
    %1545 = vector.broadcast %1544 : f32 to vector<8x128xf32>
    %1546 = arith.mulf %1545, %1543 : vector<8x128xf32>
    %1547 = arith.addf %1529, %1546 : vector<8x128xf32>
    %c44_561 = arith.constant 44 : index
    %1548 = memref.load %arg5[%c44_561] : memref<96xf32, #tpu.memory_space<smem>>
    %1549 = vector.broadcast %1548 : f32 to vector<8x128xf32>
    %1550 = arith.mulf %1549, %1543 : vector<8x128xf32>
    %1551 = arith.addf %1533, %1550 : vector<8x128xf32>
    %c68_562 = arith.constant 68 : index
    %1552 = memref.load %arg5[%c68_562] : memref<96xf32, #tpu.memory_space<smem>>
    %1553 = vector.broadcast %1552 : f32 to vector<8x128xf32>
    %1554 = arith.mulf %1553, %1543 : vector<8x128xf32>
    %1555 = arith.addf %1537, %1554 : vector<8x128xf32>
    %c92_563 = arith.constant 92 : index
    %1556 = memref.load %arg5[%c92_563] : memref<96xf32, #tpu.memory_space<smem>>
    %1557 = vector.broadcast %1556 : f32 to vector<8x128xf32>
    %1558 = arith.mulf %1557, %1543 : vector<8x128xf32>
    %1559 = arith.addf %1541, %1558 : vector<8x128xf32>
    %c7_564 = arith.constant 7 : index
    %c14_565 = arith.constant 14 : index
    %c0_566 = arith.constant 0 : index
    %1560 = vector.load %arg8[%c7_564, %c14_565, %c0_566] : memref<8x25x128xf32, #tpu.memory_space<vmem>>, vector<1x8x128xf32>
    %1561 = vector.shape_cast %1560 : vector<1x8x128xf32> to vector<8x128xf32>
    %c21_567 = arith.constant 21 : index
    %1562 = memref.load %arg5[%c21_567] : memref<96xf32, #tpu.memory_space<smem>>
    %1563 = vector.broadcast %1562 : f32 to vector<8x128xf32>
    %1564 = arith.mulf %1563, %1561 : vector<8x128xf32>
    %1565 = arith.addf %1547, %1564 : vector<8x128xf32>
    %c45_568 = arith.constant 45 : index
    %1566 = memref.load %arg5[%c45_568] : memref<96xf32, #tpu.memory_space<smem>>
    %1567 = vector.broadcast %1566 : f32 to vector<8x128xf32>
    %1568 = arith.mulf %1567, %1561 : vector<8x128xf32>
    %1569 = arith.addf %1551, %1568 : vector<8x128xf32>
    %c69_569 = arith.constant 69 : index
    %1570 = memref.load %arg5[%c69_569] : memref<96xf32, #tpu.memory_space<smem>>
    %1571 = vector.broadcast %1570 : f32 to vector<8x128xf32>
    %1572 = arith.mulf %1571, %1561 : vector<8x128xf32>
    %1573 = arith.addf %1555, %1572 : vector<8x128xf32>
    %c93_570 = arith.constant 93 : index
    %1574 = memref.load %arg5[%c93_570] : memref<96xf32, #tpu.memory_space<smem>>
    %1575 = vector.broadcast %1574 : f32 to vector<8x128xf32>
    %1576 = arith.mulf %1575, %1561 : vector<8x128xf32>
    %1577 = arith.addf %1559, %1576 : vector<8x128xf32>
    %c7_571 = arith.constant 7 : index
    %c15_572 = arith.constant 15 : index
    %c0_573 = arith.constant 0 : index
    %1578 = vector.load %arg8[%c7_571, %c15_572, %c0_573] : memref<8x25x128xf32, #tpu.memory_space<vmem>>, vector<1x8x128xf32>
    %1579 = vector.shape_cast %1578 : vector<1x8x128xf32> to vector<8x128xf32>
    %c22_574 = arith.constant 22 : index
    %1580 = memref.load %arg5[%c22_574] : memref<96xf32, #tpu.memory_space<smem>>
    %1581 = vector.broadcast %1580 : f32 to vector<8x128xf32>
    %1582 = arith.mulf %1581, %1579 : vector<8x128xf32>
    %1583 = arith.addf %1565, %1582 : vector<8x128xf32>
    %c46_575 = arith.constant 46 : index
    %1584 = memref.load %arg5[%c46_575] : memref<96xf32, #tpu.memory_space<smem>>
    %1585 = vector.broadcast %1584 : f32 to vector<8x128xf32>
    %1586 = arith.mulf %1585, %1579 : vector<8x128xf32>
    %1587 = arith.addf %1569, %1586 : vector<8x128xf32>
    %c70_576 = arith.constant 70 : index
    %1588 = memref.load %arg5[%c70_576] : memref<96xf32, #tpu.memory_space<smem>>
    %1589 = vector.broadcast %1588 : f32 to vector<8x128xf32>
    %1590 = arith.mulf %1589, %1579 : vector<8x128xf32>
    %1591 = arith.addf %1573, %1590 : vector<8x128xf32>
    %c94_577 = arith.constant 94 : index
    %1592 = memref.load %arg5[%c94_577] : memref<96xf32, #tpu.memory_space<smem>>
    %1593 = vector.broadcast %1592 : f32 to vector<8x128xf32>
    %1594 = arith.mulf %1593, %1579 : vector<8x128xf32>
    %1595 = arith.addf %1577, %1594 : vector<8x128xf32>
    %c7_578 = arith.constant 7 : index
    %c16_579 = arith.constant 16 : index
    %c0_580 = arith.constant 0 : index
    %1596 = vector.load %arg8[%c7_578, %c16_579, %c0_580] : memref<8x25x128xf32, #tpu.memory_space<vmem>>, vector<1x8x128xf32>
    %1597 = vector.shape_cast %1596 : vector<1x8x128xf32> to vector<8x128xf32>
    %c23_581 = arith.constant 23 : index
    %1598 = memref.load %arg5[%c23_581] : memref<96xf32, #tpu.memory_space<smem>>
    %1599 = vector.broadcast %1598 : f32 to vector<8x128xf32>
    %1600 = arith.mulf %1599, %1597 : vector<8x128xf32>
    %1601 = arith.addf %1583, %1600 : vector<8x128xf32>
    %c47_582 = arith.constant 47 : index
    %1602 = memref.load %arg5[%c47_582] : memref<96xf32, #tpu.memory_space<smem>>
    %1603 = vector.broadcast %1602 : f32 to vector<8x128xf32>
    %1604 = arith.mulf %1603, %1597 : vector<8x128xf32>
    %1605 = arith.addf %1587, %1604 : vector<8x128xf32>
    %c71_583 = arith.constant 71 : index
    %1606 = memref.load %arg5[%c71_583] : memref<96xf32, #tpu.memory_space<smem>>
    %1607 = vector.broadcast %1606 : f32 to vector<8x128xf32>
    %1608 = arith.mulf %1607, %1597 : vector<8x128xf32>
    %1609 = arith.addf %1591, %1608 : vector<8x128xf32>
    %c95_584 = arith.constant 95 : index
    %1610 = memref.load %arg5[%c95_584] : memref<96xf32, #tpu.memory_space<smem>>
    %1611 = vector.broadcast %1610 : f32 to vector<8x128xf32>
    %1612 = arith.mulf %1611, %1597 : vector<8x128xf32>
    %1613 = arith.addf %1595, %1612 : vector<8x128xf32>
    %c0_585 = arith.constant 0 : index
    %c8_586 = arith.constant 8 : index
    %c0_587 = arith.constant 0 : index
    %1614 = vector.load %arg6[%c0_585, %c8_586, %c0_587] : memref<4x17x128xf32, #tpu.memory_space<vmem>>, vector<1x8x128xf32>
    %1615 = vector.shape_cast %1614 : vector<1x8x128xf32> to vector<8x128xf32>
    %1616 = vector.shape_cast %1601 : vector<8x128xf32> to vector<1x8x128xf32>
    tpu.vector_store %arg6[%c0_585, %c8_586, %c0_587], %1616 {strides = array<i32>} : memref<4x17x128xf32, #tpu.memory_space<vmem>>, vector<1x8x128xf32>,
    %c1_588 = arith.constant 1 : index
    %c8_589 = arith.constant 8 : index
    %c0_590 = arith.constant 0 : index
    %1617 = vector.load %arg6[%c1_588, %c8_589, %c0_590] : memref<4x17x128xf32, #tpu.memory_space<vmem>>, vector<1x8x128xf32>
    %1618 = vector.shape_cast %1617 : vector<1x8x128xf32> to vector<8x128xf32>
    %1619 = vector.shape_cast %1605 : vector<8x128xf32> to vector<1x8x128xf32>
    tpu.vector_store %arg6[%c1_588, %c8_589, %c0_590], %1619 {strides = array<i32>} : memref<4x17x128xf32, #tpu.memory_space<vmem>>, vector<1x8x128xf32>,
    %c2_591 = arith.constant 2 : index
    %c8_592 = arith.constant 8 : index
    %c0_593 = arith.constant 0 : index
    %1620 = vector.load %arg6[%c2_591, %c8_592, %c0_593] : memref<4x17x128xf32, #tpu.memory_space<vmem>>, vector<1x8x128xf32>
    %1621 = vector.shape_cast %1620 : vector<1x8x128xf32> to vector<8x128xf32>
    %1622 = vector.shape_cast %1609 : vector<8x128xf32> to vector<1x8x128xf32>
    tpu.vector_store %arg6[%c2_591, %c8_592, %c0_593], %1622 {strides = array<i32>} : memref<4x17x128xf32, #tpu.memory_space<vmem>>, vector<1x8x128xf32>,
    %c3_594 = arith.constant 3 : index
    %c8_595 = arith.constant 8 : index
    %c0_596 = arith.constant 0 : index
    %1623 = vector.load %arg6[%c3_594, %c8_595, %c0_596] : memref<4x17x128xf32, #tpu.memory_space<vmem>>, vector<1x8x128xf32>
    %1624 = vector.shape_cast %1623 : vector<1x8x128xf32> to vector<8x128xf32>
    %1625 = vector.shape_cast %1613 : vector<8x128xf32> to vector<1x8x128xf32>
    tpu.vector_store %arg6[%c3_594, %c8_595, %c0_596], %1625 {strides = array<i32>} : memref<4x17x128xf32, #tpu.memory_space<vmem>>, vector<1x8x128xf32>,
    %cst_597 = arith.constant 0.000000e+00 : f32
    %1626 = vector.broadcast %cst_597 : f32 to vector<1x128xf32>
    %cst_598 = arith.constant 0.000000e+00 : f32
    %1627 = vector.broadcast %cst_598 : f32 to vector<1x128xf32>
    %cst_599 = arith.constant 0.000000e+00 : f32
    %1628 = vector.broadcast %cst_599 : f32 to vector<1x128xf32>
    %cst_600 = arith.constant 0.000000e+00 : f32
    %1629 = vector.broadcast %cst_600 : f32 to vector<1x128xf32>
    %c0_601 = arith.constant 0 : index
    %c22_602 = arith.constant 22 : index
    %c0_603 = arith.constant 0 : index
    %1630 = vector.load %arg8[%c0_601, %c22_602, %c0_603] : memref<8x25x128xf32, #tpu.memory_space<vmem>>, vector<1x1x128xf32>
    %1631 = vector.shape_cast %1630 : vector<1x1x128xf32> to vector<1x128xf32>
    %c0_604 = arith.constant 0 : index
    %1632 = memref.load %arg5[%c0_604] : memref<96xf32, #tpu.memory_space<smem>>
    %1633 = vector.broadcast %1632 : f32 to vector<1x128xf32>
    %1634 = arith.mulf %1633, %1631 : vector<1x128xf32>
    %1635 = arith.addf %1626, %1634 : vector<1x128xf32>
    %c24_605 = arith.constant 24 : index
    %1636 = memref.load %arg5[%c24_605] : memref<96xf32, #tpu.memory_space<smem>>
    %1637 = vector.broadcast %1636 : f32 to vector<1x128xf32>
    %1638 = arith.mulf %1637, %1631 : vector<1x128xf32>
    %1639 = arith.addf %1627, %1638 : vector<1x128xf32>
    %c48_606 = arith.constant 48 : index
    %1640 = memref.load %arg5[%c48_606] : memref<96xf32, #tpu.memory_space<smem>>
    %1641 = vector.broadcast %1640 : f32 to vector<1x128xf32>
    %1642 = arith.mulf %1641, %1631 : vector<1x128xf32>
    %1643 = arith.addf %1628, %1642 : vector<1x128xf32>
    %c72_607 = arith.constant 72 : index
    %1644 = memref.load %arg5[%c72_607] : memref<96xf32, #tpu.memory_space<smem>>
    %1645 = vector.broadcast %1644 : f32 to vector<1x128xf32>
    %1646 = arith.mulf %1645, %1631 : vector<1x128xf32>
    %1647 = arith.addf %1629, %1646 : vector<1x128xf32>
    %c0_608 = arith.constant 0 : index
    %c23_609 = arith.constant 23 : index
    %c0_610 = arith.constant 0 : index
    %1648 = vector.load %arg8[%c0_608, %c23_609, %c0_610] : memref<8x25x128xf32, #tpu.memory_space<vmem>>, vector<1x1x128xf32>
    %1649 = vector.shape_cast %1648 : vector<1x1x128xf32> to vector<1x128xf32>
    %c1_611 = arith.constant 1 : index
    %1650 = memref.load %arg5[%c1_611] : memref<96xf32, #tpu.memory_space<smem>>
    %1651 = vector.broadcast %1650 : f32 to vector<1x128xf32>
    %1652 = arith.mulf %1651, %1649 : vector<1x128xf32>
    %1653 = arith.addf %1635, %1652 : vector<1x128xf32>
    %c25_612 = arith.constant 25 : index
    %1654 = memref.load %arg5[%c25_612] : memref<96xf32, #tpu.memory_space<smem>>
    %1655 = vector.broadcast %1654 : f32 to vector<1x128xf32>
    %1656 = arith.mulf %1655, %1649 : vector<1x128xf32>
    %1657 = arith.addf %1639, %1656 : vector<1x128xf32>
    %c49_613 = arith.constant 49 : index
    %1658 = memref.load %arg5[%c49_613] : memref<96xf32, #tpu.memory_space<smem>>
    %1659 = vector.broadcast %1658 : f32 to vector<1x128xf32>
    %1660 = arith.mulf %1659, %1649 : vector<1x128xf32>
    %1661 = arith.addf %1643, %1660 : vector<1x128xf32>
    %c73_614 = arith.constant 73 : index
    %1662 = memref.load %arg5[%c73_614] : memref<96xf32, #tpu.memory_space<smem>>
    %1663 = vector.broadcast %1662 : f32 to vector<1x128xf32>
    %1664 = arith.mulf %1663, %1649 : vector<1x128xf32>
    %1665 = arith.addf %1647, %1664 : vector<1x128xf32>
    %c0_615 = arith.constant 0 : index
    %c24_616 = arith.constant 24 : index
    %c0_617 = arith.constant 0 : index
    %1666 = vector.load %arg8[%c0_615, %c24_616, %c0_617] : memref<8x25x128xf32, #tpu.memory_space<vmem>>, vector<1x1x128xf32>
    %1667 = vector.shape_cast %1666 : vector<1x1x128xf32> to vector<1x128xf32>
    %c2_618 = arith.constant 2 : index
    %1668 = memref.load %arg5[%c2_618] : memref<96xf32, #tpu.memory_space<smem>>
    %1669 = vector.broadcast %1668 : f32 to vector<1x128xf32>
    %1670 = arith.mulf %1669, %1667 : vector<1x128xf32>
    %1671 = arith.addf %1653, %1670 : vector<1x128xf32>
    %c26_619 = arith.constant 26 : index
    %1672 = memref.load %arg5[%c26_619] : memref<96xf32, #tpu.memory_space<smem>>
    %1673 = vector.broadcast %1672 : f32 to vector<1x128xf32>
    %1674 = arith.mulf %1673, %1667 : vector<1x128xf32>
    %1675 = arith.addf %1657, %1674 : vector<1x128xf32>
    %c50_620 = arith.constant 50 : index
    %1676 = memref.load %arg5[%c50_620] : memref<96xf32, #tpu.memory_space<smem>>
    %1677 = vector.broadcast %1676 : f32 to vector<1x128xf32>
    %1678 = arith.mulf %1677, %1667 : vector<1x128xf32>
    %1679 = arith.addf %1661, %1678 : vector<1x128xf32>
    %c74_621 = arith.constant 74 : index
    %1680 = memref.load %arg5[%c74_621] : memref<96xf32, #tpu.memory_space<smem>>
    %1681 = vector.broadcast %1680 : f32 to vector<1x128xf32>
    %1682 = arith.mulf %1681, %1667 : vector<1x128xf32>
    %1683 = arith.addf %1665, %1682 : vector<1x128xf32>
    %c1_622 = arith.constant 1 : index
    %c22_623 = arith.constant 22 : index
    %c0_624 = arith.constant 0 : index
    %1684 = vector.load %arg8[%c1_622, %c22_623, %c0_624] : memref<8x25x128xf32, #tpu.memory_space<vmem>>, vector<1x1x128xf32>
    %1685 = vector.shape_cast %1684 : vector<1x1x128xf32> to vector<1x128xf32>
    %c3_625 = arith.constant 3 : index
    %1686 = memref.load %arg5[%c3_625] : memref<96xf32, #tpu.memory_space<smem>>
    %1687 = vector.broadcast %1686 : f32 to vector<1x128xf32>
    %1688 = arith.mulf %1687, %1685 : vector<1x128xf32>
    %1689 = arith.addf %1671, %1688 : vector<1x128xf32>
    %c27_626 = arith.constant 27 : index
    %1690 = memref.load %arg5[%c27_626] : memref<96xf32, #tpu.memory_space<smem>>
    %1691 = vector.broadcast %1690 : f32 to vector<1x128xf32>
    %1692 = arith.mulf %1691, %1685 : vector<1x128xf32>
    %1693 = arith.addf %1675, %1692 : vector<1x128xf32>
    %c51_627 = arith.constant 51 : index
    %1694 = memref.load %arg5[%c51_627] : memref<96xf32, #tpu.memory_space<smem>>
    %1695 = vector.broadcast %1694 : f32 to vector<1x128xf32>
    %1696 = arith.mulf %1695, %1685 : vector<1x128xf32>
    %1697 = arith.addf %1679, %1696 : vector<1x128xf32>
    %c75_628 = arith.constant 75 : index
    %1698 = memref.load %arg5[%c75_628] : memref<96xf32, #tpu.memory_space<smem>>
    %1699 = vector.broadcast %1698 : f32 to vector<1x128xf32>
    %1700 = arith.mulf %1699, %1685 : vector<1x128xf32>
    %1701 = arith.addf %1683, %1700 : vector<1x128xf32>
    %c1_629 = arith.constant 1 : index
    %c23_630 = arith.constant 23 : index
    %c0_631 = arith.constant 0 : index
    %1702 = vector.load %arg8[%c1_629, %c23_630, %c0_631] : memref<8x25x128xf32, #tpu.memory_space<vmem>>, vector<1x1x128xf32>
    %1703 = vector.shape_cast %1702 : vector<1x1x128xf32> to vector<1x128xf32>
    %c4_632 = arith.constant 4 : index
    %1704 = memref.load %arg5[%c4_632] : memref<96xf32, #tpu.memory_space<smem>>
    %1705 = vector.broadcast %1704 : f32 to vector<1x128xf32>
    %1706 = arith.mulf %1705, %1703 : vector<1x128xf32>
    %1707 = arith.addf %1689, %1706 : vector<1x128xf32>
    %c28_633 = arith.constant 28 : index
    %1708 = memref.load %arg5[%c28_633] : memref<96xf32, #tpu.memory_space<smem>>
    %1709 = vector.broadcast %1708 : f32 to vector<1x128xf32>
    %1710 = arith.mulf %1709, %1703 : vector<1x128xf32>
    %1711 = arith.addf %1693, %1710 : vector<1x128xf32>
    %c52_634 = arith.constant 52 : index
    %1712 = memref.load %arg5[%c52_634] : memref<96xf32, #tpu.memory_space<smem>>
    %1713 = vector.broadcast %1712 : f32 to vector<1x128xf32>
    %1714 = arith.mulf %1713, %1703 : vector<1x128xf32>
    %1715 = arith.addf %1697, %1714 : vector<1x128xf32>
    %c76_635 = arith.constant 76 : index
    %1716 = memref.load %arg5[%c76_635] : memref<96xf32, #tpu.memory_space<smem>>
    %1717 = vector.broadcast %1716 : f32 to vector<1x128xf32>
    %1718 = arith.mulf %1717, %1703 : vector<1x128xf32>
    %1719 = arith.addf %1701, %1718 : vector<1x128xf32>
    %c1_636 = arith.constant 1 : index
    %c24_637 = arith.constant 24 : index
    %c0_638 = arith.constant 0 : index
    %1720 = vector.load %arg8[%c1_636, %c24_637, %c0_638] : memref<8x25x128xf32, #tpu.memory_space<vmem>>, vector<1x1x128xf32>
    %1721 = vector.shape_cast %1720 : vector<1x1x128xf32> to vector<1x128xf32>
    %c5_639 = arith.constant 5 : index
    %1722 = memref.load %arg5[%c5_639] : memref<96xf32, #tpu.memory_space<smem>>
    %1723 = vector.broadcast %1722 : f32 to vector<1x128xf32>
    %1724 = arith.mulf %1723, %1721 : vector<1x128xf32>
    %1725 = arith.addf %1707, %1724 : vector<1x128xf32>
    %c29_640 = arith.constant 29 : index
    %1726 = memref.load %arg5[%c29_640] : memref<96xf32, #tpu.memory_space<smem>>
    %1727 = vector.broadcast %1726 : f32 to vector<1x128xf32>
    %1728 = arith.mulf %1727, %1721 : vector<1x128xf32>
    %1729 = arith.addf %1711, %1728 : vector<1x128xf32>
    %c53_641 = arith.constant 53 : index
    %1730 = memref.load %arg5[%c53_641] : memref<96xf32, #tpu.memory_space<smem>>
    %1731 = vector.broadcast %1730 : f32 to vector<1x128xf32>
    %1732 = arith.mulf %1731, %1721 : vector<1x128xf32>
    %1733 = arith.addf %1715, %1732 : vector<1x128xf32>
    %c77_642 = arith.constant 77 : index
    %1734 = memref.load %arg5[%c77_642] : memref<96xf32, #tpu.memory_space<smem>>
    %1735 = vector.broadcast %1734 : f32 to vector<1x128xf32>
    %1736 = arith.mulf %1735, %1721 : vector<1x128xf32>
    %1737 = arith.addf %1719, %1736 : vector<1x128xf32>
    %c2_643 = arith.constant 2 : index
    %c22_644 = arith.constant 22 : index
    %c0_645 = arith.constant 0 : index
    %1738 = vector.load %arg8[%c2_643, %c22_644, %c0_645] : memref<8x25x128xf32, #tpu.memory_space<vmem>>, vector<1x1x128xf32>
    %1739 = vector.shape_cast %1738 : vector<1x1x128xf32> to vector<1x128xf32>
    %c6_646 = arith.constant 6 : index
    %1740 = memref.load %arg5[%c6_646] : memref<96xf32, #tpu.memory_space<smem>>
    %1741 = vector.broadcast %1740 : f32 to vector<1x128xf32>
    %1742 = arith.mulf %1741, %1739 : vector<1x128xf32>
    %1743 = arith.addf %1725, %1742 : vector<1x128xf32>
    %c30_647 = arith.constant 30 : index
    %1744 = memref.load %arg5[%c30_647] : memref<96xf32, #tpu.memory_space<smem>>
    %1745 = vector.broadcast %1744 : f32 to vector<1x128xf32>
    %1746 = arith.mulf %1745, %1739 : vector<1x128xf32>
    %1747 = arith.addf %1729, %1746 : vector<1x128xf32>
    %c54_648 = arith.constant 54 : index
    %1748 = memref.load %arg5[%c54_648] : memref<96xf32, #tpu.memory_space<smem>>
    %1749 = vector.broadcast %1748 : f32 to vector<1x128xf32>
    %1750 = arith.mulf %1749, %1739 : vector<1x128xf32>
    %1751 = arith.addf %1733, %1750 : vector<1x128xf32>
    %c78_649 = arith.constant 78 : index
    %1752 = memref.load %arg5[%c78_649] : memref<96xf32, #tpu.memory_space<smem>>
    %1753 = vector.broadcast %1752 : f32 to vector<1x128xf32>
    %1754 = arith.mulf %1753, %1739 : vector<1x128xf32>
    %1755 = arith.addf %1737, %1754 : vector<1x128xf32>
    %c2_650 = arith.constant 2 : index
    %c23_651 = arith.constant 23 : index
    %c0_652 = arith.constant 0 : index
    %1756 = vector.load %arg8[%c2_650, %c23_651, %c0_652] : memref<8x25x128xf32, #tpu.memory_space<vmem>>, vector<1x1x128xf32>
    %1757 = vector.shape_cast %1756 : vector<1x1x128xf32> to vector<1x128xf32>
    %c7_653 = arith.constant 7 : index
    %1758 = memref.load %arg5[%c7_653] : memref<96xf32, #tpu.memory_space<smem>>
    %1759 = vector.broadcast %1758 : f32 to vector<1x128xf32>
    %1760 = arith.mulf %1759, %1757 : vector<1x128xf32>
    %1761 = arith.addf %1743, %1760 : vector<1x128xf32>
    %c31_654 = arith.constant 31 : index
    %1762 = memref.load %arg5[%c31_654] : memref<96xf32, #tpu.memory_space<smem>>
    %1763 = vector.broadcast %1762 : f32 to vector<1x128xf32>
    %1764 = arith.mulf %1763, %1757 : vector<1x128xf32>
    %1765 = arith.addf %1747, %1764 : vector<1x128xf32>
    %c55_655 = arith.constant 55 : index
    %1766 = memref.load %arg5[%c55_655] : memref<96xf32, #tpu.memory_space<smem>>
    %1767 = vector.broadcast %1766 : f32 to vector<1x128xf32>
    %1768 = arith.mulf %1767, %1757 : vector<1x128xf32>
    %1769 = arith.addf %1751, %1768 : vector<1x128xf32>
    %c79_656 = arith.constant 79 : index
    %1770 = memref.load %arg5[%c79_656] : memref<96xf32, #tpu.memory_space<smem>>
    %1771 = vector.broadcast %1770 : f32 to vector<1x128xf32>
    %1772 = arith.mulf %1771, %1757 : vector<1x128xf32>
    %1773 = arith.addf %1755, %1772 : vector<1x128xf32>
    %c2_657 = arith.constant 2 : index
    %c24_658 = arith.constant 24 : index
    %c0_659 = arith.constant 0 : index
    %1774 = vector.load %arg8[%c2_657, %c24_658, %c0_659] : memref<8x25x128xf32, #tpu.memory_space<vmem>>, vector<1x1x128xf32>
    %1775 = vector.shape_cast %1774 : vector<1x1x128xf32> to vector<1x128xf32>
    %c8_660 = arith.constant 8 : index
    %1776 = memref.load %arg5[%c8_660] : memref<96xf32, #tpu.memory_space<smem>>
    %1777 = vector.broadcast %1776 : f32 to vector<1x128xf32>
    %1778 = arith.mulf %1777, %1775 : vector<1x128xf32>
    %1779 = arith.addf %1761, %1778 : vector<1x128xf32>
    %c32_661 = arith.constant 32 : index
    %1780 = memref.load %arg5[%c32_661] : memref<96xf32, #tpu.memory_space<smem>>
    %1781 = vector.broadcast %1780 : f32 to vector<1x128xf32>
    %1782 = arith.mulf %1781, %1775 : vector<1x128xf32>
    %1783 = arith.addf %1765, %1782 : vector<1x128xf32>
    %c56_662 = arith.constant 56 : index
    %1784 = memref.load %arg5[%c56_662] : memref<96xf32, #tpu.memory_space<smem>>
    %1785 = vector.broadcast %1784 : f32 to vector<1x128xf32>
    %1786 = arith.mulf %1785, %1775 : vector<1x128xf32>
    %1787 = arith.addf %1769, %1786 : vector<1x128xf32>
    %c80_663 = arith.constant 80 : index
    %1788 = memref.load %arg5[%c80_663] : memref<96xf32, #tpu.memory_space<smem>>
    %1789 = vector.broadcast %1788 : f32 to vector<1x128xf32>
    %1790 = arith.mulf %1789, %1775 : vector<1x128xf32>
    %1791 = arith.addf %1773, %1790 : vector<1x128xf32>
    %c3_664 = arith.constant 3 : index
    %c22_665 = arith.constant 22 : index
    %c0_666 = arith.constant 0 : index
    %1792 = vector.load %arg8[%c3_664, %c22_665, %c0_666] : memref<8x25x128xf32, #tpu.memory_space<vmem>>, vector<1x1x128xf32>
    %1793 = vector.shape_cast %1792 : vector<1x1x128xf32> to vector<1x128xf32>
    %c9_667 = arith.constant 9 : index
    %1794 = memref.load %arg5[%c9_667] : memref<96xf32, #tpu.memory_space<smem>>
    %1795 = vector.broadcast %1794 : f32 to vector<1x128xf32>
    %1796 = arith.mulf %1795, %1793 : vector<1x128xf32>
    %1797 = arith.addf %1779, %1796 : vector<1x128xf32>
    %c33_668 = arith.constant 33 : index
    %1798 = memref.load %arg5[%c33_668] : memref<96xf32, #tpu.memory_space<smem>>
    %1799 = vector.broadcast %1798 : f32 to vector<1x128xf32>
    %1800 = arith.mulf %1799, %1793 : vector<1x128xf32>
    %1801 = arith.addf %1783, %1800 : vector<1x128xf32>
    %c57_669 = arith.constant 57 : index
    %1802 = memref.load %arg5[%c57_669] : memref<96xf32, #tpu.memory_space<smem>>
    %1803 = vector.broadcast %1802 : f32 to vector<1x128xf32>
    %1804 = arith.mulf %1803, %1793 : vector<1x128xf32>
    %1805 = arith.addf %1787, %1804 : vector<1x128xf32>
    %c81_670 = arith.constant 81 : index
    %1806 = memref.load %arg5[%c81_670] : memref<96xf32, #tpu.memory_space<smem>>
    %1807 = vector.broadcast %1806 : f32 to vector<1x128xf32>
    %1808 = arith.mulf %1807, %1793 : vector<1x128xf32>
    %1809 = arith.addf %1791, %1808 : vector<1x128xf32>
    %c3_671 = arith.constant 3 : index
    %c23_672 = arith.constant 23 : index
    %c0_673 = arith.constant 0 : index
    %1810 = vector.load %arg8[%c3_671, %c23_672, %c0_673] : memref<8x25x128xf32, #tpu.memory_space<vmem>>, vector<1x1x128xf32>
    %1811 = vector.shape_cast %1810 : vector<1x1x128xf32> to vector<1x128xf32>
    %c10_674 = arith.constant 10 : index
    %1812 = memref.load %arg5[%c10_674] : memref<96xf32, #tpu.memory_space<smem>>
    %1813 = vector.broadcast %1812 : f32 to vector<1x128xf32>
    %1814 = arith.mulf %1813, %1811 : vector<1x128xf32>
    %1815 = arith.addf %1797, %1814 : vector<1x128xf32>
    %c34_675 = arith.constant 34 : index
    %1816 = memref.load %arg5[%c34_675] : memref<96xf32, #tpu.memory_space<smem>>
    %1817 = vector.broadcast %1816 : f32 to vector<1x128xf32>
    %1818 = arith.mulf %1817, %1811 : vector<1x128xf32>
    %1819 = arith.addf %1801, %1818 : vector<1x128xf32>
    %c58_676 = arith.constant 58 : index
    %1820 = memref.load %arg5[%c58_676] : memref<96xf32, #tpu.memory_space<smem>>
    %1821 = vector.broadcast %1820 : f32 to vector<1x128xf32>
    %1822 = arith.mulf %1821, %1811 : vector<1x128xf32>
    %1823 = arith.addf %1805, %1822 : vector<1x128xf32>
    %c82_677 = arith.constant 82 : index
    %1824 = memref.load %arg5[%c82_677] : memref<96xf32, #tpu.memory_space<smem>>
    %1825 = vector.broadcast %1824 : f32 to vector<1x128xf32>
    %1826 = arith.mulf %1825, %1811 : vector<1x128xf32>
    %1827 = arith.addf %1809, %1826 : vector<1x128xf32>
    %c3_678 = arith.constant 3 : index
    %c24_679 = arith.constant 24 : index
    %c0_680 = arith.constant 0 : index
    %1828 = vector.load %arg8[%c3_678, %c24_679, %c0_680] : memref<8x25x128xf32, #tpu.memory_space<vmem>>, vector<1x1x128xf32>
    %1829 = vector.shape_cast %1828 : vector<1x1x128xf32> to vector<1x128xf32>
    %c11_681 = arith.constant 11 : index
    %1830 = memref.load %arg5[%c11_681] : memref<96xf32, #tpu.memory_space<smem>>
    %1831 = vector.broadcast %1830 : f32 to vector<1x128xf32>
    %1832 = arith.mulf %1831, %1829 : vector<1x128xf32>
    %1833 = arith.addf %1815, %1832 : vector<1x128xf32>
    %c35_682 = arith.constant 35 : index
    %1834 = memref.load %arg5[%c35_682] : memref<96xf32, #tpu.memory_space<smem>>
    %1835 = vector.broadcast %1834 : f32 to vector<1x128xf32>
    %1836 = arith.mulf %1835, %1829 : vector<1x128xf32>
    %1837 = arith.addf %1819, %1836 : vector<1x128xf32>
    %c59_683 = arith.constant 59 : index
    %1838 = memref.load %arg5[%c59_683] : memref<96xf32, #tpu.memory_space<smem>>
    %1839 = vector.broadcast %1838 : f32 to vector<1x128xf32>
    %1840 = arith.mulf %1839, %1829 : vector<1x128xf32>
    %1841 = arith.addf %1823, %1840 : vector<1x128xf32>
    %c83_684 = arith.constant 83 : index
    %1842 = memref.load %arg5[%c83_684] : memref<96xf32, #tpu.memory_space<smem>>
    %1843 = vector.broadcast %1842 : f32 to vector<1x128xf32>
    %1844 = arith.mulf %1843, %1829 : vector<1x128xf32>
    %1845 = arith.addf %1827, %1844 : vector<1x128xf32>
    %c4_685 = arith.constant 4 : index
    %c22_686 = arith.constant 22 : index
    %c0_687 = arith.constant 0 : index
    %1846 = vector.load %arg8[%c4_685, %c22_686, %c0_687] : memref<8x25x128xf32, #tpu.memory_space<vmem>>, vector<1x1x128xf32>
    %1847 = vector.shape_cast %1846 : vector<1x1x128xf32> to vector<1x128xf32>
    %c12_688 = arith.constant 12 : index
    %1848 = memref.load %arg5[%c12_688] : memref<96xf32, #tpu.memory_space<smem>>
    %1849 = vector.broadcast %1848 : f32 to vector<1x128xf32>
    %1850 = arith.mulf %1849, %1847 : vector<1x128xf32>
    %1851 = arith.addf %1833, %1850 : vector<1x128xf32>
    %c36_689 = arith.constant 36 : index
    %1852 = memref.load %arg5[%c36_689] : memref<96xf32, #tpu.memory_space<smem>>
    %1853 = vector.broadcast %1852 : f32 to vector<1x128xf32>
    %1854 = arith.mulf %1853, %1847 : vector<1x128xf32>
    %1855 = arith.addf %1837, %1854 : vector<1x128xf32>
    %c60_690 = arith.constant 60 : index
    %1856 = memref.load %arg5[%c60_690] : memref<96xf32, #tpu.memory_space<smem>>
    %1857 = vector.broadcast %1856 : f32 to vector<1x128xf32>
    %1858 = arith.mulf %1857, %1847 : vector<1x128xf32>
    %1859 = arith.addf %1841, %1858 : vector<1x128xf32>
    %c84_691 = arith.constant 84 : index
    %1860 = memref.load %arg5[%c84_691] : memref<96xf32, #tpu.memory_space<smem>>
    %1861 = vector.broadcast %1860 : f32 to vector<1x128xf32>
    %1862 = arith.mulf %1861, %1847 : vector<1x128xf32>
    %1863 = arith.addf %1845, %1862 : vector<1x128xf32>
    %c4_692 = arith.constant 4 : index
    %c23_693 = arith.constant 23 : index
    %c0_694 = arith.constant 0 : index
    %1864 = vector.load %arg8[%c4_692, %c23_693, %c0_694] : memref<8x25x128xf32, #tpu.memory_space<vmem>>, vector<1x1x128xf32>
    %1865 = vector.shape_cast %1864 : vector<1x1x128xf32> to vector<1x128xf32>
    %c13_695 = arith.constant 13 : index
    %1866 = memref.load %arg5[%c13_695] : memref<96xf32, #tpu.memory_space<smem>>
    %1867 = vector.broadcast %1866 : f32 to vector<1x128xf32>
    %1868 = arith.mulf %1867, %1865 : vector<1x128xf32>
    %1869 = arith.addf %1851, %1868 : vector<1x128xf32>
    %c37_696 = arith.constant 37 : index
    %1870 = memref.load %arg5[%c37_696] : memref<96xf32, #tpu.memory_space<smem>>
    %1871 = vector.broadcast %1870 : f32 to vector<1x128xf32>
    %1872 = arith.mulf %1871, %1865 : vector<1x128xf32>
    %1873 = arith.addf %1855, %1872 : vector<1x128xf32>
    %c61_697 = arith.constant 61 : index
    %1874 = memref.load %arg5[%c61_697] : memref<96xf32, #tpu.memory_space<smem>>
    %1875 = vector.broadcast %1874 : f32 to vector<1x128xf32>
    %1876 = arith.mulf %1875, %1865 : vector<1x128xf32>
    %1877 = arith.addf %1859, %1876 : vector<1x128xf32>
    %c85_698 = arith.constant 85 : index
    %1878 = memref.load %arg5[%c85_698] : memref<96xf32, #tpu.memory_space<smem>>
    %1879 = vector.broadcast %1878 : f32 to vector<1x128xf32>
    %1880 = arith.mulf %1879, %1865 : vector<1x128xf32>
    %1881 = arith.addf %1863, %1880 : vector<1x128xf32>
    %c4_699 = arith.constant 4 : index
    %c24_700 = arith.constant 24 : index
    %c0_701 = arith.constant 0 : index
    %1882 = vector.load %arg8[%c4_699, %c24_700, %c0_701] : memref<8x25x128xf32, #tpu.memory_space<vmem>>, vector<1x1x128xf32>
    %1883 = vector.shape_cast %1882 : vector<1x1x128xf32> to vector<1x128xf32>
    %c14_702 = arith.constant 14 : index
    %1884 = memref.load %arg5[%c14_702] : memref<96xf32, #tpu.memory_space<smem>>
    %1885 = vector.broadcast %1884 : f32 to vector<1x128xf32>
    %1886 = arith.mulf %1885, %1883 : vector<1x128xf32>
    %1887 = arith.addf %1869, %1886 : vector<1x128xf32>
    %c38_703 = arith.constant 38 : index
    %1888 = memref.load %arg5[%c38_703] : memref<96xf32, #tpu.memory_space<smem>>
    %1889 = vector.broadcast %1888 : f32 to vector<1x128xf32>
    %1890 = arith.mulf %1889, %1883 : vector<1x128xf32>
    %1891 = arith.addf %1873, %1890 : vector<1x128xf32>
    %c62_704 = arith.constant 62 : index
    %1892 = memref.load %arg5[%c62_704] : memref<96xf32, #tpu.memory_space<smem>>
    %1893 = vector.broadcast %1892 : f32 to vector<1x128xf32>
    %1894 = arith.mulf %1893, %1883 : vector<1x128xf32>
    %1895 = arith.addf %1877, %1894 : vector<1x128xf32>
    %c86_705 = arith.constant 86 : index
    %1896 = memref.load %arg5[%c86_705] : memref<96xf32, #tpu.memory_space<smem>>
    %1897 = vector.broadcast %1896 : f32 to vector<1x128xf32>
    %1898 = arith.mulf %1897, %1883 : vector<1x128xf32>
    %1899 = arith.addf %1881, %1898 : vector<1x128xf32>
    %c5_706 = arith.constant 5 : index
    %c22_707 = arith.constant 22 : index
    %c0_708 = arith.constant 0 : index
    %1900 = vector.load %arg8[%c5_706, %c22_707, %c0_708] : memref<8x25x128xf32, #tpu.memory_space<vmem>>, vector<1x1x128xf32>
    %1901 = vector.shape_cast %1900 : vector<1x1x128xf32> to vector<1x128xf32>
    %c15_709 = arith.constant 15 : index
    %1902 = memref.load %arg5[%c15_709] : memref<96xf32, #tpu.memory_space<smem>>
    %1903 = vector.broadcast %1902 : f32 to vector<1x128xf32>
    %1904 = arith.mulf %1903, %1901 : vector<1x128xf32>
    %1905 = arith.addf %1887, %1904 : vector<1x128xf32>
    %c39_710 = arith.constant 39 : index
    %1906 = memref.load %arg5[%c39_710] : memref<96xf32, #tpu.memory_space<smem>>
    %1907 = vector.broadcast %1906 : f32 to vector<1x128xf32>
    %1908 = arith.mulf %1907, %1901 : vector<1x128xf32>
    %1909 = arith.addf %1891, %1908 : vector<1x128xf32>
    %c63_711 = arith.constant 63 : index
    %1910 = memref.load %arg5[%c63_711] : memref<96xf32, #tpu.memory_space<smem>>
    %1911 = vector.broadcast %1910 : f32 to vector<1x128xf32>
    %1912 = arith.mulf %1911, %1901 : vector<1x128xf32>
    %1913 = arith.addf %1895, %1912 : vector<1x128xf32>
    %c87_712 = arith.constant 87 : index
    %1914 = memref.load %arg5[%c87_712] : memref<96xf32, #tpu.memory_space<smem>>
    %1915 = vector.broadcast %1914 : f32 to vector<1x128xf32>
    %1916 = arith.mulf %1915, %1901 : vector<1x128xf32>
    %1917 = arith.addf %1899, %1916 : vector<1x128xf32>
    %c5_713 = arith.constant 5 : index
    %c23_714 = arith.constant 23 : index
    %c0_715 = arith.constant 0 : index
    %1918 = vector.load %arg8[%c5_713, %c23_714, %c0_715] : memref<8x25x128xf32, #tpu.memory_space<vmem>>, vector<1x1x128xf32>
    %1919 = vector.shape_cast %1918 : vector<1x1x128xf32> to vector<1x128xf32>
    %c16_716 = arith.constant 16 : index
    %1920 = memref.load %arg5[%c16_716] : memref<96xf32, #tpu.memory_space<smem>>
    %1921 = vector.broadcast %1920 : f32 to vector<1x128xf32>
    %1922 = arith.mulf %1921, %1919 : vector<1x128xf32>
    %1923 = arith.addf %1905, %1922 : vector<1x128xf32>
    %c40_717 = arith.constant 40 : index
    %1924 = memref.load %arg5[%c40_717] : memref<96xf32, #tpu.memory_space<smem>>
    %1925 = vector.broadcast %1924 : f32 to vector<1x128xf32>
    %1926 = arith.mulf %1925, %1919 : vector<1x128xf32>
    %1927 = arith.addf %1909, %1926 : vector<1x128xf32>
    %c64_718 = arith.constant 64 : index
    %1928 = memref.load %arg5[%c64_718] : memref<96xf32, #tpu.memory_space<smem>>
    %1929 = vector.broadcast %1928 : f32 to vector<1x128xf32>
    %1930 = arith.mulf %1929, %1919 : vector<1x128xf32>
    %1931 = arith.addf %1913, %1930 : vector<1x128xf32>
    %c88_719 = arith.constant 88 : index
    %1932 = memref.load %arg5[%c88_719] : memref<96xf32, #tpu.memory_space<smem>>
    %1933 = vector.broadcast %1932 : f32 to vector<1x128xf32>
    %1934 = arith.mulf %1933, %1919 : vector<1x128xf32>
    %1935 = arith.addf %1917, %1934 : vector<1x128xf32>
    %c5_720 = arith.constant 5 : index
    %c24_721 = arith.constant 24 : index
    %c0_722 = arith.constant 0 : index
    %1936 = vector.load %arg8[%c5_720, %c24_721, %c0_722] : memref<8x25x128xf32, #tpu.memory_space<vmem>>, vector<1x1x128xf32>
    %1937 = vector.shape_cast %1936 : vector<1x1x128xf32> to vector<1x128xf32>
    %c17_723 = arith.constant 17 : index
    %1938 = memref.load %arg5[%c17_723] : memref<96xf32, #tpu.memory_space<smem>>
    %1939 = vector.broadcast %1938 : f32 to vector<1x128xf32>
    %1940 = arith.mulf %1939, %1937 : vector<1x128xf32>
    %1941 = arith.addf %1923, %1940 : vector<1x128xf32>
    %c41_724 = arith.constant 41 : index
    %1942 = memref.load %arg5[%c41_724] : memref<96xf32, #tpu.memory_space<smem>>
    %1943 = vector.broadcast %1942 : f32 to vector<1x128xf32>
    %1944 = arith.mulf %1943, %1937 : vector<1x128xf32>
    %1945 = arith.addf %1927, %1944 : vector<1x128xf32>
    %c65_725 = arith.constant 65 : index
    %1946 = memref.load %arg5[%c65_725] : memref<96xf32, #tpu.memory_space<smem>>
    %1947 = vector.broadcast %1946 : f32 to vector<1x128xf32>
    %1948 = arith.mulf %1947, %1937 : vector<1x128xf32>
    %1949 = arith.addf %1931, %1948 : vector<1x128xf32>
    %c89_726 = arith.constant 89 : index
    %1950 = memref.load %arg5[%c89_726] : memref<96xf32, #tpu.memory_space<smem>>
    %1951 = vector.broadcast %1950 : f32 to vector<1x128xf32>
    %1952 = arith.mulf %1951, %1937 : vector<1x128xf32>
    %1953 = arith.addf %1935, %1952 : vector<1x128xf32>
    %c6_727 = arith.constant 6 : index
    %c22_728 = arith.constant 22 : index
    %c0_729 = arith.constant 0 : index
    %1954 = vector.load %arg8[%c6_727, %c22_728, %c0_729] : memref<8x25x128xf32, #tpu.memory_space<vmem>>, vector<1x1x128xf32>
    %1955 = vector.shape_cast %1954 : vector<1x1x128xf32> to vector<1x128xf32>
    %c18_730 = arith.constant 18 : index
    %1956 = memref.load %arg5[%c18_730] : memref<96xf32, #tpu.memory_space<smem>>
    %1957 = vector.broadcast %1956 : f32 to vector<1x128xf32>
    %1958 = arith.mulf %1957, %1955 : vector<1x128xf32>
    %1959 = arith.addf %1941, %1958 : vector<1x128xf32>
    %c42_731 = arith.constant 42 : index
    %1960 = memref.load %arg5[%c42_731] : memref<96xf32, #tpu.memory_space<smem>>
    %1961 = vector.broadcast %1960 : f32 to vector<1x128xf32>
    %1962 = arith.mulf %1961, %1955 : vector<1x128xf32>
    %1963 = arith.addf %1945, %1962 : vector<1x128xf32>
    %c66_732 = arith.constant 66 : index
    %1964 = memref.load %arg5[%c66_732] : memref<96xf32, #tpu.memory_space<smem>>
    %1965 = vector.broadcast %1964 : f32 to vector<1x128xf32>
    %1966 = arith.mulf %1965, %1955 : vector<1x128xf32>
    %1967 = arith.addf %1949, %1966 : vector<1x128xf32>
    %c90_733 = arith.constant 90 : index
    %1968 = memref.load %arg5[%c90_733] : memref<96xf32, #tpu.memory_space<smem>>
    %1969 = vector.broadcast %1968 : f32 to vector<1x128xf32>
    %1970 = arith.mulf %1969, %1955 : vector<1x128xf32>
    %1971 = arith.addf %1953, %1970 : vector<1x128xf32>
    %c6_734 = arith.constant 6 : index
    %c23_735 = arith.constant 23 : index
    %c0_736 = arith.constant 0 : index
    %1972 = vector.load %arg8[%c6_734, %c23_735, %c0_736] : memref<8x25x128xf32, #tpu.memory_space<vmem>>, vector<1x1x128xf32>
    %1973 = vector.shape_cast %1972 : vector<1x1x128xf32> to vector<1x128xf32>
    %c19_737 = arith.constant 19 : index
    %1974 = memref.load %arg5[%c19_737] : memref<96xf32, #tpu.memory_space<smem>>
    %1975 = vector.broadcast %1974 : f32 to vector<1x128xf32>
    %1976 = arith.mulf %1975, %1973 : vector<1x128xf32>
    %1977 = arith.addf %1959, %1976 : vector<1x128xf32>
    %c43_738 = arith.constant 43 : index
    %1978 = memref.load %arg5[%c43_738] : memref<96xf32, #tpu.memory_space<smem>>
    %1979 = vector.broadcast %1978 : f32 to vector<1x128xf32>
    %1980 = arith.mulf %1979, %1973 : vector<1x128xf32>
    %1981 = arith.addf %1963, %1980 : vector<1x128xf32>
    %c67_739 = arith.constant 67 : index
    %1982 = memref.load %arg5[%c67_739] : memref<96xf32, #tpu.memory_space<smem>>
    %1983 = vector.broadcast %1982 : f32 to vector<1x128xf32>
    %1984 = arith.mulf %1983, %1973 : vector<1x128xf32>
    %1985 = arith.addf %1967, %1984 : vector<1x128xf32>
    %c91_740 = arith.constant 91 : index
    %1986 = memref.load %arg5[%c91_740] : memref<96xf32, #tpu.memory_space<smem>>
    %1987 = vector.broadcast %1986 : f32 to vector<1x128xf32>
    %1988 = arith.mulf %1987, %1973 : vector<1x128xf32>
    %1989 = arith.addf %1971, %1988 : vector<1x128xf32>
    %c6_741 = arith.constant 6 : index
    %c24_742 = arith.constant 24 : index
    %c0_743 = arith.constant 0 : index
    %1990 = vector.load %arg8[%c6_741, %c24_742, %c0_743] : memref<8x25x128xf32, #tpu.memory_space<vmem>>, vector<1x1x128xf32>
    %1991 = vector.shape_cast %1990 : vector<1x1x128xf32> to vector<1x128xf32>
    %c20_744 = arith.constant 20 : index
    %1992 = memref.load %arg5[%c20_744] : memref<96xf32, #tpu.memory_space<smem>>
    %1993 = vector.broadcast %1992 : f32 to vector<1x128xf32>
    %1994 = arith.mulf %1993, %1991 : vector<1x128xf32>
    %1995 = arith.addf %1977, %1994 : vector<1x128xf32>
    %c44_745 = arith.constant 44 : index
    %1996 = memref.load %arg5[%c44_745] : memref<96xf32, #tpu.memory_space<smem>>
    %1997 = vector.broadcast %1996 : f32 to vector<1x128xf32>
    %1998 = arith.mulf %1997, %1991 : vector<1x128xf32>
    %1999 = arith.addf %1981, %1998 : vector<1x128xf32>
    %c68_746 = arith.constant 68 : index
    %2000 = memref.load %arg5[%c68_746] : memref<96xf32, #tpu.memory_space<smem>>
    %2001 = vector.broadcast %2000 : f32 to vector<1x128xf32>
    %2002 = arith.mulf %2001, %1991 : vector<1x128xf32>
    %2003 = arith.addf %1985, %2002 : vector<1x128xf32>
    %c92_747 = arith.constant 92 : index
    %2004 = memref.load %arg5[%c92_747] : memref<96xf32, #tpu.memory_space<smem>>
    %2005 = vector.broadcast %2004 : f32 to vector<1x128xf32>
    %2006 = arith.mulf %2005, %1991 : vector<1x128xf32>
    %2007 = arith.addf %1989, %2006 : vector<1x128xf32>
    %c7_748 = arith.constant 7 : index
    %c22_749 = arith.constant 22 : index
    %c0_750 = arith.constant 0 : index
    %2008 = vector.load %arg8[%c7_748, %c22_749, %c0_750] : memref<8x25x128xf32, #tpu.memory_space<vmem>>, vector<1x1x128xf32>
    %2009 = vector.shape_cast %2008 : vector<1x1x128xf32> to vector<1x128xf32>
    %c21_751 = arith.constant 21 : index
    %2010 = memref.load %arg5[%c21_751] : memref<96xf32, #tpu.memory_space<smem>>
    %2011 = vector.broadcast %2010 : f32 to vector<1x128xf32>
    %2012 = arith.mulf %2011, %2009 : vector<1x128xf32>
    %2013 = arith.addf %1995, %2012 : vector<1x128xf32>
    %c45_752 = arith.constant 45 : index
    %2014 = memref.load %arg5[%c45_752] : memref<96xf32, #tpu.memory_space<smem>>
    %2015 = vector.broadcast %2014 : f32 to vector<1x128xf32>
    %2016 = arith.mulf %2015, %2009 : vector<1x128xf32>
    %2017 = arith.addf %1999, %2016 : vector<1x128xf32>
    %c69_753 = arith.constant 69 : index
    %2018 = memref.load %arg5[%c69_753] : memref<96xf32, #tpu.memory_space<smem>>
    %2019 = vector.broadcast %2018 : f32 to vector<1x128xf32>
    %2020 = arith.mulf %2019, %2009 : vector<1x128xf32>
    %2021 = arith.addf %2003, %2020 : vector<1x128xf32>
    %c93_754 = arith.constant 93 : index
    %2022 = memref.load %arg5[%c93_754] : memref<96xf32, #tpu.memory_space<smem>>
    %2023 = vector.broadcast %2022 : f32 to vector<1x128xf32>
    %2024 = arith.mulf %2023, %2009 : vector<1x128xf32>
    %2025 = arith.addf %2007, %2024 : vector<1x128xf32>
    %c7_755 = arith.constant 7 : index
    %c23_756 = arith.constant 23 : index
    %c0_757 = arith.constant 0 : index
    %2026 = vector.load %arg8[%c7_755, %c23_756, %c0_757] : memref<8x25x128xf32, #tpu.memory_space<vmem>>, vector<1x1x128xf32>
    %2027 = vector.shape_cast %2026 : vector<1x1x128xf32> to vector<1x128xf32>
    %c22_758 = arith.constant 22 : index
    %2028 = memref.load %arg5[%c22_758] : memref<96xf32, #tpu.memory_space<smem>>
    %2029 = vector.broadcast %2028 : f32 to vector<1x128xf32>
    %2030 = arith.mulf %2029, %2027 : vector<1x128xf32>
    %2031 = arith.addf %2013, %2030 : vector<1x128xf32>
    %c46_759 = arith.constant 46 : index
    %2032 = memref.load %arg5[%c46_759] : memref<96xf32, #tpu.memory_space<smem>>
    %2033 = vector.broadcast %2032 : f32 to vector<1x128xf32>
    %2034 = arith.mulf %2033, %2027 : vector<1x128xf32>
    %2035 = arith.addf %2017, %2034 : vector<1x128xf32>
    %c70_760 = arith.constant 70 : index
    %2036 = memref.load %arg5[%c70_760] : memref<96xf32, #tpu.memory_space<smem>>
    %2037 = vector.broadcast %2036 : f32 to vector<1x128xf32>
    %2038 = arith.mulf %2037, %2027 : vector<1x128xf32>
    %2039 = arith.addf %2021, %2038 : vector<1x128xf32>
    %c94_761 = arith.constant 94 : index
    %2040 = memref.load %arg5[%c94_761] : memref<96xf32, #tpu.memory_space<smem>>
    %2041 = vector.broadcast %2040 : f32 to vector<1x128xf32>
    %2042 = arith.mulf %2041, %2027 : vector<1x128xf32>
    %2043 = arith.addf %2025, %2042 : vector<1x128xf32>
    %c7_762 = arith.constant 7 : index
    %c24_763 = arith.constant 24 : index
    %c0_764 = arith.constant 0 : index
    %2044 = vector.load %arg8[%c7_762, %c24_763, %c0_764] : memref<8x25x128xf32, #tpu.memory_space<vmem>>, vector<1x1x128xf32>
    %2045 = vector.shape_cast %2044 : vector<1x1x128xf32> to vector<1x128xf32>
    %c23_765 = arith.constant 23 : index
    %2046 = memref.load %arg5[%c23_765] : memref<96xf32, #tpu.memory_space<smem>>
    %2047 = vector.broadcast %2046 : f32 to vector<1x128xf32>
    %2048 = arith.mulf %2047, %2045 : vector<1x128xf32>
    %2049 = arith.addf %2031, %2048 : vector<1x128xf32>
    %c47_766 = arith.constant 47 : index
    %2050 = memref.load %arg5[%c47_766] : memref<96xf32, #tpu.memory_space<smem>>
    %2051 = vector.broadcast %2050 : f32 to vector<1x128xf32>
    %2052 = arith.mulf %2051, %2045 : vector<1x128xf32>
    %2053 = arith.addf %2035, %2052 : vector<1x128xf32>
    %c71_767 = arith.constant 71 : index
    %2054 = memref.load %arg5[%c71_767] : memref<96xf32, #tpu.memory_space<smem>>
    %2055 = vector.broadcast %2054 : f32 to vector<1x128xf32>
    %2056 = arith.mulf %2055, %2045 : vector<1x128xf32>
    %2057 = arith.addf %2039, %2056 : vector<1x128xf32>
    %c95_768 = arith.constant 95 : index
    %2058 = memref.load %arg5[%c95_768] : memref<96xf32, #tpu.memory_space<smem>>
    %2059 = vector.broadcast %2058 : f32 to vector<1x128xf32>
    %2060 = arith.mulf %2059, %2045 : vector<1x128xf32>
    %2061 = arith.addf %2043, %2060 : vector<1x128xf32>
    %c0_769 = arith.constant 0 : index
    %c16_770 = arith.constant 16 : index
    %c0_771 = arith.constant 0 : index
    %2062 = vector.load %arg6[%c0_769, %c16_770, %c0_771] : memref<4x17x128xf32, #tpu.memory_space<vmem>>, vector<1x1x128xf32>
    %2063 = vector.shape_cast %2062 : vector<1x1x128xf32> to vector<1x128xf32>
    %2064 = vector.shape_cast %2049 : vector<1x128xf32> to vector<1x1x128xf32>
    tpu.vector_store %arg6[%c0_769, %c16_770, %c0_771], %2064 {strides = array<i32>} : memref<4x17x128xf32, #tpu.memory_space<vmem>>, vector<1x1x128xf32>,
    %c1_772 = arith.constant 1 : index
    %c16_773 = arith.constant 16 : index
    %c0_774 = arith.constant 0 : index
    %2065 = vector.load %arg6[%c1_772, %c16_773, %c0_774] : memref<4x17x128xf32, #tpu.memory_space<vmem>>, vector<1x1x128xf32>
    %2066 = vector.shape_cast %2065 : vector<1x1x128xf32> to vector<1x128xf32>
    %2067 = vector.shape_cast %2053 : vector<1x128xf32> to vector<1x1x128xf32>
    tpu.vector_store %arg6[%c1_772, %c16_773, %c0_774], %2067 {strides = array<i32>} : memref<4x17x128xf32, #tpu.memory_space<vmem>>, vector<1x1x128xf32>,
    %c2_775 = arith.constant 2 : index
    %c16_776 = arith.constant 16 : index
    %c0_777 = arith.constant 0 : index
    %2068 = vector.load %arg6[%c2_775, %c16_776, %c0_777] : memref<4x17x128xf32, #tpu.memory_space<vmem>>, vector<1x1x128xf32>
    %2069 = vector.shape_cast %2068 : vector<1x1x128xf32> to vector<1x128xf32>
    %2070 = vector.shape_cast %2057 : vector<1x128xf32> to vector<1x1x128xf32>
    tpu.vector_store %arg6[%c2_775, %c16_776, %c0_777], %2070 {strides = array<i32>} : memref<4x17x128xf32, #tpu.memory_space<vmem>>, vector<1x1x128xf32>,
    %c3_778 = arith.constant 3 : index
    %c16_779 = arith.constant 16 : index
    %c0_780 = arith.constant 0 : index
    %2071 = vector.load %arg6[%c3_778, %c16_779, %c0_780] : memref<4x17x128xf32, #tpu.memory_space<vmem>>, vector<1x1x128xf32>
    %2072 = vector.shape_cast %2071 : vector<1x1x128xf32> to vector<1x128xf32>
    %2073 = vector.shape_cast %2061 : vector<1x128xf32> to vector<1x1x128xf32>
    tpu.vector_store %arg6[%c3_778, %c16_779, %c0_780], %2073 {strides = array<i32>} : memref<4x17x128xf32, #tpu.memory_space<vmem>>, vector<1x1x128xf32>,
    %2074 = tpu.iota {dimensions = array<i32: 1>} : vector<1x128xi32>
    %c128_i32 = arith.constant 128 : i32
    %2075 = arith.muli %arg0, %c128_i32 : i32
    %2076 = vector.broadcast %2075 : i32 to vector<1x128xi32>
    %2077 = arith.addi %2074, %2076 : vector<1x128xi32>
    %c8_i32 = arith.constant 8 : i32
    %2078 = vector.broadcast %c8_i32 : i32 to vector<1x128xi32>
    %2079 = arith.cmpi slt, %2077, %2078 : vector<1x128xi32>
    %2080 = arith.extui %2079 : vector<1x128xi1> to vector<1x128xi32>
    %2081 = arith.sitofp %2080 : vector<1x128xi32> to vector<1x128xf32>
    %c0_781 = arith.constant 0 : index
    %c0_782 = arith.constant 0 : index
    %c0_783 = arith.constant 0 : index
    %2082 = vector.load %arg6[%c0_781, %c0_782, %c0_783] : memref<4x17x128xf32, #tpu.memory_space<vmem>>, vector<1x17x128xf32>
    %2083 = vector.shape_cast %2082 : vector<1x17x128xf32> to vector<17x128xf32>
    %2084 = vector.broadcast %2081 : vector<1x128xf32> to vector<17x128xf32>
    %2085 = arith.mulf %2083, %2084 : vector<17x128xf32>
    %cst_784 = arith.constant dense<0.000000e+00> : vector<128xf32>
    %2086 = vector.multi_reduction <add>, %2085, %cst_784 [0] : vector<17x128xf32> to vector<128xf32>
    %2087 = vector.shape_cast %2086 : vector<128xf32> to vector<1x128xf32>
    %2088 = arith.mulf %2085, %2085 : vector<17x128xf32>
    %cst_785 = arith.constant dense<0.000000e+00> : vector<128xf32>
    %2089 = vector.multi_reduction <add>, %2088, %cst_785 [0] : vector<17x128xf32> to vector<128xf32>
    %2090 = vector.shape_cast %2089 : vector<128xf32> to vector<1x128xf32>
    %c1_786 = arith.constant 1 : index
    %c0_787 = arith.constant 0 : index
    %c0_788 = arith.constant 0 : index
    %2091 = vector.load %arg6[%c1_786, %c0_787, %c0_788] : memref<4x17x128xf32, #tpu.memory_space<vmem>>, vector<1x17x128xf32>
    %2092 = vector.shape_cast %2091 : vector<1x17x128xf32> to vector<17x128xf32>
    %2093 = vector.broadcast %2081 : vector<1x128xf32> to vector<17x128xf32>
    %2094 = arith.mulf %2092, %2093 : vector<17x128xf32>
    %cst_789 = arith.constant dense<0.000000e+00> : vector<128xf32>
    %2095 = vector.multi_reduction <add>, %2094, %cst_789 [0] : vector<17x128xf32> to vector<128xf32>
    %2096 = vector.shape_cast %2095 : vector<128xf32> to vector<1x128xf32>
    %2097 = arith.mulf %2094, %2094 : vector<17x128xf32>
    %cst_790 = arith.constant dense<0.000000e+00> : vector<128xf32>
    %2098 = vector.multi_reduction <add>, %2097, %cst_790 [0] : vector<17x128xf32> to vector<128xf32>
    %2099 = vector.shape_cast %2098 : vector<128xf32> to vector<1x128xf32>
    %c2_791 = arith.constant 2 : index
    %c0_792 = arith.constant 0 : index
    %c0_793 = arith.constant 0 : index
    %2100 = vector.load %arg6[%c2_791, %c0_792, %c0_793] : memref<4x17x128xf32, #tpu.memory_space<vmem>>, vector<1x17x128xf32>
    %2101 = vector.shape_cast %2100 : vector<1x17x128xf32> to vector<17x128xf32>
    %2102 = vector.broadcast %2081 : vector<1x128xf32> to vector<17x128xf32>
    %2103 = arith.mulf %2101, %2102 : vector<17x128xf32>
    %cst_794 = arith.constant dense<0.000000e+00> : vector<128xf32>
    %2104 = vector.multi_reduction <add>, %2103, %cst_794 [0] : vector<17x128xf32> to vector<128xf32>
    %2105 = vector.shape_cast %2104 : vector<128xf32> to vector<1x128xf32>
    %2106 = arith.mulf %2103, %2103 : vector<17x128xf32>
    %cst_795 = arith.constant dense<0.000000e+00> : vector<128xf32>
    %2107 = vector.multi_reduction <add>, %2106, %cst_795 [0] : vector<17x128xf32> to vector<128xf32>
    %2108 = vector.shape_cast %2107 : vector<128xf32> to vector<1x128xf32>
    %c3_796 = arith.constant 3 : index
    %c0_797 = arith.constant 0 : index
    %c0_798 = arith.constant 0 : index
    %2109 = vector.load %arg6[%c3_796, %c0_797, %c0_798] : memref<4x17x128xf32, #tpu.memory_space<vmem>>, vector<1x17x128xf32>
    %2110 = vector.shape_cast %2109 : vector<1x17x128xf32> to vector<17x128xf32>
    %2111 = vector.broadcast %2081 : vector<1x128xf32> to vector<17x128xf32>
    %2112 = arith.mulf %2110, %2111 : vector<17x128xf32>
    %cst_799 = arith.constant dense<0.000000e+00> : vector<128xf32>
    %2113 = vector.multi_reduction <add>, %2112, %cst_799 [0] : vector<17x128xf32> to vector<128xf32>
    %2114 = vector.shape_cast %2113 : vector<128xf32> to vector<1x128xf32>
    %2115 = arith.mulf %2112, %2112 : vector<17x128xf32>
    %cst_800 = arith.constant dense<0.000000e+00> : vector<128xf32>
    %2116 = vector.multi_reduction <add>, %2115, %cst_800 [0] : vector<17x128xf32> to vector<128xf32>
    %2117 = vector.shape_cast %2116 : vector<128xf32> to vector<1x128xf32>
    %2118 = tpu.concatenate %2087, %2096, %2105, %2114, %2090, %2099, %2108, %2117 in 0 : vector<1x128xf32>, vector<1x128xf32>, vector<1x128xf32>, vector<1x128xf32>, vector<1x128xf32>, vector<1x128xf32>, vector<1x128xf32>, vector<1x128xf32> -> vector<8x128xf32>
    %c0_801 = arith.constant 0 : index
    %c0_802 = arith.constant 0 : index
    %2119 = vector.load %arg7[%c0_801, %c0_802] : memref<8x128xf32, #tpu.memory_space<vmem>>, vector<8x128xf32>
    tpu.vector_store %arg7[%c0_801, %c0_802], %2118 {strides = array<i32>} : memref<8x128xf32, #tpu.memory_space<vmem>>, vector<8x128xf32>,
    return
  }
  func.func @transform_0(%arg0: i32) -> (i32, i32, i32) {
    %c0_i32 = arith.constant 0 : i32
    %c0_i32_0 = arith.constant 0 : i32
    %c0_i32_1 = arith.constant 0 : i32
    return %c0_i32, %c0_i32_0, %arg0 : i32, i32, i32
  }
  func.func @transform_1(%arg0: i32) -> (i32, i32, i32) {
    %c0_i32 = arith.constant 0 : i32
    %c0_i32_0 = arith.constant 0 : i32
    %c0_i32_1 = arith.constant 0 : i32
    return %c0_i32, %c0_i32_0, %arg0 : i32, i32, i32
  }
  func.func @transform_2(%arg0: i32) -> i32 {
    %c0_i32 = arith.constant 0 : i32
    %c0_i32_0 = arith.constant 0 : i32
    return %c0_i32 : i32
  }
  func.func @transform_3(%arg0: i32) -> i32 {
    %c0_i32 = arith.constant 0 : i32
    %c0_i32_0 = arith.constant 0 : i32
    return %c0_i32 : i32
  }
  func.func @transform_4(%arg0: i32) -> i32 {
    %c0_i32 = arith.constant 0 : i32
    %c0_i32_0 = arith.constant 0 : i32
    return %c0_i32 : i32
  }
  func.func @transform_5(%arg0: i32) -> (i32, i32, i32) {
    %c0_i32 = arith.constant 0 : i32
    %c0_i32_0 = arith.constant 0 : i32
    %c0_i32_1 = arith.constant 0 : i32
    return %c0_i32, %c0_i32_0, %arg0 : i32, i32, i32
  }
  func.func @transform_6(%arg0: i32) -> (i32, i32) {
    %c0_i32 = arith.constant 0 : i32
    %c0_i32_0 = arith.constant 0 : i32
    return %c0_i32, %arg0 : i32, i32
  }
}

</mosaic_0001>

<llo_original>
// kernel: squeeze.3
$region0: #{squeeze.3}
  %s0 = inlined_call_operand.vmem [shape: f32[8,4,1,3], index: 0, kind: input, shape index: {}]
  %s1 = inlined_call_operand.vmem [shape: f32[96], index: 1, kind: output, shape index: {}]
  $region1: #{squeeze.3} parent=0
    #allocation0 [shape = 'u8[4096]{0}', space=vmem, size = 0x1000, scoped, tag = 'scoped mem for output reshape']
    #allocation1 [shape = 'u8[32768]{0}', space=vmem, size = 0x8000, scoped, tag = 'scoped mem for input reshape']
    %s3 = sshllo.u32 0, 4
    %s4 = smul.addr 4, 7
    %s5 = scalar_lea.vmem %s0, %s4
    %v6 = vld [vmem:[%s5] sm:%s3]
    %s7 = scalar_lea.vmem [#allocation1], 56
    %8 = vst [vmem:[%s7] sm:%s3] %v6
    %s9 = smul.addr 4, 6
    %s10 = scalar_lea.vmem %s0, %s9
    %v11 = vld [vmem:[%s10] sm:%s3]
    %s12 = scalar_lea.vmem [#allocation1], 48
    %13 = vst [vmem:[%s12] sm:%s3] %v11
    %s14 = smul.addr 4, 5
    %s15 = scalar_lea.vmem %s0, %s14
    %v16 = vld [vmem:[%s15] sm:%s3]
    %s17 = scalar_lea.vmem [#allocation1], 40
    %18 = vst [vmem:[%s17] sm:%s3] %v16
    %s19 = smul.addr 4, 4
    %s20 = scalar_lea.vmem %s0, %s19
    %v21 = vld [vmem:[%s20] sm:%s3]
    %s22 = scalar_lea.vmem [#allocation1], 32
    %23 = vst [vmem:[%s22] sm:%s3] %v21
    %s24 = smul.addr 4, 3
    %s25 = scalar_lea.vmem %s0, %s24
    %v26 = vld [vmem:[%s25] sm:%s3]
    %s27 = scalar_lea.vmem [#allocation1], 24
    %28 = vst [vmem:[%s27] sm:%s3] %v26
    %s29 = smul.addr 4, 2
    %s30 = scalar_lea.vmem %s0, %s29
    %v31 = vld [vmem:[%s30] sm:%s3]
    %s32 = scalar_lea.vmem [#allocation1], 16
    %33 = vst [vmem:[%s32] sm:%s3] %v31
    %s34 = scalar_lea.vmem %s0, 4
    %v35 = vld [vmem:[%s34] sm:%s3]
    %s36 = scalar_lea.vmem [#allocation1], 8
    %37 = vst [vmem:[%s36] sm:%s3] %v35
    %v38 = vld [vmem:[%s0] sm:%s3]
    %39 = vst [vmem:[#allocation1] sm:%s3] %v38
    %v40 = vld [vmem:[#allocation1] sm:$0x1]
    %vm41 = vcmask 23552
    %42 = vst.msk [vmem:[#allocation0] sm:$0x1] %vm41, %v40
    %s43 = scalar_lea.vmem [#allocation1], 59
    %v44 = vld [vmem:[%s43] sm:$0x1]
    %45 = vrot.lane.b32.xlu0 %v44, 93
    %v46 = vpop.permute.xlu0 %45
    %vm47 = vcmask 786152
    %48 = vst.msk [vmem:[#allocation0] sm:$0x1] %vm47, %v46
    %s49 = scalar_lea.vmem [#allocation1], 58
    %v50 = vld [vmem:[%s49] sm:$0x1]
    %51 = vrot.lane.b32.xlu0 %v50, 90
    %v52 = vpop.permute.xlu0 %51
    %vm53 = vcmask 761552
    %54 = vst.msk [vmem:[#allocation0] sm:$0x1] %vm53, %v52
    %s55 = scalar_lea.vmem [#allocation1], 57
    %v56 = vld [vmem:[%s55] sm:$0x1]
    %57 = vrot.lane.b32.xlu0 %v56, 87
    %v58 = vpop.permute.xlu0 %57
    %vm59 = vcmask 736952
    %60 = vst.msk [vmem:[#allocation0] sm:$0x1] %vm59, %v58
    %s61 = scalar_lea.vmem [#allocation1], 56
    %v62 = vld [vmem:[%s61] sm:$0x1]
    %63 = vrot.lane.b32.xlu0 %v62, 84
    %v64 = vpop.permute.xlu0 %63
    %vm65 = vcmask 712352
    %66 = vst.msk [vmem:[#allocation0] sm:$0x1] %vm65, %v64
    %s67 = scalar_lea.vmem [#allocation1], 51
    %v68 = vld [vmem:[%s67] sm:$0x1]
    %69 = vrot.lane.b32.xlu0 %v68, 81
    %v70 = vpop.permute.xlu0 %69
    %vm71 = vcmask 687752
    %72 = vst.msk [vmem:[#allocation0] sm:$0x1] %vm71, %v70
    %s73 = scalar_lea.vmem [#allocation1], 50
    %v74 = vld [vmem:[%s73] sm:$0x1]
    %75 = vrot.lane.b32.xlu0 %v74, 78
    %v76 = vpop.permute.xlu0 %75
    %vm77 = vcmask 663152
    %78 = vst.msk [vmem:[#allocation0] sm:$0x1] %vm77, %v76
    %s79 = scalar_lea.vmem [#allocation1], 49
    %v80 = vld [vmem:[%s79] sm:$0x1]
    %81 = vrot.lane.b32.xlu0 %v80, 75
    %v82 = vpop.permute.xlu0 %81
    %vm83 = vcmask 638552
    %84 = vst.msk [vmem:[#allocation0] sm:$0x1] %vm83, %v82
    %s85 = scalar_lea.vmem [#allocation1], 48
    %v86 = vld [vmem:[%s85] sm:$0x1]
    %87 = vrot.lane.b32.xlu0 %v86, 72
    %v88 = vpop.permute.xlu0 %87
    %vm89 = vcmask 613952
    %90 = vst.msk [vmem:[#allocation0] sm:$0x1] %vm89, %v88
    %s91 = scalar_lea.vmem [#allocation1], 43
    %v92 = vld [vmem:[%s91] sm:$0x1]
    %93 = vrot.lane.b32.xlu0 %v92, 69
    %v94 = vpop.permute.xlu0 %93
    %vm95 = vcmask 589352
    %96 = vst.msk [vmem:[#allocation0] sm:$0x1] %vm95, %v94
    %s97 = scalar_lea.vmem [#allocation1], 42
    %v98 = vld [vmem:[%s97] sm:$0x1]
    %99 = vrot.lane.b32.xlu0 %v98, 66
    %v100 = vpop.permute.xlu0 %99
    %vm101 = vcmask 564752
    %102 = vst.msk [vmem:[#allocation0] sm:$0x1] %vm101, %v100
    %s103 = scalar_lea.vmem [#allocation1], 41
    %v104 = vld [vmem:[%s103] sm:$0x1]
    %105 = vrot.lane.b32.xlu0 %v104, 63
    %v106 = vpop.permute.xlu0 %105
    %vm107 = vcmask 540152
    %108 = vst.msk [vmem:[#allocation0] sm:$0x1] %vm107, %v106
    %s109 = scalar_lea.vmem [#allocation1], 40
    %v110 = vld [vmem:[%s109] sm:$0x1]
    %111 = vrot.lane.b32.xlu0 %v110, 60
    %v112 = vpop.permute.xlu0 %111
    %vm113 = vcmask 515552
    %114 = vst.msk [vmem:[#allocation0] sm:$0x1] %vm113, %v112
    %s115 = scalar_lea.vmem [#allocation1], 35
    %v116 = vld [vmem:[%s115] sm:$0x1]
    %117 = vrot.lane.b32.xlu0 %v116, 57
    %v118 = vpop.permute.xlu0 %117
    %vm119 = vcmask 490952
    %120 = vst.msk [vmem:[#allocation0] sm:$0x1] %vm119, %v118
    %s121 = scalar_lea.vmem [#allocation1], 34
    %v122 = vld [vmem:[%s121] sm:$0x1]
    %123 = vrot.lane.b32.xlu0 %v122, 54
    %v124 = vpop.permute.xlu0 %123
    %vm125 = vcmask 466352
    %126 = vst.msk [vmem:[#allocation0] sm:$0x1] %vm125, %v124
    %s127 = scalar_lea.vmem [#allocation1], 33
    %v128 = vld [vmem:[%s127] sm:$0x1]
    %129 = vrot.lane.b32.xlu0 %v128, 51
    %v130 = vpop.permute.xlu0 %129
    %vm131 = vcmask 441752
    %132 = vst.msk [vmem:[#allocation0] sm:$0x1] %vm131, %v130
    %s133 = scalar_lea.vmem [#allocation1], 32
    %v134 = vld [vmem:[%s133] sm:$0x1]
    %135 = vrot.lane.b32.xlu0 %v134, 48
    %v136 = vpop.permute.xlu0 %135
    %vm137 = vcmask 417152
    %138 = vst.msk [vmem:[#allocation0] sm:$0x1] %vm137, %v136
    %s139 = scalar_lea.vmem [#allocation1], 27
    %v140 = vld [vmem:[%s139] sm:$0x1]
    %141 = vrot.lane.b32.xlu0 %v140, 45
    %v142 = vpop.permute.xlu0 %141
    %vm143 = vcmask 392552
    %144 = vst.msk [vmem:[#allocation0] sm:$0x1] %vm143, %v142
    %s145 = scalar_lea.vmem [#allocation1], 26
    %v146 = vld [vmem:[%s145] sm:$0x1]
    %147 = vrot.lane.b32.xlu0 %v146, 42
    %v148 = vpop.permute.xlu0 %147
    %vm149 = vcmask 367952
    %150 = vst.msk [vmem:[#allocation0] sm:$0x1] %vm149, %v148
    %s151 = scalar_lea.vmem [#allocation1], 25
    %v152 = vld [vmem:[%s151] sm:$0x1]
    %153 = vrot.lane.b32.xlu0 %v152, 39
    %v154 = vpop.permute.xlu0 %153
    %vm155 = vcmask 343352
    %156 = vst.msk [vmem:[#allocation0] sm:$0x1] %vm155, %v154
    %s157 = scalar_lea.vmem [#allocation1], 24
    %v158 = vld [vmem:[%s157] sm:$0x1]
    %159 = vrot.lane.b32.xlu0 %v158, 36
    %v160 = vpop.permute.xlu0 %159
    %vm161 = vcmask 318752
    %162 = vst.msk [vmem:[#allocation0] sm:$0x1] %vm161, %v160
    %s163 = scalar_lea.vmem [#allocation1], 19
    %v164 = vld [vmem:[%s163] sm:$0x1]
    %165 = vrot.lane.b32.xlu0 %v164, 33
    %v166 = vpop.permute.xlu0 %165
    %vm167 = vcmask 294152
    %168 = vst.msk [vmem:[#allocation0] sm:$0x1] %vm167, %v166
    %s169 = scalar_lea.vmem [#allocation1], 18
    %v170 = vld [vmem:[%s169] sm:$0x1]
    %171 = vrot.lane.b32.xlu0 %v170, 30
    %v172 = vpop.permute.xlu0 %171
    %vm173 = vcmask 269552
    %174 = vst.msk [vmem:[#allocation0] sm:$0x1] %vm173, %v172
    %s175 = scalar_lea.vmem [#allocation1], 17
    %v176 = vld [vmem:[%s175] sm:$0x1]
    %177 = vrot.lane.b32.xlu0 %v176, 27
    %v178 = vpop.permute.xlu0 %177
    %vm179 = vcmask 244952
    %180 = vst.msk [vmem:[#allocation0] sm:$0x1] %vm179, %v178
    %s181 = scalar_lea.vmem [#allocation1], 16
    %v182 = vld [vmem:[%s181] sm:$0x1]
    %183 = vrot.lane.b32.xlu0 %v182, 24
    %v184 = vpop.permute.xlu0 %183
    %vm185 = vcmask 220352
    %186 = vst.msk [vmem:[#allocation0] sm:$0x1] %vm185, %v184
    %s187 = scalar_lea.vmem [#allocation1], 11
    %v188 = vld [vmem:[%s187] sm:$0x1]
    %189 = vrot.lane.b32.xlu0 %v188, 21
    %v190 = vpop.permute.xlu0 %189
    %vm191 = vcmask 195752
    %192 = vst.msk [vmem:[#allocation0] sm:$0x1] %vm191, %v190
    %s193 = scalar_lea.vmem [#allocation1], 10
    %v194 = vld [vmem:[%s193] sm:$0x1]
    %195 = vrot.lane.b32.xlu0 %v194, 18
    %v196 = vpop.permute.xlu0 %195
    %vm197 = vcmask 171152
    %198 = vst.msk [vmem:[#allocation0] sm:$0x1] %vm197, %v196
    %s199 = scalar_lea.vmem [#allocation1], 9
    %v200 = vld [vmem:[%s199] sm:$0x1]
    %201 = vrot.lane.b32.xlu0 %v200, 15
    %v202 = vpop.permute.xlu0 %201
    %vm203 = vcmask 146552
    %204 = vst.msk [vmem:[#allocation0] sm:$0x1] %vm203, %v202
    %s205 = scalar_lea.vmem [#allocation1], 8
    %v206 = vld [vmem:[%s205] sm:$0x1]
    %207 = vrot.lane.b32.xlu0 %v206, 12
    %v208 = vpop.permute.xlu0 %207
    %vm209 = vcmask 121952
    %210 = vst.msk [vmem:[#allocation0] sm:$0x1] %vm209, %v208
    %s211 = scalar_lea.vmem [#allocation1], 3
    %v212 = vld [vmem:[%s211] sm:$0x1]
    %213 = vrot.lane.b32.xlu0 %v212, 9
    %v214 = vpop.permute.xlu0 %213
    %vm215 = vcmask 97352
    %216 = vst.msk [vmem:[#allocation0] sm:$0x1] %vm215, %v214
    %s217 = scalar_lea.vmem [#allocation1], 2
    %v218 = vld [vmem:[%s217] sm:$0x1]
    %219 = vrot.lane.b32.xlu0 %v218, 6
    %v220 = vpop.permute.xlu0 %219
    %vm221 = vcmask 72752
    %222 = vst.msk [vmem:[#allocation0] sm:$0x1] %vm221, %v220
    %s223 = scalar_lea.vmem [#allocation1], 1
    %v224 = vld [vmem:[%s223] sm:$0x1]
    %225 = vrot.lane.b32.xlu0 %v224, 3
    %v226 = vpop.permute.xlu0 %225
    %vm227 = vcmask 48152
    %228 = vst.msk [vmem:[#allocation0] sm:$0x1] %vm227, %v226
    %s230 = sshllo.u32 0, 1
    %v232 = vld [vmem:[#allocation0] sm:%s230]
    %s233 = sshllo.u32 0, 1
    %234 = vst [vmem:[%s1] sm:%s233] %v232

// kernel: squeeze.4
$region0: #{squeeze.4}
  %s0 = inlined_call_operand.vmem [shape: f32[4,8,1,3], index: 0, kind: input, shape index: {}]
  %s1 = inlined_call_operand.vmem [shape: f32[96], index: 1, kind: output, shape index: {}]
  $region1: #{squeeze.4} parent=0
    #allocation0 [shape = 'u8[4096]{0}', space=vmem, size = 0x1000, scoped, tag = 'scoped mem for output reshape']
    %v2 = vld [vmem:[%s0] sm:$0x1]
    %vm3 = vcmask 23552
    %4 = vst.msk [vmem:[#allocation0] sm:$0x1] %vm3, %v2
    %s5 = scalar_lea.vmem %s0, 31
    %v6 = vld [vmem:[%s5] sm:$0x1]
    %7 = vrot.lane.b32.xlu0 %v6, 93
    %v8 = vpop.permute.xlu0 %7
    %vm9 = vcmask 786152
    %10 = vst.msk [vmem:[#allocation0] sm:$0x1] %vm9, %v8
    %s11 = scalar_lea.vmem %s0, 30
    %v12 = vld [vmem:[%s11] sm:$0x1]
    %13 = vrot.lane.b32.xlu0 %v12, 90
    %v14 = vpop.permute.xlu0 %13
    %vm15 = vcmask 761552
    %16 = vst.msk [vmem:[#allocation0] sm:$0x1] %vm15, %v14
    %s17 = scalar_lea.vmem %s0, 29
    %v18 = vld [vmem:[%s17] sm:$0x1]
    %19 = vrot.lane.b32.xlu0 %v18, 87
    %v20 = vpop.permute.xlu0 %19
    %vm21 = vcmask 736952
    %22 = vst.msk [vmem:[#allocation0] sm:$0x1] %vm21, %v20
    %s23 = scalar_lea.vmem %s0, 28
    %v24 = vld [vmem:[%s23] sm:$0x1]
    %25 = vrot.lane.b32.xlu0 %v24, 84
    %v26 = vpop.permute.xlu0 %25
    %vm27 = vcmask 712352
    %28 = vst.msk [vmem:[#allocation0] sm:$0x1] %vm27, %v26
    %s29 = scalar_lea.vmem %s0, 27
    %v30 = vld [vmem:[%s29] sm:$0x1]
    %31 = vrot.lane.b32.xlu0 %v30, 81
    %v32 = vpop.permute.xlu0 %31
    %vm33 = vcmask 687752
    %34 = vst.msk [vmem:[#allocation0] sm:$0x1] %vm33, %v32
    %s35 = scalar_lea.vmem %s0, 26
    %v36 = vld [vmem:[%s35] sm:$0x1]
    %37 = vrot.lane.b32.xlu0 %v36, 78
    %v38 = vpop.permute.xlu0 %37
    %vm39 = vcmask 663152
    %40 = vst.msk [vmem:[#allocation0] sm:$0x1] %vm39, %v38
    %s41 = scalar_lea.vmem %s0, 25
    %v42 = vld [vmem:[%s41] sm:$0x1]
    %43 = vrot.lane.b32.xlu0 %v42, 75
    %v44 = vpop.permute.xlu0 %43
    %vm45 = vcmask 638552
    %46 = vst.msk [vmem:[#allocation0] sm:$0x1] %vm45, %v44
    %s47 = scalar_lea.vmem %s0, 24
    %v48 = vld [vmem:[%s47] sm:$0x1]
    %49 = vrot.lane.b32.xlu0 %v48, 72
    %v50 = vpop.permute.xlu0 %49
    %vm51 = vcmask 613952
    %52 = vst.msk [vmem:[#allocation0] sm:$0x1] %vm51, %v50
    %s53 = scalar_lea.vmem %s0, 23
    %v54 = vld [vmem:[%s53] sm:$0x1]
    %55 = vrot.lane.b32.xlu0 %v54, 69
    %v56 = vpop.permute.xlu0 %55
    %vm57 = vcmask 589352
    %58 = vst.msk [vmem:[#allocation0] sm:$0x1] %vm57, %v56
    %s59 = scalar_lea.vmem %s0, 22
    %v60 = vld [vmem:[%s59] sm:$0x1]
    %61 = vrot.lane.b32.xlu0 %v60, 66
    %v62 = vpop.permute.xlu0 %61
    %vm63 = vcmask 564752
    %64 = vst.msk [vmem:[#allocation0] sm:$0x1] %vm63, %v62
    %s65 = scalar_lea.vmem %s0, 21
    %v66 = vld [vmem:[%s65] sm:$0x1]
    %67 = vrot.lane.b32.xlu0 %v66, 63
    %v68 = vpop.permute.xlu0 %67
    %vm69 = vcmask 540152
    %70 = vst.msk [vmem:[#allocation0] sm:$0x1] %vm69, %v68
    %s71 = scalar_lea.vmem %s0, 20
    %v72 = vld [vmem:[%s71] sm:$0x1]
    %73 = vrot.lane.b32.xlu0 %v72, 60
    %v74 = vpop.permute.xlu0 %73
    %vm75 = vcmask 515552
    %76 = vst.msk [vmem:[#allocation0] sm:$0x1] %vm75, %v74
    %s77 = scalar_lea.vmem %s0, 19
    %v78 = vld [vmem:[%s77] sm:$0x1]
    %79 = vrot.lane.b32.xlu0 %v78, 57
    %v80 = vpop.permute.xlu0 %79
    %vm81 = vcmask 490952
    %82 = vst.msk [vmem:[#allocation0] sm:$0x1] %vm81, %v80
    %s83 = scalar_lea.vmem %s0, 18
    %v84 = vld [vmem:[%s83] sm:$0x1]
    %85 = vrot.lane.b32.xlu0 %v84, 54
    %v86 = vpop.permute.xlu0 %85
    %vm87 = vcmask 466352
    %88 = vst.msk [vmem:[#allocation0] sm:$0x1] %vm87, %v86
    %s89 = scalar_lea.vmem %s0, 17
    %v90 = vld [vmem:[%s89] sm:$0x1]
    %91 = vrot.lane.b32.xlu0 %v90, 51
    %v92 = vpop.permute.xlu0 %91
    %vm93 = vcmask 441752
    %94 = vst.msk [vmem:[#allocation0] sm:$0x1] %vm93, %v92
    %s95 = scalar_lea.vmem %s0, 16
    %v96 = vld [vmem:[%s95] sm:$0x1]
    %97 = vrot.lane.b32.xlu0 %v96, 48
    %v98 = vpop.permute.xlu0 %97
    %vm99 = vcmask 417152
    %100 = vst.msk [vmem:[#allocation0] sm:$0x1] %vm99, %v98
    %s101 = scalar_lea.vmem %s0, 15
    %v102 = vld [vmem:[%s101] sm:$0x1]
    %103 = vrot.lane.b32.xlu0 %v102, 45
    %v104 = vpop.permute.xlu0 %103
    %vm105 = vcmask 392552
    %106 = vst.msk [vmem:[#allocation0] sm:$0x1] %vm105, %v104
    %s107 = scalar_lea.vmem %s0, 14
    %v108 = vld [vmem:[%s107] sm:$0x1]
    %109 = vrot.lane.b32.xlu0 %v108, 42
    %v110 = vpop.permute.xlu0 %109
    %vm111 = vcmask 367952
    %112 = vst.msk [vmem:[#allocation0] sm:$0x1] %vm111, %v110
    %s113 = scalar_lea.vmem %s0, 13
    %v114 = vld [vmem:[%s113] sm:$0x1]
    %115 = vrot.lane.b32.xlu0 %v114, 39
    %v116 = vpop.permute.xlu0 %115
    %vm117 = vcmask 343352
    %118 = vst.msk [vmem:[#allocation0] sm:$0x1] %vm117, %v116
    %s119 = scalar_lea.vmem %s0, 12
    %v120 = vld [vmem:[%s119] sm:$0x1]
    %121 = vrot.lane.b32.xlu0 %v120, 36
    %v122 = vpop.permute.xlu0 %121
    %vm123 = vcmask 318752
    %124 = vst.msk [vmem:[#allocation0] sm:$0x1] %vm123, %v122
    %s125 = scalar_lea.vmem %s0, 11
    %v126 = vld [vmem:[%s125] sm:$0x1]
    %127 = vrot.lane.b32.xlu0 %v126, 33
    %v128 = vpop.permute.xlu0 %127
    %vm129 = vcmask 294152
    %130 = vst.msk [vmem:[#allocation0] sm:$0x1] %vm129, %v128
    %s131 = scalar_lea.vmem %s0, 10
    %v132 = vld [vmem:[%s131] sm:$0x1]
    %133 = vrot.lane.b32.xlu0 %v132, 30
    %v134 = vpop.permute.xlu0 %133
    %vm135 = vcmask 269552
    %136 = vst.msk [vmem:[#allocation0] sm:$0x1] %vm135, %v134
    %s137 = scalar_lea.vmem %s0, 9
    %v138 = vld [vmem:[%s137] sm:$0x1]
    %139 = vrot.lane.b32.xlu0 %v138, 27
    %v140 = vpop.permute.xlu0 %139
    %vm141 = vcmask 244952
    %142 = vst.msk [vmem:[#allocation0] sm:$0x1] %vm141, %v140
    %s143 = scalar_lea.vmem %s0, 8
    %v144 = vld [vmem:[%s143] sm:$0x1]
    %145 = vrot.lane.b32.xlu0 %v144, 24
    %v146 = vpop.permute.xlu0 %145
    %vm147 = vcmask 220352
    %148 = vst.msk [vmem:[#allocation0] sm:$0x1] %vm147, %v146
    %s149 = scalar_lea.vmem %s0, 7
    %v150 = vld [vmem:[%s149] sm:$0x1]
    %151 = vrot.lane.b32.xlu0 %v150, 21
    %v152 = vpop.permute.xlu0 %151
    %vm153 = vcmask 195752
    %154 = vst.msk [vmem:[#allocation0] sm:$0x1] %vm153, %v152
    %s155 = scalar_lea.vmem %s0, 6
    %v156 = vld [vmem:[%s155] sm:$0x1]
    %157 = vrot.lane.b32.xlu0 %v156, 18
    %v158 = vpop.permute.xlu0 %157
    %vm159 = vcmask 171152
    %160 = vst.msk [vmem:[#allocation0] sm:$0x1] %vm159, %v158
    %s161 = scalar_lea.vmem %s0, 5
    %v162 = vld [vmem:[%s161] sm:$0x1]
    %163 = vrot.lane.b32.xlu0 %v162, 15
    %v164 = vpop.permute.xlu0 %163
    %vm165 = vcmask 146552
    %166 = vst.msk [vmem:[#allocation0] sm:$0x1] %vm165, %v164
    %s167 = scalar_lea.vmem %s0, 4
    %v168 = vld [vmem:[%s167] sm:$0x1]
    %169 = vrot.lane.b32.xlu0 %v168, 12
    %v170 = vpop.permute.xlu0 %169
    %vm171 = vcmask 121952
    %172 = vst.msk [vmem:[#allocation0] sm:$0x1] %vm171, %v170
    %s173 = scalar_lea.vmem %s0, 3
    %v174 = vld [vmem:[%s173] sm:$0x1]
    %175 = vrot.lane.b32.xlu0 %v174, 9
    %v176 = vpop.permute.xlu0 %175
    %vm177 = vcmask 97352
    %178 = vst.msk [vmem:[#allocation0] sm:$0x1] %vm177, %v176
    %s179 = scalar_lea.vmem %s0, 2
    %v180 = vld [vmem:[%s179] sm:$0x1]
    %181 = vrot.lane.b32.xlu0 %v180, 6
    %v182 = vpop.permute.xlu0 %181
    %vm183 = vcmask 72752
    %184 = vst.msk [vmem:[#allocation0] sm:$0x1] %vm183, %v182
    %s185 = scalar_lea.vmem %s0, 1
    %v186 = vld [vmem:[%s185] sm:$0x1]
    %187 = vrot.lane.b32.xlu0 %v186, 3
    %v188 = vpop.permute.xlu0 %187
    %vm189 = vcmask 48152
    %190 = vst.msk [vmem:[#allocation0] sm:$0x1] %vm189, %v188
    %s192 = sshllo.u32 0, 1
    %v194 = vld [vmem:[#allocation0] sm:%s192]
    %s195 = sshllo.u32 0, 1
    %196 = vst [vmem:[%s1] sm:%s195] %v194

// kernel: squeeze.5
$region0: #{squeeze.5}
  %s0 = inlined_call_operand.vmem [shape: f32[4,4,1,3], index: 0, kind: input, shape index: {}]
  %s1 = inlined_call_operand.vmem [shape: f32[48], index: 1, kind: output, shape index: {}]
  $region1: #{squeeze.5} parent=0
    #allocation0 [shape = 'u8[4096]{0}', space=vmem, size = 0x1000, scoped, tag = 'scoped mem for output reshape']
    #allocation1 [shape = 'u8[16384]{0}', space=vmem, size = 0x4000, scoped, tag = 'scoped mem for input reshape']
    %s3 = sshllo.u32 0, 4
    %s4 = smul.addr 4, 3
    %s5 = scalar_lea.vmem %s0, %s4
    %v6 = vld [vmem:[%s5] sm:%s3]
    %s7 = scalar_lea.vmem [#allocation1], 24
    %8 = vst [vmem:[%s7] sm:%s3] %v6
    %s9 = smul.addr 4, 2
    %s10 = scalar_lea.vmem %s0, %s9
    %v11 = vld [vmem:[%s10] sm:%s3]
    %s12 = scalar_lea.vmem [#allocation1], 16
    %13 = vst [vmem:[%s12] sm:%s3] %v11
    %s14 = scalar_lea.vmem %s0, 4
    %v15 = vld [vmem:[%s14] sm:%s3]
    %s16 = scalar_lea.vmem [#allocation1], 8
    %17 = vst [vmem:[%s16] sm:%s3] %v15
    %v18 = vld [vmem:[%s0] sm:%s3]
    %19 = vst [vmem:[#allocation1] sm:%s3] %v18
    %v20 = vld [vmem:[#allocation1] sm:$0x1]
    %vm21 = vcmask 23552
    %22 = vst.msk [vmem:[#allocation0] sm:$0x1] %vm21, %v20
    %s23 = scalar_lea.vmem [#allocation1], 27
    %v24 = vld [vmem:[%s23] sm:$0x1]
    %25 = vrot.lane.b32.xlu0 %v24, 45
    %v26 = vpop.permute.xlu0 %25
    %vm27 = vcmask 392552
    %28 = vst.msk [vmem:[#allocation0] sm:$0x1] %vm27, %v26
    %s29 = scalar_lea.vmem [#allocation1], 26
    %v30 = vld [vmem:[%s29] sm:$0x1]
    %31 = vrot.lane.b32.xlu0 %v30, 42
    %v32 = vpop.permute.xlu0 %31
    %vm33 = vcmask 367952
    %34 = vst.msk [vmem:[#allocation0] sm:$0x1] %vm33, %v32
    %s35 = scalar_lea.vmem [#allocation1], 25
    %v36 = vld [vmem:[%s35] sm:$0x1]
    %37 = vrot.lane.b32.xlu0 %v36, 39
    %v38 = vpop.permute.xlu0 %37
    %vm39 = vcmask 343352
    %40 = vst.msk [vmem:[#allocation0] sm:$0x1] %vm39, %v38
    %s41 = scalar_lea.vmem [#allocation1], 24
    %v42 = vld [vmem:[%s41] sm:$0x1]
    %43 = vrot.lane.b32.xlu0 %v42, 36
    %v44 = vpop.permute.xlu0 %43
    %vm45 = vcmask 318752
    %46 = vst.msk [vmem:[#allocation0] sm:$0x1] %vm45, %v44
    %s47 = scalar_lea.vmem [#allocation1], 19
    %v48 = vld [vmem:[%s47] sm:$0x1]
    %49 = vrot.lane.b32.xlu0 %v48, 33
    %v50 = vpop.permute.xlu0 %49
    %vm51 = vcmask 294152
    %52 = vst.msk [vmem:[#allocation0] sm:$0x1] %vm51, %v50
    %s53 = scalar_lea.vmem [#allocation1], 18
    %v54 = vld [vmem:[%s53] sm:$0x1]
    %55 = vrot.lane.b32.xlu0 %v54, 30
    %v56 = vpop.permute.xlu0 %55
    %vm57 = vcmask 269552
    %58 = vst.msk [vmem:[#allocation0] sm:$0x1] %vm57, %v56
    %s59 = scalar_lea.vmem [#allocation1], 17
    %v60 = vld [vmem:[%s59] sm:$0x1]
    %61 = vrot.lane.b32.xlu0 %v60, 27
    %v62 = vpop.permute.xlu0 %61
    %vm63 = vcmask 244952
    %64 = vst.msk [vmem:[#allocation0] sm:$0x1] %vm63, %v62
    %s65 = scalar_lea.vmem [#allocation1], 16
    %v66 = vld [vmem:[%s65] sm:$0x1]
    %67 = vrot.lane.b32.xlu0 %v66, 24
    %v68 = vpop.permute.xlu0 %67
    %vm69 = vcmask 220352
    %70 = vst.msk [vmem:[#allocation0] sm:$0x1] %vm69, %v68
    %s71 = scalar_lea.vmem [#allocation1], 11
    %v72 = vld [vmem:[%s71] sm:$0x1]
    %73 = vrot.lane.b32.xlu0 %v72, 21
    %v74 = vpop.permute.xlu0 %73
    %vm75 = vcmask 195752
    %76 = vst.msk [vmem:[#allocation0] sm:$0x1] %vm75, %v74
    %s77 = scalar_lea.vmem [#allocation1], 10
    %v78 = vld [vmem:[%s77] sm:$0x1]
    %79 = vrot.lane.b32.xlu0 %v78, 18
    %v80 = vpop.permute.xlu0 %79
    %vm81 = vcmask 171152
    %82 = vst.msk [vmem:[#allocation0] sm:$0x1] %vm81, %v80
    %s83 = scalar_lea.vmem [#allocation1], 9
    %v84 = vld [vmem:[%s83] sm:$0x1]
    %85 = vrot.lane.b32.xlu0 %v84, 15
    %v86 = vpop.permute.xlu0 %85
    %vm87 = vcmask 146552
    %88 = vst.msk [vmem:[#allocation0] sm:$0x1] %vm87, %v86
    %s89 = scalar_lea.vmem [#allocation1], 8
    %v90 = vld [vmem:[%s89] sm:$0x1]
    %91 = vrot.lane.b32.xlu0 %v90, 12
    %v92 = vpop.permute.xlu0 %91
    %vm93 = vcmask 121952
    %94 = vst.msk [vmem:[#allocation0] sm:$0x1] %vm93, %v92
    %s95 = scalar_lea.vmem [#allocation1], 3
    %v96 = vld [vmem:[%s95] sm:$0x1]
    %97 = vrot.lane.b32.xlu0 %v96, 9
    %v98 = vpop.permute.xlu0 %97
    %vm99 = vcmask 97352
    %100 = vst.msk [vmem:[#allocation0] sm:$0x1] %vm99, %v98
    %s101 = scalar_lea.vmem [#allocation1], 2
    %v102 = vld [vmem:[%s101] sm:$0x1]
    %103 = vrot.lane.b32.xlu0 %v102, 6
    %v104 = vpop.permute.xlu0 %103
    %vm105 = vcmask 72752
    %106 = vst.msk [vmem:[#allocation0] sm:$0x1] %vm105, %v104
    %s107 = scalar_lea.vmem [#allocation1], 1
    %v108 = vld [vmem:[%s107] sm:$0x1]
    %109 = vrot.lane.b32.xlu0 %v108, 3
    %v110 = vpop.permute.xlu0 %109
    %vm111 = vcmask 48152
    %112 = vst.msk [vmem:[#allocation0] sm:$0x1] %vm111, %v110
    %s114 = sshllo.u32 0, 1
    %v116 = vld [vmem:[#allocation0] sm:%s114]
    %s117 = sshllo.u32 0, 1
    %118 = vst [vmem:[%s1] sm:%s117] %v116

// kernel: decoder_block_forward.3
$region0: #{decoder_block_forward.3}
  #allocation0 [shape = 'u32[]', space=smem, size = 0x4, offset = 0x4, fixed_abs, tag = 'smem constant byte address 0x4 - core index']
  #allocation1 [shape = 'u32[144,128]{1,0:T(1,128)}', space=vmem, size = 0x12000, scoped, tag = 'internal scratch']
  #allocation2 [shape = 'f32[4,27,128]{2,1,0:T(8,128)}', space=vmem, size = 0x10000, scoped, tag = 'scratch operand']
  %s0 = inlined_call_operand.vmem [shape: f32[4,17,128], index: 0, kind: input, shape index: {}]
  %s1 = inlined_call_operand.vmem [shape: f32[4], index: 1, kind: input, shape index: {}]
  %s2 = inlined_call_operand.vmem [shape: f32[4], index: 2, kind: input, shape index: {}]
  %s3 = inlined_call_operand.vmem [shape: f32[48], index: 3, kind: input, shape index: {}]
  %s4 = inlined_call_operand.vmem [shape: f32[4,19,128], index: 4, kind: output, shape index: {0}]
  %s5 = inlined_call_operand.vmem [shape: f32[8,128], index: 5, kind: output, shape index: {1}]
  %6 = xla_tuple %s4, %s5
  %s7 = sld [smem:[#allocation0]]
  $region46: #{decoder_block_forward.3} parent=0
    _
  %s9 = ssub.s32 1, %s7
  %s10 = scalar_select 0, %s9, %s7
  $region1: #{decoder_block_forward.3} parent=0
    #allocation3 [shape = 'u8[512]{0}', space=smem, size = 0x200, scoped, tag = 'input window, operand 1, single buffered']
    #allocation4 [shape = 's32[1]{0}', space=sflag, size = 0x4, scoped, tag = 'scoped memory for decoder_block_forward.3']
    #allocation5 [shape = 'u8[512]{0}', space=smem, size = 0x200, scoped, tag = 'input window, operand 2, single buffered']
    #allocation6 [shape = 's32[1]{0}', space=sflag, size = 0x4, scoped, tag = 'scoped memory for decoder_block_forward.3']
    #allocation7 [shape = 'u8[512]{0}', space=smem, size = 0x200, scoped, tag = 'input window, operand 3, single buffered']
    %11 = vsyncpa [#allocation4], 0
    %12 = vsyncpa [#allocation6], 0
    // Predicated region
    $region2: #{decoder_block_forward.3} parent=1 // pred_check
      _
    $region3: #{decoder_block_forward.3} parent=1 // pred_check_branch
      %14 = sbr.rel (0) target = $region5
    $region4: #{decoder_block_forward.3} parent=1 // pred_region
      _
    $region5: #{decoder_block_forward.3} parent=1 // pred_fallthru
      _
    // Predicated region
    $region6: #{decoder_block_forward.3} parent=1 // pred_check
      _
    $region7: #{decoder_block_forward.3} parent=1 // pred_check_branch
      %16 = sbr.rel (0) target = $region9
    $region8: #{decoder_block_forward.3} parent=1 // pred_region
      %s18 = ssub.s32 16, 16
      %19 = vsyncadd [#allocation4], %s18
      %s21 = sshll.u32 %s1, 4
      %s22 = int_to_ptr.vmem [resolvable:$true] %s21
      %24 = dma.vmem_to_smem %s22, 16, [#allocation3], [#allocation4]
    $region9: #{decoder_block_forward.3} parent=1 // pred_fallthru
      _
    // Predicated region
    $region10: #{decoder_block_forward.3} parent=1 // pred_check
      _
    $region11: #{decoder_block_forward.3} parent=1 // pred_check_branch
      %26 = sbr.rel (0) target = $region13
    $region12: #{decoder_block_forward.3} parent=1 // pred_region
      %s28 = ssub.s32 16, 16
      %29 = vsyncadd [#allocation6], %s28
      %s31 = sshll.u32 %s2, 4
      %s32 = int_to_ptr.vmem [resolvable:$true] %s31
      %34 = dma.vmem_to_smem %s32, 16, [#allocation5], [#allocation6]
    $region13: #{decoder_block_forward.3} parent=1 // pred_fallthru
      _
    // Predicated region
    $region14: #{decoder_block_forward.3} parent=1 // pred_check
      _
    $region15: #{decoder_block_forward.3} parent=1 // pred_check_branch
      %36 = sbr.rel (0) target = $region17
    $region16: #{decoder_block_forward.3} parent=1 // pred_region
      %s38 = ssub.s32 16, 16
      %39 = vsyncadd [#allocation6], %s38
      %s41 = sshll.u32 %s3, 4
      %s42 = int_to_ptr.vmem [resolvable:$true] %s41
      %44 = dma.vmem_to_smem %s42, 16, [#allocation7], [#allocation6]
    $region17: #{decoder_block_forward.3} parent=1 // pred_fallthru
      _
    // Predicated region
    $region18: #{decoder_block_forward.3} parent=1 // pred_check
      _
    $region19: #{decoder_block_forward.3} parent=1 // pred_check_branch
      %46 = sbr.rel (0) target = $region21
    $region20: #{decoder_block_forward.3} parent=1 // pred_region
      %47 = dma.done [#allocation4], 16
    $region21: #{decoder_block_forward.3} parent=1 // pred_fallthru
      _
    // Predicated region
    $region22: #{decoder_block_forward.3} parent=1 // pred_check
      _
    $region23: #{decoder_block_forward.3} parent=1 // pred_check_branch
      %49 = sbr.rel (0) target = $region25
    $region24: #{decoder_block_forward.3} parent=1 // pred_region
      %50 = dma.done [#allocation6], 16
    $region25: #{decoder_block_forward.3} parent=1 // pred_fallthru
      _
    // Predicated region
    $region26: #{decoder_block_forward.3} parent=1 // pred_check
      _
    $region27: #{decoder_block_forward.3} parent=1 // pred_check_branch
      %52 = sbr.rel (0) target = $region29
    $region28: #{decoder_block_forward.3} parent=1 // pred_region
      %53 = dma.done [#allocation6], 16
    $region29: #{decoder_block_forward.3} parent=1 // pred_fallthru
      _
    %54 = sfence
    %55 = vst [vmem:[#allocation2 + $0x6] sm:$0x3] 0.0
    %56 = vst [vmem:[#allocation2 + $0x26] sm:$0x3] 0.0
    %57 = vst [vmem:[#allocation2 + $0x46] sm:$0x3] 0.0
    %58 = vst [vmem:[#allocation2 + $0x66] sm:$0x3] 0.0
    %59 = vst [vmem:[#allocation2 + $0x19] sm:$0x3] 0.0
    %60 = vst [vmem:[#allocation2 + $0x39] sm:$0x3] 0.0
    %61 = vst [vmem:[#allocation2 + $0x59] sm:$0x3] 0.0
    %62 = vst [vmem:[#allocation2 + $0x79] sm:$0x3] 0.0
    %v63 = vld [vmem:[%s0] sm:$0xff]
    %v64 = vld [vmem:[%s0 + $0x8] sm:$0xff]
    %v65 = vld [vmem:[%s0 + $0x10] sm:$0x1]
    %s66 = sld [smem:[#allocation3]]
    %v67 = vstv %s66
    %v68 = vmul.f32 %v63, %v67
    %v69 = vmul.f32 %v64, %v67
    %v70 = vmul.f32 %v65, %v67
    %s71 = sld [smem:[#allocation5]]
    %v72 = vstv %s71
    %v73 = vadd.f32 %v68, %v72
    %v74 = vadd.f32 %v69, %v72
    %v75 = vadd.f32 %v70, %v72
    %v76 = vmax.f32 %v73, 0.0
    %v77 = vmax.f32 %v74, 0.0
    %v78 = vmax.f32 %v75, 0.0
    %79 = vst [vmem:[#allocation2 + $0x8] sm:$0xff] %v76
    %80 = vst [vmem:[#allocation2 + $0x10] sm:$0xff] %v77
    %81 = vst [vmem:[#allocation2 + $0x18] sm:$0x1] %v78
    %s82 = scalar_lea.vmem %s0, 24
    %v83 = vld [vmem:[%s82] sm:$0xff]
    %v84 = vld [vmem:[%s82 + $0x8] sm:$0xff]
    %v85 = vld [vmem:[%s82 + $0x10] sm:$0x1]
    %s86 = sld [smem:[#allocation3 + $0x1]]
    %v87 = vstv %s86
    %v88 = vmul.f32 %v83, %v87
    %v89 = vmul.f32 %v84, %v87
    %v90 = vmul.f32 %v85, %v87
    %s91 = sld [smem:[#allocation5 + $0x1]]
    %v92 = vstv %s91
    %v93 = vadd.f32 %v88, %v92
    %v94 = vadd.f32 %v89, %v92
    %v95 = vadd.f32 %v90, %v92
    %v96 = vmax.f32 %v93, 0.0
    %v97 = vmax.f32 %v94, 0.0
    %v98 = vmax.f32 %v95, 0.0
    %s99 = scalar_lea.vmem [#allocation2], 32
    %100 = vst [vmem:[%s99 + $0x8] sm:$0xff] %v96
    %101 = vst [vmem:[%s99 + $0x10] sm:$0xff] %v97
    %102 = vst [vmem:[%s99 + $0x18] sm:$0x1] %v98
    %s103 = scalar_lea.vmem %s0, 48
    %v104 = vld [vmem:[%s103] sm:$0xff]
    %v105 = vld [vmem:[%s103 + $0x8] sm:$0xff]
    %v106 = vld [vmem:[%s103 + $0x10] sm:$0x1]
    %s107 = sld [smem:[#allocation3 + $0x2]]
    %v108 = vstv %s107
    %v109 = vmul.f32 %v104, %v108
    %v110 = vmul.f32 %v105, %v108
    %v111 = vmul.f32 %v106, %v108
    %s112 = sld [smem:[#allocation5 + $0x2]]
    %v113 = vstv %s112
    %v114 = vadd.f32 %v109, %v113
    %v115 = vadd.f32 %v110, %v113
    %v116 = vadd.f32 %v111, %v113
    %v117 = vmax.f32 %v114, 0.0
    %v118 = vmax.f32 %v115, 0.0
    %v119 = vmax.f32 %v116, 0.0
    %s120 = scalar_lea.vmem [#allocation2], 64
    %121 = vst [vmem:[%s120 + $0x8] sm:$0xff] %v117
    %122 = vst [vmem:[%s120 + $0x10] sm:$0xff] %v118
    %123 = vst [vmem:[%s120 + $0x18] sm:$0x1] %v119
    %s124 = scalar_lea.vmem %s0, 72
    %v125 = vld [vmem:[%s124] sm:$0xff]
    %v126 = vld [vmem:[%s124 + $0x8] sm:$0xff]
    %v127 = vld [vmem:[%s124 + $0x10] sm:$0x1]
    %s128 = sld [smem:[#allocation3 + $0x3]]
    %v129 = vstv %s128
    %v130 = vmul.f32 %v125, %v129
    %v131 = vmul.f32 %v126, %v129
    %v132 = vmul.f32 %v127, %v129
    %s133 = sld [smem:[#allocation5 + $0x3]]
    %v134 = vstv %s133
    %v135 = vadd.f32 %v130, %v134
    %v136 = vadd.f32 %v131, %v134
    %v137 = vadd.f32 %v132, %v134
    %v138 = vmax.f32 %v135, 0.0
    %v139 = vmax.f32 %v136, 0.0
    %v140 = vmax.f32 %v137, 0.0
    %s141 = scalar_lea.vmem [#allocation2], 96
    %142 = vst [vmem:[%s141 + $0x8] sm:$0xff] %v138
    %143 = vst [vmem:[%s141 + $0x10] sm:$0xff] %v139
    %144 = vst [vmem:[%s141 + $0x18] sm:$0x1] %v140
    %v145 = vld [vmem:[#allocation2 + $0x6] sm:$0xff]
    %s146 = sld [smem:[#allocation7]]
    %v147 = vstv %s146
    %v148 = vmul.f32 %v147, %v145
    %v149 = vadd.f32 %v148, 0.0
    %s150 = sld [smem:[#allocation7 + $0xc]]
    %v151 = vstv %s150
    %v152 = vmul.f32 %v151, %v145
    %v153 = vadd.f32 %v152, 0.0
    %s154 = sld [smem:[#allocation7 + $0x18]]
    %v155 = vstv %s154
    %v156 = vmul.f32 %v155, %v145
    %v157 = vadd.f32 %v156, 0.0
    %s158 = sld [smem:[#allocation7 + $0x24]]
    %v159 = vstv %s158
    %v160 = vmul.f32 %v159, %v145
    %v161 = vadd.f32 %v160, 0.0
    %v162 = vld [vmem:[#allocation2 + $0x7] sm:$0xff]
    %s163 = sld [smem:[#allocation7 + $0x1]]
    %v164 = vstv %s163
    %v165 = vmul.f32 %v164, %v162
    %v166 = vadd.f32 %v149, %v165
    %s167 = sld [smem:[#allocation7 + $0xd]]
    %v168 = vstv %s167
    %v169 = vmul.f32 %v168, %v162
    %v170 = vadd.f32 %v153, %v169
    %s171 = sld [smem:[#allocation7 + $0x19]]
    %v172 = vstv %s171
    %v173 = vmul.f32 %v172, %v162
    %v174 = vadd.f32 %v157, %v173
    %s175 = sld [smem:[#allocation7 + $0x25]]
    %v176 = vstv %s175
    %v177 = vmul.f32 %v176, %v162
    %v178 = vadd.f32 %v161, %v177
    %v179 = vld [vmem:[#allocation2 + $0x8] sm:$0xff]
    %s180 = sld [smem:[#allocation7 + $0x2]]
    %v181 = vstv %s180
    %v182 = vmul.f32 %v181, %v179
    %v183 = vadd.f32 %v166, %v182
    %s184 = sld [smem:[#allocation7 + $0xe]]
    %v185 = vstv %s184
    %v186 = vmul.f32 %v185, %v179
    %v187 = vadd.f32 %v170, %v186
    %s188 = sld [smem:[#allocation7 + $0x1a]]
    %v189 = vstv %s188
    %v190 = vmul.f32 %v189, %v179
    %v191 = vadd.f32 %v174, %v190
    %s192 = sld [smem:[#allocation7 + $0x26]]
    %v193 = vstv %s192
    %v194 = vmul.f32 %v193, %v179
    %v195 = vadd.f32 %v178, %v194
    %v196 = vld [vmem:[%s99 + $0x6] sm:$0xff]
    %s197 = sld [smem:[#allocation7 + $0x3]]
    %v198 = vstv %s197
    %v199 = vmul.f32 %v198, %v196
    %v200 = vadd.f32 %v183, %v199
    %s201 = sld [smem:[#allocation7 + $0xf]]
    %v202 = vstv %s201
    %v203 = vmul.f32 %v202, %v196
    %v204 = vadd.f32 %v187, %v203
    %s205 = sld [smem:[#allocation7 + $0x1b]]
    %v206 = vstv %s205
    %v207 = vmul.f32 %v206, %v196
    %v208 = vadd.f32 %v191, %v207
    %s209 = sld [smem:[#allocation7 + $0x27]]
    %v210 = vstv %s209
    %v211 = vmul.f32 %v210, %v196
    %v212 = vadd.f32 %v195, %v211
    %v213 = vld [vmem:[%s99 + $0x7] sm:$0xff]
    %s214 = sld [smem:[#allocation7 + $0x4]]
    %v215 = vstv %s214
    %v216 = vmul.f32 %v215, %v213
    %v217 = vadd.f32 %v200, %v216
    %s218 = sld [smem:[#allocation7 + $0x10]]
    %v219 = vstv %s218
    %v220 = vmul.f32 %v219, %v213
    %v221 = vadd.f32 %v204, %v220
    %s222 = sld [smem:[#allocation7 + $0x1c]]
    %v223 = vstv %s222
    %v224 = vmul.f32 %v223, %v213
    %v225 = vadd.f32 %v208, %v224
    %s226 = sld [smem:[#allocation7 + $0x28]]
    %v227 = vstv %s226
    %v228 = vmul.f32 %v227, %v213
    %v229 = vadd.f32 %v212, %v228
    %v230 = vld [vmem:[%s99 + $0x8] sm:$0xff]
    %s231 = sld [smem:[#allocation7 + $0x5]]
    %v232 = vstv %s231
    %v233 = vmul.f32 %v232, %v230
    %v234 = vadd.f32 %v217, %v233
    %s235 = sld [smem:[#allocation7 + $0x11]]
    %v236 = vstv %s235
    %v237 = vmul.f32 %v236, %v230
    %v238 = vadd.f32 %v221, %v237
    %s239 = sld [smem:[#allocation7 + $0x1d]]
    %v240 = vstv %s239
    %v241 = vmul.f32 %v240, %v230
    %v242 = vadd.f32 %v225, %v241
    %s243 = sld [smem:[#allocation7 + $0x29]]
    %v244 = vstv %s243
    %v245 = vmul.f32 %v244, %v230
    %v246 = vadd.f32 %v229, %v245
    %v247 = vld [vmem:[%s120 + $0x6] sm:$0xff]
    %s248 = sld [smem:[#allocation7 + $0x6]]
    %v249 = vstv %s248
    %v250 = vmul.f32 %v249, %v247
    %v251 = vadd.f32 %v234, %v250
    %s252 = sld [smem:[#allocation7 + $0x12]]
    %v253 = vstv %s252
    %v254 = vmul.f32 %v253, %v247
    %v255 = vadd.f32 %v238, %v254
    %s256 = sld [smem:[#allocation7 + $0x1e]]
    %v257 = vstv %s256
    %v258 = vmul.f32 %v257, %v247
    %v259 = vadd.f32 %v242, %v258
    %s260 = sld [smem:[#allocation7 + $0x2a]]
    %v261 = vstv %s260
    %v262 = vmul.f32 %v261, %v247
    %v263 = vadd.f32 %v246, %v262
    %v264 = vld [vmem:[%s120 + $0x7] sm:$0xff]
    %s265 = sld [smem:[#allocation7 + $0x7]]
    %v266 = vstv %s265
    %v267 = vmul.f32 %v266, %v264
    %v268 = vadd.f32 %v251, %v267
    %s269 = sld [smem:[#allocation7 + $0x13]]
    %v270 = vstv %s269
    %v271 = vmul.f32 %v270, %v264
    %v272 = vadd.f32 %v255, %v271
    %s273 = sld [smem:[#allocation7 + $0x1f]]
    %v274 = vstv %s273
    %v275 = vmul.f32 %v274, %v264
    %v276 = vadd.f32 %v259, %v275
    %s277 = sld [smem:[#allocation7 + $0x2b]]
    %v278 = vstv %s277
    %v279 = vmul.f32 %v278, %v264
    %v280 = vadd.f32 %v263, %v279
    %v281 = vld [vmem:[%s120 + $0x8] sm:$0xff]
    %s282 = sld [smem:[#allocation7 + $0x8]]
    %v283 = vstv %s282
    %v284 = vmul.f32 %v283, %v281
    %v285 = vadd.f32 %v268, %v284
    %s286 = sld [smem:[#allocation7 + $0x14]]
    %v287 = vstv %s286
    %v288 = vmul.f32 %v287, %v281
    %v289 = vadd.f32 %v272, %v288
    %s290 = sld [smem:[#allocation7 + $0x20]]
    %v291 = vstv %s290
    %v292 = vmul.f32 %v291, %v281
    %v293 = vadd.f32 %v276, %v292
    %s294 = sld [smem:[#allocation7 + $0x2c]]
    %v295 = vstv %s294
    %v296 = vmul.f32 %v295, %v281
    %v297 = vadd.f32 %v280, %v296
    %v298 = vld [vmem:[%s141 + $0x6] sm:$0xff]
    %s299 = sld [smem:[#allocation7 + $0x9]]
    %v300 = vstv %s299
    %v301 = vmul.f32 %v300, %v298
    %v302 = vadd.f32 %v285, %v301
    %s303 = sld [smem:[#allocation7 + $0x15]]
    %v304 = vstv %s303
    %v305 = vmul.f32 %v304, %v298
    %v306 = vadd.f32 %v289, %v305
    %s307 = sld [smem:[#allocation7 + $0x21]]
    %v308 = vstv %s307
    %v309 = vmul.f32 %v308, %v298
    %v310 = vadd.f32 %v293, %v309
    %s311 = sld [smem:[#allocation7 + $0x2d]]
    %v312 = vstv %s311
    %v313 = vmul.f32 %v312, %v298
    %v314 = vadd.f32 %v297, %v313
    %v315 = vld [vmem:[%s141 + $0x7] sm:$0xff]
    %s316 = sld [smem:[#allocation7 + $0xa]]
    %v317 = vstv %s316
    %v318 = vmul.f32 %v317, %v315
    %v319 = vadd.f32 %v302, %v318
    %s320 = sld [smem:[#allocation7 + $0x16]]
    %v321 = vstv %s320
    %v322 = vmul.f32 %v321, %v315
    %v323 = vadd.f32 %v306, %v322
    %s324 = sld [smem:[#allocation7 + $0x22]]
    %v325 = vstv %s324
    %v326 = vmul.f32 %v325, %v315
    %v327 = vadd.f32 %v310, %v326
    %s328 = sld [smem:[#allocation7 + $0x2e]]
    %v329 = vstv %s328
    %v330 = vmul.f32 %v329, %v315
    %v331 = vadd.f32 %v314, %v330
    %v332 = vld [vmem:[%s141 + $0x8] sm:$0xff]
    %s333 = sld [smem:[#allocation7 + $0xb]]
    %v334 = vstv %s333
    %v335 = vmul.f32 %v334, %v332
    %v336 = vadd.f32 %v319, %v335
    %s337 = sld [smem:[#allocation7 + $0x17]]
    %v338 = vstv %s337
    %v339 = vmul.f32 %v338, %v332
    %v340 = vadd.f32 %v323, %v339
    %s341 = sld [smem:[#allocation7 + $0x23]]
    %v342 = vstv %s341
    %v343 = vmul.f32 %v342, %v332
    %v344 = vadd.f32 %v327, %v343
    %s345 = sld [smem:[#allocation7 + $0x2f]]
    %v346 = vstv %s345
    %v347 = vmul.f32 %v346, %v332
    %v348 = vadd.f32 %v331, %v347
    %349 = vst [vmem:[%s4] sm:$0xff] %v336
    %s350 = scalar_lea.vmem %s4, 24
    %351 = vst [vmem:[%s350] sm:$0xff] %v340
    %s352 = scalar_lea.vmem %s4, 48
    %353 = vst [vmem:[%s352] sm:$0xff] %v344
    %s354 = scalar_lea.vmem %s4, 72
    %355 = vst [vmem:[%s354] sm:$0xff] %v348
    %v356 = vld [vmem:[#allocation2 + $0xe] sm:$0xff]
    %s357 = sld [smem:[#allocation7]]
    %v358 = vstv %s357
    %v359 = vmul.f32 %v358, %v356
    %v360 = vadd.f32 %v359, 0.0
    %s361 = sld [smem:[#allocation7 + $0xc]]
    %v362 = vstv %s361
    %v363 = vmul.f32 %v362, %v356
    %v364 = vadd.f32 %v363, 0.0
    %s365 = sld [smem:[#allocation7 + $0x18]]
    %v366 = vstv %s365
    %v367 = vmul.f32 %v366, %v356
    %v368 = vadd.f32 %v367, 0.0
    %s369 = sld [smem:[#allocation7 + $0x24]]
    %v370 = vstv %s369
    %v371 = vmul.f32 %v370, %v356
    %v372 = vadd.f32 %v371, 0.0
    %v373 = vld [vmem:[#allocation2 + $0xf] sm:$0xff]
    %s374 = sld [smem:[#allocation7 + $0x1]]
    %v375 = vstv %s374
    %v376 = vmul.f32 %v375, %v373
    %v377 = vadd.f32 %v360, %v376
    %s378 = sld [smem:[#allocation7 + $0xd]]
    %v379 = vstv %s378
    %v380 = vmul.f32 %v379, %v373
    %v381 = vadd.f32 %v364, %v380
    %s382 = sld [smem:[#allocation7 + $0x19]]
    %v383 = vstv %s382
    %v384 = vmul.f32 %v383, %v373
    %v385 = vadd.f32 %v368, %v384
    %s386 = sld [smem:[#allocation7 + $0x25]]
    %v387 = vstv %s386
    %v388 = vmul.f32 %v387, %v373
    %v389 = vadd.f32 %v372, %v388
    %v390 = vld [vmem:[#allocation2 + $0x10] sm:$0xff]
    %s391 = sld [smem:[#allocation7 + $0x2]]
    %v392 = vstv %s391
    %v393 = vmul.f32 %v392, %v390
    %v394 = vadd.f32 %v377, %v393
    %s395 = sld [smem:[#allocation7 + $0xe]]
    %v396 = vstv %s395
    %v397 = vmul.f32 %v396, %v390
    %v398 = vadd.f32 %v381, %v397
    %s399 = sld [smem:[#allocation7 + $0x1a]]
    %v400 = vstv %s399
    %v401 = vmul.f32 %v400, %v390
    %v402 = vadd.f32 %v385, %v401
    %s403 = sld [smem:[#allocation7 + $0x26]]
    %v404 = vstv %s403
    %v405 = vmul.f32 %v404, %v390
    %v406 = vadd.f32 %v389, %v405
    %v407 = vld [vmem:[%s99 + $0xe] sm:$0xff]
    %s408 = sld [smem:[#allocation7 + $0x3]]
    %v409 = vstv %s408
    %v410 = vmul.f32 %v409, %v407
    %v411 = vadd.f32 %v394, %v410
    %s412 = sld [smem:[#allocation7 + $0xf]]
    %v413 = vstv %s412
    %v414 = vmul.f32 %v413, %v407
    %v415 = vadd.f32 %v398, %v414
    %s416 = sld [smem:[#allocation7 + $0x1b]]
    %v417 = vstv %s416
    %v418 = vmul.f32 %v417, %v407
    %v419 = vadd.f32 %v402, %v418
    %s420 = sld [smem:[#allocation7 + $0x27]]
    %v421 = vstv %s420
    %v422 = vmul.f32 %v421, %v407
    %v423 = vadd.f32 %v406, %v422
    %v424 = vld [vmem:[%s99 + $0xf] sm:$0xff]
    %s425 = sld [smem:[#allocation7 + $0x4]]
    %v426 = vstv %s425
    %v427 = vmul.f32 %v426, %v424
    %v428 = vadd.f32 %v411, %v427
    %s429 = sld [smem:[#allocation7 + $0x10]]
    %v430 = vstv %s429
    %v431 = vmul.f32 %v430, %v424
    %v432 = vadd.f32 %v415, %v431
    %s433 = sld [smem:[#allocation7 + $0x1c]]
    %v434 = vstv %s433
    %v435 = vmul.f32 %v434, %v424
    %v436 = vadd.f32 %v419, %v435
    %s437 = sld [smem:[#allocation7 + $0x28]]
    %v438 = vstv %s437
    %v439 = vmul.f32 %v438, %v424
    %v440 = vadd.f32 %v423, %v439
    %v441 = vld [vmem:[%s99 + $0x10] sm:$0xff]
    %s442 = sld [smem:[#allocation7 + $0x5]]
    %v443 = vstv %s442
    %v444 = vmul.f32 %v443, %v441
    %v445 = vadd.f32 %v428, %v444
    %s446 = sld [smem:[#allocation7 + $0x11]]
    %v447 = vstv %s446
    %v448 = vmul.f32 %v447, %v441
    %v449 = vadd.f32 %v432, %v448
    %s450 = sld [smem:[#allocation7 + $0x1d]]
    %v451 = vstv %s450
    %v452 = vmul.f32 %v451, %v441
    %v453 = vadd.f32 %v436, %v452
    %s454 = sld [smem:[#allocation7 + $0x29]]
    %v455 = vstv %s454
    %v456 = vmul.f32 %v455, %v441
    %v457 = vadd.f32 %v440, %v456
    %v458 = vld [vmem:[%s120 + $0xe] sm:$0xff]
    %s459 = sld [smem:[#allocation7 + $0x6]]
    %v460 = vstv %s459
    %v461 = vmul.f32 %v460, %v458
    %v462 = vadd.f32 %v445, %v461
    %s463 = sld [smem:[#allocation7 + $0x12]]
    %v464 = vstv %s463
    %v465 = vmul.f32 %v464, %v458
    %v466 = vadd.f32 %v449, %v465
    %s467 = sld [smem:[#allocation7 + $0x1e]]
    %v468 = vstv %s467
    %v469 = vmul.f32 %v468, %v458
    %v470 = vadd.f32 %v453, %v469
    %s471 = sld [smem:[#allocation7 + $0x2a]]
    %v472 = vstv %s471
    %v473 = vmul.f32 %v472, %v458
    %v474 = vadd.f32 %v457, %v473
    %v475 = vld [vmem:[%s120 + $0xf] sm:$0xff]
    %s476 = sld [smem:[#allocation7 + $0x7]]
    %v477 = vstv %s476
    %v478 = vmul.f32 %v477, %v475
    %v479 = vadd.f32 %v462, %v478
    %s480 = sld [smem:[#allocation7 + $0x13]]
    %v481 = vstv %s480
    %v482 = vmul.f32 %v481, %v475
    %v483 = vadd.f32 %v466, %v482
    %s484 = sld [smem:[#allocation7 + $0x1f]]
    %v485 = vstv %s484
    %v486 = vmul.f32 %v485, %v475
    %v487 = vadd.f32 %v470, %v486
    %s488 = sld [smem:[#allocation7 + $0x2b]]
    %v489 = vstv %s488
    %v490 = vmul.f32 %v489, %v475
    %v491 = vadd.f32 %v474, %v490
    %v492 = vld [vmem:[%s120 + $0x10] sm:$0xff]
    %s493 = sld [smem:[#allocation7 + $0x8]]
    %v494 = vstv %s493
    %v495 = vmul.f32 %v494, %v492
    %v496 = vadd.f32 %v479, %v495
    %s497 = sld [smem:[#allocation7 + $0x14]]
    %v498 = vstv %s497
    %v499 = vmul.f32 %v498, %v492
    %v500 = vadd.f32 %v483, %v499
    %s501 = sld [smem:[#allocation7 + $0x20]]
    %v502 = vstv %s501
    %v503 = vmul.f32 %v502, %v492
    %v504 = vadd.f32 %v487, %v503
    %s505 = sld [smem:[#allocation7 + $0x2c]]
    %v506 = vstv %s505
    %v507 = vmul.f32 %v506, %v492
    %v508 = vadd.f32 %v491, %v507
    %v509 = vld [vmem:[%s141 + $0xe] sm:$0xff]
    %s510 = sld [smem:[#allocation7 + $0x9]]
    %v511 = vstv %s510
    %v512 = vmul.f32 %v511, %v509
    %v513 = vadd.f32 %v496, %v512
    %s514 = sld [smem:[#allocation7 + $0x15]]
    %v515 = vstv %s514
    %v516 = vmul.f32 %v515, %v509
    %v517 = vadd.f32 %v500, %v516
    %s518 = sld [smem:[#allocation7 + $0x21]]
    %v519 = vstv %s518
    %v520 = vmul.f32 %v519, %v509
    %v521 = vadd.f32 %v504, %v520
    %s522 = sld [smem:[#allocation7 + $0x2d]]
    %v523 = vstv %s522
    %v524 = vmul.f32 %v523, %v509
    %v525 = vadd.f32 %v508, %v524
    %v526 = vld [vmem:[%s141 + $0xf] sm:$0xff]
    %s527 = sld [smem:[#allocation7 + $0xa]]
    %v528 = vstv %s527
    %v529 = vmul.f32 %v528, %v526
    %v530 = vadd.f32 %v513, %v529
    %s531 = sld [smem:[#allocation7 + $0x16]]
    %v532 = vstv %s531
    %v533 = vmul.f32 %v532, %v526
    %v534 = vadd.f32 %v517, %v533
    %s535 = sld [smem:[#allocation7 + $0x22]]
    %v536 = vstv %s535
    %v537 = vmul.f32 %v536, %v526
    %v538 = vadd.f32 %v521, %v537
    %s539 = sld [smem:[#allocation7 + $0x2e]]
    %v540 = vstv %s539
    %v541 = vmul.f32 %v540, %v526
    %v542 = vadd.f32 %v525, %v541
    %v543 = vld [vmem:[%s141 + $0x10] sm:$0xff]
    %s544 = sld [smem:[#allocation7 + $0xb]]
    %v545 = vstv %s544
    %v546 = vmul.f32 %v545, %v543
    %v547 = vadd.f32 %v530, %v546
    %s548 = sld [smem:[#allocation7 + $0x17]]
    %v549 = vstv %s548
    %v550 = vmul.f32 %v549, %v543
    %v551 = vadd.f32 %v534, %v550
    %s552 = sld [smem:[#allocation7 + $0x23]]
    %v553 = vstv %s552
    %v554 = vmul.f32 %v553, %v543
    %v555 = vadd.f32 %v538, %v554
    %s556 = sld [smem:[#allocation7 + $0x2f]]
    %v557 = vstv %s556
    %v558 = vmul.f32 %v557, %v543
    %v559 = vadd.f32 %v542, %v558
    %560 = vst [vmem:[%s4 + $0x8] sm:$0xff] %v547
    %561 = vst [vmem:[%s350 + $0x8] sm:$0xff] %v551
    %562 = vst [vmem:[%s352 + $0x8] sm:$0xff] %v555
    %563 = vst [vmem:[%s354 + $0x8] sm:$0xff] %v559
    %v564 = vld [vmem:[#allocation2 + $0x16] sm:$0x7]
    %s565 = sld [smem:[#allocation7]]
    %v566 = vstv %s565
    %v567 = vmul.f32 %v566, %v564
    %v568 = vadd.f32 %v567, 0.0
    %s569 = sld [smem:[#allocation7 + $0xc]]
    %v570 = vstv %s569
    %v571 = vmul.f32 %v570, %v564
    %v572 = vadd.f32 %v571, 0.0
    %s573 = sld [smem:[#allocation7 + $0x18]]
    %v574 = vstv %s573
    %v575 = vmul.f32 %v574, %v564
    %v576 = vadd.f32 %v575, 0.0
    %s577 = sld [smem:[#allocation7 + $0x24]]
    %v578 = vstv %s577
    %v579 = vmul.f32 %v578, %v564
    %v580 = vadd.f32 %v579, 0.0
    %v581 = vld [vmem:[#allocation2 + $0x17] sm:$0x7]
    %s582 = sld [smem:[#allocation7 + $0x1]]
    %v583 = vstv %s582
    %v584 = vmul.f32 %v583, %v581
    %v585 = vadd.f32 %v568, %v584
    %s586 = sld [smem:[#allocation7 + $0xd]]
    %v587 = vstv %s586
    %v588 = vmul.f32 %v587, %v581
    %v589 = vadd.f32 %v572, %v588
    %s590 = sld [smem:[#allocation7 + $0x19]]
    %v591 = vstv %s590
    %v592 = vmul.f32 %v591, %v581
    %v593 = vadd.f32 %v576, %v592
    %s594 = sld [smem:[#allocation7 + $0x25]]
    %v595 = vstv %s594
    %v596 = vmul.f32 %v595, %v581
    %v597 = vadd.f32 %v580, %v596
    %v598 = vld [vmem:[#allocation2 + $0x18] sm:$0x7]
    %s599 = sld [smem:[#allocation7 + $0x2]]
    %v600 = vstv %s599
    %v601 = vmul.f32 %v600, %v598
    %v602 = vadd.f32 %v585, %v601
    %s603 = sld [smem:[#allocation7 + $0xe]]
    %v604 = vstv %s603
    %v605 = vmul.f32 %v604, %v598
    %v606 = vadd.f32 %v589, %v605
    %s607 = sld [smem:[#allocation7 + $0x1a]]
    %v608 = vstv %s607
    %v609 = vmul.f32 %v608, %v598
    %v610 = vadd.f32 %v593, %v609
    %s611 = sld [smem:[#allocation7 + $0x26]]
    %v612 = vstv %s611
    %v613 = vmul.f32 %v612, %v598
    %v614 = vadd.f32 %v597, %v613
    %v615 = vld [vmem:[%s99 + $0x16] sm:$0x7]
    %s616 = sld [smem:[#allocation7 + $0x3]]
    %v617 = vstv %s616
    %v618 = vmul.f32 %v617, %v615
    %v619 = vadd.f32 %v602, %v618
    %s620 = sld [smem:[#allocation7 + $0xf]]
    %v621 = vstv %s620
    %v622 = vmul.f32 %v621, %v615
    %v623 = vadd.f32 %v606, %v622
    %s624 = sld [smem:[#allocation7 + $0x1b]]
    %v625 = vstv %s624
    %v626 = vmul.f32 %v625, %v615
    %v627 = vadd.f32 %v610, %v626
    %s628 = sld [smem:[#allocation7 + $0x27]]
    %v629 = vstv %s628
    %v630 = vmul.f32 %v629, %v615
    %v631 = vadd.f32 %v614, %v630
    %v632 = vld [vmem:[%s99 + $0x17] sm:$0x7]
    %s633 = sld [smem:[#allocation7 + $0x4]]
    %v634 = vstv %s633
    %v635 = vmul.f32 %v634, %v632
    %v636 = vadd.f32 %v619, %v635
    %s637 = sld [smem:[#allocation7 + $0x10]]
    %v638 = vstv %s637
    %v639 = vmul.f32 %v638, %v632
    %v640 = vadd.f32 %v623, %v639
    %s641 = sld [smem:[#allocation7 + $0x1c]]
    %v642 = vstv %s641
    %v643 = vmul.f32 %v642, %v632
    %v644 = vadd.f32 %v627, %v643
    %s645 = sld [smem:[#allocation7 + $0x28]]
    %v646 = vstv %s645
    %v647 = vmul.f32 %v646, %v632
    %v648 = vadd.f32 %v631, %v647
    %v649 = vld [vmem:[%s99 + $0x18] sm:$0x7]
    %s650 = sld [smem:[#allocation7 + $0x5]]
    %v651 = vstv %s650
    %v652 = vmul.f32 %v651, %v649
    %v653 = vadd.f32 %v636, %v652
    %s654 = sld [smem:[#allocation7 + $0x11]]
    %v655 = vstv %s654
    %v656 = vmul.f32 %v655, %v649
    %v657 = vadd.f32 %v640, %v656
    %s658 = sld [smem:[#allocation7 + $0x1d]]
    %v659 = vstv %s658
    %v660 = vmul.f32 %v659, %v649
    %v661 = vadd.f32 %v644, %v660
    %s662 = sld [smem:[#allocation7 + $0x29]]
    %v663 = vstv %s662
    %v664 = vmul.f32 %v663, %v649
    %v665 = vadd.f32 %v648, %v664
    %v666 = vld [vmem:[%s120 + $0x16] sm:$0x7]
    %s667 = sld [smem:[#allocation7 + $0x6]]
    %v668 = vstv %s667
    %v669 = vmul.f32 %v668, %v666
    %v670 = vadd.f32 %v653, %v669
    %s671 = sld [smem:[#allocation7 + $0x12]]
    %v672 = vstv %s671
    %v673 = vmul.f32 %v672, %v666
    %v674 = vadd.f32 %v657, %v673
    %s675 = sld [smem:[#allocation7 + $0x1e]]
    %v676 = vstv %s675
    %v677 = vmul.f32 %v676, %v666
    %v678 = vadd.f32 %v661, %v677
    %s679 = sld [smem:[#allocation7 + $0x2a]]
    %v680 = vstv %s679
    %v681 = vmul.f32 %v680, %v666
    %v682 = vadd.f32 %v665, %v681
    %v683 = vld [vmem:[%s120 + $0x17] sm:$0x7]
    %s684 = sld [smem:[#allocation7 + $0x7]]
    %v685 = vstv %s684
    %v686 = vmul.f32 %v685, %v683
    %v687 = vadd.f32 %v670, %v686
    %s688 = sld [smem:[#allocation7 + $0x13]]
    %v689 = vstv %s688
    %v690 = vmul.f32 %v689, %v683
    %v691 = vadd.f32 %v674, %v690
    %s692 = sld [smem:[#allocation7 + $0x1f]]
    %v693 = vstv %s692
    %v694 = vmul.f32 %v693, %v683
    %v695 = vadd.f32 %v678, %v694
    %s696 = sld [smem:[#allocation7 + $0x2b]]
    %v697 = vstv %s696
    %v698 = vmul.f32 %v697, %v683
    %v699 = vadd.f32 %v682, %v698
    %v700 = vld [vmem:[%s120 + $0x18] sm:$0x7]
    %s701 = sld [smem:[#allocation7 + $0x8]]
    %v702 = vstv %s701
    %v703 = vmul.f32 %v702, %v700
    %v704 = vadd.f32 %v687, %v703
    %s705 = sld [smem:[#allocation7 + $0x14]]
    %v706 = vstv %s705
    %v707 = vmul.f32 %v706, %v700
    %v708 = vadd.f32 %v691, %v707
    %s709 = sld [smem:[#allocation7 + $0x20]]
    %v710 = vstv %s709
    %v711 = vmul.f32 %v710, %v700
    %v712 = vadd.f32 %v695, %v711
    %s713 = sld [smem:[#allocation7 + $0x2c]]
    %v714 = vstv %s713
    %v715 = vmul.f32 %v714, %v700
    %v716 = vadd.f32 %v699, %v715
    %v717 = vld [vmem:[%s141 + $0x16] sm:$0x7]
    %s718 = sld [smem:[#allocation7 + $0x9]]
    %v719 = vstv %s718
    %v720 = vmul.f32 %v719, %v717
    %v721 = vadd.f32 %v704, %v720
    %s722 = sld [smem:[#allocation7 + $0x15]]
    %v723 = vstv %s722
    %v724 = vmul.f32 %v723, %v717
    %v725 = vadd.f32 %v708, %v724
    %s726 = sld [smem:[#allocation7 + $0x21]]
    %v727 = vstv %s726
    %v728 = vmul.f32 %v727, %v717
    %v729 = vadd.f32 %v712, %v728
    %s730 = sld [smem:[#allocation7 + $0x2d]]
    %v731 = vstv %s730
    %v732 = vmul.f32 %v731, %v717
    %v733 = vadd.f32 %v716, %v732
    %v734 = vld [vmem:[%s141 + $0x17] sm:$0x7]
    %s735 = sld [smem:[#allocation7 + $0xa]]
    %v736 = vstv %s735
    %v737 = vmul.f32 %v736, %v734
    %v738 = vadd.f32 %v721, %v737
    %s739 = sld [smem:[#allocation7 + $0x16]]
    %v740 = vstv %s739
    %v741 = vmul.f32 %v740, %v734
    %v742 = vadd.f32 %v725, %v741
    %s743 = sld [smem:[#allocation7 + $0x22]]
    %v744 = vstv %s743
    %v745 = vmul.f32 %v744, %v734
    %v746 = vadd.f32 %v729, %v745
    %s747 = sld [smem:[#allocation7 + $0x2e]]
    %v748 = vstv %s747
    %v749 = vmul.f32 %v748, %v734
    %v750 = vadd.f32 %v733, %v749
    %v751 = vld [vmem:[%s141 + $0x18] sm:$0x7]
    %s752 = sld [smem:[#allocation7 + $0xb]]
    %v753 = vstv %s752
    %v754 = vmul.f32 %v753, %v751
    %v755 = vadd.f32 %v738, %v754
    %s756 = sld [smem:[#allocation7 + $0x17]]
    %v757 = vstv %s756
    %v758 = vmul.f32 %v757, %v751
    %v759 = vadd.f32 %v742, %v758
    %s760 = sld [smem:[#allocation7 + $0x23]]
    %v761 = vstv %s760
    %v762 = vmul.f32 %v761, %v751
    %v763 = vadd.f32 %v746, %v762
    %s764 = sld [smem:[#allocation7 + $0x2f]]
    %v765 = vstv %s764
    %v766 = vmul.f32 %v765, %v751
    %v767 = vadd.f32 %v750, %v766
    %768 = vst [vmem:[%s4 + $0x10] sm:$0x7] %v755
    %769 = vst [vmem:[%s350 + $0x10] sm:$0x7] %v759
    %770 = vst [vmem:[%s352 + $0x10] sm:$0x7] %v763
    %771 = vst [vmem:[%s354 + $0x10] sm:$0x7] %v767
    %v772 = vlaneseq
    %v773 = vand.u32 %v772, 127
    %s774 = smul.u32 0, 128
    %v775 = vstv %s774
    %v776 = vadd.s32 %v773, %v775
    %vm777 = vcmp.lt.s32.totalorder %v776, 8
    %v778 = vsel %vm777, 1, 0
    %v779 = vcvt.s32.f32 %v778
    %v780 = vld [vmem:[%s4] sm:$0xff]
    %v781 = vld [vmem:[%s4 + $0x8] sm:$0xff]
    %v782 = vld [vmem:[%s4 + $0x10] sm:$0x7]
    %v783 = vmul.f32 %v780, %v779
    %v784 = vmul.f32 %v781, %v779
    %v785 = vmul.f32 %v782, %v779
    %v786 = vadd.f32 %v783, %v784
    %vm787 = vcmask 1042432
    %v788 = vsel %vm787, %v785, 0.0
    %v789 = vadd.f32 %v786, %v788
    %v790 = vrot.slane %v789, 4
    %v791 = vadd.f32 %v789, %v790
    %v792 = vrot.slane %v791, 2
    %v793 = vadd.f32 %v791, %v792
    %v794 = vrot.slane %v793, 1
    %v795 = vadd.f32 %v793, %v794
    %v796 = vmul.f32 %v783, %v783
    %v797 = vmul.f32 %v784, %v784
    %v798 = vmul.f32 %v785, %v785
    %v799 = vadd.f32 %v796, %v797
    %v800 = vsel %vm787, %v798, 0.0
    %v801 = vadd.f32 %v799, %v800
    %v802 = vrot.slane %v801, 4
    %v803 = vadd.f32 %v801, %v802
    %v804 = vrot.slane %v803, 2
    %v805 = vadd.f32 %v803, %v804
    %v806 = vrot.slane %v805, 1
    %v807 = vadd.f32 %v805, %v806
    %v808 = vld [vmem:[%s350] sm:$0xff]
    %v809 = vld [vmem:[%s350 + $0x8] sm:$0xff]
    %v810 = vld [vmem:[%s350 + $0x10] sm:$0x7]
    %v811 = vmul.f32 %v808, %v779
    %v812 = vmul.f32 %v809, %v779
    %v813 = vmul.f32 %v810, %v779
    %v814 = vadd.f32 %v811, %v812
    %v815 = vsel %vm787, %v813, 0.0
    %v816 = vadd.f32 %v814, %v815
    %v817 = vrot.slane %v816, 4
    %v818 = vadd.f32 %v816, %v817
    %v819 = vrot.slane %v818, 2
    %v820 = vadd.f32 %v818, %v819
    %v821 = vrot.slane %v820, 1
    %v822 = vadd.f32 %v820, %v821
    %v823 = vmul.f32 %v811, %v811
    %v824 = vmul.f32 %v812, %v812
    %v825 = vmul.f32 %v813, %v813
    %v826 = vadd.f32 %v823, %v824
    %v827 = vsel %vm787, %v825, 0.0
    %v828 = vadd.f32 %v826, %v827
    %v829 = vrot.slane %v828, 4
    %v830 = vadd.f32 %v828, %v829
    %v831 = vrot.slane %v830, 2
    %v832 = vadd.f32 %v830, %v831
    %v833 = vrot.slane %v832, 1
    %v834 = vadd.f32 %v832, %v833
    %v835 = vld [vmem:[%s352] sm:$0xff]
    %v836 = vld [vmem:[%s352 + $0x8] sm:$0xff]
    %v837 = vld [vmem:[%s352 + $0x10] sm:$0x7]
    %v838 = vmul.f32 %v835, %v779
    %v839 = vmul.f32 %v836, %v779
    %v840 = vmul.f32 %v837, %v779
    %v841 = vadd.f32 %v838, %v839
    %v842 = vsel %vm787, %v840, 0.0
    %v843 = vadd.f32 %v841, %v842
    %v844 = vrot.slane %v843, 4
    %v845 = vadd.f32 %v843, %v844
    %v846 = vrot.slane %v845, 2
    %v847 = vadd.f32 %v845, %v846
    %v848 = vrot.slane %v847, 1
    %v849 = vadd.f32 %v847, %v848
    %v850 = vmul.f32 %v838, %v838
    %v851 = vmul.f32 %v839, %v839
    %v852 = vmul.f32 %v840, %v840
    %v853 = vadd.f32 %v850, %v851
    %v854 = vsel %vm787, %v852, 0.0
    %v855 = vadd.f32 %v853, %v854
    %v856 = vrot.slane %v855, 4
    %v857 = vadd.f32 %v855, %v856
    %v858 = vrot.slane %v857, 2
    %v859 = vadd.f32 %v857, %v858
    %v860 = vrot.slane %v859, 1
    %v861 = vadd.f32 %v859, %v860
    %v862 = vld [vmem:[%s354] sm:$0xff]
    %v863 = vld [vmem:[%s354 + $0x8] sm:$0xff]
    %v864 = vld [vmem:[%s354 + $0x10] sm:$0x7]
    %v865 = vmul.f32 %v862, %v779
    %v866 = vmul.f32 %v863, %v779
    %v867 = vmul.f32 %v864, %v779
    %v868 = vadd.f32 %v865, %v866
    %v869 = vsel %vm787, %v867, 0.0
    %v870 = vadd.f32 %v868, %v869
    %v871 = vrot.slane %v870, 4
    %v872 = vadd.f32 %v870, %v871
    %v873 = vrot.slane %v872, 2
    %v874 = vadd.f32 %v872, %v873
    %v875 = vrot.slane %v874, 1
    %v876 = vadd.f32 %v874, %v875
    %v877 = vmul.f32 %v865, %v865
    %v878 = vmul.f32 %v866, %v866
    %v879 = vmul.f32 %v867, %v867
    %v880 = vadd.f32 %v877, %v878
    %v881 = vsel %vm787, %v879, 0.0
    %v882 = vadd.f32 %v880, %v881
    %v883 = vrot.slane %v882, 4
    %v884 = vadd.f32 %v882, %v883
    %v885 = vrot.slane %v884, 2
    %v886 = vadd.f32 %v884, %v885
    %v887 = vrot.slane %v886, 1
    %v888 = vadd.f32 %v886, %v887
    %vm889 = vcmask 1040384
    %v890 = vsel %vm889, %v795, %v822
    %vm891 = vcmask 1041408
    %v892 = vsel %vm891, %v890, %v849
    %v893 = vsel %vm787, %v892, %v876
    %vm894 = vcmask 1043456
    %v895 = vsel %vm894, %v893, %v807
    %vm896 = vcmask 1044480
    %v897 = vsel %vm896, %v895, %v834
    %vm898 = vcmask 1045504
    %v899 = vsel %vm898, %v897, %v861
    %vm900 = vcmask 1046528
    %v901 = vsel %vm900, %v899, %v888
    %902 = vst [vmem:[%s5] sm:$0xff] %v901
    // Predicated region
    $region30: #{decoder_block_forward.3} parent=1 // pred_check
      _
    $region31: #{decoder_block_forward.3} parent=1 // pred_check_branch
      %904 = sbr.rel (0) target = $region33
    $region32: #{decoder_block_forward.3} parent=1 // pred_region
      _
    $region33: #{decoder_block_forward.3} parent=1 // pred_fallthru
      _
    // Predicated region
    $region34: #{decoder_block_forward.3} parent=1 // pred_check
      _
    $region35: #{decoder_block_forward.3} parent=1 // pred_check_branch
      %906 = sbr.rel (0) target = $region37
    $region36: #{decoder_block_forward.3} parent=1 // pred_region
      _
    $region37: #{decoder_block_forward.3} parent=1 // pred_fallthru
      _
    // Predicated region
    $region38: #{decoder_block_forward.3} parent=1 // pred_check
      _
    $region39: #{decoder_block_forward.3} parent=1 // pred_check_branch
      %908 = sbr.rel (0) target = $region41
    $region40: #{decoder_block_forward.3} parent=1 // pred_region
      _
    $region41: #{decoder_block_forward.3} parent=1 // pred_fallthru
      _
    // Predicated region
    $region42: #{decoder_block_forward.3} parent=1 // pred_check
      _
    $region43: #{decoder_block_forward.3} parent=1 // pred_check_branch
      %910 = sbr.rel (0) target = $region45
    $region44: #{decoder_block_forward.3} parent=1 // pred_region
      _
    $region45: #{decoder_block_forward.3} parent=1 // pred_fallthru
      _
    %911 = vsyncpa [#allocation4], 1
    %912 = vsyncpa [#allocation6], 1

// kernel: decoder_block_forward.2
$region0: #{decoder_block_forward.2}
  #allocation0 [shape = 'u32[]', space=smem, size = 0x4, offset = 0x4, fixed_abs, tag = 'smem constant byte address 0x4 - core index']
  #allocation1 [shape = 'u32[144,128]{1,0:T(1,128)}', space=vmem, size = 0x12000, scoped, tag = 'internal scratch']
  #allocation2 [shape = 'f32[8,25,128]{2,1,0:T(8,128)}', space=vmem, size = 0x20000, scoped, tag = 'scratch operand']
  %s0 = inlined_call_operand.vmem [shape: f32[8,5,128], index: 0, kind: input, shape index: {}]
  %s1 = inlined_call_operand.vmem [shape: f32[4,15,128], index: 1, kind: input, shape index: {}]
  %s2 = inlined_call_operand.vmem [shape: f32[96], index: 2, kind: input, shape index: {}]
  %s3 = inlined_call_operand.vmem [shape: f32[4], index: 3, kind: input, shape index: {}]
  %s4 = inlined_call_operand.vmem [shape: f32[96], index: 4, kind: input, shape index: {}]
  %s5 = inlined_call_operand.vmem [shape: f32[4,17,128], index: 5, kind: output, shape index: {0}]
  %s6 = inlined_call_operand.vmem [shape: f32[8,128], index: 6, kind: output, shape index: {1}]
  %7 = xla_tuple %s5, %s6
  %s8 = sld [smem:[#allocation0]]
  $region50: #{decoder_block_forward.2} parent=0
    _
  %s10 = ssub.s32 1, %s8
  %s11 = scalar_select 0, %s10, %s8
  $region1: #{decoder_block_forward.2} parent=0
    #allocation3 [shape = 'u8[512]{0}', space=smem, size = 0x200, scoped, tag = 'input window, operand 2, single buffered']
    #allocation4 [shape = 's32[1]{0}', space=sflag, size = 0x4, scoped, tag = 'scoped memory for decoder_block_forward.2']
    #allocation5 [shape = 'u8[512]{0}', space=smem, size = 0x200, scoped, tag = 'input window, operand 3, single buffered']
    #allocation6 [shape = 's32[1]{0}', space=sflag, size = 0x4, scoped, tag = 'scoped memory for decoder_block_forward.2']
    #allocation7 [shape = 'u8[512]{0}', space=smem, size = 0x200, scoped, tag = 'input window, operand 4, single buffered']
    %12 = vsyncpa [#allocation4], 0
    %13 = vsyncpa [#allocation6], 0
    // Predicated region
    $region2: #{decoder_block_forward.2} parent=1 // pred_check
      _
    $region3: #{decoder_block_forward.2} parent=1 // pred_check_branch
      %15 = sbr.rel (0) target = $region5
    $region4: #{decoder_block_forward.2} parent=1 // pred_region
      _
    $region5: #{decoder_block_forward.2} parent=1 // pred_fallthru
      _
    // Predicated region
    $region6: #{decoder_block_forward.2} parent=1 // pred_check
      _
    $region7: #{decoder_block_forward.2} parent=1 // pred_check_branch
      %17 = sbr.rel (0) target = $region9
    $region8: #{decoder_block_forward.2} parent=1 // pred_region
      _
    $region9: #{decoder_block_forward.2} parent=1 // pred_fallthru
      _
    // Predicated region
    $region10: #{decoder_block_forward.2} parent=1 // pred_check
      _
    $region11: #{decoder_block_forward.2} parent=1 // pred_check_branch
      %19 = sbr.rel (0) target = $region13
    $region12: #{decoder_block_forward.2} parent=1 // pred_region
      %s21 = ssub.s32 16, 16
      %22 = vsyncadd [#allocation4], %s21
      %s24 = sshll.u32 %s2, 4
      %s25 = int_to_ptr.vmem [resolvable:$true] %s24
      %27 = dma.vmem_to_smem %s25, 16, [#allocation3], [#allocation4]
    $region13: #{decoder_block_forward.2} parent=1 // pred_fallthru
      _
    // Predicated region
    $region14: #{decoder_block_forward.2} parent=1 // pred_check
      _
    $region15: #{decoder_block_forward.2} parent=1 // pred_check_branch
      %29 = sbr.rel (0) target = $region17
    $region16: #{decoder_block_forward.2} parent=1 // pred_region
      %s31 = ssub.s32 16, 16
      %32 = vsyncadd [#allocation6], %s31
      %s34 = sshll.u32 %s3, 4
      %s35 = int_to_ptr.vmem [resolvable:$true] %s34
      %37 = dma.vmem_to_smem %s35, 16, [#allocation5], [#allocation6]
    $region17: #{decoder_block_forward.2} parent=1 // pred_fallthru
      _
    // Predicated region
    $region18: #{decoder_block_forward.2} parent=1 // pred_check
      _
    $region19: #{decoder_block_forward.2} parent=1 // pred_check_branch
      %39 = sbr.rel (0) target = $region21
    $region20: #{decoder_block_forward.2} parent=1 // pred_region
      %s41 = ssub.s32 16, 16
      %42 = vsyncadd [#allocation6], %s41
      %s44 = sshll.u32 %s4, 4
      %s45 = int_to_ptr.vmem [resolvable:$true] %s44
      %47 = dma.vmem_to_smem %s45, 16, [#allocation7], [#allocation6]
    $region21: #{decoder_block_forward.2} parent=1 // pred_fallthru
      _
    // Predicated region
    $region22: #{decoder_block_forward.2} parent=1 // pred_check
      _
    $region23: #{decoder_block_forward.2} parent=1 // pred_check_branch
      %49 = sbr.rel (0) target = $region25
    $region24: #{decoder_block_forward.2} parent=1 // pred_region
      %50 = dma.done [#allocation4], 16
    $region25: #{decoder_block_forward.2} parent=1 // pred_fallthru
      _
    // Predicated region
    $region26: #{decoder_block_forward.2} parent=1 // pred_check
      _
    $region27: #{decoder_block_forward.2} parent=1 // pred_check_branch
      %52 = sbr.rel (0) target = $region29
    $region28: #{decoder_block_forward.2} parent=1 // pred_region
      %53 = dma.done [#allocation6], 16
    $region29: #{decoder_block_forward.2} parent=1 // pred_fallthru
      _
    // Predicated region
    $region30: #{decoder_block_forward.2} parent=1 // pred_check
      _
    $region31: #{decoder_block_forward.2} parent=1 // pred_check_branch
      %55 = sbr.rel (0) target = $region33
    $region32: #{decoder_block_forward.2} parent=1 // pred_region
      %56 = dma.done [#allocation6], 16
    $region33: #{decoder_block_forward.2} parent=1 // pred_fallthru
      _
    %57 = sfence
    %58 = vst [vmem:[#allocation2 + $0x6] sm:$0x3] 0.0
    %59 = vst [vmem:[#allocation2 + $0x26] sm:$0x3] 0.0
    %60 = vst [vmem:[#allocation2 + $0x46] sm:$0x3] 0.0
    %61 = vst [vmem:[#allocation2 + $0x66] sm:$0x3] 0.0
    %62 = vst [vmem:[#allocation2 + $0x86] sm:$0x3] 0.0
    %63 = vst [vmem:[#allocation2 + $0xa6] sm:$0x3] 0.0
    %64 = vst [vmem:[#allocation2 + $0xc6] sm:$0x3] 0.0
    %65 = vst [vmem:[#allocation2 + $0xe6] sm:$0x3] 0.0
    %66 = vst [vmem:[#allocation2 + $0x17] sm:$0x3] 0.0
    %67 = vst [vmem:[#allocation2 + $0x37] sm:$0x3] 0.0
    %68 = vst [vmem:[#allocation2 + $0x57] sm:$0x3] 0.0
    %69 = vst [vmem:[#allocation2 + $0x77] sm:$0x3] 0.0
    %70 = vst [vmem:[#allocation2 + $0x97] sm:$0x3] 0.0
    %71 = vst [vmem:[#allocation2 + $0xb7] sm:$0x3] 0.0
    %72 = vst [vmem:[#allocation2 + $0xd7] sm:$0x3] 0.0
    %73 = vst [vmem:[#allocation2 + $0xf7] sm:$0x3] 0.0
    %v74 = vld [vmem:[%s1] sm:$0xff]
    %v75 = vld [vmem:[%s1 + $0x8] sm:$0x7f]
    %v76 = vld [vmem:[%s1 + $0x10] sm:$0xff]
    %v77 = vld [vmem:[%s1 + $0x18] sm:$0x7f]
    %v78 = vld [vmem:[%s1 + $0x20] sm:$0xff]
    %v79 = vld [vmem:[%s1 + $0x28] sm:$0x7f]
    %v80 = vld [vmem:[%s1 + $0x30] sm:$0xff]
    %v81 = vld [vmem:[%s1 + $0x38] sm:$0x7f]
    %s82 = scalar_lea.vmem [#allocation2], 128
    %83 = vst [vmem:[%s82 + $0x8] sm:$0xff] %v74
    %84 = vst [vmem:[%s82 + $0x10] sm:$0x7f] %v75
    %85 = vst [vmem:[%s82 + $0x28] sm:$0xff] %v76
    %86 = vst [vmem:[%s82 + $0x30] sm:$0x7f] %v77
    %87 = vst [vmem:[%s82 + $0x48] sm:$0xff] %v78
    %88 = vst [vmem:[%s82 + $0x50] sm:$0x7f] %v79
    %89 = vst [vmem:[%s82 + $0x68] sm:$0xff] %v80
    %90 = vst [vmem:[%s82 + $0x70] sm:$0x7f] %v81
    %v91 = vld [vmem:[%s0] sm:$0x1f]
    %s92 = scalar_lea.vmem %s0, 8
    %v93 = vld [vmem:[%s92] sm:$0x1f]
    %s94 = scalar_lea.vmem %s0, 16
    %v95 = vld [vmem:[%s94] sm:$0x1f]
    %s96 = scalar_lea.vmem %s0, 24
    %v97 = vld [vmem:[%s96] sm:$0x1f]
    %s98 = scalar_lea.vmem %s0, 32
    %v99 = vld [vmem:[%s98] sm:$0x1f]
    %s100 = scalar_lea.vmem %s0, 40
    %v101 = vld [vmem:[%s100] sm:$0x1f]
    %s102 = scalar_lea.vmem %s0, 48
    %v103 = vld [vmem:[%s102] sm:$0x1f]
    %s104 = scalar_lea.vmem %s0, 56
    %v105 = vld [vmem:[%s104] sm:$0x1f]
    %s106 = sld [smem:[#allocation5]]
    %v107 = vstv %s106
    %s108 = sld [smem:[#allocation3]]
    %v109 = vstv %s108
    %v110 = vmul.f32 %v109, %v91
    %v111 = vadd.f32 %v107, %v110
    %s112 = sld [smem:[#allocation3 + $0xc]]
    %v113 = vstv %s112
    %v114 = vmul.f32 %v113, %v93
    %v115 = vadd.f32 %v111, %v114
    %s116 = sld [smem:[#allocation3 + $0x18]]
    %v117 = vstv %s116
    %v118 = vmul.f32 %v117, %v95
    %v119 = vadd.f32 %v115, %v118
    %s120 = sld [smem:[#allocation3 + $0x24]]
    %v121 = vstv %s120
    %v122 = vmul.f32 %v121, %v97
    %v123 = vadd.f32 %v119, %v122
    %s124 = sld [smem:[#allocation3 + $0x30]]
    %v125 = vstv %s124
    %v126 = vmul.f32 %v125, %v99
    %v127 = vadd.f32 %v123, %v126
    %s128 = sld [smem:[#allocation3 + $0x3c]]
    %v129 = vstv %s128
    %v130 = vmul.f32 %v129, %v101
    %v131 = vadd.f32 %v127, %v130
    %s132 = sld [smem:[#allocation3 + $0x48]]
    %v133 = vstv %s132
    %v134 = vmul.f32 %v133, %v103
    %v135 = vadd.f32 %v131, %v134
    %s136 = sld [smem:[#allocation3 + $0x54]]
    %v137 = vstv %s136
    %v138 = vmul.f32 %v137, %v105
    %v139 = vadd.f32 %v135, %v138
    %140 = vst [vmem:[#allocation2 + $0x8] sm:$0x1] %v139
    %141 = vst [vmem:[#allocation2 + $0xa] sm:$0x2] %v139
    %142 = vst [vmem:[#allocation2 + $0xc] sm:$0x4] %v139
    %143 = vst [vmem:[#allocation2 + $0xe] sm:$0x8] %v139
    %144 = vst [vmem:[#allocation2 + $0x10] sm:$0x10] %v139
    %s145 = sld [smem:[#allocation5]]
    %v146 = vstv %s145
    %s147 = sld [smem:[#allocation3 + $0x1]]
    %v148 = vstv %s147
    %v149 = vmul.f32 %v148, %v91
    %v150 = vadd.f32 %v146, %v149
    %s151 = sld [smem:[#allocation3 + $0xd]]
    %v152 = vstv %s151
    %v153 = vmul.f32 %v152, %v93
    %v154 = vadd.f32 %v150, %v153
    %s155 = sld [smem:[#allocation3 + $0x19]]
    %v156 = vstv %s155
    %v157 = vmul.f32 %v156, %v95
    %v158 = vadd.f32 %v154, %v157
    %s159 = sld [smem:[#allocation3 + $0x25]]
    %v160 = vstv %s159
    %v161 = vmul.f32 %v160, %v97
    %v162 = vadd.f32 %v158, %v161
    %s163 = sld [smem:[#allocation3 + $0x31]]
    %v164 = vstv %s163
    %v165 = vmul.f32 %v164, %v99
    %v166 = vadd.f32 %v162, %v165
    %s167 = sld [smem:[#allocation3 + $0x3d]]
    %v168 = vstv %s167
    %v169 = vmul.f32 %v168, %v101
    %v170 = vadd.f32 %v166, %v169
    %s171 = sld [smem:[#allocation3 + $0x49]]
    %v172 = vstv %s171
    %v173 = vmul.f32 %v172, %v103
    %v174 = vadd.f32 %v170, %v173
    %s175 = sld [smem:[#allocation3 + $0x55]]
    %v176 = vstv %s175
    %v177 = vmul.f32 %v176, %v105
    %v178 = vadd.f32 %v174, %v177
    %179 = vst [vmem:[#allocation2 + $0x9] sm:$0x1] %v178
    %180 = vst [vmem:[#allocation2 + $0xb] sm:$0x2] %v178
    %181 = vst [vmem:[#allocation2 + $0xd] sm:$0x4] %v178
    %182 = vst [vmem:[#allocation2 + $0xf] sm:$0x8] %v178
    %183 = vst [vmem:[#allocation2 + $0x11] sm:$0x10] %v178
    %s184 = sld [smem:[#allocation5]]
    %v185 = vstv %s184
    %s186 = sld [smem:[#allocation3 + $0x2]]
    %v187 = vstv %s186
    %v188 = vmul.f32 %v187, %v91
    %v189 = vadd.f32 %v185, %v188
    %s190 = sld [smem:[#allocation3 + $0xe]]
    %v191 = vstv %s190
    %v192 = vmul.f32 %v191, %v93
    %v193 = vadd.f32 %v189, %v192
    %s194 = sld [smem:[#allocation3 + $0x1a]]
    %v195 = vstv %s194
    %v196 = vmul.f32 %v195, %v95
    %v197 = vadd.f32 %v193, %v196
    %s198 = sld [smem:[#allocation3 + $0x26]]
    %v199 = vstv %s198
    %v200 = vmul.f32 %v199, %v97
    %v201 = vadd.f32 %v197, %v200
    %s202 = sld [smem:[#allocation3 + $0x32]]
    %v203 = vstv %s202
    %v204 = vmul.f32 %v203, %v99
    %v205 = vadd.f32 %v201, %v204
    %s206 = sld [smem:[#allocation3 + $0x3e]]
    %v207 = vstv %s206
    %v208 = vmul.f32 %v207, %v101
    %v209 = vadd.f32 %v205, %v208
    %s210 = sld [smem:[#allocation3 + $0x4a]]
    %v211 = vstv %s210
    %v212 = vmul.f32 %v211, %v103
    %v213 = vadd.f32 %v209, %v212
    %s214 = sld [smem:[#allocation3 + $0x56]]
    %v215 = vstv %s214
    %v216 = vmul.f32 %v215, %v105
    %v217 = vadd.f32 %v213, %v216
    %218 = vst [vmem:[#allocation2 + $0xa] sm:$0x1] %v217
    %219 = vst [vmem:[#allocation2 + $0xc] sm:$0x2] %v217
    %220 = vst [vmem:[#allocation2 + $0xe] sm:$0x4] %v217
    %221 = vst [vmem:[#allocation2 + $0x10] sm:$0x8] %v217
    %222 = vst [vmem:[#allocation2 + $0x12] sm:$0x10] %v217
    %s223 = sld [smem:[#allocation5 + $0x1]]
    %v224 = vstv %s223
    %s225 = sld [smem:[#allocation3 + $0x3]]
    %v226 = vstv %s225
    %v227 = vmul.f32 %v226, %v91
    %v228 = vadd.f32 %v224, %v227
    %s229 = sld [smem:[#allocation3 + $0xf]]
    %v230 = vstv %s229
    %v231 = vmul.f32 %v230, %v93
    %v232 = vadd.f32 %v228, %v231
    %s233 = sld [smem:[#allocation3 + $0x1b]]
    %v234 = vstv %s233
    %v235 = vmul.f32 %v234, %v95
    %v236 = vadd.f32 %v232, %v235
    %s237 = sld [smem:[#allocation3 + $0x27]]
    %v238 = vstv %s237
    %v239 = vmul.f32 %v238, %v97
    %v240 = vadd.f32 %v236, %v239
    %s241 = sld [smem:[#allocation3 + $0x33]]
    %v242 = vstv %s241
    %v243 = vmul.f32 %v242, %v99
    %v244 = vadd.f32 %v240, %v243
    %s245 = sld [smem:[#allocation3 + $0x3f]]
    %v246 = vstv %s245
    %v247 = vmul.f32 %v246, %v101
    %v248 = vadd.f32 %v244, %v247
    %s249 = sld [smem:[#allocation3 + $0x4b]]
    %v250 = vstv %s249
    %v251 = vmul.f32 %v250, %v103
    %v252 = vadd.f32 %v248, %v251
    %s253 = sld [smem:[#allocation3 + $0x57]]
    %v254 = vstv %s253
    %v255 = vmul.f32 %v254, %v105
    %v256 = vadd.f32 %v252, %v255
    %s257 = scalar_lea.vmem [#allocation2], 32
    %258 = vst [vmem:[%s257 + $0x8] sm:$0x1] %v256
    %259 = vst [vmem:[%s257 + $0xa] sm:$0x2] %v256
    %260 = vst [vmem:[%s257 + $0xc] sm:$0x4] %v256
    %261 = vst [vmem:[%s257 + $0xe] sm:$0x8] %v256
    %262 = vst [vmem:[%s257 + $0x10] sm:$0x10] %v256
    %s263 = sld [smem:[#allocation5 + $0x1]]
    %v264 = vstv %s263
    %s265 = sld [smem:[#allocation3 + $0x4]]
    %v266 = vstv %s265
    %v267 = vmul.f32 %v266, %v91
    %v268 = vadd.f32 %v264, %v267
    %s269 = sld [smem:[#allocation3 + $0x10]]
    %v270 = vstv %s269
    %v271 = vmul.f32 %v270, %v93
    %v272 = vadd.f32 %v268, %v271
    %s273 = sld [smem:[#allocation3 + $0x1c]]
    %v274 = vstv %s273
    %v275 = vmul.f32 %v274, %v95
    %v276 = vadd.f32 %v272, %v275
    %s277 = sld [smem:[#allocation3 + $0x28]]
    %v278 = vstv %s277
    %v279 = vmul.f32 %v278, %v97
    %v280 = vadd.f32 %v276, %v279
    %s281 = sld [smem:[#allocation3 + $0x34]]
    %v282 = vstv %s281
    %v283 = vmul.f32 %v282, %v99
    %v284 = vadd.f32 %v280, %v283
    %s285 = sld [smem:[#allocation3 + $0x40]]
    %v286 = vstv %s285
    %v287 = vmul.f32 %v286, %v101
    %v288 = vadd.f32 %v284, %v287
    %s289 = sld [smem:[#allocation3 + $0x4c]]
    %v290 = vstv %s289
    %v291 = vmul.f32 %v290, %v103
    %v292 = vadd.f32 %v288, %v291
    %s293 = sld [smem:[#allocation3 + $0x58]]
    %v294 = vstv %s293
    %v295 = vmul.f32 %v294, %v105
    %v296 = vadd.f32 %v292, %v295
    %297 = vst [vmem:[%s257 + $0x9] sm:$0x1] %v296
    %298 = vst [vmem:[%s257 + $0xb] sm:$0x2] %v296
    %299 = vst [vmem:[%s257 + $0xd] sm:$0x4] %v296
    %300 = vst [vmem:[%s257 + $0xf] sm:$0x8] %v296
    %301 = vst [vmem:[%s257 + $0x11] sm:$0x10] %v296
    %s302 = sld [smem:[#allocation5 + $0x1]]
    %v303 = vstv %s302
    %s304 = sld [smem:[#allocation3 + $0x5]]
    %v305 = vstv %s304
    %v306 = vmul.f32 %v305, %v91
    %v307 = vadd.f32 %v303, %v306
    %s308 = sld [smem:[#allocation3 + $0x11]]
    %v309 = vstv %s308
    %v310 = vmul.f32 %v309, %v93
    %v311 = vadd.f32 %v307, %v310
    %s312 = sld [smem:[#allocation3 + $0x1d]]
    %v313 = vstv %s312
    %v314 = vmul.f32 %v313, %v95
    %v315 = vadd.f32 %v311, %v314
    %s316 = sld [smem:[#allocation3 + $0x29]]
    %v317 = vstv %s316
    %v318 = vmul.f32 %v317, %v97
    %v319 = vadd.f32 %v315, %v318
    %s320 = sld [smem:[#allocation3 + $0x35]]
    %v321 = vstv %s320
    %v322 = vmul.f32 %v321, %v99
    %v323 = vadd.f32 %v319, %v322
    %s324 = sld [smem:[#allocation3 + $0x41]]
    %v325 = vstv %s324
    %v326 = vmul.f32 %v325, %v101
    %v327 = vadd.f32 %v323, %v326
    %s328 = sld [smem:[#allocation3 + $0x4d]]
    %v329 = vstv %s328
    %v330 = vmul.f32 %v329, %v103
    %v331 = vadd.f32 %v327, %v330
    %s332 = sld [smem:[#allocation3 + $0x59]]
    %v333 = vstv %s332
    %v334 = vmul.f32 %v333, %v105
    %v335 = vadd.f32 %v331, %v334
    %336 = vst [vmem:[%s257 + $0xa] sm:$0x1] %v335
    %337 = vst [vmem:[%s257 + $0xc] sm:$0x2] %v335
    %338 = vst [vmem:[%s257 + $0xe] sm:$0x4] %v335
    %339 = vst [vmem:[%s257 + $0x10] sm:$0x8] %v335
    %340 = vst [vmem:[%s257 + $0x12] sm:$0x10] %v335
    %s341 = sld [smem:[#allocation5 + $0x2]]
    %v342 = vstv %s341
    %s343 = sld [smem:[#allocation3 + $0x6]]
    %v344 = vstv %s343
    %v345 = vmul.f32 %v344, %v91
    %v346 = vadd.f32 %v342, %v345
    %s347 = sld [smem:[#allocation3 + $0x12]]
    %v348 = vstv %s347
    %v349 = vmul.f32 %v348, %v93
    %v350 = vadd.f32 %v346, %v349
    %s351 = sld [smem:[#allocation3 + $0x1e]]
    %v352 = vstv %s351
    %v353 = vmul.f32 %v352, %v95
    %v354 = vadd.f32 %v350, %v353
    %s355 = sld [smem:[#allocation3 + $0x2a]]
    %v356 = vstv %s355
    %v357 = vmul.f32 %v356, %v97
    %v358 = vadd.f32 %v354, %v357
    %s359 = sld [smem:[#allocation3 + $0x36]]
    %v360 = vstv %s359
    %v361 = vmul.f32 %v360, %v99
    %v362 = vadd.f32 %v358, %v361
    %s363 = sld [smem:[#allocation3 + $0x42]]
    %v364 = vstv %s363
    %v365 = vmul.f32 %v364, %v101
    %v366 = vadd.f32 %v362, %v365
    %s367 = sld [smem:[#allocation3 + $0x4e]]
    %v368 = vstv %s367
    %v369 = vmul.f32 %v368, %v103
    %v370 = vadd.f32 %v366, %v369
    %s371 = sld [smem:[#allocation3 + $0x5a]]
    %v372 = vstv %s371
    %v373 = vmul.f32 %v372, %v105
    %v374 = vadd.f32 %v370, %v373
    %s375 = scalar_lea.vmem [#allocation2], 64
    %376 = vst [vmem:[%s375 + $0x8] sm:$0x1] %v374
    %377 = vst [vmem:[%s375 + $0xa] sm:$0x2] %v374
    %378 = vst [vmem:[%s375 + $0xc] sm:$0x4] %v374
    %379 = vst [vmem:[%s375 + $0xe] sm:$0x8] %v374
    %380 = vst [vmem:[%s375 + $0x10] sm:$0x10] %v374
    %s381 = sld [smem:[#allocation5 + $0x2]]
    %v382 = vstv %s381
    %s383 = sld [smem:[#allocation3 + $0x7]]
    %v384 = vstv %s383
    %v385 = vmul.f32 %v384, %v91
    %v386 = vadd.f32 %v382, %v385
    %s387 = sld [smem:[#allocation3 + $0x13]]
    %v388 = vstv %s387
    %v389 = vmul.f32 %v388, %v93
    %v390 = vadd.f32 %v386, %v389
    %s391 = sld [smem:[#allocation3 + $0x1f]]
    %v392 = vstv %s391
    %v393 = vmul.f32 %v392, %v95
    %v394 = vadd.f32 %v390, %v393
    %s395 = sld [smem:[#allocation3 + $0x2b]]
    %v396 = vstv %s395
    %v397 = vmul.f32 %v396, %v97
    %v398 = vadd.f32 %v394, %v397
    %s399 = sld [smem:[#allocation3 + $0x37]]
    %v400 = vstv %s399
    %v401 = vmul.f32 %v400, %v99
    %v402 = vadd.f32 %v398, %v401
    %s403 = sld [smem:[#allocation3 + $0x43]]
    %v404 = vstv %s403
    %v405 = vmul.f32 %v404, %v101
    %v406 = vadd.f32 %v402, %v405
    %s407 = sld [smem:[#allocation3 + $0x4f]]
    %v408 = vstv %s407
    %v409 = vmul.f32 %v408, %v103
    %v410 = vadd.f32 %v406, %v409
    %s411 = sld [smem:[#allocation3 + $0x5b]]
    %v412 = vstv %s411
    %v413 = vmul.f32 %v412, %v105
    %v414 = vadd.f32 %v410, %v413
    %415 = vst [vmem:[%s375 + $0x9] sm:$0x1] %v414
    %416 = vst [vmem:[%s375 + $0xb] sm:$0x2] %v414
    %417 = vst [vmem:[%s375 + $0xd] sm:$0x4] %v414
    %418 = vst [vmem:[%s375 + $0xf] sm:$0x8] %v414
    %419 = vst [vmem:[%s375 + $0x11] sm:$0x10] %v414
    %s420 = sld [smem:[#allocation5 + $0x2]]
    %v421 = vstv %s420
    %s422 = sld [smem:[#allocation3 + $0x8]]
    %v423 = vstv %s422
    %v424 = vmul.f32 %v423, %v91
    %v425 = vadd.f32 %v421, %v424
    %s426 = sld [smem:[#allocation3 + $0x14]]
    %v427 = vstv %s426
    %v428 = vmul.f32 %v427, %v93
    %v429 = vadd.f32 %v425, %v428
    %s430 = sld [smem:[#allocation3 + $0x20]]
    %v431 = vstv %s430
    %v432 = vmul.f32 %v431, %v95
    %v433 = vadd.f32 %v429, %v432
    %s434 = sld [smem:[#allocation3 + $0x2c]]
    %v435 = vstv %s434
    %v436 = vmul.f32 %v435, %v97
    %v437 = vadd.f32 %v433, %v436
    %s438 = sld [smem:[#allocation3 + $0x38]]
    %v439 = vstv %s438
    %v440 = vmul.f32 %v439, %v99
    %v441 = vadd.f32 %v437, %v440
    %s442 = sld [smem:[#allocation3 + $0x44]]
    %v443 = vstv %s442
    %v444 = vmul.f32 %v443, %v101
    %v445 = vadd.f32 %v441, %v444
    %s446 = sld [smem:[#allocation3 + $0x50]]
    %v447 = vstv %s446
    %v448 = vmul.f32 %v447, %v103
    %v449 = vadd.f32 %v445, %v448
    %s450 = sld [smem:[#allocation3 + $0x5c]]
    %v451 = vstv %s450
    %v452 = vmul.f32 %v451, %v105
    %v453 = vadd.f32 %v449, %v452
    %454 = vst [vmem:[%s375 + $0xa] sm:$0x1] %v453
    %455 = vst [vmem:[%s375 + $0xc] sm:$0x2] %v453
    %456 = vst [vmem:[%s375 + $0xe] sm:$0x4] %v453
    %457 = vst [vmem:[%s375 + $0x10] sm:$0x8] %v453
    %458 = vst [vmem:[%s375 + $0x12] sm:$0x10] %v453
    %s459 = sld [smem:[#allocation5 + $0x3]]
    %v460 = vstv %s459
    %s461 = sld [smem:[#allocation3 + $0x9]]
    %v462 = vstv %s461
    %v463 = vmul.f32 %v462, %v91
    %v464 = vadd.f32 %v460, %v463
    %s465 = sld [smem:[#allocation3 + $0x15]]
    %v466 = vstv %s465
    %v467 = vmul.f32 %v466, %v93
    %v468 = vadd.f32 %v464, %v467
    %s469 = sld [smem:[#allocation3 + $0x21]]
    %v470 = vstv %s469
    %v471 = vmul.f32 %v470, %v95
    %v472 = vadd.f32 %v468, %v471
    %s473 = sld [smem:[#allocation3 + $0x2d]]
    %v474 = vstv %s473
    %v475 = vmul.f32 %v474, %v97
    %v476 = vadd.f32 %v472, %v475
    %s477 = sld [smem:[#allocation3 + $0x39]]
    %v478 = vstv %s477
    %v479 = vmul.f32 %v478, %v99
    %v480 = vadd.f32 %v476, %v479
    %s481 = sld [smem:[#allocation3 + $0x45]]
    %v482 = vstv %s481
    %v483 = vmul.f32 %v482, %v101
    %v484 = vadd.f32 %v480, %v483
    %s485 = sld [smem:[#allocation3 + $0x51]]
    %v486 = vstv %s485
    %v487 = vmul.f32 %v486, %v103
    %v488 = vadd.f32 %v484, %v487
    %s489 = sld [smem:[#allocation3 + $0x5d]]
    %v490 = vstv %s489
    %v491 = vmul.f32 %v490, %v105
    %v492 = vadd.f32 %v488, %v491
    %s493 = scalar_lea.vmem [#allocation2], 96
    %494 = vst [vmem:[%s493 + $0x8] sm:$0x1] %v492
    %495 = vst [vmem:[%s493 + $0xa] sm:$0x2] %v492
    %496 = vst [vmem:[%s493 + $0xc] sm:$0x4] %v492
    %497 = vst [vmem:[%s493 + $0xe] sm:$0x8] %v492
    %498 = vst [vmem:[%s493 + $0x10] sm:$0x10] %v492
    %s499 = sld [smem:[#allocation5 + $0x3]]
    %v500 = vstv %s499
    %s501 = sld [smem:[#allocation3 + $0xa]]
    %v502 = vstv %s501
    %v503 = vmul.f32 %v502, %v91
    %v504 = vadd.f32 %v500, %v503
    %s505 = sld [smem:[#allocation3 + $0x16]]
    %v506 = vstv %s505
    %v507 = vmul.f32 %v506, %v93
    %v508 = vadd.f32 %v504, %v507
    %s509 = sld [smem:[#allocation3 + $0x22]]
    %v510 = vstv %s509
    %v511 = vmul.f32 %v510, %v95
    %v512 = vadd.f32 %v508, %v511
    %s513 = sld [smem:[#allocation3 + $0x2e]]
    %v514 = vstv %s513
    %v515 = vmul.f32 %v514, %v97
    %v516 = vadd.f32 %v512, %v515
    %s517 = sld [smem:[#allocation3 + $0x3a]]
    %v518 = vstv %s517
    %v519 = vmul.f32 %v518, %v99
    %v520 = vadd.f32 %v516, %v519
    %s521 = sld [smem:[#allocation3 + $0x46]]
    %v522 = vstv %s521
    %v523 = vmul.f32 %v522, %v101
    %v524 = vadd.f32 %v520, %v523
    %s525 = sld [smem:[#allocation3 + $0x52]]
    %v526 = vstv %s525
    %v527 = vmul.f32 %v526, %v103
    %v528 = vadd.f32 %v524, %v527
    %s529 = sld [smem:[#allocation3 + $0x5e]]
    %v530 = vstv %s529
    %v531 = vmul.f32 %v530, %v105
    %v532 = vadd.f32 %v528, %v531
    %533 = vst [vmem:[%s493 + $0x9] sm:$0x1] %v532
    %534 = vst [vmem:[%s493 + $0xb] sm:$0x2] %v532
    %535 = vst [vmem:[%s493 + $0xd] sm:$0x4] %v532
    %536 = vst [vmem:[%s493 + $0xf] sm:$0x8] %v532
    %537 = vst [vmem:[%s493 + $0x11] sm:$0x10] %v532
    %s538 = sld [smem:[#allocation5 + $0x3]]
    %v539 = vstv %s538
    %s540 = sld [smem:[#allocation3 + $0xb]]
    %v541 = vstv %s540
    %v542 = vmul.f32 %v541, %v91
    %v543 = vadd.f32 %v539, %v542
    %s544 = sld [smem:[#allocation3 + $0x17]]
    %v545 = vstv %s544
    %v546 = vmul.f32 %v545, %v93
    %v547 = vadd.f32 %v543, %v546
    %s548 = sld [smem:[#allocation3 + $0x23]]
    %v549 = vstv %s548
    %v550 = vmul.f32 %v549, %v95
    %v551 = vadd.f32 %v547, %v550
    %s552 = sld [smem:[#allocation3 + $0x2f]]
    %v553 = vstv %s552
    %v554 = vmul.f32 %v553, %v97
    %v555 = vadd.f32 %v551, %v554
    %s556 = sld [smem:[#allocation3 + $0x3b]]
    %v557 = vstv %s556
    %v558 = vmul.f32 %v557, %v99
    %v559 = vadd.f32 %v555, %v558
    %s560 = sld [smem:[#allocation3 + $0x47]]
    %v561 = vstv %s560
    %v562 = vmul.f32 %v561, %v101
    %v563 = vadd.f32 %v559, %v562
    %s564 = sld [smem:[#allocation3 + $0x53]]
    %v565 = vstv %s564
    %v566 = vmul.f32 %v565, %v103
    %v567 = vadd.f32 %v563, %v566
    %s568 = sld [smem:[#allocation3 + $0x5f]]
    %v569 = vstv %s568
    %v570 = vmul.f32 %v569, %v105
    %v571 = vadd.f32 %v567, %v570
    %572 = vst [vmem:[%s493 + $0xa] sm:$0x1] %v571
    %573 = vst [vmem:[%s493 + $0xc] sm:$0x2] %v571
    %574 = vst [vmem:[%s493 + $0xe] sm:$0x4] %v571
    %575 = vst [vmem:[%s493 + $0x10] sm:$0x8] %v571
    %576 = vst [vmem:[%s493 + $0x12] sm:$0x10] %v571
    %v577 = vld [vmem:[#allocation2 + $0x6] sm:$0xff]
    %s578 = sld [smem:[#allocation7]]
    %v579 = vstv %s578
    %v580 = vmul.f32 %v579, %v577
    %v581 = vadd.f32 %v580, 0.0
    %s582 = sld [smem:[#allocation7 + $0x18]]
    %v583 = vstv %s582
    %v584 = vmul.f32 %v583, %v577
    %v585 = vadd.f32 %v584, 0.0
    %s586 = sld [smem:[#allocation7 + $0x30]]
    %v587 = vstv %s586
    %v588 = vmul.f32 %v587, %v577
    %v589 = vadd.f32 %v588, 0.0
    %s590 = sld [smem:[#allocation7 + $0x48]]
    %v591 = vstv %s590
    %v592 = vmul.f32 %v591, %v577
    %v593 = vadd.f32 %v592, 0.0
    %v594 = vld [vmem:[#allocation2 + $0x7] sm:$0xff]
    %s595 = sld [smem:[#allocation7 + $0x1]]
    %v596 = vstv %s595
    %v597 = vmul.f32 %v596, %v594
    %v598 = vadd.f32 %v581, %v597
    %s599 = sld [smem:[#allocation7 + $0x19]]
    %v600 = vstv %s599
    %v601 = vmul.f32 %v600, %v594
    %v602 = vadd.f32 %v585, %v601
    %s603 = sld [smem:[#allocation7 + $0x31]]
    %v604 = vstv %s603
    %v605 = vmul.f32 %v604, %v594
    %v606 = vadd.f32 %v589, %v605
    %s607 = sld [smem:[#allocation7 + $0x49]]
    %v608 = vstv %s607
    %v609 = vmul.f32 %v608, %v594
    %v610 = vadd.f32 %v593, %v609
    %v611 = vld [vmem:[#allocation2 + $0x8] sm:$0xff]
    %s612 = sld [smem:[#allocation7 + $0x2]]
    %v613 = vstv %s612
    %v614 = vmul.f32 %v613, %v611
    %v615 = vadd.f32 %v598, %v614
    %s616 = sld [smem:[#allocation7 + $0x1a]]
    %v617 = vstv %s616
    %v618 = vmul.f32 %v617, %v611
    %v619 = vadd.f32 %v602, %v618
    %s620 = sld [smem:[#allocation7 + $0x32]]
    %v621 = vstv %s620
    %v622 = vmul.f32 %v621, %v611
    %v623 = vadd.f32 %v606, %v622
    %s624 = sld [smem:[#allocation7 + $0x4a]]
    %v625 = vstv %s624
    %v626 = vmul.f32 %v625, %v611
    %v627 = vadd.f32 %v610, %v626
    %v628 = vld [vmem:[%s257 + $0x6] sm:$0xff]
    %s629 = sld [smem:[#allocation7 + $0x3]]
    %v630 = vstv %s629
    %v631 = vmul.f32 %v630, %v628
    %v632 = vadd.f32 %v615, %v631
    %s633 = sld [smem:[#allocation7 + $0x1b]]
    %v634 = vstv %s633
    %v635 = vmul.f32 %v634, %v628
    %v636 = vadd.f32 %v619, %v635
    %s637 = sld [smem:[#allocation7 + $0x33]]
    %v638 = vstv %s637
    %v639 = vmul.f32 %v638, %v628
    %v640 = vadd.f32 %v623, %v639
    %s641 = sld [smem:[#allocation7 + $0x4b]]
    %v642 = vstv %s641
    %v643 = vmul.f32 %v642, %v628
    %v644 = vadd.f32 %v627, %v643
    %v645 = vld [vmem:[%s257 + $0x7] sm:$0xff]
    %s646 = sld [smem:[#allocation7 + $0x4]]
    %v647 = vstv %s646
    %v648 = vmul.f32 %v647, %v645
    %v649 = vadd.f32 %v632, %v648
    %s650 = sld [smem:[#allocation7 + $0x1c]]
    %v651 = vstv %s650
    %v652 = vmul.f32 %v651, %v645
    %v653 = vadd.f32 %v636, %v652
    %s654 = sld [smem:[#allocation7 + $0x34]]
    %v655 = vstv %s654
    %v656 = vmul.f32 %v655, %v645
    %v657 = vadd.f32 %v640, %v656
    %s658 = sld [smem:[#allocation7 + $0x4c]]
    %v659 = vstv %s658
    %v660 = vmul.f32 %v659, %v645
    %v661 = vadd.f32 %v644, %v660
    %v662 = vld [vmem:[%s257 + $0x8] sm:$0xff]
    %s663 = sld [smem:[#allocation7 + $0x5]]
    %v664 = vstv %s663
    %v665 = vmul.f32 %v664, %v662
    %v666 = vadd.f32 %v649, %v665
    %s667 = sld [smem:[#allocation7 + $0x1d]]
    %v668 = vstv %s667
    %v669 = vmul.f32 %v668, %v662
    %v670 = vadd.f32 %v653, %v669
    %s671 = sld [smem:[#allocation7 + $0x35]]
    %v672 = vstv %s671
    %v673 = vmul.f32 %v672, %v662
    %v674 = vadd.f32 %v657, %v673
    %s675 = sld [smem:[#allocation7 + $0x4d]]
    %v676 = vstv %s675
    %v677 = vmul.f32 %v676, %v662
    %v678 = vadd.f32 %v661, %v677
    %v679 = vld [vmem:[%s375 + $0x6] sm:$0xff]
    %s680 = sld [smem:[#allocation7 + $0x6]]
    %v681 = vstv %s680
    %v682 = vmul.f32 %v681, %v679
    %v683 = vadd.f32 %v666, %v682
    %s684 = sld [smem:[#allocation7 + $0x1e]]
    %v685 = vstv %s684
    %v686 = vmul.f32 %v685, %v679
    %v687 = vadd.f32 %v670, %v686
    %s688 = sld [smem:[#allocation7 + $0x36]]
    %v689 = vstv %s688
    %v690 = vmul.f32 %v689, %v679
    %v691 = vadd.f32 %v674, %v690
    %s692 = sld [smem:[#allocation7 + $0x4e]]
    %v693 = vstv %s692
    %v694 = vmul.f32 %v693, %v679
    %v695 = vadd.f32 %v678, %v694
    %v696 = vld [vmem:[%s375 + $0x7] sm:$0xff]
    %s697 = sld [smem:[#allocation7 + $0x7]]
    %v698 = vstv %s697
    %v699 = vmul.f32 %v698, %v696
    %v700 = vadd.f32 %v683, %v699
    %s701 = sld [smem:[#allocation7 + $0x1f]]
    %v702 = vstv %s701
    %v703 = vmul.f32 %v702, %v696
    %v704 = vadd.f32 %v687, %v703
    %s705 = sld [smem:[#allocation7 + $0x37]]
    %v706 = vstv %s705
    %v707 = vmul.f32 %v706, %v696
    %v708 = vadd.f32 %v691, %v707
    %s709 = sld [smem:[#allocation7 + $0x4f]]
    %v710 = vstv %s709
    %v711 = vmul.f32 %v710, %v696
    %v712 = vadd.f32 %v695, %v711
    %v713 = vld [vmem:[%s375 + $0x8] sm:$0xff]
    %s714 = sld [smem:[#allocation7 + $0x8]]
    %v715 = vstv %s714
    %v716 = vmul.f32 %v715, %v713
    %v717 = vadd.f32 %v700, %v716
    %s718 = sld [smem:[#allocation7 + $0x20]]
    %v719 = vstv %s718
    %v720 = vmul.f32 %v719, %v713
    %v721 = vadd.f32 %v704, %v720
    %s722 = sld [smem:[#allocation7 + $0x38]]
    %v723 = vstv %s722
    %v724 = vmul.f32 %v723, %v713
    %v725 = vadd.f32 %v708, %v724
    %s726 = sld [smem:[#allocation7 + $0x50]]
    %v727 = vstv %s726
    %v728 = vmul.f32 %v727, %v713
    %v729 = vadd.f32 %v712, %v728
    %v730 = vld [vmem:[%s493 + $0x6] sm:$0xff]
    %s731 = sld [smem:[#allocation7 + $0x9]]
    %v732 = vstv %s731
    %v733 = vmul.f32 %v732, %v730
    %v734 = vadd.f32 %v717, %v733
    %s735 = sld [smem:[#allocation7 + $0x21]]
    %v736 = vstv %s735
    %v737 = vmul.f32 %v736, %v730
    %v738 = vadd.f32 %v721, %v737
    %s739 = sld [smem:[#allocation7 + $0x39]]
    %v740 = vstv %s739
    %v741 = vmul.f32 %v740, %v730
    %v742 = vadd.f32 %v725, %v741
    %s743 = sld [smem:[#allocation7 + $0x51]]
    %v744 = vstv %s743
    %v745 = vmul.f32 %v744, %v730
    %v746 = vadd.f32 %v729, %v745
    %v747 = vld [vmem:[%s493 + $0x7] sm:$0xff]
    %s748 = sld [smem:[#allocation7 + $0xa]]
    %v749 = vstv %s748
    %v750 = vmul.f32 %v749, %v747
    %v751 = vadd.f32 %v734, %v750
    %s752 = sld [smem:[#allocation7 + $0x22]]
    %v753 = vstv %s752
    %v754 = vmul.f32 %v753, %v747
    %v755 = vadd.f32 %v738, %v754
    %s756 = sld [smem:[#allocation7 + $0x3a]]
    %v757 = vstv %s756
    %v758 = vmul.f32 %v757, %v747
    %v759 = vadd.f32 %v742, %v758
    %s760 = sld [smem:[#allocation7 + $0x52]]
    %v761 = vstv %s760
    %v762 = vmul.f32 %v761, %v747
    %v763 = vadd.f32 %v746, %v762
    %v764 = vld [vmem:[%s493 + $0x8] sm:$0xff]
    %s765 = sld [smem:[#allocation7 + $0xb]]
    %v766 = vstv %s765
    %v767 = vmul.f32 %v766, %v764
    %v768 = vadd.f32 %v751, %v767
    %s769 = sld [smem:[#allocation7 + $0x23]]
    %v770 = vstv %s769
    %v771 = vmul.f32 %v770, %v764
    %v772 = vadd.f32 %v755, %v771
    %s773 = sld [smem:[#allocation7 + $0x3b]]
    %v774 = vstv %s773
    %v775 = vmul.f32 %v774, %v764
    %v776 = vadd.f32 %v759, %v775
    %s777 = sld [smem:[#allocation7 + $0x53]]
    %v778 = vstv %s777
    %v779 = vmul.f32 %v778, %v764
    %v780 = vadd.f32 %v763, %v779
    %v781 = vld [vmem:[%s82 + $0x6] sm:$0xff]
    %s782 = sld [smem:[#allocation7 + $0xc]]
    %v783 = vstv %s782
    %v784 = vmul.f32 %v783, %v781
    %v785 = vadd.f32 %v768, %v784
    %s786 = sld [smem:[#allocation7 + $0x24]]
    %v787 = vstv %s786
    %v788 = vmul.f32 %v787, %v781
    %v789 = vadd.f32 %v772, %v788
    %s790 = sld [smem:[#allocation7 + $0x3c]]
    %v791 = vstv %s790
    %v792 = vmul.f32 %v791, %v781
    %v793 = vadd.f32 %v776, %v792
    %s794 = sld [smem:[#allocation7 + $0x54]]
    %v795 = vstv %s794
    %v796 = vmul.f32 %v795, %v781
    %v797 = vadd.f32 %v780, %v796
    %v798 = vld [vmem:[%s82 + $0x7] sm:$0xff]
    %s799 = sld [smem:[#allocation7 + $0xd]]
    %v800 = vstv %s799
    %v801 = vmul.f32 %v800, %v798
    %v802 = vadd.f32 %v785, %v801
    %s803 = sld [smem:[#allocation7 + $0x25]]
    %v804 = vstv %s803
    %v805 = vmul.f32 %v804, %v798
    %v806 = vadd.f32 %v789, %v805
    %s807 = sld [smem:[#allocation7 + $0x3d]]
    %v808 = vstv %s807
    %v809 = vmul.f32 %v808, %v798
    %v810 = vadd.f32 %v793, %v809
    %s811 = sld [smem:[#allocation7 + $0x55]]
    %v812 = vstv %s811
    %v813 = vmul.f32 %v812, %v798
    %v814 = vadd.f32 %v797, %v813
    %v815 = vld [vmem:[%s82 + $0x8] sm:$0xff]
    %s816 = sld [smem:[#allocation7 + $0xe]]
    %v817 = vstv %s816
    %v818 = vmul.f32 %v817, %v815
    %v819 = vadd.f32 %v802, %v818
    %s820 = sld [smem:[#allocation7 + $0x26]]
    %v821 = vstv %s820
    %v822 = vmul.f32 %v821, %v815
    %v823 = vadd.f32 %v806, %v822
    %s824 = sld [smem:[#allocation7 + $0x3e]]
    %v825 = vstv %s824
    %v826 = vmul.f32 %v825, %v815
    %v827 = vadd.f32 %v810, %v826
    %s828 = sld [smem:[#allocation7 + $0x56]]
    %v829 = vstv %s828
    %v830 = vmul.f32 %v829, %v815
    %v831 = vadd.f32 %v814, %v830
    %s832 = scalar_lea.vmem [#allocation2], 160
    %v833 = vld [vmem:[%s832 + $0x6] sm:$0xff]
    %s834 = sld [smem:[#allocation7 + $0xf]]
    %v835 = vstv %s834
    %v836 = vmul.f32 %v835, %v833
    %v837 = vadd.f32 %v819, %v836
    %s838 = sld [smem:[#allocation7 + $0x27]]
    %v839 = vstv %s838
    %v840 = vmul.f32 %v839, %v833
    %v841 = vadd.f32 %v823, %v840
    %s842 = sld [smem:[#allocation7 + $0x3f]]
    %v843 = vstv %s842
    %v844 = vmul.f32 %v843, %v833
    %v845 = vadd.f32 %v827, %v844
    %s846 = sld [smem:[#allocation7 + $0x57]]
    %v847 = vstv %s846
    %v848 = vmul.f32 %v847, %v833
    %v849 = vadd.f32 %v831, %v848
    %v850 = vld [vmem:[%s832 + $0x7] sm:$0xff]
    %s851 = sld [smem:[#allocation7 + $0x10]]
    %v852 = vstv %s851
    %v853 = vmul.f32 %v852, %v850
    %v854 = vadd.f32 %v837, %v853
    %s855 = sld [smem:[#allocation7 + $0x28]]
    %v856 = vstv %s855
    %v857 = vmul.f32 %v856, %v850
    %v858 = vadd.f32 %v841, %v857
    %s859 = sld [smem:[#allocation7 + $0x40]]
    %v860 = vstv %s859
    %v861 = vmul.f32 %v860, %v850
    %v862 = vadd.f32 %v845, %v861
    %s863 = sld [smem:[#allocation7 + $0x58]]
    %v864 = vstv %s863
    %v865 = vmul.f32 %v864, %v850
    %v866 = vadd.f32 %v849, %v865
    %v867 = vld [vmem:[%s832 + $0x8] sm:$0xff]
    %s868 = sld [smem:[#allocation7 + $0x11]]
    %v869 = vstv %s868
    %v870 = vmul.f32 %v869, %v867
    %v871 = vadd.f32 %v854, %v870
    %s872 = sld [smem:[#allocation7 + $0x29]]
    %v873 = vstv %s872
    %v874 = vmul.f32 %v873, %v867
    %v875 = vadd.f32 %v858, %v874
    %s876 = sld [smem:[#allocation7 + $0x41]]
    %v877 = vstv %s876
    %v878 = vmul.f32 %v877, %v867
    %v879 = vadd.f32 %v862, %v878
    %s880 = sld [smem:[#allocation7 + $0x59]]
    %v881 = vstv %s880
    %v882 = vmul.f32 %v881, %v867
    %v883 = vadd.f32 %v866, %v882
    %s884 = scalar_lea.vmem [#allocation2], 192
    %v885 = vld [vmem:[%s884 + $0x6] sm:$0xff]
    %s886 = sld [smem:[#allocation7 + $0x12]]
    %v887 = vstv %s886
    %v888 = vmul.f32 %v887, %v885
    %v889 = vadd.f32 %v871, %v888
    %s890 = sld [smem:[#allocation7 + $0x2a]]
    %v891 = vstv %s890
    %v892 = vmul.f32 %v891, %v885
    %v893 = vadd.f32 %v875, %v892
    %s894 = sld [smem:[#allocation7 + $0x42]]
    %v895 = vstv %s894
    %v896 = vmul.f32 %v895, %v885
    %v897 = vadd.f32 %v879, %v896
    %s898 = sld [smem:[#allocation7 + $0x5a]]
    %v899 = vstv %s898
    %v900 = vmul.f32 %v899, %v885
    %v901 = vadd.f32 %v883, %v900
    %v902 = vld [vmem:[%s884 + $0x7] sm:$0xff]
    %s903 = sld [smem:[#allocation7 + $0x13]]
    %v904 = vstv %s903
    %v905 = vmul.f32 %v904, %v902
    %v906 = vadd.f32 %v889, %v905
    %s907 = sld [smem:[#allocation7 + $0x2b]]
    %v908 = vstv %s907
    %v909 = vmul.f32 %v908, %v902
    %v910 = vadd.f32 %v893, %v909
    %s911 = sld [smem:[#allocation7 + $0x43]]
    %v912 = vstv %s911
    %v913 = vmul.f32 %v912, %v902
    %v914 = vadd.f32 %v897, %v913
    %s915 = sld [smem:[#allocation7 + $0x5b]]
    %v916 = vstv %s915
    %v917 = vmul.f32 %v916, %v902
    %v918 = vadd.f32 %v901, %v917
    %v919 = vld [vmem:[%s884 + $0x8] sm:$0xff]
    %s920 = sld [smem:[#allocation7 + $0x14]]
    %v921 = vstv %s920
    %v922 = vmul.f32 %v921, %v919
    %v923 = vadd.f32 %v906, %v922
    %s924 = sld [smem:[#allocation7 + $0x2c]]
    %v925 = vstv %s924
    %v926 = vmul.f32 %v925, %v919
    %v927 = vadd.f32 %v910, %v926
    %s928 = sld [smem:[#allocation7 + $0x44]]
    %v929 = vstv %s928
    %v930 = vmul.f32 %v929, %v919
    %v931 = vadd.f32 %v914, %v930
    %s932 = sld [smem:[#allocation7 + $0x5c]]
    %v933 = vstv %s932
    %v934 = vmul.f32 %v933, %v919
    %v935 = vadd.f32 %v918, %v934
    %s936 = scalar_lea.vmem [#allocation2], 224
    %v937 = vld [vmem:[%s936 + $0x6] sm:$0xff]
    %s938 = sld [smem:[#allocation7 + $0x15]]
    %v939 = vstv %s938
    %v940 = vmul.f32 %v939, %v937
    %v941 = vadd.f32 %v923, %v940
    %s942 = sld [smem:[#allocation7 + $0x2d]]
    %v943 = vstv %s942
    %v944 = vmul.f32 %v943, %v937
    %v945 = vadd.f32 %v927, %v944
    %s946 = sld [smem:[#allocation7 + $0x45]]
    %v947 = vstv %s946
    %v948 = vmul.f32 %v947, %v937
    %v949 = vadd.f32 %v931, %v948
    %s950 = sld [smem:[#allocation7 + $0x5d]]
    %v951 = vstv %s950
    %v952 = vmul.f32 %v951, %v937
    %v953 = vadd.f32 %v935, %v952
    %v954 = vld [vmem:[%s936 + $0x7] sm:$0xff]
    %s955 = sld [smem:[#allocation7 + $0x16]]
    %v956 = vstv %s955
    %v957 = vmul.f32 %v956, %v954
    %v958 = vadd.f32 %v941, %v957
    %s959 = sld [smem:[#allocation7 + $0x2e]]
    %v960 = vstv %s959
    %v961 = vmul.f32 %v960, %v954
    %v962 = vadd.f32 %v945, %v961
    %s963 = sld [smem:[#allocation7 + $0x46]]
    %v964 = vstv %s963
    %v965 = vmul.f32 %v964, %v954
    %v966 = vadd.f32 %v949, %v965
    %s967 = sld [smem:[#allocation7 + $0x5e]]
    %v968 = vstv %s967
    %v969 = vmul.f32 %v968, %v954
    %v970 = vadd.f32 %v953, %v969
    %v971 = vld [vmem:[%s936 + $0x8] sm:$0xff]
    %s972 = sld [smem:[#allocation7 + $0x17]]
    %v973 = vstv %s972
    %v974 = vmul.f32 %v973, %v971
    %v975 = vadd.f32 %v958, %v974
    %s976 = sld [smem:[#allocation7 + $0x2f]]
    %v977 = vstv %s976
    %v978 = vmul.f32 %v977, %v971
    %v979 = vadd.f32 %v962, %v978
    %s980 = sld [smem:[#allocation7 + $0x47]]
    %v981 = vstv %s980
    %v982 = vmul.f32 %v981, %v971
    %v983 = vadd.f32 %v966, %v982
    %s984 = sld [smem:[#allocation7 + $0x5f]]
    %v985 = vstv %s984
    %v986 = vmul.f32 %v985, %v971
    %v987 = vadd.f32 %v970, %v986
    %988 = vst [vmem:[%s5] sm:$0xff] %v975
    %s989 = scalar_lea.vmem %s5, 24
    %990 = vst [vmem:[%s989] sm:$0xff] %v979
    %s991 = scalar_lea.vmem %s5, 48
    %992 = vst [vmem:[%s991] sm:$0xff] %v983
    %s993 = scalar_lea.vmem %s5, 72
    %994 = vst [vmem:[%s993] sm:$0xff] %v987
    %v995 = vld [vmem:[#allocation2 + $0xe] sm:$0xff]
    %s996 = sld [smem:[#allocation7]]
    %v997 = vstv %s996
    %v998 = vmul.f32 %v997, %v995
    %v999 = vadd.f32 %v998, 0.0
    %s1000 = sld [smem:[#allocation7 + $0x18]]
    %v1001 = vstv %s1000
    %v1002 = vmul.f32 %v1001, %v995
    %v1003 = vadd.f32 %v1002, 0.0
    %s1004 = sld [smem:[#allocation7 + $0x30]]
    %v1005 = vstv %s1004
    %v1006 = vmul.f32 %v1005, %v995
    %v1007 = vadd.f32 %v1006, 0.0
    %s1008 = sld [smem:[#allocation7 + $0x48]]
    %v1009 = vstv %s1008
    %v1010 = vmul.f32 %v1009, %v995
    %v1011 = vadd.f32 %v1010, 0.0
    %v1012 = vld [vmem:[#allocation2 + $0xf] sm:$0xff]
    %s1013 = sld [smem:[#allocation7 + $0x1]]
    %v1014 = vstv %s1013
    %v1015 = vmul.f32 %v1014, %v1012
    %v1016 = vadd.f32 %v999, %v1015
    %s1017 = sld [smem:[#allocation7 + $0x19]]
    %v1018 = vstv %s1017
    %v1019 = vmul.f32 %v1018, %v1012
    %v1020 = vadd.f32 %v1003, %v1019
    %s1021 = sld [smem:[#allocation7 + $0x31]]
    %v1022 = vstv %s1021
    %v1023 = vmul.f32 %v1022, %v1012
    %v1024 = vadd.f32 %v1007, %v1023
    %s1025 = sld [smem:[#allocation7 + $0x49]]
    %v1026 = vstv %s1025
    %v1027 = vmul.f32 %v1026, %v1012
    %v1028 = vadd.f32 %v1011, %v1027
    %v1029 = vld [vmem:[#allocation2 + $0x10] sm:$0xff]
    %s1030 = sld [smem:[#allocation7 + $0x2]]
    %v1031 = vstv %s1030
    %v1032 = vmul.f32 %v1031, %v1029
    %v1033 = vadd.f32 %v1016, %v1032
    %s1034 = sld [smem:[#allocation7 + $0x1a]]
    %v1035 = vstv %s1034
    %v1036 = vmul.f32 %v1035, %v1029
    %v1037 = vadd.f32 %v1020, %v1036
    %s1038 = sld [smem:[#allocation7 + $0x32]]
    %v1039 = vstv %s1038
    %v1040 = vmul.f32 %v1039, %v1029
    %v1041 = vadd.f32 %v1024, %v1040
    %s1042 = sld [smem:[#allocation7 + $0x4a]]
    %v1043 = vstv %s1042
    %v1044 = vmul.f32 %v1043, %v1029
    %v1045 = vadd.f32 %v1028, %v1044
    %v1046 = vld [vmem:[%s257 + $0xe] sm:$0xff]
    %s1047 = sld [smem:[#allocation7 + $0x3]]
    %v1048 = vstv %s1047
    %v1049 = vmul.f32 %v1048, %v1046
    %v1050 = vadd.f32 %v1033, %v1049
    %s1051 = sld [smem:[#allocation7 + $0x1b]]
    %v1052 = vstv %s1051
    %v1053 = vmul.f32 %v1052, %v1046
    %v1054 = vadd.f32 %v1037, %v1053
    %s1055 = sld [smem:[#allocation7 + $0x33]]
    %v1056 = vstv %s1055
    %v1057 = vmul.f32 %v1056, %v1046
    %v1058 = vadd.f32 %v1041, %v1057
    %s1059 = sld [smem:[#allocation7 + $0x4b]]
    %v1060 = vstv %s1059
    %v1061 = vmul.f32 %v1060, %v1046
    %v1062 = vadd.f32 %v1045, %v1061
    %v1063 = vld [vmem:[%s257 + $0xf] sm:$0xff]
    %s1064 = sld [smem:[#allocation7 + $0x4]]
    %v1065 = vstv %s1064
    %v1066 = vmul.f32 %v1065, %v1063
    %v1067 = vadd.f32 %v1050, %v1066
    %s1068 = sld [smem:[#allocation7 + $0x1c]]
    %v1069 = vstv %s1068
    %v1070 = vmul.f32 %v1069, %v1063
    %v1071 = vadd.f32 %v1054, %v1070
    %s1072 = sld [smem:[#allocation7 + $0x34]]
    %v1073 = vstv %s1072
    %v1074 = vmul.f32 %v1073, %v1063
    %v1075 = vadd.f32 %v1058, %v1074
    %s1076 = sld [smem:[#allocation7 + $0x4c]]
    %v1077 = vstv %s1076
    %v1078 = vmul.f32 %v1077, %v1063
    %v1079 = vadd.f32 %v1062, %v1078
    %v1080 = vld [vmem:[%s257 + $0x10] sm:$0xff]
    %s1081 = sld [smem:[#allocation7 + $0x5]]
    %v1082 = vstv %s1081
    %v1083 = vmul.f32 %v1082, %v1080
    %v1084 = vadd.f32 %v1067, %v1083
    %s1085 = sld [smem:[#allocation7 + $0x1d]]
    %v1086 = vstv %s1085
    %v1087 = vmul.f32 %v1086, %v1080
    %v1088 = vadd.f32 %v1071, %v1087
    %s1089 = sld [smem:[#allocation7 + $0x35]]
    %v1090 = vstv %s1089
    %v1091 = vmul.f32 %v1090, %v1080
    %v1092 = vadd.f32 %v1075, %v1091
    %s1093 = sld [smem:[#allocation7 + $0x4d]]
    %v1094 = vstv %s1093
    %v1095 = vmul.f32 %v1094, %v1080
    %v1096 = vadd.f32 %v1079, %v1095
    %v1097 = vld [vmem:[%s375 + $0xe] sm:$0xff]
    %s1098 = sld [smem:[#allocation7 + $0x6]]
    %v1099 = vstv %s1098
    %v1100 = vmul.f32 %v1099, %v1097
    %v1101 = vadd.f32 %v1084, %v1100
    %s1102 = sld [smem:[#allocation7 + $0x1e]]
    %v1103 = vstv %s1102
    %v1104 = vmul.f32 %v1103, %v1097
    %v1105 = vadd.f32 %v1088, %v1104
    %s1106 = sld [smem:[#allocation7 + $0x36]]
    %v1107 = vstv %s1106
    %v1108 = vmul.f32 %v1107, %v1097
    %v1109 = vadd.f32 %v1092, %v1108
    %s1110 = sld [smem:[#allocation7 + $0x4e]]
    %v1111 = vstv %s1110
    %v1112 = vmul.f32 %v1111, %v1097
    %v1113 = vadd.f32 %v1096, %v1112
    %v1114 = vld [vmem:[%s375 + $0xf] sm:$0xff]
    %s1115 = sld [smem:[#allocation7 + $0x7]]
    %v1116 = vstv %s1115
    %v1117 = vmul.f32 %v1116, %v1114
    %v1118 = vadd.f32 %v1101, %v1117
    %s1119 = sld [smem:[#allocation7 + $0x1f]]
    %v1120 = vstv %s1119
    %v1121 = vmul.f32 %v1120, %v1114
    %v1122 = vadd.f32 %v1105, %v1121
    %s1123 = sld [smem:[#allocation7 + $0x37]]
    %v1124 = vstv %s1123
    %v1125 = vmul.f32 %v1124, %v1114
    %v1126 = vadd.f32 %v1109, %v1125
    %s1127 = sld [smem:[#allocation7 + $0x4f]]
    %v1128 = vstv %s1127
    %v1129 = vmul.f32 %v1128, %v1114
    %v1130 = vadd.f32 %v1113, %v1129
    %v1131 = vld [vmem:[%s375 + $0x10] sm:$0xff]
    %s1132 = sld [smem:[#allocation7 + $0x8]]
    %v1133 = vstv %s1132
    %v1134 = vmul.f32 %v1133, %v1131
    %v1135 = vadd.f32 %v1118, %v1134
    %s1136 = sld [smem:[#allocation7 + $0x20]]
    %v1137 = vstv %s1136
    %v1138 = vmul.f32 %v1137, %v1131
    %v1139 = vadd.f32 %v1122, %v1138
    %s1140 = sld [smem:[#allocation7 + $0x38]]
    %v1141 = vstv %s1140
    %v1142 = vmul.f32 %v1141, %v1131
    %v1143 = vadd.f32 %v1126, %v1142
    %s1144 = sld [smem:[#allocation7 + $0x50]]
    %v1145 = vstv %s1144
    %v1146 = vmul.f32 %v1145, %v1131
    %v1147 = vadd.f32 %v1130, %v1146
    %v1148 = vld [vmem:[%s493 + $0xe] sm:$0xff]
    %s1149 = sld [smem:[#allocation7 + $0x9]]
    %v1150 = vstv %s1149
    %v1151 = vmul.f32 %v1150, %v1148
    %v1152 = vadd.f32 %v1135, %v1151
    %s1153 = sld [smem:[#allocation7 + $0x21]]
    %v1154 = vstv %s1153
    %v1155 = vmul.f32 %v1154, %v1148
    %v1156 = vadd.f32 %v1139, %v1155
    %s1157 = sld [smem:[#allocation7 + $0x39]]
    %v1158 = vstv %s1157
    %v1159 = vmul.f32 %v1158, %v1148
    %v1160 = vadd.f32 %v1143, %v1159
    %s1161 = sld [smem:[#allocation7 + $0x51]]
    %v1162 = vstv %s1161
    %v1163 = vmul.f32 %v1162, %v1148
    %v1164 = vadd.f32 %v1147, %v1163
    %v1165 = vld [vmem:[%s493 + $0xf] sm:$0xff]
    %s1166 = sld [smem:[#allocation7 + $0xa]]
    %v1167 = vstv %s1166
    %v1168 = vmul.f32 %v1167, %v1165
    %v1169 = vadd.f32 %v1152, %v1168
    %s1170 = sld [smem:[#allocation7 + $0x22]]
    %v1171 = vstv %s1170
    %v1172 = vmul.f32 %v1171, %v1165
    %v1173 = vadd.f32 %v1156, %v1172
    %s1174 = sld [smem:[#allocation7 + $0x3a]]
    %v1175 = vstv %s1174
    %v1176 = vmul.f32 %v1175, %v1165
    %v1177 = vadd.f32 %v1160, %v1176
    %s1178 = sld [smem:[#allocation7 + $0x52]]
    %v1179 = vstv %s1178
    %v1180 = vmul.f32 %v1179, %v1165
    %v1181 = vadd.f32 %v1164, %v1180
    %v1182 = vld [vmem:[%s493 + $0x10] sm:$0xff]
    %s1183 = sld [smem:[#allocation7 + $0xb]]
    %v1184 = vstv %s1183
    %v1185 = vmul.f32 %v1184, %v1182
    %v1186 = vadd.f32 %v1169, %v1185
    %s1187 = sld [smem:[#allocation7 + $0x23]]
    %v1188 = vstv %s1187
    %v1189 = vmul.f32 %v1188, %v1182
    %v1190 = vadd.f32 %v1173, %v1189
    %s1191 = sld [smem:[#allocation7 + $0x3b]]
    %v1192 = vstv %s1191
    %v1193 = vmul.f32 %v1192, %v1182
    %v1194 = vadd.f32 %v1177, %v1193
    %s1195 = sld [smem:[#allocation7 + $0x53]]
    %v1196 = vstv %s1195
    %v1197 = vmul.f32 %v1196, %v1182
    %v1198 = vadd.f32 %v1181, %v1197
    %v1199 = vld [vmem:[%s82 + $0xe] sm:$0xff]
    %s1200 = sld [smem:[#allocation7 + $0xc]]
    %v1201 = vstv %s1200
    %v1202 = vmul.f32 %v1201, %v1199
    %v1203 = vadd.f32 %v1186, %v1202
    %s1204 = sld [smem:[#allocation7 + $0x24]]
    %v1205 = vstv %s1204
    %v1206 = vmul.f32 %v1205, %v1199
    %v1207 = vadd.f32 %v1190, %v1206
    %s1208 = sld [smem:[#allocation7 + $0x3c]]
    %v1209 = vstv %s1208
    %v1210 = vmul.f32 %v1209, %v1199
    %v1211 = vadd.f32 %v1194, %v1210
    %s1212 = sld [smem:[#allocation7 + $0x54]]
    %v1213 = vstv %s1212
    %v1214 = vmul.f32 %v1213, %v1199
    %v1215 = vadd.f32 %v1198, %v1214
    %v1216 = vld [vmem:[%s82 + $0xf] sm:$0xff]
    %s1217 = sld [smem:[#allocation7 + $0xd]]
    %v1218 = vstv %s1217
    %v1219 = vmul.f32 %v1218, %v1216
    %v1220 = vadd.f32 %v1203, %v1219
    %s1221 = sld [smem:[#allocation7 + $0x25]]
    %v1222 = vstv %s1221
    %v1223 = vmul.f32 %v1222, %v1216
    %v1224 = vadd.f32 %v1207, %v1223
    %s1225 = sld [smem:[#allocation7 + $0x3d]]
    %v1226 = vstv %s1225
    %v1227 = vmul.f32 %v1226, %v1216
    %v1228 = vadd.f32 %v1211, %v1227
    %s1229 = sld [smem:[#allocation7 + $0x55]]
    %v1230 = vstv %s1229
    %v1231 = vmul.f32 %v1230, %v1216
    %v1232 = vadd.f32 %v1215, %v1231
    %v1233 = vld [vmem:[%s82 + $0x10] sm:$0xff]
    %s1234 = sld [smem:[#allocation7 + $0xe]]
    %v1235 = vstv %s1234
    %v1236 = vmul.f32 %v1235, %v1233
    %v1237 = vadd.f32 %v1220, %v1236
    %s1238 = sld [smem:[#allocation7 + $0x26]]
    %v1239 = vstv %s1238
    %v1240 = vmul.f32 %v1239, %v1233
    %v1241 = vadd.f32 %v1224, %v1240
    %s1242 = sld [smem:[#allocation7 + $0x3e]]
    %v1243 = vstv %s1242
    %v1244 = vmul.f32 %v1243, %v1233
    %v1245 = vadd.f32 %v1228, %v1244
    %s1246 = sld [smem:[#allocation7 + $0x56]]
    %v1247 = vstv %s1246
    %v1248 = vmul.f32 %v1247, %v1233
    %v1249 = vadd.f32 %v1232, %v1248
    %v1250 = vld [vmem:[%s832 + $0xe] sm:$0xff]
    %s1251 = sld [smem:[#allocation7 + $0xf]]
    %v1252 = vstv %s1251
    %v1253 = vmul.f32 %v1252, %v1250
    %v1254 = vadd.f32 %v1237, %v1253
    %s1255 = sld [smem:[#allocation7 + $0x27]]
    %v1256 = vstv %s1255
    %v1257 = vmul.f32 %v1256, %v1250
    %v1258 = vadd.f32 %v1241, %v1257
    %s1259 = sld [smem:[#allocation7 + $0x3f]]
    %v1260 = vstv %s1259
    %v1261 = vmul.f32 %v1260, %v1250
    %v1262 = vadd.f32 %v1245, %v1261
    %s1263 = sld [smem:[#allocation7 + $0x57]]
    %v1264 = vstv %s1263
    %v1265 = vmul.f32 %v1264, %v1250
    %v1266 = vadd.f32 %v1249, %v1265
    %v1267 = vld [vmem:[%s832 + $0xf] sm:$0xff]
    %s1268 = sld [smem:[#allocation7 + $0x10]]
    %v1269 = vstv %s1268
    %v1270 = vmul.f32 %v1269, %v1267
    %v1271 = vadd.f32 %v1254, %v1270
    %s1272 = sld [smem:[#allocation7 + $0x28]]
    %v1273 = vstv %s1272
    %v1274 = vmul.f32 %v1273, %v1267
    %v1275 = vadd.f32 %v1258, %v1274
    %s1276 = sld [smem:[#allocation7 + $0x40]]
    %v1277 = vstv %s1276
    %v1278 = vmul.f32 %v1277, %v1267
    %v1279 = vadd.f32 %v1262, %v1278
    %s1280 = sld [smem:[#allocation7 + $0x58]]
    %v1281 = vstv %s1280
    %v1282 = vmul.f32 %v1281, %v1267
    %v1283 = vadd.f32 %v1266, %v1282
    %v1284 = vld [vmem:[%s832 + $0x10] sm:$0xff]
    %s1285 = sld [smem:[#allocation7 + $0x11]]
    %v1286 = vstv %s1285
    %v1287 = vmul.f32 %v1286, %v1284
    %v1288 = vadd.f32 %v1271, %v1287
    %s1289 = sld [smem:[#allocation7 + $0x29]]
    %v1290 = vstv %s1289
    %v1291 = vmul.f32 %v1290, %v1284
    %v1292 = vadd.f32 %v1275, %v1291
    %s1293 = sld [smem:[#allocation7 + $0x41]]
    %v1294 = vstv %s1293
    %v1295 = vmul.f32 %v1294, %v1284
    %v1296 = vadd.f32 %v1279, %v1295
    %s1297 = sld [smem:[#allocation7 + $0x59]]
    %v1298 = vstv %s1297
    %v1299 = vmul.f32 %v1298, %v1284
    %v1300 = vadd.f32 %v1283, %v1299
    %v1301 = vld [vmem:[%s884 + $0xe] sm:$0xff]
    %s1302 = sld [smem:[#allocation7 + $0x12]]
    %v1303 = vstv %s1302
    %v1304 = vmul.f32 %v1303, %v1301
    %v1305 = vadd.f32 %v1288, %v1304
    %s1306 = sld [smem:[#allocation7 + $0x2a]]
    %v1307 = vstv %s1306
    %v1308 = vmul.f32 %v1307, %v1301
    %v1309 = vadd.f32 %v1292, %v1308
    %s1310 = sld [smem:[#allocation7 + $0x42]]
    %v1311 = vstv %s1310
    %v1312 = vmul.f32 %v1311, %v1301
    %v1313 = vadd.f32 %v1296, %v1312
    %s1314 = sld [smem:[#allocation7 + $0x5a]]
    %v1315 = vstv %s1314
    %v1316 = vmul.f32 %v1315, %v1301
    %v1317 = vadd.f32 %v1300, %v1316
    %v1318 = vld [vmem:[%s884 + $0xf] sm:$0xff]
    %s1319 = sld [smem:[#allocation7 + $0x13]]
    %v1320 = vstv %s1319
    %v1321 = vmul.f32 %v1320, %v1318
    %v1322 = vadd.f32 %v1305, %v1321
    %s1323 = sld [smem:[#allocation7 + $0x2b]]
    %v1324 = vstv %s1323
    %v1325 = vmul.f32 %v1324, %v1318
    %v1326 = vadd.f32 %v1309, %v1325
    %s1327 = sld [smem:[#allocation7 + $0x43]]
    %v1328 = vstv %s1327
    %v1329 = vmul.f32 %v1328, %v1318
    %v1330 = vadd.f32 %v1313, %v1329
    %s1331 = sld [smem:[#allocation7 + $0x5b]]
    %v1332 = vstv %s1331
    %v1333 = vmul.f32 %v1332, %v1318
    %v1334 = vadd.f32 %v1317, %v1333
    %v1335 = vld [vmem:[%s884 + $0x10] sm:$0xff]
    %s1336 = sld [smem:[#allocation7 + $0x14]]
    %v1337 = vstv %s1336
    %v1338 = vmul.f32 %v1337, %v1335
    %v1339 = vadd.f32 %v1322, %v1338
    %s1340 = sld [smem:[#allocation7 + $0x2c]]
    %v1341 = vstv %s1340
    %v1342 = vmul.f32 %v1341, %v1335
    %v1343 = vadd.f32 %v1326, %v1342
    %s1344 = sld [smem:[#allocation7 + $0x44]]
    %v1345 = vstv %s1344
    %v1346 = vmul.f32 %v1345, %v1335
    %v1347 = vadd.f32 %v1330, %v1346
    %s1348 = sld [smem:[#allocation7 + $0x5c]]
    %v1349 = vstv %s1348
    %v1350 = vmul.f32 %v1349, %v1335
    %v1351 = vadd.f32 %v1334, %v1350
    %v1352 = vld [vmem:[%s936 + $0xe] sm:$0xff]
    %s1353 = sld [smem:[#allocation7 + $0x15]]
    %v1354 = vstv %s1353
    %v1355 = vmul.f32 %v1354, %v1352
    %v1356 = vadd.f32 %v1339, %v1355
    %s1357 = sld [smem:[#allocation7 + $0x2d]]
    %v1358 = vstv %s1357
    %v1359 = vmul.f32 %v1358, %v1352
    %v1360 = vadd.f32 %v1343, %v1359
    %s1361 = sld [smem:[#allocation7 + $0x45]]
    %v1362 = vstv %s1361
    %v1363 = vmul.f32 %v1362, %v1352
    %v1364 = vadd.f32 %v1347, %v1363
    %s1365 = sld [smem:[#allocation7 + $0x5d]]
    %v1366 = vstv %s1365
    %v1367 = vmul.f32 %v1366, %v1352
    %v1368 = vadd.f32 %v1351, %v1367
    %v1369 = vld [vmem:[%s936 + $0xf] sm:$0xff]
    %s1370 = sld [smem:[#allocation7 + $0x16]]
    %v1371 = vstv %s1370
    %v1372 = vmul.f32 %v1371, %v1369
    %v1373 = vadd.f32 %v1356, %v1372
    %s1374 = sld [smem:[#allocation7 + $0x2e]]
    %v1375 = vstv %s1374
    %v1376 = vmul.f32 %v1375, %v1369
    %v1377 = vadd.f32 %v1360, %v1376
    %s1378 = sld [smem:[#allocation7 + $0x46]]
    %v1379 = vstv %s1378
    %v1380 = vmul.f32 %v1379, %v1369
    %v1381 = vadd.f32 %v1364, %v1380
    %s1382 = sld [smem:[#allocation7 + $0x5e]]
    %v1383 = vstv %s1382
    %v1384 = vmul.f32 %v1383, %v1369
    %v1385 = vadd.f32 %v1368, %v1384
    %v1386 = vld [vmem:[%s936 + $0x10] sm:$0xff]
    %s1387 = sld [smem:[#allocation7 + $0x17]]
    %v1388 = vstv %s1387
    %v1389 = vmul.f32 %v1388, %v1386
    %v1390 = vadd.f32 %v1373, %v1389
    %s1391 = sld [smem:[#allocation7 + $0x2f]]
    %v1392 = vstv %s1391
    %v1393 = vmul.f32 %v1392, %v1386
    %v1394 = vadd.f32 %v1377, %v1393
    %s1395 = sld [smem:[#allocation7 + $0x47]]
    %v1396 = vstv %s1395
    %v1397 = vmul.f32 %v1396, %v1386
    %v1398 = vadd.f32 %v1381, %v1397
    %s1399 = sld [smem:[#allocation7 + $0x5f]]
    %v1400 = vstv %s1399
    %v1401 = vmul.f32 %v1400, %v1386
    %v1402 = vadd.f32 %v1385, %v1401
    %1403 = vst [vmem:[%s5 + $0x8] sm:$0xff] %v1390
    %1404 = vst [vmem:[%s989 + $0x8] sm:$0xff] %v1394
    %1405 = vst [vmem:[%s991 + $0x8] sm:$0xff] %v1398
    %1406 = vst [vmem:[%s993 + $0x8] sm:$0xff] %v1402
    %v1407 = vld [vmem:[#allocation2 + $0x16] sm:$0x1]
    %s1408 = sld [smem:[#allocation7]]
    %v1409 = vstv %s1408
    %v1410 = vmul.f32 %v1409, %v1407
    %v1411 = vadd.f32 %v1410, 0.0
    %s1412 = sld [smem:[#allocation7 + $0x18]]
    %v1413 = vstv %s1412
    %v1414 = vmul.f32 %v1413, %v1407
    %v1415 = vadd.f32 %v1414, 0.0
    %s1416 = sld [smem:[#allocation7 + $0x30]]
    %v1417 = vstv %s1416
    %v1418 = vmul.f32 %v1417, %v1407
    %v1419 = vadd.f32 %v1418, 0.0
    %s1420 = sld [smem:[#allocation7 + $0x48]]
    %v1421 = vstv %s1420
    %v1422 = vmul.f32 %v1421, %v1407
    %v1423 = vadd.f32 %v1422, 0.0
    %v1424 = vld [vmem:[#allocation2 + $0x17] sm:$0x1]
    %s1425 = sld [smem:[#allocation7 + $0x1]]
    %v1426 = vstv %s1425
    %v1427 = vmul.f32 %v1426, %v1424
    %v1428 = vadd.f32 %v1411, %v1427
    %s1429 = sld [smem:[#allocation7 + $0x19]]
    %v1430 = vstv %s1429
    %v1431 = vmul.f32 %v1430, %v1424
    %v1432 = vadd.f32 %v1415, %v1431
    %s1433 = sld [smem:[#allocation7 + $0x31]]
    %v1434 = vstv %s1433
    %v1435 = vmul.f32 %v1434, %v1424
    %v1436 = vadd.f32 %v1419, %v1435
    %s1437 = sld [smem:[#allocation7 + $0x49]]
    %v1438 = vstv %s1437
    %v1439 = vmul.f32 %v1438, %v1424
    %v1440 = vadd.f32 %v1423, %v1439
    %v1441 = vld [vmem:[#allocation2 + $0x18] sm:$0x1]
    %s1442 = sld [smem:[#allocation7 + $0x2]]
    %v1443 = vstv %s1442
    %v1444 = vmul.f32 %v1443, %v1441
    %v1445 = vadd.f32 %v1428, %v1444
    %s1446 = sld [smem:[#allocation7 + $0x1a]]
    %v1447 = vstv %s1446
    %v1448 = vmul.f32 %v1447, %v1441
    %v1449 = vadd.f32 %v1432, %v1448
    %s1450 = sld [smem:[#allocation7 + $0x32]]
    %v1451 = vstv %s1450
    %v1452 = vmul.f32 %v1451, %v1441
    %v1453 = vadd.f32 %v1436, %v1452
    %s1454 = sld [smem:[#allocation7 + $0x4a]]
    %v1455 = vstv %s1454
    %v1456 = vmul.f32 %v1455, %v1441
    %v1457 = vadd.f32 %v1440, %v1456
    %v1458 = vld [vmem:[%s257 + $0x16] sm:$0x1]
    %s1459 = sld [smem:[#allocation7 + $0x3]]
    %v1460 = vstv %s1459
    %v1461 = vmul.f32 %v1460, %v1458
    %v1462 = vadd.f32 %v1445, %v1461
    %s1463 = sld [smem:[#allocation7 + $0x1b]]
    %v1464 = vstv %s1463
    %v1465 = vmul.f32 %v1464, %v1458
    %v1466 = vadd.f32 %v1449, %v1465
    %s1467 = sld [smem:[#allocation7 + $0x33]]
    %v1468 = vstv %s1467
    %v1469 = vmul.f32 %v1468, %v1458
    %v1470 = vadd.f32 %v1453, %v1469
    %s1471 = sld [smem:[#allocation7 + $0x4b]]
    %v1472 = vstv %s1471
    %v1473 = vmul.f32 %v1472, %v1458
    %v1474 = vadd.f32 %v1457, %v1473
    %v1475 = vld [vmem:[%s257 + $0x17] sm:$0x1]
    %s1476 = sld [smem:[#allocation7 + $0x4]]
    %v1477 = vstv %s1476
    %v1478 = vmul.f32 %v1477, %v1475
    %v1479 = vadd.f32 %v1462, %v1478
    %s1480 = sld [smem:[#allocation7 + $0x1c]]
    %v1481 = vstv %s1480
    %v1482 = vmul.f32 %v1481, %v1475
    %v1483 = vadd.f32 %v1466, %v1482
    %s1484 = sld [smem:[#allocation7 + $0x34]]
    %v1485 = vstv %s1484
    %v1486 = vmul.f32 %v1485, %v1475
    %v1487 = vadd.f32 %v1470, %v1486
    %s1488 = sld [smem:[#allocation7 + $0x4c]]
    %v1489 = vstv %s1488
    %v1490 = vmul.f32 %v1489, %v1475
    %v1491 = vadd.f32 %v1474, %v1490
    %v1492 = vld [vmem:[%s257 + $0x18] sm:$0x1]
    %s1493 = sld [smem:[#allocation7 + $0x5]]
    %v1494 = vstv %s1493
    %v1495 = vmul.f32 %v1494, %v1492
    %v1496 = vadd.f32 %v1479, %v1495
    %s1497 = sld [smem:[#allocation7 + $0x1d]]
    %v1498 = vstv %s1497
    %v1499 = vmul.f32 %v1498, %v1492
    %v1500 = vadd.f32 %v1483, %v1499
    %s1501 = sld [smem:[#allocation7 + $0x35]]
    %v1502 = vstv %s1501
    %v1503 = vmul.f32 %v1502, %v1492
    %v1504 = vadd.f32 %v1487, %v1503
    %s1505 = sld [smem:[#allocation7 + $0x4d]]
    %v1506 = vstv %s1505
    %v1507 = vmul.f32 %v1506, %v1492
    %v1508 = vadd.f32 %v1491, %v1507
    %v1509 = vld [vmem:[%s375 + $0x16] sm:$0x1]
    %s1510 = sld [smem:[#allocation7 + $0x6]]
    %v1511 = vstv %s1510
    %v1512 = vmul.f32 %v1511, %v1509
    %v1513 = vadd.f32 %v1496, %v1512
    %s1514 = sld [smem:[#allocation7 + $0x1e]]
    %v1515 = vstv %s1514
    %v1516 = vmul.f32 %v1515, %v1509
    %v1517 = vadd.f32 %v1500, %v1516
    %s1518 = sld [smem:[#allocation7 + $0x36]]
    %v1519 = vstv %s1518
    %v1520 = vmul.f32 %v1519, %v1509
    %v1521 = vadd.f32 %v1504, %v1520
    %s1522 = sld [smem:[#allocation7 + $0x4e]]
    %v1523 = vstv %s1522
    %v1524 = vmul.f32 %v1523, %v1509
    %v1525 = vadd.f32 %v1508, %v1524
    %v1526 = vld [vmem:[%s375 + $0x17] sm:$0x1]
    %s1527 = sld [smem:[#allocation7 + $0x7]]
    %v1528 = vstv %s1527
    %v1529 = vmul.f32 %v1528, %v1526
    %v1530 = vadd.f32 %v1513, %v1529
    %s1531 = sld [smem:[#allocation7 + $0x1f]]
    %v1532 = vstv %s1531
    %v1533 = vmul.f32 %v1532, %v1526
    %v1534 = vadd.f32 %v1517, %v1533
    %s1535 = sld [smem:[#allocation7 + $0x37]]
    %v1536 = vstv %s1535
    %v1537 = vmul.f32 %v1536, %v1526
    %v1538 = vadd.f32 %v1521, %v1537
    %s1539 = sld [smem:[#allocation7 + $0x4f]]
    %v1540 = vstv %s1539
    %v1541 = vmul.f32 %v1540, %v1526
    %v1542 = vadd.f32 %v1525, %v1541
    %v1543 = vld [vmem:[%s375 + $0x18] sm:$0x1]
    %s1544 = sld [smem:[#allocation7 + $0x8]]
    %v1545 = vstv %s1544
    %v1546 = vmul.f32 %v1545, %v1543
    %v1547 = vadd.f32 %v1530, %v1546
    %s1548 = sld [smem:[#allocation7 + $0x20]]
    %v1549 = vstv %s1548
    %v1550 = vmul.f32 %v1549, %v1543
    %v1551 = vadd.f32 %v1534, %v1550
    %s1552 = sld [smem:[#allocation7 + $0x38]]
    %v1553 = vstv %s1552
    %v1554 = vmul.f32 %v1553, %v1543
    %v1555 = vadd.f32 %v1538, %v1554
    %s1556 = sld [smem:[#allocation7 + $0x50]]
    %v1557 = vstv %s1556
    %v1558 = vmul.f32 %v1557, %v1543
    %v1559 = vadd.f32 %v1542, %v1558
    %v1560 = vld [vmem:[%s493 + $0x16] sm:$0x1]
    %s1561 = sld [smem:[#allocation7 + $0x9]]
    %v1562 = vstv %s1561
    %v1563 = vmul.f32 %v1562, %v1560
    %v1564 = vadd.f32 %v1547, %v1563
    %s1565 = sld [smem:[#allocation7 + $0x21]]
    %v1566 = vstv %s1565
    %v1567 = vmul.f32 %v1566, %v1560
    %v1568 = vadd.f32 %v1551, %v1567
    %s1569 = sld [smem:[#allocation7 + $0x39]]
    %v1570 = vstv %s1569
    %v1571 = vmul.f32 %v1570, %v1560
    %v1572 = vadd.f32 %v1555, %v1571
    %s1573 = sld [smem:[#allocation7 + $0x51]]
    %v1574 = vstv %s1573
    %v1575 = vmul.f32 %v1574, %v1560
    %v1576 = vadd.f32 %v1559, %v1575
    %v1577 = vld [vmem:[%s493 + $0x17] sm:$0x1]
    %s1578 = sld [smem:[#allocation7 + $0xa]]
    %v1579 = vstv %s1578
    %v1580 = vmul.f32 %v1579, %v1577
    %v1581 = vadd.f32 %v1564, %v1580
    %s1582 = sld [smem:[#allocation7 + $0x22]]
    %v1583 = vstv %s1582
    %v1584 = vmul.f32 %v1583, %v1577
    %v1585 = vadd.f32 %v1568, %v1584
    %s1586 = sld [smem:[#allocation7 + $0x3a]]
    %v1587 = vstv %s1586
    %v1588 = vmul.f32 %v1587, %v1577
    %v1589 = vadd.f32 %v1572, %v1588
    %s1590 = sld [smem:[#allocation7 + $0x52]]
    %v1591 = vstv %s1590
    %v1592 = vmul.f32 %v1591, %v1577
    %v1593 = vadd.f32 %v1576, %v1592
    %v1594 = vld [vmem:[%s493 + $0x18] sm:$0x1]
    %s1595 = sld [smem:[#allocation7 + $0xb]]
    %v1596 = vstv %s1595
    %v1597 = vmul.f32 %v1596, %v1594
    %v1598 = vadd.f32 %v1581, %v1597
    %s1599 = sld [smem:[#allocation7 + $0x23]]
    %v1600 = vstv %s1599
    %v1601 = vmul.f32 %v1600, %v1594
    %v1602 = vadd.f32 %v1585, %v1601
    %s1603 = sld [smem:[#allocation7 + $0x3b]]
    %v1604 = vstv %s1603
    %v1605 = vmul.f32 %v1604, %v1594
    %v1606 = vadd.f32 %v1589, %v1605
    %s1607 = sld [smem:[#allocation7 + $0x53]]
    %v1608 = vstv %s1607
    %v1609 = vmul.f32 %v1608, %v1594
    %v1610 = vadd.f32 %v1593, %v1609
    %v1611 = vld [vmem:[%s82 + $0x16] sm:$0x1]
    %s1612 = sld [smem:[#allocation7 + $0xc]]
    %v1613 = vstv %s1612
    %v1614 = vmul.f32 %v1613, %v1611
    %v1615 = vadd.f32 %v1598, %v1614
    %s1616 = sld [smem:[#allocation7 + $0x24]]
    %v1617 = vstv %s1616
    %v1618 = vmul.f32 %v1617, %v1611
    %v1619 = vadd.f32 %v1602, %v1618
    %s1620 = sld [smem:[#allocation7 + $0x3c]]
    %v1621 = vstv %s1620
    %v1622 = vmul.f32 %v1621, %v1611
    %v1623 = vadd.f32 %v1606, %v1622
    %s1624 = sld [smem:[#allocation7 + $0x54]]
    %v1625 = vstv %s1624
    %v1626 = vmul.f32 %v1625, %v1611
    %v1627 = vadd.f32 %v1610, %v1626
    %v1628 = vld [vmem:[%s82 + $0x17] sm:$0x1]
    %s1629 = sld [smem:[#allocation7 + $0xd]]
    %v1630 = vstv %s1629
    %v1631 = vmul.f32 %v1630, %v1628
    %v1632 = vadd.f32 %v1615, %v1631
    %s1633 = sld [smem:[#allocation7 + $0x25]]
    %v1634 = vstv %s1633
    %v1635 = vmul.f32 %v1634, %v1628
    %v1636 = vadd.f32 %v1619, %v1635
    %s1637 = sld [smem:[#allocation7 + $0x3d]]
    %v1638 = vstv %s1637
    %v1639 = vmul.f32 %v1638, %v1628
    %v1640 = vadd.f32 %v1623, %v1639
    %s1641 = sld [smem:[#allocation7 + $0x55]]
    %v1642 = vstv %s1641
    %v1643 = vmul.f32 %v1642, %v1628
    %v1644 = vadd.f32 %v1627, %v1643
    %v1645 = vld [vmem:[%s82 + $0x18] sm:$0x1]
    %s1646 = sld [smem:[#allocation7 + $0xe]]
    %v1647 = vstv %s1646
    %v1648 = vmul.f32 %v1647, %v1645
    %v1649 = vadd.f32 %v1632, %v1648
    %s1650 = sld [smem:[#allocation7 + $0x26]]
    %v1651 = vstv %s1650
    %v1652 = vmul.f32 %v1651, %v1645
    %v1653 = vadd.f32 %v1636, %v1652
    %s1654 = sld [smem:[#allocation7 + $0x3e]]
    %v1655 = vstv %s1654
    %v1656 = vmul.f32 %v1655, %v1645
    %v1657 = vadd.f32 %v1640, %v1656
    %s1658 = sld [smem:[#allocation7 + $0x56]]
    %v1659 = vstv %s1658
    %v1660 = vmul.f32 %v1659, %v1645
    %v1661 = vadd.f32 %v1644, %v1660
    %v1662 = vld [vmem:[%s832 + $0x16] sm:$0x1]
    %s1663 = sld [smem:[#allocation7 + $0xf]]
    %v1664 = vstv %s1663
    %v1665 = vmul.f32 %v1664, %v1662
    %v1666 = vadd.f32 %v1649, %v1665
    %s1667 = sld [smem:[#allocation7 + $0x27]]
    %v1668 = vstv %s1667
    %v1669 = vmul.f32 %v1668, %v1662
    %v1670 = vadd.f32 %v1653, %v1669
    %s1671 = sld [smem:[#allocation7 + $0x3f]]
    %v1672 = vstv %s1671
    %v1673 = vmul.f32 %v1672, %v1662
    %v1674 = vadd.f32 %v1657, %v1673
    %s1675 = sld [smem:[#allocation7 + $0x57]]
    %v1676 = vstv %s1675
    %v1677 = vmul.f32 %v1676, %v1662
    %v1678 = vadd.f32 %v1661, %v1677
    %v1679 = vld [vmem:[%s832 + $0x17] sm:$0x1]
    %s1680 = sld [smem:[#allocation7 + $0x10]]
    %v1681 = vstv %s1680
    %v1682 = vmul.f32 %v1681, %v1679
    %v1683 = vadd.f32 %v1666, %v1682
    %s1684 = sld [smem:[#allocation7 + $0x28]]
    %v1685 = vstv %s1684
    %v1686 = vmul.f32 %v1685, %v1679
    %v1687 = vadd.f32 %v1670, %v1686
    %s1688 = sld [smem:[#allocation7 + $0x40]]
    %v1689 = vstv %s1688
    %v1690 = vmul.f32 %v1689, %v1679
    %v1691 = vadd.f32 %v1674, %v1690
    %s1692 = sld [smem:[#allocation7 + $0x58]]
    %v1693 = vstv %s1692
    %v1694 = vmul.f32 %v1693, %v1679
    %v1695 = vadd.f32 %v1678, %v1694
    %v1696 = vld [vmem:[%s832 + $0x18] sm:$0x1]
    %s1697 = sld [smem:[#allocation7 + $0x11]]
    %v1698 = vstv %s1697
    %v1699 = vmul.f32 %v1698, %v1696
    %v1700 = vadd.f32 %v1683, %v1699
    %s1701 = sld [smem:[#allocation7 + $0x29]]
    %v1702 = vstv %s1701
    %v1703 = vmul.f32 %v1702, %v1696
    %v1704 = vadd.f32 %v1687, %v1703
    %s1705 = sld [smem:[#allocation7 + $0x41]]
    %v1706 = vstv %s1705
    %v1707 = vmul.f32 %v1706, %v1696
    %v1708 = vadd.f32 %v1691, %v1707
    %s1709 = sld [smem:[#allocation7 + $0x59]]
    %v1710 = vstv %s1709
    %v1711 = vmul.f32 %v1710, %v1696
    %v1712 = vadd.f32 %v1695, %v1711
    %v1713 = vld [vmem:[%s884 + $0x16] sm:$0x1]
    %s1714 = sld [smem:[#allocation7 + $0x12]]
    %v1715 = vstv %s1714
    %v1716 = vmul.f32 %v1715, %v1713
    %v1717 = vadd.f32 %v1700, %v1716
    %s1718 = sld [smem:[#allocation7 + $0x2a]]
    %v1719 = vstv %s1718
    %v1720 = vmul.f32 %v1719, %v1713
    %v1721 = vadd.f32 %v1704, %v1720
    %s1722 = sld [smem:[#allocation7 + $0x42]]
    %v1723 = vstv %s1722
    %v1724 = vmul.f32 %v1723, %v1713
    %v1725 = vadd.f32 %v1708, %v1724
    %s1726 = sld [smem:[#allocation7 + $0x5a]]
    %v1727 = vstv %s1726
    %v1728 = vmul.f32 %v1727, %v1713
    %v1729 = vadd.f32 %v1712, %v1728
    %v1730 = vld [vmem:[%s884 + $0x17] sm:$0x1]
    %s1731 = sld [smem:[#allocation7 + $0x13]]
    %v1732 = vstv %s1731
    %v1733 = vmul.f32 %v1732, %v1730
    %v1734 = vadd.f32 %v1717, %v1733
    %s1735 = sld [smem:[#allocation7 + $0x2b]]
    %v1736 = vstv %s1735
    %v1737 = vmul.f32 %v1736, %v1730
    %v1738 = vadd.f32 %v1721, %v1737
    %s1739 = sld [smem:[#allocation7 + $0x43]]
    %v1740 = vstv %s1739
    %v1741 = vmul.f32 %v1740, %v1730
    %v1742 = vadd.f32 %v1725, %v1741
    %s1743 = sld [smem:[#allocation7 + $0x5b]]
    %v1744 = vstv %s1743
    %v1745 = vmul.f32 %v1744, %v1730
    %v1746 = vadd.f32 %v1729, %v1745
    %v1747 = vld [vmem:[%s884 + $0x18] sm:$0x1]
    %s1748 = sld [smem:[#allocation7 + $0x14]]
    %v1749 = vstv %s1748
    %v1750 = vmul.f32 %v1749, %v1747
    %v1751 = vadd.f32 %v1734, %v1750
    %s1752 = sld [smem:[#allocation7 + $0x2c]]
    %v1753 = vstv %s1752
    %v1754 = vmul.f32 %v1753, %v1747
    %v1755 = vadd.f32 %v1738, %v1754
    %s1756 = sld [smem:[#allocation7 + $0x44]]
    %v1757 = vstv %s1756
    %v1758 = vmul.f32 %v1757, %v1747
    %v1759 = vadd.f32 %v1742, %v1758
    %s1760 = sld [smem:[#allocation7 + $0x5c]]
    %v1761 = vstv %s1760
    %v1762 = vmul.f32 %v1761, %v1747
    %v1763 = vadd.f32 %v1746, %v1762
    %v1764 = vld [vmem:[%s936 + $0x16] sm:$0x1]
    %s1765 = sld [smem:[#allocation7 + $0x15]]
    %v1766 = vstv %s1765
    %v1767 = vmul.f32 %v1766, %v1764
    %v1768 = vadd.f32 %v1751, %v1767
    %s1769 = sld [smem:[#allocation7 + $0x2d]]
    %v1770 = vstv %s1769
    %v1771 = vmul.f32 %v1770, %v1764
    %v1772 = vadd.f32 %v1755, %v1771
    %s1773 = sld [smem:[#allocation7 + $0x45]]
    %v1774 = vstv %s1773
    %v1775 = vmul.f32 %v1774, %v1764
    %v1776 = vadd.f32 %v1759, %v1775
    %s1777 = sld [smem:[#allocation7 + $0x5d]]
    %v1778 = vstv %s1777
    %v1779 = vmul.f32 %v1778, %v1764
    %v1780 = vadd.f32 %v1763, %v1779
    %v1781 = vld [vmem:[%s936 + $0x17] sm:$0x1]
    %s1782 = sld [smem:[#allocation7 + $0x16]]
    %v1783 = vstv %s1782
    %v1784 = vmul.f32 %v1783, %v1781
    %v1785 = vadd.f32 %v1768, %v1784
    %s1786 = sld [smem:[#allocation7 + $0x2e]]
    %v1787 = vstv %s1786
    %v1788 = vmul.f32 %v1787, %v1781
    %v1789 = vadd.f32 %v1772, %v1788
    %s1790 = sld [smem:[#allocation7 + $0x46]]
    %v1791 = vstv %s1790
    %v1792 = vmul.f32 %v1791, %v1781
    %v1793 = vadd.f32 %v1776, %v1792
    %s1794 = sld [smem:[#allocation7 + $0x5e]]
    %v1795 = vstv %s1794
    %v1796 = vmul.f32 %v1795, %v1781
    %v1797 = vadd.f32 %v1780, %v1796
    %v1798 = vld [vmem:[%s936 + $0x18] sm:$0x1]
    %s1799 = sld [smem:[#allocation7 + $0x17]]
    %v1800 = vstv %s1799
    %v1801 = vmul.f32 %v1800, %v1798
    %v1802 = vadd.f32 %v1785, %v1801
    %s1803 = sld [smem:[#allocation7 + $0x2f]]
    %v1804 = vstv %s1803
    %v1805 = vmul.f32 %v1804, %v1798
    %v1806 = vadd.f32 %v1789, %v1805
    %s1807 = sld [smem:[#allocation7 + $0x47]]
    %v1808 = vstv %s1807
    %v1809 = vmul.f32 %v1808, %v1798
    %v1810 = vadd.f32 %v1793, %v1809
    %s1811 = sld [smem:[#allocation7 + $0x5f]]
    %v1812 = vstv %s1811
    %v1813 = vmul.f32 %v1812, %v1798
    %v1814 = vadd.f32 %v1797, %v1813
    %1815 = vst [vmem:[%s5 + $0x10] sm:$0x1] %v1802
    %1816 = vst [vmem:[%s989 + $0x10] sm:$0x1] %v1806
    %1817 = vst [vmem:[%s991 + $0x10] sm:$0x1] %v1810
    %1818 = vst [vmem:[%s993 + $0x10] sm:$0x1] %v1814
    %v1819 = vlaneseq
    %v1820 = vand.u32 %v1819, 127
    %s1821 = smul.u32 0, 128
    %v1822 = vstv %s1821
    %v1823 = vadd.s32 %v1820, %v1822
    %vm1824 = vcmp.lt.s32.totalorder %v1823, 8
    %v1825 = vsel %vm1824, 1, 0
    %v1826 = vcvt.s32.f32 %v1825
    %v1827 = vld [vmem:[%s5] sm:$0xff]
    %v1828 = vld [vmem:[%s5 + $0x8] sm:$0xff]
    %v1829 = vld [vmem:[%s5 + $0x10] sm:$0x1]
    %v1830 = vmul.f32 %v1827, %v1826
    %v1831 = vmul.f32 %v1828, %v1826
    %v1832 = vmul.f32 %v1829, %v1826
    %v1833 = vadd.f32 %v1830, %v1831
    %vm1834 = vcmask 1040384
    %v1835 = vsel %vm1834, %v1832, 0.0
    %v1836 = vadd.f32 %v1833, %v1835
    %v1837 = vrot.slane %v1836, 4
    %v1838 = vadd.f32 %v1836, %v1837
    %v1839 = vrot.slane %v1838, 2
    %v1840 = vadd.f32 %v1838, %v1839
    %v1841 = vrot.slane %v1840, 1
    %v1842 = vadd.f32 %v1840, %v1841
    %v1843 = vmul.f32 %v1830, %v1830
    %v1844 = vmul.f32 %v1831, %v1831
    %v1845 = vmul.f32 %v1832, %v1832
    %v1846 = vadd.f32 %v1843, %v1844
    %v1847 = vsel %vm1834, %v1845, 0.0
    %v1848 = vadd.f32 %v1846, %v1847
    %v1849 = vrot.slane %v1848, 4
    %v1850 = vadd.f32 %v1848, %v1849
    %v1851 = vrot.slane %v1850, 2
    %v1852 = vadd.f32 %v1850, %v1851
    %v1853 = vrot.slane %v1852, 1
    %v1854 = vadd.f32 %v1852, %v1853
    %v1855 = vld [vmem:[%s989] sm:$0xff]
    %v1856 = vld [vmem:[%s989 + $0x8] sm:$0xff]
    %v1857 = vld [vmem:[%s989 + $0x10] sm:$0x1]
    %v1858 = vmul.f32 %v1855, %v1826
    %v1859 = vmul.f32 %v1856, %v1826
    %v1860 = vmul.f32 %v1857, %v1826
    %v1861 = vadd.f32 %v1858, %v1859
    %v1862 = vsel %vm1834, %v1860, 0.0
    %v1863 = vadd.f32 %v1861, %v1862
    %v1864 = vrot.slane %v1863, 4
    %v1865 = vadd.f32 %v1863, %v1864
    %v1866 = vrot.slane %v1865, 2
    %v1867 = vadd.f32 %v1865, %v1866
    %v1868 = vrot.slane %v1867, 1
    %v1869 = vadd.f32 %v1867, %v1868
    %v1870 = vmul.f32 %v1858, %v1858
    %v1871 = vmul.f32 %v1859, %v1859
    %v1872 = vmul.f32 %v1860, %v1860
    %v1873 = vadd.f32 %v1870, %v1871
    %v1874 = vsel %vm1834, %v1872, 0.0
    %v1875 = vadd.f32 %v1873, %v1874
    %v1876 = vrot.slane %v1875, 4
    %v1877 = vadd.f32 %v1875, %v1876
    %v1878 = vrot.slane %v1877, 2
    %v1879 = vadd.f32 %v1877, %v1878
    %v1880 = vrot.slane %v1879, 1
    %v1881 = vadd.f32 %v1879, %v1880
    %v1882 = vld [vmem:[%s991] sm:$0xff]
    %v1883 = vld [vmem:[%s991 + $0x8] sm:$0xff]
    %v1884 = vld [vmem:[%s991 + $0x10] sm:$0x1]
    %v1885 = vmul.f32 %v1882, %v1826
    %v1886 = vmul.f32 %v1883, %v1826
    %v1887 = vmul.f32 %v1884, %v1826
    %v1888 = vadd.f32 %v1885, %v1886
    %v1889 = vsel %vm1834, %v1887, 0.0
    %v1890 = vadd.f32 %v1888, %v1889
    %v1891 = vrot.slane %v1890, 4
    %v1892 = vadd.f32 %v1890, %v1891
    %v1893 = vrot.slane %v1892, 2
    %v1894 = vadd.f32 %v1892, %v1893
    %v1895 = vrot.slane %v1894, 1
    %v1896 = vadd.f32 %v1894, %v1895
    %v1897 = vmul.f32 %v1885, %v1885
    %v1898 = vmul.f32 %v1886, %v1886
    %v1899 = vmul.f32 %v1887, %v1887
    %v1900 = vadd.f32 %v1897, %v1898
    %v1901 = vsel %vm1834, %v1899, 0.0
    %v1902 = vadd.f32 %v1900, %v1901
    %v1903 = vrot.slane %v1902, 4
    %v1904 = vadd.f32 %v1902, %v1903
    %v1905 = vrot.slane %v1904, 2
    %v1906 = vadd.f32 %v1904, %v1905
    %v1907 = vrot.slane %v1906, 1
    %v1908 = vadd.f32 %v1906, %v1907
    %v1909 = vld [vmem:[%s993] sm:$0xff]
    %v1910 = vld [vmem:[%s993 + $0x8] sm:$0xff]
    %v1911 = vld [vmem:[%s993 + $0x10] sm:$0x1]
    %v1912 = vmul.f32 %v1909, %v1826
    %v1913 = vmul.f32 %v1910, %v1826
    %v1914 = vmul.f32 %v1911, %v1826
    %v1915 = vadd.f32 %v1912, %v1913
    %v1916 = vsel %vm1834, %v1914, 0.0
    %v1917 = vadd.f32 %v1915, %v1916
    %v1918 = vrot.slane %v1917, 4
    %v1919 = vadd.f32 %v1917, %v1918
    %v1920 = vrot.slane %v1919, 2
    %v1921 = vadd.f32 %v1919, %v1920
    %v1922 = vrot.slane %v1921, 1
    %v1923 = vadd.f32 %v1921, %v1922
    %v1924 = vmul.f32 %v1912, %v1912
    %v1925 = vmul.f32 %v1913, %v1913
    %v1926 = vmul.f32 %v1914, %v1914
    %v1927 = vadd.f32 %v1924, %v1925
    %v1928 = vsel %vm1834, %v1926, 0.0
    %v1929 = vadd.f32 %v1927, %v1928
    %v1930 = vrot.slane %v1929, 4
    %v1931 = vadd.f32 %v1929, %v1930
    %v1932 = vrot.slane %v1931, 2
    %v1933 = vadd.f32 %v1931, %v1932
    %v1934 = vrot.slane %v1933, 1
    %v1935 = vadd.f32 %v1933, %v1934
    %v1936 = vsel %vm1834, %v1842, %v1869
    %vm1937 = vcmask 1041408
    %v1938 = vsel %vm1937, %v1936, %v1896
    %vm1939 = vcmask 1042432
    %v1940 = vsel %vm1939, %v1938, %v1923
    %vm1941 = vcmask 1043456
    %v1942 = vsel %vm1941, %v1940, %v1854
    %vm1943 = vcmask 1044480
    %v1944 = vsel %vm1943, %v1942, %v1881
    %vm1945 = vcmask 1045504
    %v1946 = vsel %vm1945, %v1944, %v1908
    %vm1947 = vcmask 1046528
    %v1948 = vsel %vm1947, %v1946, %v1935
    %1949 = vst [vmem:[%s6] sm:$0xff] %v1948
    // Predicated region
    $region34: #{decoder_block_forward.2} parent=1 // pred_check
      _
    $region35: #{decoder_block_forward.2} parent=1 // pred_check_branch
      %1951 = sbr.rel (0) target = $region37
    $region36: #{decoder_block_forward.2} parent=1 // pred_region
      _
    $region37: #{decoder_block_forward.2} parent=1 // pred_fallthru
      _
    // Predicated region
    $region38: #{decoder_block_forward.2} parent=1 // pred_check
      _
    $region39: #{decoder_block_forward.2} parent=1 // pred_check_branch
      %1953 = sbr.rel (0) target = $region41
    $region40: #{decoder_block_forward.2} parent=1 // pred_region
      _
    $region41: #{decoder_block_forward.2} parent=1 // pred_fallthru
      _
    // Predicated region
    $region42: #{decoder_block_forward.2} parent=1 // pred_check
      _
    $region43: #{decoder_block_forward.2} parent=1 // pred_check_branch
      %1955 = sbr.rel (0) target = $region45
    $region44: #{decoder_block_forward.2} parent=1 // pred_region
      _
    $region45: #{decoder_block_forward.2} parent=1 // pred_fallthru
      _
    // Predicated region
    $region46: #{decoder_block_forward.2} parent=1 // pred_check
      _
    $region47: #{decoder_block_forward.2} parent=1 // pred_check_branch
      %1957 = sbr.rel (0) target = $region49
    $region48: #{decoder_block_forward.2} parent=1 // pred_region
      _
    $region49: #{decoder_block_forward.2} parent=1 // pred_fallthru
      _
    %1958 = vsyncpa [#allocation4], 1
    %1959 = vsyncpa [#allocation6], 1

</llo_original>
